<compile_context>
chip_gen: v6e
topology: v6e:2x2x1
jax: 0.10.0
libtpu: 0.0.40
codegen_flags: <defaults>
</compile_context>

<pallas_src>
import functools

import jax
import jax.numpy as jnp
from jax.experimental import pallas as pl
from jax.experimental.pallas import tpu as pltpu

LANE = 128
NEG_BIG = -1e30


# --------------------------------------------------------------------------
# Pallas kernel: forward for a block of GB graphs per grid step.
# --------------------------------------------------------------------------
def gnn_kernel(a_ref, x_ref, pool_ref, w_ref, b_ref, out_ref, *,
               num_layers, n_nodes, chunk):
    bf16 = jnp.bfloat16
    gb = x_ref.shape[0]              # graphs in this block
    f = x_ref.shape[-1]              # padded feature/lane width (= 128)
    n_chunks = a_ref.shape[0]        # graph-chunks in this block
    rows = chunk * n_nodes           # rows per block-diag adjacency (= 256)

    a = a_ref[...]                                   # (n_chunks, rows, rows) bf16
    h = x_ref[...].reshape(gb * n_nodes, f)          # (gb*n, f) bf16 node features

    # ---- 4 x (GCNConv + ReLU), statically unrolled -----------------------
    for layer in range(num_layers):
        w = w_ref[layer]                             # (f, f) bf16
        b = b_ref[pl.ds(layer, 1), :]                # (1, f) f32
        # H @ W as one flat (gb*n, f) x (f, f) MXU matmul, f32 accumulate.
        hw = jnp.dot(h.astype(bf16), w, preferred_element_type=jnp.float32)
        # A_hat @ (H W): block-diagonal adjacencies, 256-row MXU matmuls.
        hw_c = hw.reshape(n_chunks, rows, f).astype(bf16)
        ah = jnp.einsum('cij,cjf->cif', a, hw_c,
                        preferred_element_type=jnp.float32)
        # bias + ReLU in f32 (VPU).
        h = jnp.maximum(ah.reshape(gb * n_nodes, f) + b, 0.0)

    # ---- global_mean_pool as an MXU matmul with a precomputed pool matrix --
    pooled = jnp.dot(pool_ref[...], h.astype(bf16),
                     preferred_element_type=jnp.float32)           # (gb, f)

    # ---- final Linear (padded bias lanes carry -1e30 -> softmax mask) ------
    wf = w_ref[num_layers]                           # (f, f) bf16
    b_fin = b_ref[pl.ds(num_layers, 1), :]           # (1, f) f32
    logits = jnp.dot(pooled.astype(bf16), wf,
                     preferred_element_type=jnp.float32) + b_fin   # (gb, f)

    # ---- log_softmax (padded lanes contribute exp(~-1e30) == 0) -----------
    m = jnp.max(logits, axis=-1, keepdims=True)
    z = logits - m
    lse = jnp.log(jnp.sum(jnp.exp(z), axis=-1, keepdims=True))
    out_ref[...] = z - lse                           # (gb, f) lane-dense


def mygnn_forward(a_blk_bf16, x_pad_bf16, pool_bf16, w_stack_bf16, b_stack, *,
                  num_classes, n_nodes, chunk, graphs_per_block):
    """a_blk_bf16: (B/chunk, chunk*N, chunk*N) bf16 block-diag adjacencies;
       x_pad_bf16: (B, N, 128) bf16; pool_bf16: (GB, GB*N) bf16;
       w_stack_bf16: (L+1, 128, 128) bf16; b_stack: (8, 128) f32."""
    B = x_pad_bf16.shape[0]
    F = x_pad_bf16.shape[-1]
    L = w_stack_bf16.shape[0] - 1
    GB = graphs_per_block
    N = n_nodes
    assert B % GB == 0 and GB % chunk == 0
    rows = chunk * N

    kernel = functools.partial(gnn_kernel, num_layers=L,
                               n_nodes=N, chunk=chunk)
    out = pl.pallas_call(
        kernel,
        out_shape=jax.ShapeDtypeStruct((B, F), jnp.float32),
        grid=(B // GB,),
        in_specs=[
            pl.BlockSpec((GB // chunk, rows, rows), lambda g: (g, 0, 0)),  # A blk-diag
            pl.BlockSpec((GB, N, F), lambda g: (g, 0, 0)),                 # X slab
            pl.BlockSpec(pool_bf16.shape, lambda g: (0, 0)),               # pool (resident)
            pl.BlockSpec((L + 1, F, F), lambda g: (0, 0, 0)),              # weights (resident)
            pl.BlockSpec(b_stack.shape, lambda g: (0, 0)),                 # biases (resident)
        ],
        out_specs=pl.BlockSpec((GB, F), lambda g: (g, 0)),                 # lane-dense out
        compiler_params=pltpu.CompilerParams(
            dimension_semantics=("parallel",),       # 2 balanced steps -> 2 TCs on v7x
            vmem_limit_bytes=32 * 1024 * 1024,
        ),
    )(a_blk_bf16, x_pad_bf16, pool_bf16, w_stack_bf16, b_stack)
    return out[:, :num_classes]


# --------------------------------------------------------------------------
# Glue: adjacency normalization / block-diag packing, params, pool, reference.
# --------------------------------------------------------------------------
def normalize_adjacency(adj):
    """GCN default normalization, batched: A_hat = D^-1/2 (A + I) D^-1/2."""
    n = adj.shape[-1]
    eye = jnp.eye(n, dtype=adj.dtype)
    a = adj * (1.0 - eye) + eye                      # zero diag, add self loops
    deg = jnp.sum(a, axis=-1)
    dis = jnp.where(deg > 0, 1.0 / jnp.sqrt(deg), 0.0)
    return dis[..., :, None] * a * dis[..., None, :]


def block_diag_adjacency(a_hat, chunk):
    """(B, N, N) -> (B/chunk, chunk*N, chunk*N) block-diagonal adjacencies."""
    B, N, _ = a_hat.shape
    nc = B // chunk
    a = a_hat.reshape(nc, chunk, N, N)
    eye = jnp.eye(chunk, dtype=a_hat.dtype)
    blk = jnp.einsum('ij,cirs->cirjs', eye, a)       # [c, i, r, j, s]
    return blk.reshape(nc, chunk * N, chunk * N)


def make_pool_matrix(gb, n, dtype=jnp.bfloat16):
    """pool[g, g*n:(g+1)*n] = 1/n  — constant per graph-block."""
    row = jnp.arange(gb)[:, None]
    col = jnp.arange(gb * n)[None, :]
    return jnp.where(col // n == row, 1.0 / n, 0.0).astype(dtype)


def init_params(key, num_features, layer_sizes, num_classes):
    sizes = [num_features] + list(layer_sizes) + [num_classes]
    params = []
    for i in range(len(sizes) - 1):
        key, kw, kb = jax.random.split(key, 3)
        fan_in, fan_out = sizes[i], sizes[i + 1]
        scale = jnp.sqrt(6.0 / (fan_in + fan_out))
        w = jax.random.uniform(kw, (fan_in, fan_out), jnp.float32, -scale, scale)
        b = 0.1 * jax.random.normal(kb, (fan_out,), jnp.float32)
        params.append((w, b))
    return params


def pack_params(params, num_classes, lane=LANE):
    """Pack L+1 (w, b) pairs into padded slabs.  Padded lanes of the final
    bias get -1e30 so the kernel needs no explicit log_softmax class mask."""
    n_layers = len(params)
    rows = ((n_layers + 7) // 8) * 8
    w_stack = jnp.zeros((n_layers, lane, lane), jnp.float32)
    b_stack = jnp.zeros((rows, lane), jnp.float32)
    for i, (w, b) in enumerate(params):
        fi, fo = w.shape
        w_stack = w_stack.at[i, :fi, :fo].set(w)
        b_stack = b_stack.at[i, :fo].set(b)
    # mask padded class lanes of the final layer via the bias
    b_stack = b_stack.at[n_layers - 1, num_classes:].set(NEG_BIG)
    return w_stack, b_stack


def reference_forward(a_hat, x, params):
    """Pure-JAX mirror of the kernel math (bf16 MXU operands, f32 accumulate)."""
    bf16, f32 = jnp.bfloat16, jnp.float32
    a = a_hat.astype(bf16)
    h = x
    for (w, b) in params[:-1]:
        hw = jnp.einsum('gnf,fo->gno', h.astype(bf16), w.astype(bf16),
                        preferred_element_type=f32)
        ah = jnp.einsum('gij,gjf->gif', a, hw.astype(bf16),
                        preferred_element_type=f32)
        h = jnp.maximum(ah + b[None, None, :], 0.0)
    n = h.shape[1]
    pool = jnp.full((n,), 1.0 / n, bf16)
    pooled = jnp.einsum('n,gnf->gf', pool, h.astype(bf16),
                        preferred_element_type=f32)
    wf, b_fin = params[-1]
    logits = jnp.einsum('gf,fc->gc', pooled.astype(bf16), wf.astype(bf16),
                        preferred_element_type=f32) + b_fin[None, :]
    return jax.nn.log_softmax(logits, axis=-1)


if __name__ == "__main__":
    key = jax.random.PRNGKey(0)

    B = 64                     # graphs in the batch
    GB = 32                    # graphs per grid step  (2 steps -> 2 TCs on v7x)
    CHUNK = 8                  # graphs per block-diag A (8*32 = 256 MXU rows)
    N = 32                     # nodes per graph (fixed)
    F0 = 8                     # raw node features
    layer_sizes = [16, 16, 16, 16]
    C = 4                      # classes

    # Deterministic batch of random symmetric graphs.
    key, ka, kx = jax.random.split(key, 3)
    raw = jax.random.bernoulli(ka, 0.15, (B, N, N))
    adj = jnp.logical_or(raw, jnp.swapaxes(raw, 1, 2)).astype(jnp.float32)
    # TODO(synk): PyG's scatter-add GCNConv weights duplicate edges; densifying
    # to a 0/1 adjacency collapses multigraph duplicates.
    a_hat = normalize_adjacency(adj)                       # (B, N, N) f32

    x = jax.random.normal(kx, (B, N, F0), jnp.float32)     # node features

    params = init_params(key, F0, layer_sizes, C)
    w_stack, b_stack = pack_params(params, num_classes=C)  # (5,128,128), (8,128)

    # Pack / pad inputs: bf16 MXU operands, block-diag A, constant pool matrix.
    x_pad = jnp.zeros((B, N, LANE), jnp.bfloat16).at[:, :, :F0].set(
        x.astype(jnp.bfloat16))
    a_blk = block_diag_adjacency(a_hat, CHUNK).astype(jnp.bfloat16)
    pool = make_pool_matrix(GB, N)
    w_bf = w_stack.astype(jnp.bfloat16)

    fwd = jax.jit(functools.partial(mygnn_forward, num_classes=C, n_nodes=N,
                                    chunk=CHUNK, graphs_per_block=GB))
    out = fwd(a_blk, x_pad, pool, w_bf, b_stack)
    out = jax.block_until_ready(out)

    ref = reference_forward(a_hat, x, params)
    assert out.shape == (B, C)
    max_err = float(jnp.max(jnp.abs(out - ref)))
    assert jnp.allclose(out, ref, atol=2e-3, rtol=2e-3), max_err

    print("KERNEL_OK")
</pallas_src>

<mosaic_0001>
module attributes {stable_mosaic.version = 11 : i64} {
  func.func @gnn_kernel(%arg0: i32, %arg1: memref<4x256x256xbf16, #tpu.memory_space<vmem>>, %arg2: memref<32x32x128xbf16, #tpu.memory_space<vmem>>, %arg3: memref<32x1024xbf16, #tpu.memory_space<vmem>>, %arg4: memref<5x128x128xbf16, #tpu.memory_space<vmem>>, %arg5: memref<8x128xf32, #tpu.memory_space<vmem>>, %arg6: memref<32x128xf32, #tpu.memory_space<vmem>>) attributes {dimension_semantics = [#tpu.dimension_semantics<parallel>], iteration_bounds = array<i64: 2>, scalar_prefetch = 0 : i64, scratch_operands = 0 : i64, tpu.core_type = #tpu.core_type<tc>, window_params = [{transform_indices = @transform_0, window_bounds = array<i64: 4, 256, 256>}, {transform_indices = @transform_1, window_bounds = array<i64: 32, 32, 128>}, {pipeline_mode = #tpu.pipeline_mode<synchronous>, transform_indices = @transform_2, window_bounds = array<i64: 32, 1024>}, {pipeline_mode = #tpu.pipeline_mode<synchronous>, transform_indices = @transform_3, window_bounds = array<i64: 5, 128, 128>}, {pipeline_mode = #tpu.pipeline_mode<synchronous>, transform_indices = @transform_4, window_bounds = array<i64: 8, 128>}, {transform_indices = @transform_5, window_bounds = array<i64: 32, 128>}]} {
    %c0 = arith.constant 0 : index
    %c0_0 = arith.constant 0 : index
    %c0_1 = arith.constant 0 : index
    %0 = vector.load %arg1[%c0, %c0_0, %c0_1] : memref<4x256x256xbf16, #tpu.memory_space<vmem>>, vector<4x256x256xbf16>
    %c0_2 = arith.constant 0 : index
    %c0_3 = arith.constant 0 : index
    %c0_4 = arith.constant 0 : index
    %1 = vector.load %arg2[%c0_2, %c0_3, %c0_4] : memref<32x32x128xbf16, #tpu.memory_space<vmem>>, vector<32x32x128xbf16>
    %2 = vector.shape_cast %1 : vector<32x32x128xbf16> to vector<1024x128xbf16>
    %c0_5 = arith.constant 0 : index
    %c0_6 = arith.constant 0 : index
    %c0_7 = arith.constant 0 : index
    %3 = vector.load %arg4[%c0_5, %c0_6, %c0_7] : memref<5x128x128xbf16, #tpu.memory_space<vmem>>, vector<1x128x128xbf16>
    %4 = vector.shape_cast %3 : vector<1x128x128xbf16> to vector<128x128xbf16>
    %c0_8 = arith.constant 0 : index
    %c0_9 = arith.constant 0 : index
    %5 = vector.load %arg5[%c0_8, %c0_9] : memref<8x128xf32, #tpu.memory_space<vmem>>, vector<1x128xf32>
    %cst = arith.constant dense<0.000000e+00> : vector<1024x128xf32>
    %6 = tpu.matmul %2, %4, %cst {dimension_numbers = #tpu.dot_dimension_numbers<[1], [0], [0], [1], [0, 0, 1, 1], [], []>} : vector<1024x128xbf16>, vector<128x128xbf16>, vector<1024x128xf32> -> vector<1024x128xf32>
    %7 = vector.shape_cast %6 : vector<1024x128xf32> to vector<4x256x128xf32>
    %8 = arith.truncf %7 : vector<4x256x128xf32> to vector<4x256x128xbf16>
    "tpu.trace_start"() <{level = 10 : i32, message = "cij,cjf->cif"}> : () -> ()
    %cst_10 = arith.constant dense<0.000000e+00> : vector<4x256x128xf32>
    %9 = tpu.matmul %0, %8, %cst_10 {dimension_numbers = #tpu.dot_dimension_numbers<[2], [1], [1], [2], [0, 0, 0, 1, 1, 2], [0], [0]>} : vector<4x256x256xbf16>, vector<4x256x128xbf16>, vector<4x256x128xf32> -> vector<4x256x128xf32>
    "tpu.trace_stop"() : () -> ()
    %10 = vector.shape_cast %9 : vector<4x256x128xf32> to vector<1024x128xf32>
    %11 = vector.broadcast %5 : vector<1x128xf32> to vector<1024x128xf32>
    %12 = arith.addf %10, %11 : vector<1024x128xf32>
    %cst_11 = arith.constant 0.000000e+00 : f32
    %13 = vector.broadcast %cst_11 : f32 to vector<1024x128xf32>
    %14 = arith.maximumf %12, %13 : vector<1024x128xf32>
    %c1 = arith.constant 1 : index
    %c0_12 = arith.constant 0 : index
    %c0_13 = arith.constant 0 : index
    %15 = vector.load %arg4[%c1, %c0_12, %c0_13] : memref<5x128x128xbf16, #tpu.memory_space<vmem>>, vector<1x128x128xbf16>
    %16 = vector.shape_cast %15 : vector<1x128x128xbf16> to vector<128x128xbf16>
    %c1_14 = arith.constant 1 : index
    %c0_15 = arith.constant 0 : index
    %17 = vector.load %arg5[%c1_14, %c0_15] : memref<8x128xf32, #tpu.memory_space<vmem>>, vector<1x128xf32>
    %18 = arith.truncf %14 : vector<1024x128xf32> to vector<1024x128xbf16>
    %cst_16 = arith.constant dense<0.000000e+00> : vector<1024x128xf32>
    %19 = tpu.matmul %18, %16, %cst_16 {dimension_numbers = #tpu.dot_dimension_numbers<[1], [0], [0], [1], [0, 0, 1, 1], [], []>} : vector<1024x128xbf16>, vector<128x128xbf16>, vector<1024x128xf32> -> vector<1024x128xf32>
    %20 = vector.shape_cast %19 : vector<1024x128xf32> to vector<4x256x128xf32>
    %21 = arith.truncf %20 : vector<4x256x128xf32> to vector<4x256x128xbf16>
    "tpu.trace_start"() <{level = 10 : i32, message = "cij,cjf->cif"}> : () -> ()
    %cst_17 = arith.constant dense<0.000000e+00> : vector<4x256x128xf32>
    %22 = tpu.matmul %0, %21, %cst_17 {dimension_numbers = #tpu.dot_dimension_numbers<[2], [1], [1], [2], [0, 0, 0, 1, 1, 2], [0], [0]>} : vector<4x256x256xbf16>, vector<4x256x128xbf16>, vector<4x256x128xf32> -> vector<4x256x128xf32>
    "tpu.trace_stop"() : () -> ()
    %23 = vector.shape_cast %22 : vector<4x256x128xf32> to vector<1024x128xf32>
    %24 = vector.broadcast %17 : vector<1x128xf32> to vector<1024x128xf32>
    %25 = arith.addf %23, %24 : vector<1024x128xf32>
    %cst_18 = arith.constant 0.000000e+00 : f32
    %26 = vector.broadcast %cst_18 : f32 to vector<1024x128xf32>
    %27 = arith.maximumf %25, %26 : vector<1024x128xf32>
    %c2 = arith.constant 2 : index
    %c0_19 = arith.constant 0 : index
    %c0_20 = arith.constant 0 : index
    %28 = vector.load %arg4[%c2, %c0_19, %c0_20] : memref<5x128x128xbf16, #tpu.memory_space<vmem>>, vector<1x128x128xbf16>
    %29 = vector.shape_cast %28 : vector<1x128x128xbf16> to vector<128x128xbf16>
    %c2_21 = arith.constant 2 : index
    %c0_22 = arith.constant 0 : index
    %30 = vector.load %arg5[%c2_21, %c0_22] : memref<8x128xf32, #tpu.memory_space<vmem>>, vector<1x128xf32>
    %31 = arith.truncf %27 : vector<1024x128xf32> to vector<1024x128xbf16>
    %cst_23 = arith.constant dense<0.000000e+00> : vector<1024x128xf32>
    %32 = tpu.matmul %31, %29, %cst_23 {dimension_numbers = #tpu.dot_dimension_numbers<[1], [0], [0], [1], [0, 0, 1, 1], [], []>} : vector<1024x128xbf16>, vector<128x128xbf16>, vector<1024x128xf32> -> vector<1024x128xf32>
    %33 = vector.shape_cast %32 : vector<1024x128xf32> to vector<4x256x128xf32>
    %34 = arith.truncf %33 : vector<4x256x128xf32> to vector<4x256x128xbf16>
    "tpu.trace_start"() <{level = 10 : i32, message = "cij,cjf->cif"}> : () -> ()
    %cst_24 = arith.constant dense<0.000000e+00> : vector<4x256x128xf32>
    %35 = tpu.matmul %0, %34, %cst_24 {dimension_numbers = #tpu.dot_dimension_numbers<[2], [1], [1], [2], [0, 0, 0, 1, 1, 2], [0], [0]>} : vector<4x256x256xbf16>, vector<4x256x128xbf16>, vector<4x256x128xf32> -> vector<4x256x128xf32>
    "tpu.trace_stop"() : () -> ()
    %36 = vector.shape_cast %35 : vector<4x256x128xf32> to vector<1024x128xf32>
    %37 = vector.broadcast %30 : vector<1x128xf32> to vector<1024x128xf32>
    %38 = arith.addf %36, %37 : vector<1024x128xf32>
    %cst_25 = arith.constant 0.000000e+00 : f32
    %39 = vector.broadcast %cst_25 : f32 to vector<1024x128xf32>
    %40 = arith.maximumf %38, %39 : vector<1024x128xf32>
    %c3 = arith.constant 3 : index
    %c0_26 = arith.constant 0 : index
    %c0_27 = arith.constant 0 : index
    %41 = vector.load %arg4[%c3, %c0_26, %c0_27] : memref<5x128x128xbf16, #tpu.memory_space<vmem>>, vector<1x128x128xbf16>
    %42 = vector.shape_cast %41 : vector<1x128x128xbf16> to vector<128x128xbf16>
    %c3_28 = arith.constant 3 : index
    %c0_29 = arith.constant 0 : index
    %43 = vector.load %arg5[%c3_28, %c0_29] : memref<8x128xf32, #tpu.memory_space<vmem>>, vector<1x128xf32>
    %44 = arith.truncf %40 : vector<1024x128xf32> to vector<1024x128xbf16>
    %cst_30 = arith.constant dense<0.000000e+00> : vector<1024x128xf32>
    %45 = tpu.matmul %44, %42, %cst_30 {dimension_numbers = #tpu.dot_dimension_numbers<[1], [0], [0], [1], [0, 0, 1, 1], [], []>} : vector<1024x128xbf16>, vector<128x128xbf16>, vector<1024x128xf32> -> vector<1024x128xf32>
    %46 = vector.shape_cast %45 : vector<1024x128xf32> to vector<4x256x128xf32>
    %47 = arith.truncf %46 : vector<4x256x128xf32> to vector<4x256x128xbf16>
    "tpu.trace_start"() <{level = 10 : i32, message = "cij,cjf->cif"}> : () -> ()
    %cst_31 = arith.constant dense<0.000000e+00> : vector<4x256x128xf32>
    %48 = tpu.matmul %0, %47, %cst_31 {dimension_numbers = #tpu.dot_dimension_numbers<[2], [1], [1], [2], [0, 0, 0, 1, 1, 2], [0], [0]>} : vector<4x256x256xbf16>, vector<4x256x128xbf16>, vector<4x256x128xf32> -> vector<4x256x128xf32>
    "tpu.trace_stop"() : () -> ()
    %49 = vector.shape_cast %48 : vector<4x256x128xf32> to vector<1024x128xf32>
    %50 = vector.broadcast %43 : vector<1x128xf32> to vector<1024x128xf32>
    %51 = arith.addf %49, %50 : vector<1024x128xf32>
    %cst_32 = arith.constant 0.000000e+00 : f32
    %52 = vector.broadcast %cst_32 : f32 to vector<1024x128xf32>
    %53 = arith.maximumf %51, %52 : vector<1024x128xf32>
    %c0_33 = arith.constant 0 : index
    %c0_34 = arith.constant 0 : index
    %54 = vector.load %arg3[%c0_33, %c0_34] : memref<32x1024xbf16, #tpu.memory_space<vmem>>, vector<32x1024xbf16>
    %55 = arith.truncf %53 : vector<1024x128xf32> to vector<1024x128xbf16>
    %cst_35 = arith.constant dense<0.000000e+00> : vector<32x128xf32>
    %56 = tpu.matmul %54, %55, %cst_35 {dimension_numbers = #tpu.dot_dimension_numbers<[1], [0], [0], [1], [0, 0, 1, 1], [], []>} : vector<32x1024xbf16>, vector<1024x128xbf16>, vector<32x128xf32> -> vector<32x128xf32>
    %c4 = arith.constant 4 : index
    %c0_36 = arith.constant 0 : index
    %c0_37 = arith.constant 0 : index
    %57 = vector.load %arg4[%c4, %c0_36, %c0_37] : memref<5x128x128xbf16, #tpu.memory_space<vmem>>, vector<1x128x128xbf16>
    %58 = vector.shape_cast %57 : vector<1x128x128xbf16> to vector<128x128xbf16>
    %c4_38 = arith.constant 4 : index
    %c0_39 = arith.constant 0 : index
    %59 = vector.load %arg5[%c4_38, %c0_39] : memref<8x128xf32, #tpu.memory_space<vmem>>, vector<1x128xf32>
    %60 = arith.truncf %56 : vector<32x128xf32> to vector<32x128xbf16>
    %cst_40 = arith.constant dense<0.000000e+00> : vector<32x128xf32>
    %61 = tpu.matmul %60, %58, %cst_40 {dimension_numbers = #tpu.dot_dimension_numbers<[1], [0], [0], [1], [0, 0, 1, 1], [], []>} : vector<32x128xbf16>, vector<128x128xbf16>, vector<32x128xf32> -> vector<32x128xf32>
    %62 = vector.broadcast %59 : vector<1x128xf32> to vector<32x128xf32>
    %63 = arith.addf %61, %62 : vector<32x128xf32>
    %cst_41 = arith.constant dense<0xFF800000> : vector<32xf32>
    %64 = vector.multi_reduction <maximumf>, %63, %cst_41 [1] : vector<32x128xf32> to vector<32xf32>
    %65 = vector.shape_cast %64 : vector<32xf32> to vector<32x1xf32>
    %66 = vector.broadcast %65 : vector<32x1xf32> to vector<32x128xf32>
    %67 = arith.subf %63, %66 : vector<32x128xf32>
    %68 = math.exp %67 : vector<32x128xf32>
    %cst_42 = arith.constant dense<0.000000e+00> : vector<32xf32>
    %69 = vector.multi_reduction <add>, %68, %cst_42 [1] : vector<32x128xf32> to vector<32xf32>
    %70 = vector.shape_cast %69 : vector<32xf32> to vector<32x1xf32>
    %71 = math.log %70 : vector<32x1xf32>
    %72 = vector.broadcast %71 : vector<32x1xf32> to vector<32x128xf32>
    %73 = arith.subf %67, %72 : vector<32x128xf32>
    %c0_43 = arith.constant 0 : index
    %c0_44 = arith.constant 0 : index
    %74 = vector.load %arg6[%c0_43, %c0_44] : memref<32x128xf32, #tpu.memory_space<vmem>>, vector<32x128xf32>
    tpu.vector_store %arg6[%c0_43, %c0_44], %73 {strides = array<i32>} : memref<32x128xf32, #tpu.memory_space<vmem>>, vector<32x128xf32>,
    return
  }
  func.func @transform_0(%arg0: i32) -> (i32, i32, i32) {
    %c0_i32 = arith.constant 0 : i32
    %c0_i32_0 = arith.constant 0 : i32
    %c0_i32_1 = arith.constant 0 : i32
    return %arg0, %c0_i32, %c0_i32_0 : i32, i32, i32
  }
  func.func @transform_1(%arg0: i32) -> (i32, i32, i32) {
    %c0_i32 = arith.constant 0 : i32
    %c0_i32_0 = arith.constant 0 : i32
    %c0_i32_1 = arith.constant 0 : i32
    return %arg0, %c0_i32, %c0_i32_0 : i32, i32, i32
  }
  func.func @transform_2(%arg0: i32) -> (i32, i32) {
    %c0_i32 = arith.constant 0 : i32
    %c0_i32_0 = arith.constant 0 : i32
    %c0_i32_1 = arith.constant 0 : i32
    return %c0_i32, %c0_i32_0 : i32, i32
  }
  func.func @transform_3(%arg0: i32) -> (i32, i32, i32) {
    %c0_i32 = arith.constant 0 : i32
    %c0_i32_0 = arith.constant 0 : i32
    %c0_i32_1 = arith.constant 0 : i32
    %c0_i32_2 = arith.constant 0 : i32
    return %c0_i32, %c0_i32_0, %c0_i32_1 : i32, i32, i32
  }
  func.func @transform_4(%arg0: i32) -> (i32, i32) {
    %c0_i32 = arith.constant 0 : i32
    %c0_i32_0 = arith.constant 0 : i32
    %c0_i32_1 = arith.constant 0 : i32
    return %c0_i32, %c0_i32_0 : i32, i32
  }
  func.func @transform_5(%arg0: i32) -> (i32, i32) {
    %c0_i32 = arith.constant 0 : i32
    %c0_i32_0 = arith.constant 0 : i32
    return %arg0, %c0_i32 : i32, i32
  }
}

</mosaic_0001>

<llo_original>
// kernel: mygnn_forward.1
$region0: #{mygnn_forward.1}
  #allocation0 [shape = 'u32[]', space=smem, size = 0x4, offset = 0x4, fixed_abs, tag = 'smem constant byte address 0x4 - core index']
  #allocation1 [shape = 'u32[144,128]{1,0:T(1,128)}', space=vmem, size = 0x12000, scoped, tag = 'internal scratch']
  %s0 = inlined_call_operand.hbm [shape: bf16[8,256,256], index: 0, kind: input, shape index: {}]
  %s1 = inlined_call_operand.hbm [shape: bf16[64,32,128], index: 1, kind: input, shape index: {}]
  %s2 = inlined_call_operand.hbm [shape: bf16[32,1024], index: 2, kind: input, shape index: {}]
  %s3 = inlined_call_operand.hbm [shape: bf16[5,128,128], index: 3, kind: input, shape index: {}]
  %s4 = inlined_call_operand.hbm [shape: f32[8,128], index: 4, kind: input, shape index: {}]
  %s5 = inlined_call_operand.vmem [shape: f32[64,128], index: 5, kind: output, shape index: {}]
  %s6 = sld [smem:[#allocation0]]
  $region73: #{mygnn_forward.1} parent=0
    _
  %s8 = ssub.s32 1, %s6
  %s9 = scalar_select 0, %s8, %s6
  $region1: #{mygnn_forward.1} parent=0
    #allocation2 [shape = 'u8[1048576]{0}', space=vmem, size = 0x100000, scoped, tag = 'input window, operand 0']
    #allocation3 [shape = 's32[2]{0}', space=sflag, size = 0x8, scoped, tag = 'scoped memory for mygnn_forward.1']
    #allocation4 [shape = 'u8[524288]{0}', space=vmem, size = 0x80000, scoped, tag = 'input window, operand 1']
    #allocation5 [shape = 's32[2]{0}', space=sflag, size = 0x8, scoped, tag = 'scoped memory for mygnn_forward.1']
    #allocation6 [shape = 'u8[65536]{0}', space=vmem, size = 0x10000, scoped, tag = 'input window, operand 2, single buffered']
    #allocation7 [shape = 'u8[163840]{0}', space=vmem, size = 0x28000, scoped, tag = 'input window, operand 3, single buffered']
    #allocation8 [shape = 's32[1]{0}', space=sflag, size = 0x4, scoped, tag = 'scoped memory for mygnn_forward.1']
    #allocation9 [shape = 'u8[4096]{0}', space=vmem, size = 0x1000, scoped, tag = 'input window, operand 4, single buffered']
    %10 = vsyncpa [#allocation3], 0
    %s11 = scalar_lea.sflag [#allocation3], 1
    %12 = vsyncpa %s11, 0
    %13 = vsyncpa [#allocation5], 0
    %s14 = scalar_lea.sflag [#allocation5], 1
    %15 = vsyncpa %s14, 0
    %16 = vsyncpa [#allocation8], 0
    loop: start=0, step=1, limit=4
    $region2: #{mygnn_forward.1} parent=1 // loop_pre_header
      _
    $region3: #{mygnn_forward.1} parent=1 // loop_header
      %s18 = sphi 0, %s22
      %p19 = scmp.ge.s32.totalorder %s18, 4
      %s28 = sphi 0, %s30
      %s31 = sphi 0, %s28
      %s32 = sphi 0, %s31
      %s48 = sphi 0, %s32
      %s54 = sphi 0, %s56
      %s57 = sphi 0, %s54
      %s58 = sphi 0, %s57
      %s74 = sphi 0, %s58
      %s78 = sphi 0, %s78
      %s80 = sphi 0, %s78
      %s81 = sphi 0, %s80
      %s95 = sphi 0, %s81
      %s99 = sphi 0, %s99
      %s101 = sphi 0, %s99
      %s102 = sphi 0, %s101
      %s116 = sphi 0, %s102
      %s120 = sphi 0, %s120
      %s122 = sphi 0, %s120
      %s123 = sphi 0, %s122
      %s137 = sphi 0, %s123
      %s143 = sphi 0, %s145
      %s146 = sphi 0, %s143
      %s147 = sphi 0, %s146
      %s163 = sphi 0, %s147
    $region4: #{mygnn_forward.1} parent=1 // loop_header_branch
      %21 = sbr.rel (%p19) target = $region8
    $region5: #{mygnn_forward.1} parent=1 // loop_body
      %s23 = ssub.s32 %s18, 1
      %s24 = ssub.s32 %s18, 2
      %s25 = sadd.s32 %s18, 1
      %s26 = ssub.s32 %s18, %s25
      %p27 = scmp.eq.s32.totalorder %s26, 0
      %s29 = sadd.s32 %s28, 1
      %s30 = scalar_select %p27, %s28, %s29
      %p33 = pneg %p27
      %p34 = scmp.eq.s32.totalorder %s18, 1
      %p35 = por %p33, %p34
      %p36 = scmp.ne.s32.totalorder %s28, %s31
      %p37 = scmp.eq.s32.totalorder %s18, 0
      %p38 = por %p36, %p37
      %p39 = scmp.ne.s32.totalorder %s28, %s31
      %p40 = scmp.eq.s32.totalorder %s23, 1
      %p41 = por %p39, %p40
      %p42 = scmp.ne.s32.totalorder %s31, %s32
      %p43 = scmp.eq.s32.totalorder %s23, 0
      %p44 = por %p42, %p43
      %p45 = scmp.ne.s32.totalorder %s31, %s32
      %p46 = scmp.eq.s32.totalorder %s24, 1
      %p47 = por %p45, %p46
      %p49 = scmp.ne.s32.totalorder %s32, %s48
      %p50 = scmp.eq.s32.totalorder %s24, 0
      %p51 = por %p49, %p50
      %s52 = ssub.s32 %s18, %s25
      %p53 = scmp.eq.s32.totalorder %s52, 0
      %s55 = sadd.s32 %s54, 1
      %s56 = scalar_select %p53, %s54, %s55
      %p59 = pneg %p53
      %p60 = scmp.eq.s32.totalorder %s18, 1
      %p61 = por %p59, %p60
      %p62 = scmp.ne.s32.totalorder %s54, %s57
      %p63 = scmp.eq.s32.totalorder %s18, 0
      %p64 = por %p62, %p63
      %p65 = scmp.ne.s32.totalorder %s54, %s57
      %p66 = scmp.eq.s32.totalorder %s23, 1
      %p67 = por %p65, %p66
      %p68 = scmp.ne.s32.totalorder %s57, %s58
      %p69 = scmp.eq.s32.totalorder %s23, 0
      %p70 = por %p68, %p69
      %p71 = scmp.ne.s32.totalorder %s57, %s58
      %p72 = scmp.eq.s32.totalorder %s24, 1
      %p73 = por %p71, %p72
      %p75 = scmp.ne.s32.totalorder %s58, %s74
      %p76 = scmp.eq.s32.totalorder %s24, 0
      %p77 = por %p75, %p76
      %s79 = sadd.s32 %s78, 1
      %p82 = scmp.eq.s32.totalorder %s18, 1
      %p83 = scmp.ne.s32.totalorder %s78, %s80
      %p84 = scmp.eq.s32.totalorder %s18, 0
      %p85 = por %p83, %p84
      %p86 = scmp.ne.s32.totalorder %s78, %s80
      %p87 = scmp.eq.s32.totalorder %s23, 1
      %p88 = por %p86, %p87
      %p89 = scmp.ne.s32.totalorder %s80, %s81
      %p90 = scmp.eq.s32.totalorder %s23, 0
      %p91 = por %p89, %p90
      %p92 = scmp.ne.s32.totalorder %s80, %s81
      %p93 = scmp.eq.s32.totalorder %s24, 1
      %p94 = por %p92, %p93
      %p96 = scmp.ne.s32.totalorder %s81, %s95
      %p97 = scmp.eq.s32.totalorder %s24, 0
      %p98 = por %p96, %p97
      %s100 = sadd.s32 %s99, 1
      %p103 = scmp.eq.s32.totalorder %s18, 1
      %p104 = scmp.ne.s32.totalorder %s99, %s101
      %p105 = scmp.eq.s32.totalorder %s18, 0
      %p106 = por %p104, %p105
      %p107 = scmp.ne.s32.totalorder %s99, %s101
      %p108 = scmp.eq.s32.totalorder %s23, 1
      %p109 = por %p107, %p108
      %p110 = scmp.ne.s32.totalorder %s101, %s102
      %p111 = scmp.eq.s32.totalorder %s23, 0
      %p112 = por %p110, %p111
      %p113 = scmp.ne.s32.totalorder %s101, %s102
      %p114 = scmp.eq.s32.totalorder %s24, 1
      %p115 = por %p113, %p114
      %p117 = scmp.ne.s32.totalorder %s102, %s116
      %p118 = scmp.eq.s32.totalorder %s24, 0
      %p119 = por %p117, %p118
      %s121 = sadd.s32 %s120, 1
      %p124 = scmp.eq.s32.totalorder %s18, 1
      %p125 = scmp.ne.s32.totalorder %s120, %s122
      %p126 = scmp.eq.s32.totalorder %s18, 0
      %p127 = por %p125, %p126
      %p128 = scmp.ne.s32.totalorder %s120, %s122
      %p129 = scmp.eq.s32.totalorder %s23, 1
      %p130 = por %p128, %p129
      %p131 = scmp.ne.s32.totalorder %s122, %s123
      %p132 = scmp.eq.s32.totalorder %s23, 0
      %p133 = por %p131, %p132
      %p134 = scmp.ne.s32.totalorder %s122, %s123
      %p135 = scmp.eq.s32.totalorder %s24, 1
      %p136 = por %p134, %p135
      %p138 = scmp.ne.s32.totalorder %s123, %s137
      %p139 = scmp.eq.s32.totalorder %s24, 0
      %p140 = por %p138, %p139
      %s141 = ssub.s32 %s18, %s25
      %p142 = scmp.eq.s32.totalorder %s141, 0
      %s144 = sadd.s32 %s143, 1
      %s145 = scalar_select %p142, %s143, %s144
      %p148 = pneg %p142
      %p149 = scmp.eq.s32.totalorder %s18, 1
      %p150 = por %p148, %p149
      %p151 = scmp.ne.s32.totalorder %s143, %s146
      %p152 = scmp.eq.s32.totalorder %s18, 0
      %p153 = por %p151, %p152
      %p154 = scmp.ne.s32.totalorder %s143, %s146
      %p155 = scmp.eq.s32.totalorder %s23, 1
      %p156 = por %p154, %p155
      %p157 = scmp.ne.s32.totalorder %s146, %s147
      %p158 = scmp.eq.s32.totalorder %s23, 0
      %p159 = por %p157, %p158
      %p160 = scmp.ne.s32.totalorder %s146, %s147
      %p161 = scmp.eq.s32.totalorder %s24, 1
      %p162 = por %p160, %p161
      %p164 = scmp.ne.s32.totalorder %s147, %s163
      %p165 = scmp.eq.s32.totalorder %s24, 0
      %p166 = por %p164, %p165
      %p167 = scmp.le.s32.totalorder 1, %s18
      %p168 = scmp.lt.s32.totalorder %s18, 3
      %p169 = pnand %p167, %p168
      %p170 = pneg %p169
      // Predicated region
      $region9: #{mygnn_forward.1} parent=5 // pred_check
        _
      $region10: #{mygnn_forward.1} parent=5 // pred_check_branch
        %172 = sbr.rel (%p169) target = $region12
      $region11: #{mygnn_forward.1} parent=5 // pred_region
        %s173 = ssub.s32 %s18, 1
        // Predicated region
        $region13: #{mygnn_forward.1} parent=11 // pred_check
          %p174 = pneg %p91
        $region14: #{mygnn_forward.1} parent=11 // pred_check_branch
          %176 = sbr.rel (%p174) target = $region16
        $region15: #{mygnn_forward.1} parent=11 // pred_region
          %s178 = ssub.s32 2048, 2048
          %179 = vsyncadd [#allocation5], %s178
          %s180 = sshll.u32 [#allocation6], 4
          %s181 = int_to_ptr.vmem [resolvable:$true] %s180
          %186 = dma.hbm_to_vmem [thread:$0]  %s2, 2048, %s181, [#allocation5], 512, 512, 32
        $region16: #{mygnn_forward.1} parent=11 // pred_fallthru
          _
        // Predicated region
        $region17: #{mygnn_forward.1} parent=11 // pred_check
          %p187 = pneg %p112
        $region18: #{mygnn_forward.1} parent=11 // pred_check_branch
          %189 = sbr.rel (%p187) target = $region20
        $region19: #{mygnn_forward.1} parent=11 // pred_region
          %s191 = ssub.s32 5120, 5120
          %192 = vsyncadd [#allocation8], %s191
          %s193 = sshll.u32 [#allocation7], 4
          %s194 = int_to_ptr.vmem [resolvable:$true] %s193
          %199 = dma.hbm_to_vmem [thread:$0]  %s3, 5120, %s194, [#allocation8], 64, 64, 4
        $region20: #{mygnn_forward.1} parent=11 // pred_fallthru
          _
        // Predicated region
        $region21: #{mygnn_forward.1} parent=11 // pred_check
          %p200 = pneg %p133
        $region22: #{mygnn_forward.1} parent=11 // pred_check_branch
          %202 = sbr.rel (%p200) target = $region24
        $region23: #{mygnn_forward.1} parent=11 // pred_region
          %s204 = ssub.s32 128, 128
          %205 = vsyncadd [#allocation8], %s204
          %s207 = sshll.u32 [#allocation9], 4
          %s208 = int_to_ptr.vmem [resolvable:$true] %s207
          %210 = dma.hbm_to_vmem [thread:$0]  %s4, 128, %s208, [#allocation8]
        $region24: #{mygnn_forward.1} parent=11 // pred_fallthru
          _
      $region12: #{mygnn_forward.1} parent=5 // pred_fallthru
        _
      %p211 = scmp.lt.s32.totalorder %s18, 2
      // Predicated region
      $region25: #{mygnn_forward.1} parent=5 // pred_check
        %p212 = pneg %p211
      $region26: #{mygnn_forward.1} parent=5 // pred_check_branch
        %214 = sbr.rel (%p212) target = $region28
      $region27: #{mygnn_forward.1} parent=5 // pred_region
        // Predicated region
        $region29: #{mygnn_forward.1} parent=27 // pred_check
          %p215 = pneg %p38
        $region30: #{mygnn_forward.1} parent=27 // pred_check_branch
          %217 = sbr.rel (%p215) target = $region32
        $region31: #{mygnn_forward.1} parent=27 // pred_region
          %s218 = sand.u32 %s28, 1
          %s219 = scalar_lea.sflag [#allocation3], %s218
          %s220 = sand.u32 %s28, 1
          %s221 = smul.addr %s220, 1024
          %s222 = scalar_lea.vmem [#allocation2], %s221
          %s223 = smul.u32 4, %s18
          %s225 = ssub.s32 16384, 16384
          %226 = vsyncadd %s219, %s225
          %s227 = smul.addr %s223, 64
          %s228 = smul.addr %s227, 64
          %s229 = scalar_lea.hbm %s0, %s228
          %s230 = sshll.u32 %s222, 4
          %s231 = int_to_ptr.vmem [resolvable:$true] %s230
          %236 = dma.hbm_to_vmem [thread:$0]  %s229, 16384, %s231, %s219, 128, 128, 8
        $region32: #{mygnn_forward.1} parent=27 // pred_fallthru
          _
        // Predicated region
        $region33: #{mygnn_forward.1} parent=27 // pred_check
          %p237 = pneg %p64
        $region34: #{mygnn_forward.1} parent=27 // pred_check_branch
          %239 = sbr.rel (%p237) target = $region36
        $region35: #{mygnn_forward.1} parent=27 // pred_region
          %s240 = sand.u32 %s18, 1
          %s241 = scalar_lea.sflag [#allocation5], %s240
          %s242 = sand.u32 %s54, 1
          %s243 = smul.addr %s242, 512
          %s244 = scalar_lea.vmem [#allocation4], %s243
          %s245 = smul.u32 32, %s18
          %s247 = ssub.s32 8192, 8192
          %248 = vsyncadd %s241, %s247
          %s249 = smul.addr %s245, 4
          %s250 = smul.addr %s249, 64
          %s251 = scalar_lea.hbm %s1, %s250
          %s252 = sshll.u32 %s244, 4
          %s253 = int_to_ptr.vmem [resolvable:$true] %s252
          %258 = dma.hbm_to_vmem [thread:$0]  %s251, 8192, %s253, %s241, 64, 64, 4
        $region36: #{mygnn_forward.1} parent=27 // pred_fallthru
          _
      $region28: #{mygnn_forward.1} parent=5 // pred_fallthru
        _
      %p259 = scmp.le.s32.totalorder 1, %s18
      %p260 = scmp.lt.s32.totalorder %s18, 3
      %p261 = pnand %p259, %p260
      %p262 = pneg %p261
      // Predicated region
      $region37: #{mygnn_forward.1} parent=5 // pred_check
        _
      $region38: #{mygnn_forward.1} parent=5 // pred_check_branch
        %264 = sbr.rel (%p261) target = $region40
      $region39: #{mygnn_forward.1} parent=5 // pred_region
        %s265 = ssub.s32 %s18, 1
        %s266 = sand.u32 %s31, 1
        %s267 = scalar_lea.sflag [#allocation3], %s266
        %s268 = sand.u32 %s31, 1
        %s269 = smul.addr %s268, 1024
        %s270 = scalar_lea.vmem [#allocation2], %s269
        // Predicated region
        $region41: #{mygnn_forward.1} parent=39 // pred_check
          %p271 = pneg %p44
        $region42: #{mygnn_forward.1} parent=39 // pred_check_branch
          %273 = sbr.rel (%p271) target = $region44
        $region43: #{mygnn_forward.1} parent=39 // pred_region
          %274 = dma.done %s267, 16384
        $region44: #{mygnn_forward.1} parent=39 // pred_fallthru
          _
        %s275 = sand.u32 %s23, 1
        %s276 = scalar_lea.sflag [#allocation5], %s275
        %s277 = sand.u32 %s57, 1
        %s278 = smul.addr %s277, 512
        %s279 = scalar_lea.vmem [#allocation4], %s278
        // Predicated region
        $region45: #{mygnn_forward.1} parent=39 // pred_check
          %p280 = pneg %p70
        $region46: #{mygnn_forward.1} parent=39 // pred_check_branch
          %282 = sbr.rel (%p280) target = $region48
        $region47: #{mygnn_forward.1} parent=39 // pred_region
          %283 = dma.done %s276, 8192
        $region48: #{mygnn_forward.1} parent=39 // pred_fallthru
          _
        // Predicated region
        $region49: #{mygnn_forward.1} parent=39 // pred_check
          %p284 = pneg %p91
        $region50: #{mygnn_forward.1} parent=39 // pred_check_branch
          %286 = sbr.rel (%p284) target = $region52
        $region51: #{mygnn_forward.1} parent=39 // pred_region
          %287 = dma.done [#allocation5], 2048
        $region52: #{mygnn_forward.1} parent=39 // pred_fallthru
          _
        // Predicated region
        $region53: #{mygnn_forward.1} parent=39 // pred_check
          %p288 = pneg %p112
        $region54: #{mygnn_forward.1} parent=39 // pred_check_branch
          %290 = sbr.rel (%p288) target = $region56
        $region55: #{mygnn_forward.1} parent=39 // pred_region
          %291 = dma.done [#allocation8], 5120
        $region56: #{mygnn_forward.1} parent=39 // pred_fallthru
          _
        // Predicated region
        $region57: #{mygnn_forward.1} parent=39 // pred_check
          %p292 = pneg %p133
        $region58: #{mygnn_forward.1} parent=39 // pred_check_branch
          %294 = sbr.rel (%p292) target = $region60
        $region59: #{mygnn_forward.1} parent=39 // pred_region
          %295 = dma.done [#allocation8], 128
        $region60: #{mygnn_forward.1} parent=39 // pred_fallthru
          _
        %s296 = sand.u32 %s31, 1
        %s297 = scalar_lea.sflag [#allocation3], %s296
        %s298 = sand.u32 %s31, 1
        %s299 = smul.addr %s298, 1024
        %s300 = scalar_lea.vmem [#allocation2], %s299
        %p301 = pneg %p44
        %p302 = pneg %p41
        %s303 = sand.u32 %s23, 1
        %s304 = scalar_lea.sflag [#allocation5], %s303
        %s305 = sand.u32 %s57, 1
        %s306 = smul.addr %s305, 512
        %s307 = scalar_lea.vmem [#allocation4], %s306
        %p308 = pneg %p70
        %p309 = pneg %p67
        %p310 = pneg %p91
        %p311 = pneg %p88
        %p312 = pneg %p112
        %p313 = pneg %p109
        %p314 = pneg %p133
        %p315 = pneg %p130
        %p316 = pneg %p159
        %p317 = pneg %p156
        %s318 = smul.u32 4, %s23
        %p319 = scmp.lt.s32.totalorder %s318, 7
        %s320 = scalar_select %p319, %s318, 7
        %s321 = smul.addr %s320, 8
        %s322 = scalar_lea.vmem %s5, %s321
        %s323 = smul.u32 4, %s23
        %s324 = smul.u32 32, %s23
        %s325 = smul.u32 4, %s23
        %p326 = scmp.lt.s32.totalorder %s325, 7
        %s327 = scalar_select %p326, %s325, 7
        %s328 = smul.addr %s327, 8
        %s329 = scalar_lea.vmem %s5, %s328
        %s330 = smul.u32 4, %s23
        %v332 = vld [vmem:[%s270] sm:$0xff]
        %v333 = vld [vmem:[%s270 + $0x8] sm:$0xff]
        %v334 = vld [vmem:[%s270 + $0x10] sm:$0xff]
        %v335 = vld [vmem:[%s270 + $0x18] sm:$0xff]
        %v336 = vld [vmem:[%s270 + $0x20] sm:$0xff]
        %v337 = vld [vmem:[%s270 + $0x28] sm:$0xff]
        %v338 = vld [vmem:[%s270 + $0x30] sm:$0xff]
        %v339 = vld [vmem:[%s270 + $0x38] sm:$0xff]
        %v340 = vld [vmem:[%s270 + $0x40] sm:$0xff]
        %v341 = vld [vmem:[%s270 + $0x48] sm:$0xff]
        %v342 = vld [vmem:[%s270 + $0x50] sm:$0xff]
        %v343 = vld [vmem:[%s270 + $0x58] sm:$0xff]
        %v344 = vld [vmem:[%s270 + $0x60] sm:$0xff]
        %v345 = vld [vmem:[%s270 + $0x68] sm:$0xff]
        %v346 = vld [vmem:[%s270 + $0x70] sm:$0xff]
        %v347 = vld [vmem:[%s270 + $0x78] sm:$0xff]
        %v348 = vld [vmem:[%s270 + $0x80] sm:$0xff]
        %v349 = vld [vmem:[%s270 + $0x88] sm:$0xff]
        %v350 = vld [vmem:[%s270 + $0x90] sm:$0xff]
        %v351 = vld [vmem:[%s270 + $0x98] sm:$0xff]
        %v352 = vld [vmem:[%s270 + $0xa0] sm:$0xff]
        %v353 = vld [vmem:[%s270 + $0xa8] sm:$0xff]
        %v354 = vld [vmem:[%s270 + $0xb0] sm:$0xff]
        %v355 = vld [vmem:[%s270 + $0xb8] sm:$0xff]
        %v356 = vld [vmem:[%s270 + $0xc0] sm:$0xff]
        %v357 = vld [vmem:[%s270 + $0xc8] sm:$0xff]
        %v358 = vld [vmem:[%s270 + $0xd0] sm:$0xff]
        %v359 = vld [vmem:[%s270 + $0xd8] sm:$0xff]
        %v360 = vld [vmem:[%s270 + $0xe0] sm:$0xff]
        %v361 = vld [vmem:[%s270 + $0xe8] sm:$0xff]
        %v362 = vld [vmem:[%s270 + $0xf0] sm:$0xff]
        %v363 = vld [vmem:[%s270 + $0xf8] sm:$0xff]
        %v364 = vld [vmem:[%s270 + $0x100] sm:$0xff]
        %v365 = vld [vmem:[%s270 + $0x108] sm:$0xff]
        %v366 = vld [vmem:[%s270 + $0x110] sm:$0xff]
        %v367 = vld [vmem:[%s270 + $0x118] sm:$0xff]
        %v368 = vld [vmem:[%s270 + $0x120] sm:$0xff]
        %v369 = vld [vmem:[%s270 + $0x128] sm:$0xff]
        %v370 = vld [vmem:[%s270 + $0x130] sm:$0xff]
        %v371 = vld [vmem:[%s270 + $0x138] sm:$0xff]
        %v372 = vld [vmem:[%s270 + $0x140] sm:$0xff]
        %v373 = vld [vmem:[%s270 + $0x148] sm:$0xff]
        %v374 = vld [vmem:[%s270 + $0x150] sm:$0xff]
        %v375 = vld [vmem:[%s270 + $0x158] sm:$0xff]
        %v376 = vld [vmem:[%s270 + $0x160] sm:$0xff]
        %v377 = vld [vmem:[%s270 + $0x168] sm:$0xff]
        %v378 = vld [vmem:[%s270 + $0x170] sm:$0xff]
        %v379 = vld [vmem:[%s270 + $0x178] sm:$0xff]
        %v380 = vld [vmem:[%s270 + $0x180] sm:$0xff]
        %v381 = vld [vmem:[%s270 + $0x188] sm:$0xff]
        %v382 = vld [vmem:[%s270 + $0x190] sm:$0xff]
        %v383 = vld [vmem:[%s270 + $0x198] sm:$0xff]
        %v384 = vld [vmem:[%s270 + $0x1a0] sm:$0xff]
        %v385 = vld [vmem:[%s270 + $0x1a8] sm:$0xff]
        %v386 = vld [vmem:[%s270 + $0x1b0] sm:$0xff]
        %v387 = vld [vmem:[%s270 + $0x1b8] sm:$0xff]
        %v388 = vld [vmem:[%s270 + $0x1c0] sm:$0xff]
        %v389 = vld [vmem:[%s270 + $0x1c8] sm:$0xff]
        %v390 = vld [vmem:[%s270 + $0x1d0] sm:$0xff]
        %v391 = vld [vmem:[%s270 + $0x1d8] sm:$0xff]
        %v392 = vld [vmem:[%s270 + $0x1e0] sm:$0xff]
        %v393 = vld [vmem:[%s270 + $0x1e8] sm:$0xff]
        %v394 = vld [vmem:[%s270 + $0x1f0] sm:$0xff]
        %v395 = vld [vmem:[%s270 + $0x1f8] sm:$0xff]
        %v396 = vld [vmem:[%s270 + $0x200] sm:$0xff]
        %v397 = vld [vmem:[%s270 + $0x208] sm:$0xff]
        %v398 = vld [vmem:[%s270 + $0x210] sm:$0xff]
        %v399 = vld [vmem:[%s270 + $0x218] sm:$0xff]
        %v400 = vld [vmem:[%s270 + $0x220] sm:$0xff]
        %v401 = vld [vmem:[%s270 + $0x228] sm:$0xff]
        %v402 = vld [vmem:[%s270 + $0x230] sm:$0xff]
        %v403 = vld [vmem:[%s270 + $0x238] sm:$0xff]
        %v404 = vld [vmem:[%s270 + $0x240] sm:$0xff]
        %v405 = vld [vmem:[%s270 + $0x248] sm:$0xff]
        %v406 = vld [vmem:[%s270 + $0x250] sm:$0xff]
        %v407 = vld [vmem:[%s270 + $0x258] sm:$0xff]
        %v408 = vld [vmem:[%s270 + $0x260] sm:$0xff]
        %v409 = vld [vmem:[%s270 + $0x268] sm:$0xff]
        %v410 = vld [vmem:[%s270 + $0x270] sm:$0xff]
        %v411 = vld [vmem:[%s270 + $0x278] sm:$0xff]
        %v412 = vld [vmem:[%s270 + $0x280] sm:$0xff]
        %v413 = vld [vmem:[%s270 + $0x288] sm:$0xff]
        %v414 = vld [vmem:[%s270 + $0x290] sm:$0xff]
        %v415 = vld [vmem:[%s270 + $0x298] sm:$0xff]
        %v416 = vld [vmem:[%s270 + $0x2a0] sm:$0xff]
        %v417 = vld [vmem:[%s270 + $0x2a8] sm:$0xff]
        %v418 = vld [vmem:[%s270 + $0x2b0] sm:$0xff]
        %v419 = vld [vmem:[%s270 + $0x2b8] sm:$0xff]
        %v420 = vld [vmem:[%s270 + $0x2c0] sm:$0xff]
        %v421 = vld [vmem:[%s270 + $0x2c8] sm:$0xff]
        %v422 = vld [vmem:[%s270 + $0x2d0] sm:$0xff]
        %v423 = vld [vmem:[%s270 + $0x2d8] sm:$0xff]
        %v424 = vld [vmem:[%s270 + $0x2e0] sm:$0xff]
        %v425 = vld [vmem:[%s270 + $0x2e8] sm:$0xff]
        %v426 = vld [vmem:[%s270 + $0x2f0] sm:$0xff]
        %v427 = vld [vmem:[%s270 + $0x2f8] sm:$0xff]
        %v428 = vld [vmem:[%s270 + $0x300] sm:$0xff]
        %v429 = vld [vmem:[%s270 + $0x308] sm:$0xff]
        %v430 = vld [vmem:[%s270 + $0x310] sm:$0xff]
        %v431 = vld [vmem:[%s270 + $0x318] sm:$0xff]
        %v432 = vld [vmem:[%s270 + $0x320] sm:$0xff]
        %v433 = vld [vmem:[%s270 + $0x328] sm:$0xff]
        %v434 = vld [vmem:[%s270 + $0x330] sm:$0xff]
        %v435 = vld [vmem:[%s270 + $0x338] sm:$0xff]
        %v436 = vld [vmem:[%s270 + $0x340] sm:$0xff]
        %v437 = vld [vmem:[%s270 + $0x348] sm:$0xff]
        %v438 = vld [vmem:[%s270 + $0x350] sm:$0xff]
        %v439 = vld [vmem:[%s270 + $0x358] sm:$0xff]
        %v440 = vld [vmem:[%s270 + $0x360] sm:$0xff]
        %v441 = vld [vmem:[%s270 + $0x368] sm:$0xff]
        %v442 = vld [vmem:[%s270 + $0x370] sm:$0xff]
        %v443 = vld [vmem:[%s270 + $0x378] sm:$0xff]
        %v444 = vld [vmem:[%s270 + $0x380] sm:$0xff]
        %v445 = vld [vmem:[%s270 + $0x388] sm:$0xff]
        %v446 = vld [vmem:[%s270 + $0x390] sm:$0xff]
        %v447 = vld [vmem:[%s270 + $0x398] sm:$0xff]
        %v448 = vld [vmem:[%s270 + $0x3a0] sm:$0xff]
        %v449 = vld [vmem:[%s270 + $0x3a8] sm:$0xff]
        %v450 = vld [vmem:[%s270 + $0x3b0] sm:$0xff]
        %v451 = vld [vmem:[%s270 + $0x3b8] sm:$0xff]
        %v452 = vld [vmem:[%s270 + $0x3c0] sm:$0xff]
        %v453 = vld [vmem:[%s270 + $0x3c8] sm:$0xff]
        %v454 = vld [vmem:[%s270 + $0x3d0] sm:$0xff]
        %v455 = vld [vmem:[%s270 + $0x3d8] sm:$0xff]
        %v456 = vld [vmem:[%s270 + $0x3e0] sm:$0xff]
        %v457 = vld [vmem:[%s270 + $0x3e8] sm:$0xff]
        %v458 = vld [vmem:[%s270 + $0x3f0] sm:$0xff]
        %v459 = vld [vmem:[%s270 + $0x3f8] sm:$0xff]
        %v460 = vld [vmem:[%s279] sm:$0xf]
        %v461 = vld [vmem:[%s279 + $0x4] sm:$0xf]
        %v462 = vld [vmem:[%s279 + $0x8] sm:$0xf]
        %v463 = vld [vmem:[%s279 + $0xc] sm:$0xf]
        %v464 = vld [vmem:[%s279 + $0x10] sm:$0xf]
        %v465 = vld [vmem:[%s279 + $0x14] sm:$0xf]
        %v466 = vld [vmem:[%s279 + $0x18] sm:$0xf]
        %v467 = vld [vmem:[%s279 + $0x1c] sm:$0xf]
        %v468 = vld [vmem:[%s279 + $0x20] sm:$0xf]
        %v469 = vld [vmem:[%s279 + $0x24] sm:$0xf]
        %v470 = vld [vmem:[%s279 + $0x28] sm:$0xf]
        %v471 = vld [vmem:[%s279 + $0x2c] sm:$0xf]
        %v472 = vld [vmem:[%s279 + $0x30] sm:$0xf]
        %v473 = vld [vmem:[%s279 + $0x34] sm:$0xf]
        %v474 = vld [vmem:[%s279 + $0x38] sm:$0xf]
        %v475 = vld [vmem:[%s279 + $0x3c] sm:$0xf]
        %v476 = vld [vmem:[%s279 + $0x40] sm:$0xf]
        %v477 = vld [vmem:[%s279 + $0x44] sm:$0xf]
        %v478 = vld [vmem:[%s279 + $0x48] sm:$0xf]
        %v479 = vld [vmem:[%s279 + $0x4c] sm:$0xf]
        %v480 = vld [vmem:[%s279 + $0x50] sm:$0xf]
        %v481 = vld [vmem:[%s279 + $0x54] sm:$0xf]
        %v482 = vld [vmem:[%s279 + $0x58] sm:$0xf]
        %v483 = vld [vmem:[%s279 + $0x5c] sm:$0xf]
        %v484 = vld [vmem:[%s279 + $0x60] sm:$0xf]
        %v485 = vld [vmem:[%s279 + $0x64] sm:$0xf]
        %v486 = vld [vmem:[%s279 + $0x68] sm:$0xf]
        %v487 = vld [vmem:[%s279 + $0x6c] sm:$0xf]
        %v488 = vld [vmem:[%s279 + $0x70] sm:$0xf]
        %v489 = vld [vmem:[%s279 + $0x74] sm:$0xf]
        %v490 = vld [vmem:[%s279 + $0x78] sm:$0xf]
        %v491 = vld [vmem:[%s279 + $0x7c] sm:$0xf]
        %v492 = vld [vmem:[%s279 + $0x80] sm:$0xf]
        %v493 = vld [vmem:[%s279 + $0x84] sm:$0xf]
        %v494 = vld [vmem:[%s279 + $0x88] sm:$0xf]
        %v495 = vld [vmem:[%s279 + $0x8c] sm:$0xf]
        %v496 = vld [vmem:[%s279 + $0x90] sm:$0xf]
        %v497 = vld [vmem:[%s279 + $0x94] sm:$0xf]
        %v498 = vld [vmem:[%s279 + $0x98] sm:$0xf]
        %v499 = vld [vmem:[%s279 + $0x9c] sm:$0xf]
        %v500 = vld [vmem:[%s279 + $0xa0] sm:$0xf]
        %v501 = vld [vmem:[%s279 + $0xa4] sm:$0xf]
        %v502 = vld [vmem:[%s279 + $0xa8] sm:$0xf]
        %v503 = vld [vmem:[%s279 + $0xac] sm:$0xf]
        %v504 = vld [vmem:[%s279 + $0xb0] sm:$0xf]
        %v505 = vld [vmem:[%s279 + $0xb4] sm:$0xf]
        %v506 = vld [vmem:[%s279 + $0xb8] sm:$0xf]
        %v507 = vld [vmem:[%s279 + $0xbc] sm:$0xf]
        %v508 = vld [vmem:[%s279 + $0xc0] sm:$0xf]
        %v509 = vld [vmem:[%s279 + $0xc4] sm:$0xf]
        %v510 = vld [vmem:[%s279 + $0xc8] sm:$0xf]
        %v511 = vld [vmem:[%s279 + $0xcc] sm:$0xf]
        %v512 = vld [vmem:[%s279 + $0xd0] sm:$0xf]
        %v513 = vld [vmem:[%s279 + $0xd4] sm:$0xf]
        %v514 = vld [vmem:[%s279 + $0xd8] sm:$0xf]
        %v515 = vld [vmem:[%s279 + $0xdc] sm:$0xf]
        %v516 = vld [vmem:[%s279 + $0xe0] sm:$0xf]
        %v517 = vld [vmem:[%s279 + $0xe4] sm:$0xf]
        %v518 = vld [vmem:[%s279 + $0xe8] sm:$0xf]
        %v519 = vld [vmem:[%s279 + $0xec] sm:$0xf]
        %v520 = vld [vmem:[%s279 + $0xf0] sm:$0xf]
        %v521 = vld [vmem:[%s279 + $0xf4] sm:$0xf]
        %v522 = vld [vmem:[%s279 + $0xf8] sm:$0xf]
        %v523 = vld [vmem:[%s279 + $0xfc] sm:$0xf]
        %v524 = vld [vmem:[%s279 + $0x100] sm:$0xf]
        %v525 = vld [vmem:[%s279 + $0x104] sm:$0xf]
        %v526 = vld [vmem:[%s279 + $0x108] sm:$0xf]
        %v527 = vld [vmem:[%s279 + $0x10c] sm:$0xf]
        %v528 = vld [vmem:[%s279 + $0x110] sm:$0xf]
        %v529 = vld [vmem:[%s279 + $0x114] sm:$0xf]
        %v530 = vld [vmem:[%s279 + $0x118] sm:$0xf]
        %v531 = vld [vmem:[%s279 + $0x11c] sm:$0xf]
        %v532 = vld [vmem:[%s279 + $0x120] sm:$0xf]
        %v533 = vld [vmem:[%s279 + $0x124] sm:$0xf]
        %v534 = vld [vmem:[%s279 + $0x128] sm:$0xf]
        %v535 = vld [vmem:[%s279 + $0x12c] sm:$0xf]
        %v536 = vld [vmem:[%s279 + $0x130] sm:$0xf]
        %v537 = vld [vmem:[%s279 + $0x134] sm:$0xf]
        %v538 = vld [vmem:[%s279 + $0x138] sm:$0xf]
        %v539 = vld [vmem:[%s279 + $0x13c] sm:$0xf]
        %v540 = vld [vmem:[%s279 + $0x140] sm:$0xf]
        %v541 = vld [vmem:[%s279 + $0x144] sm:$0xf]
        %v542 = vld [vmem:[%s279 + $0x148] sm:$0xf]
        %v543 = vld [vmem:[%s279 + $0x14c] sm:$0xf]
        %v544 = vld [vmem:[%s279 + $0x150] sm:$0xf]
        %v545 = vld [vmem:[%s279 + $0x154] sm:$0xf]
        %v546 = vld [vmem:[%s279 + $0x158] sm:$0xf]
        %v547 = vld [vmem:[%s279 + $0x15c] sm:$0xf]
        %v548 = vld [vmem:[%s279 + $0x160] sm:$0xf]
        %v549 = vld [vmem:[%s279 + $0x164] sm:$0xf]
        %v550 = vld [vmem:[%s279 + $0x168] sm:$0xf]
        %v551 = vld [vmem:[%s279 + $0x16c] sm:$0xf]
        %v552 = vld [vmem:[%s279 + $0x170] sm:$0xf]
        %v553 = vld [vmem:[%s279 + $0x174] sm:$0xf]
        %v554 = vld [vmem:[%s279 + $0x178] sm:$0xf]
        %v555 = vld [vmem:[%s279 + $0x17c] sm:$0xf]
        %v556 = vld [vmem:[%s279 + $0x180] sm:$0xf]
        %v557 = vld [vmem:[%s279 + $0x184] sm:$0xf]
        %v558 = vld [vmem:[%s279 + $0x188] sm:$0xf]
        %v559 = vld [vmem:[%s279 + $0x18c] sm:$0xf]
        %v560 = vld [vmem:[%s279 + $0x190] sm:$0xf]
        %v561 = vld [vmem:[%s279 + $0x194] sm:$0xf]
        %v562 = vld [vmem:[%s279 + $0x198] sm:$0xf]
        %v563 = vld [vmem:[%s279 + $0x19c] sm:$0xf]
        %v564 = vld [vmem:[%s279 + $0x1a0] sm:$0xf]
        %v565 = vld [vmem:[%s279 + $0x1a4] sm:$0xf]
        %v566 = vld [vmem:[%s279 + $0x1a8] sm:$0xf]
        %v567 = vld [vmem:[%s279 + $0x1ac] sm:$0xf]
        %v568 = vld [vmem:[%s279 + $0x1b0] sm:$0xf]
        %v569 = vld [vmem:[%s279 + $0x1b4] sm:$0xf]
        %v570 = vld [vmem:[%s279 + $0x1b8] sm:$0xf]
        %v571 = vld [vmem:[%s279 + $0x1bc] sm:$0xf]
        %v572 = vld [vmem:[%s279 + $0x1c0] sm:$0xf]
        %v573 = vld [vmem:[%s279 + $0x1c4] sm:$0xf]
        %v574 = vld [vmem:[%s279 + $0x1c8] sm:$0xf]
        %v575 = vld [vmem:[%s279 + $0x1cc] sm:$0xf]
        %v576 = vld [vmem:[%s279 + $0x1d0] sm:$0xf]
        %v577 = vld [vmem:[%s279 + $0x1d4] sm:$0xf]
        %v578 = vld [vmem:[%s279 + $0x1d8] sm:$0xf]
        %v579 = vld [vmem:[%s279 + $0x1dc] sm:$0xf]
        %v580 = vld [vmem:[%s279 + $0x1e0] sm:$0xf]
        %v581 = vld [vmem:[%s279 + $0x1e4] sm:$0xf]
        %v582 = vld [vmem:[%s279 + $0x1e8] sm:$0xf]
        %v583 = vld [vmem:[%s279 + $0x1ec] sm:$0xf]
        %v584 = vld [vmem:[%s279 + $0x1f0] sm:$0xf]
        %v585 = vld [vmem:[%s279 + $0x1f4] sm:$0xf]
        %v586 = vld [vmem:[%s279 + $0x1f8] sm:$0xf]
        %v587 = vld [vmem:[%s279 + $0x1fc] sm:$0xf]
        %v588 = vld [vmem:[#allocation7] sm:$0xf]
        %v589 = vld [vmem:[#allocation7 + $0x4] sm:$0xf]
        %v590 = vld [vmem:[#allocation7 + $0x8] sm:$0xf]
        %v591 = vld [vmem:[#allocation7 + $0xc] sm:$0xf]
        %v592 = vld [vmem:[#allocation7 + $0x10] sm:$0xf]
        %v593 = vld [vmem:[#allocation7 + $0x14] sm:$0xf]
        %v594 = vld [vmem:[#allocation7 + $0x18] sm:$0xf]
        %v595 = vld [vmem:[#allocation7 + $0x1c] sm:$0xf]
        %v596 = vld [vmem:[#allocation7 + $0x20] sm:$0xf]
        %v597 = vld [vmem:[#allocation7 + $0x24] sm:$0xf]
        %v598 = vld [vmem:[#allocation7 + $0x28] sm:$0xf]
        %v599 = vld [vmem:[#allocation7 + $0x2c] sm:$0xf]
        %v600 = vld [vmem:[#allocation7 + $0x30] sm:$0xf]
        %v601 = vld [vmem:[#allocation7 + $0x34] sm:$0xf]
        %v602 = vld [vmem:[#allocation7 + $0x38] sm:$0xf]
        %v603 = vld [vmem:[#allocation7 + $0x3c] sm:$0xf]
        %v604 = vld [vmem:[#allocation9] sm:$0x1]
        %v733 = vunpack.c.l.b16 %v460
        %v734 = vunpack.c.l.b16 %v461
        %v735 = vunpack.c.l.b16 %v462
        %v736 = vunpack.c.l.b16 %v463
        %v737 = vunpack.c.l.b16 %v464
        %v738 = vunpack.c.l.b16 %v465
        %v739 = vunpack.c.l.b16 %v466
        %v740 = vunpack.c.l.b16 %v467
        %v741 = vunpack.c.l.b16 %v468
        %v742 = vunpack.c.l.b16 %v469
        %v743 = vunpack.c.l.b16 %v470
        %v744 = vunpack.c.l.b16 %v471
        %v745 = vunpack.c.l.b16 %v472
        %v746 = vunpack.c.l.b16 %v473
        %v747 = vunpack.c.l.b16 %v474
        %v748 = vunpack.c.l.b16 %v475
        %v749 = vunpack.c.l.b16 %v476
        %v750 = vunpack.c.l.b16 %v477
        %v751 = vunpack.c.l.b16 %v478
        %v752 = vunpack.c.l.b16 %v479
        %v753 = vunpack.c.l.b16 %v480
        %v754 = vunpack.c.l.b16 %v481
        %v755 = vunpack.c.l.b16 %v482
        %v756 = vunpack.c.l.b16 %v483
        %v757 = vunpack.c.l.b16 %v484
        %v758 = vunpack.c.l.b16 %v485
        %v759 = vunpack.c.l.b16 %v486
        %v760 = vunpack.c.l.b16 %v487
        %v761 = vunpack.c.l.b16 %v488
        %v762 = vunpack.c.l.b16 %v489
        %v763 = vunpack.c.l.b16 %v490
        %v764 = vunpack.c.l.b16 %v491
        %v765 = vunpack.c.l.b16 %v492
        %v766 = vunpack.c.l.b16 %v493
        %v767 = vunpack.c.l.b16 %v494
        %v768 = vunpack.c.l.b16 %v495
        %v769 = vunpack.c.l.b16 %v496
        %v770 = vunpack.c.l.b16 %v497
        %v771 = vunpack.c.l.b16 %v498
        %v772 = vunpack.c.l.b16 %v499
        %v773 = vunpack.c.l.b16 %v500
        %v774 = vunpack.c.l.b16 %v501
        %v775 = vunpack.c.l.b16 %v502
        %v776 = vunpack.c.l.b16 %v503
        %v777 = vunpack.c.l.b16 %v504
        %v778 = vunpack.c.l.b16 %v505
        %v779 = vunpack.c.l.b16 %v506
        %v780 = vunpack.c.l.b16 %v507
        %v781 = vunpack.c.l.b16 %v508
        %v782 = vunpack.c.l.b16 %v509
        %v783 = vunpack.c.l.b16 %v510
        %v784 = vunpack.c.l.b16 %v511
        %v785 = vunpack.c.l.b16 %v512
        %v786 = vunpack.c.l.b16 %v513
        %v787 = vunpack.c.l.b16 %v514
        %v788 = vunpack.c.l.b16 %v515
        %v789 = vunpack.c.l.b16 %v516
        %v790 = vunpack.c.l.b16 %v517
        %v791 = vunpack.c.l.b16 %v518
        %v792 = vunpack.c.l.b16 %v519
        %v793 = vunpack.c.l.b16 %v520
        %v794 = vunpack.c.l.b16 %v521
        %v795 = vunpack.c.l.b16 %v522
        %v796 = vunpack.c.l.b16 %v523
        %v797 = vunpack.c.l.b16 %v524
        %v798 = vunpack.c.l.b16 %v525
        %v799 = vunpack.c.l.b16 %v526
        %v800 = vunpack.c.l.b16 %v527
        %v801 = vunpack.c.l.b16 %v528
        %v802 = vunpack.c.l.b16 %v529
        %v803 = vunpack.c.l.b16 %v530
        %v804 = vunpack.c.l.b16 %v531
        %v805 = vunpack.c.l.b16 %v532
        %v806 = vunpack.c.l.b16 %v533
        %v807 = vunpack.c.l.b16 %v534
        %v808 = vunpack.c.l.b16 %v535
        %v809 = vunpack.c.l.b16 %v536
        %v810 = vunpack.c.l.b16 %v537
        %v811 = vunpack.c.l.b16 %v538
        %v812 = vunpack.c.l.b16 %v539
        %v813 = vunpack.c.l.b16 %v540
        %v814 = vunpack.c.l.b16 %v541
        %v815 = vunpack.c.l.b16 %v542
        %v816 = vunpack.c.l.b16 %v543
        %v817 = vunpack.c.l.b16 %v544
        %v818 = vunpack.c.l.b16 %v545
        %v819 = vunpack.c.l.b16 %v546
        %v820 = vunpack.c.l.b16 %v547
        %v821 = vunpack.c.l.b16 %v548
        %v822 = vunpack.c.l.b16 %v549
        %v823 = vunpack.c.l.b16 %v550
        %v824 = vunpack.c.l.b16 %v551
        %v825 = vunpack.c.l.b16 %v552
        %v826 = vunpack.c.l.b16 %v553
        %v827 = vunpack.c.l.b16 %v554
        %v828 = vunpack.c.l.b16 %v555
        %v829 = vunpack.c.l.b16 %v556
        %v830 = vunpack.c.l.b16 %v557
        %v831 = vunpack.c.l.b16 %v558
        %v832 = vunpack.c.l.b16 %v559
        %v833 = vunpack.c.l.b16 %v560
        %v834 = vunpack.c.l.b16 %v561
        %v835 = vunpack.c.l.b16 %v562
        %v836 = vunpack.c.l.b16 %v563
        %v837 = vunpack.c.l.b16 %v564
        %v838 = vunpack.c.l.b16 %v565
        %v839 = vunpack.c.l.b16 %v566
        %v840 = vunpack.c.l.b16 %v567
        %v841 = vunpack.c.l.b16 %v568
        %v842 = vunpack.c.l.b16 %v569
        %v843 = vunpack.c.l.b16 %v570
        %v844 = vunpack.c.l.b16 %v571
        %v845 = vunpack.c.l.b16 %v572
        %v846 = vunpack.c.l.b16 %v573
        %v847 = vunpack.c.l.b16 %v574
        %v848 = vunpack.c.l.b16 %v575
        %v849 = vunpack.c.l.b16 %v576
        %v850 = vunpack.c.l.b16 %v577
        %v851 = vunpack.c.l.b16 %v578
        %v852 = vunpack.c.l.b16 %v579
        %v853 = vunpack.c.l.b16 %v580
        %v854 = vunpack.c.l.b16 %v581
        %v855 = vunpack.c.l.b16 %v582
        %v856 = vunpack.c.l.b16 %v583
        %v857 = vunpack.c.l.b16 %v584
        %v858 = vunpack.c.l.b16 %v585
        %v859 = vunpack.c.l.b16 %v586
        %v860 = vunpack.c.l.b16 %v587
        %v861 = vpack.c.b16 %v734, %v733
        %v862 = vpack.c.b16 %v736, %v735
        %v863 = vpack.c.b16 %v738, %v737
        %v864 = vpack.c.b16 %v740, %v739
        %v865 = vpack.c.b16 %v742, %v741
        %v866 = vpack.c.b16 %v744, %v743
        %v867 = vpack.c.b16 %v746, %v745
        %v868 = vpack.c.b16 %v748, %v747
        %v869 = vpack.c.b16 %v750, %v749
        %v870 = vpack.c.b16 %v752, %v751
        %v871 = vpack.c.b16 %v754, %v753
        %v872 = vpack.c.b16 %v756, %v755
        %v873 = vpack.c.b16 %v758, %v757
        %v874 = vpack.c.b16 %v760, %v759
        %v875 = vpack.c.b16 %v762, %v761
        %v876 = vpack.c.b16 %v764, %v763
        %v877 = vpack.c.b16 %v766, %v765
        %v878 = vpack.c.b16 %v768, %v767
        %v879 = vpack.c.b16 %v770, %v769
        %v880 = vpack.c.b16 %v772, %v771
        %v881 = vpack.c.b16 %v774, %v773
        %v882 = vpack.c.b16 %v776, %v775
        %v883 = vpack.c.b16 %v778, %v777
        %v884 = vpack.c.b16 %v780, %v779
        %v885 = vpack.c.b16 %v782, %v781
        %v886 = vpack.c.b16 %v784, %v783
        %v887 = vpack.c.b16 %v786, %v785
        %v888 = vpack.c.b16 %v788, %v787
        %v889 = vpack.c.b16 %v790, %v789
        %v890 = vpack.c.b16 %v792, %v791
        %v891 = vpack.c.b16 %v794, %v793
        %v892 = vpack.c.b16 %v796, %v795
        %v893 = vpack.c.b16 %v798, %v797
        %v894 = vpack.c.b16 %v800, %v799
        %v895 = vpack.c.b16 %v802, %v801
        %v896 = vpack.c.b16 %v804, %v803
        %v897 = vpack.c.b16 %v806, %v805
        %v898 = vpack.c.b16 %v808, %v807
        %v899 = vpack.c.b16 %v810, %v809
        %v900 = vpack.c.b16 %v812, %v811
        %v901 = vpack.c.b16 %v814, %v813
        %v902 = vpack.c.b16 %v816, %v815
        %v903 = vpack.c.b16 %v818, %v817
        %v904 = vpack.c.b16 %v820, %v819
        %v905 = vpack.c.b16 %v822, %v821
        %v906 = vpack.c.b16 %v824, %v823
        %v907 = vpack.c.b16 %v826, %v825
        %v908 = vpack.c.b16 %v828, %v827
        %v909 = vpack.c.b16 %v830, %v829
        %v910 = vpack.c.b16 %v832, %v831
        %v911 = vpack.c.b16 %v834, %v833
        %v912 = vpack.c.b16 %v836, %v835
        %v913 = vpack.c.b16 %v838, %v837
        %v914 = vpack.c.b16 %v840, %v839
        %v915 = vpack.c.b16 %v842, %v841
        %v916 = vpack.c.b16 %v844, %v843
        %v917 = vpack.c.b16 %v846, %v845
        %v918 = vpack.c.b16 %v848, %v847
        %v919 = vpack.c.b16 %v850, %v849
        %v920 = vpack.c.b16 %v852, %v851
        %v921 = vpack.c.b16 %v854, %v853
        %v922 = vpack.c.b16 %v856, %v855
        %v923 = vpack.c.b16 %v858, %v857
        %v924 = vpack.c.b16 %v860, %v859
        %v1005 = vunpack.c.l.b16 %v588
        %v1006 = vunpack.c.l.b16 %v589
        %v1007 = vunpack.c.l.b16 %v590
        %v1008 = vunpack.c.l.b16 %v591
        %v1009 = vunpack.c.l.b16 %v592
        %v1010 = vunpack.c.l.b16 %v593
        %v1011 = vunpack.c.l.b16 %v594
        %v1012 = vunpack.c.l.b16 %v595
        %v1013 = vunpack.c.l.b16 %v596
        %v1014 = vunpack.c.l.b16 %v597
        %v1015 = vunpack.c.l.b16 %v598
        %v1016 = vunpack.c.l.b16 %v599
        %v1017 = vunpack.c.l.b16 %v600
        %v1018 = vunpack.c.l.b16 %v601
        %v1019 = vunpack.c.l.b16 %v602
        %v1020 = vunpack.c.l.b16 %v603
        %v1021 = vpack.c.b16 %v1006, %v1005
        %v1022 = vpack.c.b16 %v1008, %v1007
        %v1023 = vpack.c.b16 %v1010, %v1009
        %v1024 = vpack.c.b16 %v1012, %v1011
        %v1025 = vpack.c.b16 %v1014, %v1013
        %v1026 = vpack.c.b16 %v1016, %v1015
        %v1027 = vpack.c.b16 %v1018, %v1017
        %v1028 = vpack.c.b16 %v1020, %v1019
        %1037 = vmatprep.subr.bf16.mxu0 0
        %1038 = vmatpush1.bf16.msra.mxu0 %v1028
        %1039 = vmatprep.subr.bf16.mxu0 0
        %1040 = vmatpush1.bf16.msra.mxu0 %v1027
        %1041 = vmatprep.subr.bf16.mxu0 0
        %1042 = vmatpush1.bf16.msra.mxu0 %v1026
        %1043 = vmatprep.subr.bf16.mxu0 0
        %1044 = vmatpush1.bf16.msra.mxu0 %v1025
        %1045 = vmatprep.subr.bf16.mxu0 0
        %1046 = vmatpush1.bf16.msra.mxu0 %v1024
        %1047 = vmatprep.subr.bf16.mxu0 0
        %1048 = vmatpush1.bf16.msra.mxu0 %v1023
        %1049 = vmatprep.subr.bf16.mxu0 0
        %1050 = vmatpush1.bf16.msra.mxu0 %v1022
        %1051 = vmatprep.subr.bf16.mxu0 0
        %1052 = vmatpush1.bf16.msra.mxu0 %v1021
        %1053 = vmatprep.subr.bf16.mxu0 0
        %1054 = vmatpush2.bf16.msra.mxu0 0
        %1055 = vmatprep.subr.bf16.mxu0 0
        %1056 = vmatpush2.bf16.msra.mxu0 0
        %1057 = vmatprep.subr.bf16.mxu0 0
        %1058 = vmatpush2.bf16.msra.mxu0 0
        %1059 = vmatprep.subr.bf16.mxu0 0
        %1060 = vmatpush2.bf16.msra.mxu0 0
        %1061 = vmatprep.subr.bf16.mxu0 0
        %1062 = vmatpush2.bf16.msra.mxu0 0
        %1063 = vmatprep.subr.bf16.mxu0 0
        %1064 = vmatpush2.bf16.msra.mxu0 0
        %1065 = vmatprep.subr.bf16.mxu0 0
        %1066 = vmatpush2.bf16.msra.mxu0 0
        %1067 = vmatprep.subr.bf16.mxu0 0
        %1068 = vmatpush2.bf16.msra.mxu0 0
        %1069 = vmatprep.mubr.bf16.mxu0 0
        %1070 = vmatmul.mubr.bf16.gmra.mxu0 %v861
        %v1071 = vpop.f32.mrf.mxu0
        %v1072 = vadd.f32 0.0, %v1071
        %v1073 = vpop.f32.mrf.mxu0
        %v1074 = vpop.f32.mrf.mxu0
        %v1075 = vadd.f32 0.0, %v1074
        %v1076 = vpop.f32.mrf.mxu0
        %1077 = vmatprep.mubr.bf16.mxu0 0
        %1078 = vmatmul.mubr.bf16.gmra.mxu0 %v862
        %v1079 = vpop.f32.mrf.mxu0
        %v1080 = vadd.f32 0.0, %v1079
        %v1081 = vpop.f32.mrf.mxu0
        %v1082 = vpop.f32.mrf.mxu0
        %v1083 = vadd.f32 0.0, %v1082
        %v1084 = vpop.f32.mrf.mxu0
        %1085 = vmatprep.mubr.bf16.mxu0 0
        %1086 = vmatmul.mubr.bf16.gmra.mxu0 %v863
        %v1087 = vpop.f32.mrf.mxu0
        %v1088 = vadd.f32 0.0, %v1087
        %v1089 = vpop.f32.mrf.mxu0
        %v1090 = vpop.f32.mrf.mxu0
        %v1091 = vadd.f32 0.0, %v1090
        %v1092 = vpop.f32.mrf.mxu0
        %1093 = vmatprep.mubr.bf16.mxu0 0
        %1094 = vmatmul.mubr.bf16.gmra.mxu0 %v864
        %v1095 = vpop.f32.mrf.mxu0
        %v1096 = vadd.f32 0.0, %v1095
        %v1097 = vpop.f32.mrf.mxu0
        %v1098 = vpop.f32.mrf.mxu0
        %v1099 = vadd.f32 0.0, %v1098
        %v1100 = vpop.f32.mrf.mxu0
        %1101 = vmatprep.mubr.bf16.mxu0 0
        %1102 = vmatmul.mubr.bf16.gmra.mxu0 %v865
        %v1103 = vpop.f32.mrf.mxu0
        %v1104 = vadd.f32 0.0, %v1103
        %v1105 = vpop.f32.mrf.mxu0
        %v1106 = vpop.f32.mrf.mxu0
        %v1107 = vadd.f32 0.0, %v1106
        %v1108 = vpop.f32.mrf.mxu0
        %1109 = vmatprep.mubr.bf16.mxu0 0
        %1110 = vmatmul.mubr.bf16.gmra.mxu0 %v866
        %v1111 = vpop.f32.mrf.mxu0
        %v1112 = vadd.f32 0.0, %v1111
        %v1113 = vpop.f32.mrf.mxu0
        %v1114 = vpop.f32.mrf.mxu0
        %v1115 = vadd.f32 0.0, %v1114
        %v1116 = vpop.f32.mrf.mxu0
        %1117 = vmatprep.mubr.bf16.mxu0 0
        %1118 = vmatmul.mubr.bf16.gmra.mxu0 %v867
        %v1119 = vpop.f32.mrf.mxu0
        %v1120 = vadd.f32 0.0, %v1119
        %v1121 = vpop.f32.mrf.mxu0
        %v1122 = vpop.f32.mrf.mxu0
        %v1123 = vadd.f32 0.0, %v1122
        %v1124 = vpop.f32.mrf.mxu0
        %1125 = vmatprep.mubr.bf16.mxu0 0
        %1126 = vmatmul.mubr.bf16.gmra.mxu0 %v868
        %v1127 = vpop.f32.mrf.mxu0
        %v1128 = vadd.f32 0.0, %v1127
        %v1129 = vpop.f32.mrf.mxu0
        %v1130 = vpop.f32.mrf.mxu0
        %v1131 = vadd.f32 0.0, %v1130
        %v1132 = vpop.f32.mrf.mxu0
        %1133 = vmatprep.mubr.bf16.mxu0 0
        %1134 = vmatmul.mubr.bf16.gmra.mxu0 %v869
        %v1135 = vpop.f32.mrf.mxu0
        %v1136 = vadd.f32 0.0, %v1135
        %v1137 = vpop.f32.mrf.mxu0
        %v1138 = vpop.f32.mrf.mxu0
        %v1139 = vadd.f32 0.0, %v1138
        %v1140 = vpop.f32.mrf.mxu0
        %1141 = vmatprep.mubr.bf16.mxu0 0
        %1142 = vmatmul.mubr.bf16.gmra.mxu0 %v870
        %v1143 = vpop.f32.mrf.mxu0
        %v1144 = vadd.f32 0.0, %v1143
        %v1145 = vpop.f32.mrf.mxu0
        %v1146 = vpop.f32.mrf.mxu0
        %v1147 = vadd.f32 0.0, %v1146
        %v1148 = vpop.f32.mrf.mxu0
        %1149 = vmatprep.mubr.bf16.mxu0 0
        %1150 = vmatmul.mubr.bf16.gmra.mxu0 %v871
        %v1151 = vpop.f32.mrf.mxu0
        %v1152 = vadd.f32 0.0, %v1151
        %v1153 = vpop.f32.mrf.mxu0
        %v1154 = vpop.f32.mrf.mxu0
        %v1155 = vadd.f32 0.0, %v1154
        %v1156 = vpop.f32.mrf.mxu0
        %1157 = vmatprep.mubr.bf16.mxu0 0
        %1158 = vmatmul.mubr.bf16.gmra.mxu0 %v872
        %v1159 = vpop.f32.mrf.mxu0
        %v1160 = vadd.f32 0.0, %v1159
        %v1161 = vpop.f32.mrf.mxu0
        %v1162 = vpop.f32.mrf.mxu0
        %v1163 = vadd.f32 0.0, %v1162
        %v1164 = vpop.f32.mrf.mxu0
        %1165 = vmatprep.mubr.bf16.mxu0 0
        %1166 = vmatmul.mubr.bf16.gmra.mxu0 %v873
        %v1167 = vpop.f32.mrf.mxu0
        %v1168 = vadd.f32 0.0, %v1167
        %v1169 = vpop.f32.mrf.mxu0
        %v1170 = vpop.f32.mrf.mxu0
        %v1171 = vadd.f32 0.0, %v1170
        %v1172 = vpop.f32.mrf.mxu0
        %1173 = vmatprep.mubr.bf16.mxu0 0
        %1174 = vmatmul.mubr.bf16.gmra.mxu0 %v874
        %v1175 = vpop.f32.mrf.mxu0
        %v1176 = vadd.f32 0.0, %v1175
        %v1177 = vpop.f32.mrf.mxu0
        %v1178 = vpop.f32.mrf.mxu0
        %v1179 = vadd.f32 0.0, %v1178
        %v1180 = vpop.f32.mrf.mxu0
        %1181 = vmatprep.mubr.bf16.mxu0 0
        %1182 = vmatmul.mubr.bf16.gmra.mxu0 %v875
        %v1183 = vpop.f32.mrf.mxu0
        %v1184 = vadd.f32 0.0, %v1183
        %v1185 = vpop.f32.mrf.mxu0
        %v1186 = vpop.f32.mrf.mxu0
        %v1187 = vadd.f32 0.0, %v1186
        %v1188 = vpop.f32.mrf.mxu0
        %1189 = vmatprep.mubr.bf16.mxu0 0
        %1190 = vmatmul.mubr.bf16.gmra.mxu0 %v876
        %v1191 = vpop.f32.mrf.mxu0
        %v1192 = vadd.f32 0.0, %v1191
        %v1193 = vpop.f32.mrf.mxu0
        %v1194 = vpop.f32.mrf.mxu0
        %v1195 = vadd.f32 0.0, %v1194
        %v1196 = vpop.f32.mrf.mxu0
        %1197 = vmatprep.mubr.bf16.mxu0 0
        %1198 = vmatmul.mubr.bf16.gmra.mxu0 %v877
        %v1199 = vpop.f32.mrf.mxu0
        %v1200 = vadd.f32 0.0, %v1199
        %v1201 = vpop.f32.mrf.mxu0
        %v1202 = vpop.f32.mrf.mxu0
        %v1203 = vadd.f32 0.0, %v1202
        %v1204 = vpop.f32.mrf.mxu0
        %1205 = vmatprep.mubr.bf16.mxu0 0
        %1206 = vmatmul.mubr.bf16.gmra.mxu0 %v878
        %v1207 = vpop.f32.mrf.mxu0
        %v1208 = vadd.f32 0.0, %v1207
        %v1209 = vpop.f32.mrf.mxu0
        %v1210 = vpop.f32.mrf.mxu0
        %v1211 = vadd.f32 0.0, %v1210
        %v1212 = vpop.f32.mrf.mxu0
        %1213 = vmatprep.mubr.bf16.mxu0 0
        %1214 = vmatmul.mubr.bf16.gmra.mxu0 %v879
        %v1215 = vpop.f32.mrf.mxu0
        %v1216 = vadd.f32 0.0, %v1215
        %v1217 = vpop.f32.mrf.mxu0
        %v1218 = vpop.f32.mrf.mxu0
        %v1219 = vadd.f32 0.0, %v1218
        %v1220 = vpop.f32.mrf.mxu0
        %1221 = vmatprep.mubr.bf16.mxu0 0
        %1222 = vmatmul.mubr.bf16.gmra.mxu0 %v880
        %v1223 = vpop.f32.mrf.mxu0
        %v1224 = vadd.f32 0.0, %v1223
        %v1225 = vpop.f32.mrf.mxu0
        %v1226 = vpop.f32.mrf.mxu0
        %v1227 = vadd.f32 0.0, %v1226
        %v1228 = vpop.f32.mrf.mxu0
        %1229 = vmatprep.mubr.bf16.mxu0 0
        %1230 = vmatmul.mubr.bf16.gmra.mxu0 %v881
        %v1231 = vpop.f32.mrf.mxu0
        %v1232 = vadd.f32 0.0, %v1231
        %v1233 = vpop.f32.mrf.mxu0
        %v1234 = vpop.f32.mrf.mxu0
        %v1235 = vadd.f32 0.0, %v1234
        %v1236 = vpop.f32.mrf.mxu0
        %1237 = vmatprep.mubr.bf16.mxu0 0
        %1238 = vmatmul.mubr.bf16.gmra.mxu0 %v882
        %v1239 = vpop.f32.mrf.mxu0
        %v1240 = vadd.f32 0.0, %v1239
        %v1241 = vpop.f32.mrf.mxu0
        %v1242 = vpop.f32.mrf.mxu0
        %v1243 = vadd.f32 0.0, %v1242
        %v1244 = vpop.f32.mrf.mxu0
        %1245 = vmatprep.mubr.bf16.mxu0 0
        %1246 = vmatmul.mubr.bf16.gmra.mxu0 %v883
        %v1247 = vpop.f32.mrf.mxu0
        %v1248 = vadd.f32 0.0, %v1247
        %v1249 = vpop.f32.mrf.mxu0
        %v1250 = vpop.f32.mrf.mxu0
        %v1251 = vadd.f32 0.0, %v1250
        %v1252 = vpop.f32.mrf.mxu0
        %1253 = vmatprep.mubr.bf16.mxu0 0
        %1254 = vmatmul.mubr.bf16.gmra.mxu0 %v884
        %v1255 = vpop.f32.mrf.mxu0
        %v1256 = vadd.f32 0.0, %v1255
        %v1257 = vpop.f32.mrf.mxu0
        %v1258 = vpop.f32.mrf.mxu0
        %v1259 = vadd.f32 0.0, %v1258
        %v1260 = vpop.f32.mrf.mxu0
        %1261 = vmatprep.mubr.bf16.mxu0 0
        %1262 = vmatmul.mubr.bf16.gmra.mxu0 %v885
        %v1263 = vpop.f32.mrf.mxu0
        %v1264 = vadd.f32 0.0, %v1263
        %v1265 = vpop.f32.mrf.mxu0
        %v1266 = vpop.f32.mrf.mxu0
        %v1267 = vadd.f32 0.0, %v1266
        %v1268 = vpop.f32.mrf.mxu0
        %1269 = vmatprep.mubr.bf16.mxu0 0
        %1270 = vmatmul.mubr.bf16.gmra.mxu0 %v886
        %v1271 = vpop.f32.mrf.mxu0
        %v1272 = vadd.f32 0.0, %v1271
        %v1273 = vpop.f32.mrf.mxu0
        %v1274 = vpop.f32.mrf.mxu0
        %v1275 = vadd.f32 0.0, %v1274
        %v1276 = vpop.f32.mrf.mxu0
        %1277 = vmatprep.mubr.bf16.mxu0 0
        %1278 = vmatmul.mubr.bf16.gmra.mxu0 %v887
        %v1279 = vpop.f32.mrf.mxu0
        %v1280 = vadd.f32 0.0, %v1279
        %v1281 = vpop.f32.mrf.mxu0
        %v1282 = vpop.f32.mrf.mxu0
        %v1283 = vadd.f32 0.0, %v1282
        %v1284 = vpop.f32.mrf.mxu0
        %1285 = vmatprep.mubr.bf16.mxu0 0
        %1286 = vmatmul.mubr.bf16.gmra.mxu0 %v888
        %v1287 = vpop.f32.mrf.mxu0
        %v1288 = vadd.f32 0.0, %v1287
        %v1289 = vpop.f32.mrf.mxu0
        %v1290 = vpop.f32.mrf.mxu0
        %v1291 = vadd.f32 0.0, %v1290
        %v1292 = vpop.f32.mrf.mxu0
        %1293 = vmatprep.mubr.bf16.mxu0 0
        %1294 = vmatmul.mubr.bf16.gmra.mxu0 %v889
        %v1295 = vpop.f32.mrf.mxu0
        %v1296 = vadd.f32 0.0, %v1295
        %v1297 = vpop.f32.mrf.mxu0
        %v1298 = vpop.f32.mrf.mxu0
        %v1299 = vadd.f32 0.0, %v1298
        %v1300 = vpop.f32.mrf.mxu0
        %1301 = vmatprep.mubr.bf16.mxu0 0
        %1302 = vmatmul.mubr.bf16.gmra.mxu0 %v890
        %v1303 = vpop.f32.mrf.mxu0
        %v1304 = vadd.f32 0.0, %v1303
        %v1305 = vpop.f32.mrf.mxu0
        %v1306 = vpop.f32.mrf.mxu0
        %v1307 = vadd.f32 0.0, %v1306
        %v1308 = vpop.f32.mrf.mxu0
        %1309 = vmatprep.mubr.bf16.mxu0 0
        %1310 = vmatmul.mubr.bf16.gmra.mxu0 %v891
        %v1311 = vpop.f32.mrf.mxu0
        %v1312 = vadd.f32 0.0, %v1311
        %v1313 = vpop.f32.mrf.mxu0
        %v1314 = vpop.f32.mrf.mxu0
        %v1315 = vadd.f32 0.0, %v1314
        %v1316 = vpop.f32.mrf.mxu0
        %1317 = vmatprep.mubr.bf16.mxu0 0
        %1318 = vmatmul.mubr.bf16.gmra.mxu0 %v892
        %v1319 = vpop.f32.mrf.mxu0
        %v1320 = vadd.f32 0.0, %v1319
        %v1321 = vpop.f32.mrf.mxu0
        %v1322 = vpop.f32.mrf.mxu0
        %v1323 = vadd.f32 0.0, %v1322
        %v1324 = vpop.f32.mrf.mxu0
        %1325 = vmatprep.mubr.bf16.mxu0 0
        %1326 = vmatmul.mubr.bf16.gmra.mxu0 %v893
        %v1327 = vpop.f32.mrf.mxu0
        %v1328 = vadd.f32 0.0, %v1327
        %v1329 = vpop.f32.mrf.mxu0
        %v1330 = vpop.f32.mrf.mxu0
        %v1331 = vadd.f32 0.0, %v1330
        %v1332 = vpop.f32.mrf.mxu0
        %1333 = vmatprep.mubr.bf16.mxu0 0
        %1334 = vmatmul.mubr.bf16.gmra.mxu0 %v894
        %v1335 = vpop.f32.mrf.mxu0
        %v1336 = vadd.f32 0.0, %v1335
        %v1337 = vpop.f32.mrf.mxu0
        %v1338 = vpop.f32.mrf.mxu0
        %v1339 = vadd.f32 0.0, %v1338
        %v1340 = vpop.f32.mrf.mxu0
        %1341 = vmatprep.mubr.bf16.mxu0 0
        %1342 = vmatmul.mubr.bf16.gmra.mxu0 %v895
        %v1343 = vpop.f32.mrf.mxu0
        %v1344 = vadd.f32 0.0, %v1343
        %v1345 = vpop.f32.mrf.mxu0
        %v1346 = vpop.f32.mrf.mxu0
        %v1347 = vadd.f32 0.0, %v1346
        %v1348 = vpop.f32.mrf.mxu0
        %1349 = vmatprep.mubr.bf16.mxu0 0
        %1350 = vmatmul.mubr.bf16.gmra.mxu0 %v896
        %v1351 = vpop.f32.mrf.mxu0
        %v1352 = vadd.f32 0.0, %v1351
        %v1353 = vpop.f32.mrf.mxu0
        %v1354 = vpop.f32.mrf.mxu0
        %v1355 = vadd.f32 0.0, %v1354
        %v1356 = vpop.f32.mrf.mxu0
        %1357 = vmatprep.mubr.bf16.mxu0 0
        %1358 = vmatmul.mubr.bf16.gmra.mxu0 %v897
        %v1359 = vpop.f32.mrf.mxu0
        %v1360 = vadd.f32 0.0, %v1359
        %v1361 = vpop.f32.mrf.mxu0
        %v1362 = vpop.f32.mrf.mxu0
        %v1363 = vadd.f32 0.0, %v1362
        %v1364 = vpop.f32.mrf.mxu0
        %1365 = vmatprep.mubr.bf16.mxu0 0
        %1366 = vmatmul.mubr.bf16.gmra.mxu0 %v898
        %v1367 = vpop.f32.mrf.mxu0
        %v1368 = vadd.f32 0.0, %v1367
        %v1369 = vpop.f32.mrf.mxu0
        %v1370 = vpop.f32.mrf.mxu0
        %v1371 = vadd.f32 0.0, %v1370
        %v1372 = vpop.f32.mrf.mxu0
        %1373 = vmatprep.mubr.bf16.mxu0 0
        %1374 = vmatmul.mubr.bf16.gmra.mxu0 %v899
        %v1375 = vpop.f32.mrf.mxu0
        %v1376 = vadd.f32 0.0, %v1375
        %v1377 = vpop.f32.mrf.mxu0
        %v1378 = vpop.f32.mrf.mxu0
        %v1379 = vadd.f32 0.0, %v1378
        %v1380 = vpop.f32.mrf.mxu0
        %1381 = vmatprep.mubr.bf16.mxu0 0
        %1382 = vmatmul.mubr.bf16.gmra.mxu0 %v900
        %v1383 = vpop.f32.mrf.mxu0
        %v1384 = vadd.f32 0.0, %v1383
        %v1385 = vpop.f32.mrf.mxu0
        %v1386 = vpop.f32.mrf.mxu0
        %v1387 = vadd.f32 0.0, %v1386
        %v1388 = vpop.f32.mrf.mxu0
        %1389 = vmatprep.mubr.bf16.mxu0 0
        %1390 = vmatmul.mubr.bf16.gmra.mxu0 %v901
        %v1391 = vpop.f32.mrf.mxu0
        %v1392 = vadd.f32 0.0, %v1391
        %v1393 = vpop.f32.mrf.mxu0
        %v1394 = vpop.f32.mrf.mxu0
        %v1395 = vadd.f32 0.0, %v1394
        %v1396 = vpop.f32.mrf.mxu0
        %1397 = vmatprep.mubr.bf16.mxu0 0
        %1398 = vmatmul.mubr.bf16.gmra.mxu0 %v902
        %v1399 = vpop.f32.mrf.mxu0
        %v1400 = vadd.f32 0.0, %v1399
        %v1401 = vpop.f32.mrf.mxu0
        %v1402 = vpop.f32.mrf.mxu0
        %v1403 = vadd.f32 0.0, %v1402
        %v1404 = vpop.f32.mrf.mxu0
        %1405 = vmatprep.mubr.bf16.mxu0 0
        %1406 = vmatmul.mubr.bf16.gmra.mxu0 %v903
        %v1407 = vpop.f32.mrf.mxu0
        %v1408 = vadd.f32 0.0, %v1407
        %v1409 = vpop.f32.mrf.mxu0
        %v1410 = vpop.f32.mrf.mxu0
        %v1411 = vadd.f32 0.0, %v1410
        %v1412 = vpop.f32.mrf.mxu0
        %1413 = vmatprep.mubr.bf16.mxu0 0
        %1414 = vmatmul.mubr.bf16.gmra.mxu0 %v904
        %v1415 = vpop.f32.mrf.mxu0
        %v1416 = vadd.f32 0.0, %v1415
        %v1417 = vpop.f32.mrf.mxu0
        %v1418 = vpop.f32.mrf.mxu0
        %v1419 = vadd.f32 0.0, %v1418
        %v1420 = vpop.f32.mrf.mxu0
        %1421 = vmatprep.mubr.bf16.mxu0 0
        %1422 = vmatmul.mubr.bf16.gmra.mxu0 %v905
        %v1423 = vpop.f32.mrf.mxu0
        %v1424 = vadd.f32 0.0, %v1423
        %v1425 = vpop.f32.mrf.mxu0
        %v1426 = vpop.f32.mrf.mxu0
        %v1427 = vadd.f32 0.0, %v1426
        %v1428 = vpop.f32.mrf.mxu0
        %1429 = vmatprep.mubr.bf16.mxu0 0
        %1430 = vmatmul.mubr.bf16.gmra.mxu0 %v906
        %v1431 = vpop.f32.mrf.mxu0
        %v1432 = vadd.f32 0.0, %v1431
        %v1433 = vpop.f32.mrf.mxu0
        %v1434 = vpop.f32.mrf.mxu0
        %v1435 = vadd.f32 0.0, %v1434
        %v1436 = vpop.f32.mrf.mxu0
        %1437 = vmatprep.mubr.bf16.mxu0 0
        %1438 = vmatmul.mubr.bf16.gmra.mxu0 %v907
        %v1439 = vpop.f32.mrf.mxu0
        %v1440 = vadd.f32 0.0, %v1439
        %v1441 = vpop.f32.mrf.mxu0
        %v1442 = vpop.f32.mrf.mxu0
        %v1443 = vadd.f32 0.0, %v1442
        %v1444 = vpop.f32.mrf.mxu0
        %1445 = vmatprep.mubr.bf16.mxu0 0
        %1446 = vmatmul.mubr.bf16.gmra.mxu0 %v908
        %v1447 = vpop.f32.mrf.mxu0
        %v1448 = vadd.f32 0.0, %v1447
        %v1449 = vpop.f32.mrf.mxu0
        %v1450 = vpop.f32.mrf.mxu0
        %v1451 = vadd.f32 0.0, %v1450
        %v1452 = vpop.f32.mrf.mxu0
        %1453 = vmatprep.mubr.bf16.mxu0 0
        %1454 = vmatmul.mubr.bf16.gmra.mxu0 %v909
        %v1455 = vpop.f32.mrf.mxu0
        %v1456 = vadd.f32 0.0, %v1455
        %v1457 = vpop.f32.mrf.mxu0
        %v1458 = vpop.f32.mrf.mxu0
        %v1459 = vadd.f32 0.0, %v1458
        %v1460 = vpop.f32.mrf.mxu0
        %1461 = vmatprep.mubr.bf16.mxu0 0
        %1462 = vmatmul.mubr.bf16.gmra.mxu0 %v910
        %v1463 = vpop.f32.mrf.mxu0
        %v1464 = vadd.f32 0.0, %v1463
        %v1465 = vpop.f32.mrf.mxu0
        %v1466 = vpop.f32.mrf.mxu0
        %v1467 = vadd.f32 0.0, %v1466
        %v1468 = vpop.f32.mrf.mxu0
        %1469 = vmatprep.mubr.bf16.mxu0 0
        %1470 = vmatmul.mubr.bf16.gmra.mxu0 %v911
        %v1471 = vpop.f32.mrf.mxu0
        %v1472 = vadd.f32 0.0, %v1471
        %v1473 = vpop.f32.mrf.mxu0
        %v1474 = vpop.f32.mrf.mxu0
        %v1475 = vadd.f32 0.0, %v1474
        %v1476 = vpop.f32.mrf.mxu0
        %1477 = vmatprep.mubr.bf16.mxu0 0
        %1478 = vmatmul.mubr.bf16.gmra.mxu0 %v912
        %v1479 = vpop.f32.mrf.mxu0
        %v1480 = vadd.f32 0.0, %v1479
        %v1481 = vpop.f32.mrf.mxu0
        %v1482 = vpop.f32.mrf.mxu0
        %v1483 = vadd.f32 0.0, %v1482
        %v1484 = vpop.f32.mrf.mxu0
        %1485 = vmatprep.mubr.bf16.mxu0 0
        %1486 = vmatmul.mubr.bf16.gmra.mxu0 %v913
        %v1487 = vpop.f32.mrf.mxu0
        %v1488 = vadd.f32 0.0, %v1487
        %v1489 = vpop.f32.mrf.mxu0
        %v1490 = vpop.f32.mrf.mxu0
        %v1491 = vadd.f32 0.0, %v1490
        %v1492 = vpop.f32.mrf.mxu0
        %1493 = vmatprep.mubr.bf16.mxu0 0
        %1494 = vmatmul.mubr.bf16.gmra.mxu0 %v914
        %v1495 = vpop.f32.mrf.mxu0
        %v1496 = vadd.f32 0.0, %v1495
        %v1497 = vpop.f32.mrf.mxu0
        %v1498 = vpop.f32.mrf.mxu0
        %v1499 = vadd.f32 0.0, %v1498
        %v1500 = vpop.f32.mrf.mxu0
        %1501 = vmatprep.mubr.bf16.mxu0 0
        %1502 = vmatmul.mubr.bf16.gmra.mxu0 %v915
        %v1503 = vpop.f32.mrf.mxu0
        %v1504 = vadd.f32 0.0, %v1503
        %v1505 = vpop.f32.mrf.mxu0
        %v1506 = vpop.f32.mrf.mxu0
        %v1507 = vadd.f32 0.0, %v1506
        %v1508 = vpop.f32.mrf.mxu0
        %1509 = vmatprep.mubr.bf16.mxu0 0
        %1510 = vmatmul.mubr.bf16.gmra.mxu0 %v916
        %v1511 = vpop.f32.mrf.mxu0
        %v1512 = vadd.f32 0.0, %v1511
        %v1513 = vpop.f32.mrf.mxu0
        %v1514 = vpop.f32.mrf.mxu0
        %v1515 = vadd.f32 0.0, %v1514
        %v1516 = vpop.f32.mrf.mxu0
        %1517 = vmatprep.mubr.bf16.mxu0 0
        %1518 = vmatmul.mubr.bf16.gmra.mxu0 %v917
        %v1519 = vpop.f32.mrf.mxu0
        %v1520 = vadd.f32 0.0, %v1519
        %v1521 = vpop.f32.mrf.mxu0
        %v1522 = vpop.f32.mrf.mxu0
        %v1523 = vadd.f32 0.0, %v1522
        %v1524 = vpop.f32.mrf.mxu0
        %1525 = vmatprep.mubr.bf16.mxu0 0
        %1526 = vmatmul.mubr.bf16.gmra.mxu0 %v918
        %v1527 = vpop.f32.mrf.mxu0
        %v1528 = vadd.f32 0.0, %v1527
        %v1529 = vpop.f32.mrf.mxu0
        %v1530 = vpop.f32.mrf.mxu0
        %v1531 = vadd.f32 0.0, %v1530
        %v1532 = vpop.f32.mrf.mxu0
        %1533 = vmatprep.mubr.bf16.mxu0 0
        %1534 = vmatmul.mubr.bf16.gmra.mxu0 %v919
        %v1535 = vpop.f32.mrf.mxu0
        %v1536 = vadd.f32 0.0, %v1535
        %v1537 = vpop.f32.mrf.mxu0
        %v1538 = vpop.f32.mrf.mxu0
        %v1539 = vadd.f32 0.0, %v1538
        %v1540 = vpop.f32.mrf.mxu0
        %1541 = vmatprep.mubr.bf16.mxu0 0
        %1542 = vmatmul.mubr.bf16.gmra.mxu0 %v920
        %v1543 = vpop.f32.mrf.mxu0
        %v1544 = vadd.f32 0.0, %v1543
        %v1545 = vpop.f32.mrf.mxu0
        %v1546 = vpop.f32.mrf.mxu0
        %v1547 = vadd.f32 0.0, %v1546
        %v1548 = vpop.f32.mrf.mxu0
        %1549 = vmatprep.mubr.bf16.mxu0 0
        %1550 = vmatmul.mubr.bf16.gmra.mxu0 %v921
        %v1551 = vpop.f32.mrf.mxu0
        %v1552 = vadd.f32 0.0, %v1551
        %v1553 = vpop.f32.mrf.mxu0
        %v1554 = vpop.f32.mrf.mxu0
        %v1555 = vadd.f32 0.0, %v1554
        %v1556 = vpop.f32.mrf.mxu0
        %1557 = vmatprep.mubr.bf16.mxu0 0
        %1558 = vmatmul.mubr.bf16.gmra.mxu0 %v922
        %v1559 = vpop.f32.mrf.mxu0
        %v1560 = vadd.f32 0.0, %v1559
        %v1561 = vpop.f32.mrf.mxu0
        %v1562 = vpop.f32.mrf.mxu0
        %v1563 = vadd.f32 0.0, %v1562
        %v1564 = vpop.f32.mrf.mxu0
        %1565 = vmatprep.mubr.bf16.mxu0 0
        %1566 = vmatmul.mubr.bf16.gmra.mxu0 %v923
        %v1567 = vpop.f32.mrf.mxu0
        %v1568 = vadd.f32 0.0, %v1567
        %v1569 = vpop.f32.mrf.mxu0
        %v1570 = vpop.f32.mrf.mxu0
        %v1571 = vadd.f32 0.0, %v1570
        %v1572 = vpop.f32.mrf.mxu0
        %1573 = vmatprep.mubr.bf16.mxu0 0
        %1574 = vmatmul.mubr.bf16.gmra.mxu0 %v924
        %v1575 = vpop.f32.mrf.mxu0
        %v1576 = vadd.f32 0.0, %v1575
        %v1577 = vpop.f32.mrf.mxu0
        %v1578 = vpop.f32.mrf.mxu0
        %v1579 = vadd.f32 0.0, %v1578
        %v1580 = vpop.f32.mrf.mxu0
        %1581 = vdwg.mxu0
        %v1582 = vpack.c.bf16 %v1075, %v1072
        %v1583 = vpack.c.bf16 %v1083, %v1080
        %v1584 = vpack.c.bf16 %v1091, %v1088
        %v1585 = vpack.c.bf16 %v1099, %v1096
        %v1586 = vpack.c.bf16 %v1107, %v1104
        %v1587 = vpack.c.bf16 %v1115, %v1112
        %v1588 = vpack.c.bf16 %v1123, %v1120
        %v1589 = vpack.c.bf16 %v1131, %v1128
        %v1590 = vpack.c.bf16 %v1139, %v1136
        %v1591 = vpack.c.bf16 %v1147, %v1144
        %v1592 = vpack.c.bf16 %v1155, %v1152
        %v1593 = vpack.c.bf16 %v1163, %v1160
        %v1594 = vpack.c.bf16 %v1171, %v1168
        %v1595 = vpack.c.bf16 %v1179, %v1176
        %v1596 = vpack.c.bf16 %v1187, %v1184
        %v1597 = vpack.c.bf16 %v1195, %v1192
        %v1598 = vpack.c.bf16 %v1203, %v1200
        %v1599 = vpack.c.bf16 %v1211, %v1208
        %v1600 = vpack.c.bf16 %v1219, %v1216
        %v1601 = vpack.c.bf16 %v1227, %v1224
        %v1602 = vpack.c.bf16 %v1235, %v1232
        %v1603 = vpack.c.bf16 %v1243, %v1240
        %v1604 = vpack.c.bf16 %v1251, %v1248
        %v1605 = vpack.c.bf16 %v1259, %v1256
        %v1606 = vpack.c.bf16 %v1267, %v1264
        %v1607 = vpack.c.bf16 %v1275, %v1272
        %v1608 = vpack.c.bf16 %v1283, %v1280
        %v1609 = vpack.c.bf16 %v1291, %v1288
        %v1610 = vpack.c.bf16 %v1299, %v1296
        %v1611 = vpack.c.bf16 %v1307, %v1304
        %v1612 = vpack.c.bf16 %v1315, %v1312
        %v1613 = vpack.c.bf16 %v1323, %v1320
        %v1614 = vpack.c.bf16 %v1331, %v1328
        %v1615 = vpack.c.bf16 %v1339, %v1336
        %v1616 = vpack.c.bf16 %v1347, %v1344
        %v1617 = vpack.c.bf16 %v1355, %v1352
        %v1618 = vpack.c.bf16 %v1363, %v1360
        %v1619 = vpack.c.bf16 %v1371, %v1368
        %v1620 = vpack.c.bf16 %v1379, %v1376
        %v1621 = vpack.c.bf16 %v1387, %v1384
        %v1622 = vpack.c.bf16 %v1395, %v1392
        %v1623 = vpack.c.bf16 %v1403, %v1400
        %v1624 = vpack.c.bf16 %v1411, %v1408
        %v1625 = vpack.c.bf16 %v1419, %v1416
        %v1626 = vpack.c.bf16 %v1427, %v1424
        %v1627 = vpack.c.bf16 %v1435, %v1432
        %v1628 = vpack.c.bf16 %v1443, %v1440
        %v1629 = vpack.c.bf16 %v1451, %v1448
        %v1630 = vpack.c.bf16 %v1459, %v1456
        %v1631 = vpack.c.bf16 %v1467, %v1464
        %v1632 = vpack.c.bf16 %v1475, %v1472
        %v1633 = vpack.c.bf16 %v1483, %v1480
        %v1634 = vpack.c.bf16 %v1491, %v1488
        %v1635 = vpack.c.bf16 %v1499, %v1496
        %v1636 = vpack.c.bf16 %v1507, %v1504
        %v1637 = vpack.c.bf16 %v1515, %v1512
        %v1638 = vpack.c.bf16 %v1523, %v1520
        %v1639 = vpack.c.bf16 %v1531, %v1528
        %v1640 = vpack.c.bf16 %v1539, %v1536
        %v1641 = vpack.c.bf16 %v1547, %v1544
        %v1642 = vpack.c.bf16 %v1555, %v1552
        %v1643 = vpack.c.bf16 %v1563, %v1560
        %v1644 = vpack.c.bf16 %v1571, %v1568
        %v1645 = vpack.c.bf16 %v1579, %v1576
        %v1678 = vunpack.c.l.b16 %v332
        %v1679 = vunpack.c.h.b16 %v332
        %v1680 = vunpack.c.l.b16 %v333
        %v1681 = vunpack.c.h.b16 %v333
        %v1682 = vunpack.c.l.b16 %v334
        %v1683 = vunpack.c.h.b16 %v334
        %v1684 = vunpack.c.l.b16 %v335
        %v1685 = vunpack.c.h.b16 %v335
        %v1686 = vunpack.c.l.b16 %v336
        %v1687 = vunpack.c.h.b16 %v336
        %v1688 = vunpack.c.l.b16 %v337
        %v1689 = vunpack.c.h.b16 %v337
        %v1690 = vunpack.c.l.b16 %v338
        %v1691 = vunpack.c.h.b16 %v338
        %v1692 = vunpack.c.l.b16 %v339
        %v1693 = vunpack.c.h.b16 %v339
        %v1694 = vunpack.c.l.b16 %v340
        %v1695 = vunpack.c.h.b16 %v340
        %v1696 = vunpack.c.l.b16 %v341
        %v1697 = vunpack.c.h.b16 %v341
        %v1698 = vunpack.c.l.b16 %v342
        %v1699 = vunpack.c.h.b16 %v342
        %v1700 = vunpack.c.l.b16 %v343
        %v1701 = vunpack.c.h.b16 %v343
        %v1702 = vunpack.c.l.b16 %v344
        %v1703 = vunpack.c.h.b16 %v344
        %v1704 = vunpack.c.l.b16 %v345
        %v1705 = vunpack.c.h.b16 %v345
        %v1706 = vunpack.c.l.b16 %v346
        %v1707 = vunpack.c.h.b16 %v346
        %v1708 = vunpack.c.l.b16 %v347
        %v1709 = vunpack.c.h.b16 %v347
        %v1710 = vunpack.c.l.b16 %v348
        %v1711 = vunpack.c.h.b16 %v348
        %v1712 = vunpack.c.l.b16 %v349
        %v1713 = vunpack.c.h.b16 %v349
        %v1714 = vunpack.c.l.b16 %v350
        %v1715 = vunpack.c.h.b16 %v350
        %v1716 = vunpack.c.l.b16 %v351
        %v1717 = vunpack.c.h.b16 %v351
        %v1718 = vunpack.c.l.b16 %v352
        %v1719 = vunpack.c.h.b16 %v352
        %v1720 = vunpack.c.l.b16 %v353
        %v1721 = vunpack.c.h.b16 %v353
        %v1722 = vunpack.c.l.b16 %v354
        %v1723 = vunpack.c.h.b16 %v354
        %v1724 = vunpack.c.l.b16 %v355
        %v1725 = vunpack.c.h.b16 %v355
        %v1726 = vunpack.c.l.b16 %v356
        %v1727 = vunpack.c.h.b16 %v356
        %v1728 = vunpack.c.l.b16 %v357
        %v1729 = vunpack.c.h.b16 %v357
        %v1730 = vunpack.c.l.b16 %v358
        %v1731 = vunpack.c.h.b16 %v358
        %v1732 = vunpack.c.l.b16 %v359
        %v1733 = vunpack.c.h.b16 %v359
        %v1734 = vunpack.c.l.b16 %v360
        %v1735 = vunpack.c.h.b16 %v360
        %v1736 = vunpack.c.l.b16 %v361
        %v1737 = vunpack.c.h.b16 %v361
        %v1738 = vunpack.c.l.b16 %v362
        %v1739 = vunpack.c.h.b16 %v362
        %v1740 = vunpack.c.l.b16 %v363
        %v1741 = vunpack.c.h.b16 %v363
        %v1742 = vpack.c.b16 %v1680, %v1678
        %v1743 = vpack.c.b16 %v1681, %v1679
        %v1744 = vpack.c.b16 %v1684, %v1682
        %v1745 = vpack.c.b16 %v1685, %v1683
        %v1746 = vpack.c.b16 %v1688, %v1686
        %v1747 = vpack.c.b16 %v1689, %v1687
        %v1748 = vpack.c.b16 %v1692, %v1690
        %v1749 = vpack.c.b16 %v1693, %v1691
        %v1750 = vpack.c.b16 %v1696, %v1694
        %v1751 = vpack.c.b16 %v1697, %v1695
        %v1752 = vpack.c.b16 %v1700, %v1698
        %v1753 = vpack.c.b16 %v1701, %v1699
        %v1754 = vpack.c.b16 %v1704, %v1702
        %v1755 = vpack.c.b16 %v1705, %v1703
        %v1756 = vpack.c.b16 %v1708, %v1706
        %v1757 = vpack.c.b16 %v1709, %v1707
        %v1758 = vpack.c.b16 %v1712, %v1710
        %v1759 = vpack.c.b16 %v1713, %v1711
        %v1760 = vpack.c.b16 %v1716, %v1714
        %v1761 = vpack.c.b16 %v1717, %v1715
        %v1762 = vpack.c.b16 %v1720, %v1718
        %v1763 = vpack.c.b16 %v1721, %v1719
        %v1764 = vpack.c.b16 %v1724, %v1722
        %v1765 = vpack.c.b16 %v1725, %v1723
        %v1766 = vpack.c.b16 %v1728, %v1726
        %v1767 = vpack.c.b16 %v1729, %v1727
        %v1768 = vpack.c.b16 %v1732, %v1730
        %v1769 = vpack.c.b16 %v1733, %v1731
        %v1770 = vpack.c.b16 %v1736, %v1734
        %v1771 = vpack.c.b16 %v1737, %v1735
        %v1772 = vpack.c.b16 %v1740, %v1738
        %v1773 = vpack.c.b16 %v1741, %v1739
        %1806 = vmatprep.subr.bf16.mxu0 0
        %1807 = vmatpush1.bf16.msra.mxu0 %v1589
        %1808 = vmatprep.subr.bf16.mxu0 0
        %1809 = vmatpush1.bf16.msra.mxu0 %v1588
        %1810 = vmatprep.subr.bf16.mxu0 0
        %1811 = vmatpush1.bf16.msra.mxu0 %v1587
        %1812 = vmatprep.subr.bf16.mxu0 0
        %1813 = vmatpush1.bf16.msra.mxu0 %v1586
        %1814 = vmatprep.subr.bf16.mxu0 0
        %1815 = vmatpush1.bf16.msra.mxu0 %v1585
        %1816 = vmatprep.subr.bf16.mxu0 0
        %1817 = vmatpush1.bf16.msra.mxu0 %v1584
        %1818 = vmatprep.subr.bf16.mxu0 0
        %1819 = vmatpush1.bf16.msra.mxu0 %v1583
        %1820 = vmatprep.subr.bf16.mxu0 0
        %1821 = vmatpush1.bf16.msra.mxu0 %v1582
        %1822 = vmatprep.subr.bf16.mxu0 0
        %1823 = vmatpush2.bf16.msra.mxu0 %v1597
        %1824 = vmatprep.subr.bf16.mxu0 0
        %1825 = vmatpush2.bf16.msra.mxu0 %v1596
        %1826 = vmatprep.subr.bf16.mxu0 0
        %1827 = vmatpush2.bf16.msra.mxu0 %v1595
        %1828 = vmatprep.subr.bf16.mxu0 0
        %1829 = vmatpush2.bf16.msra.mxu0 %v1594
        %1830 = vmatprep.subr.bf16.mxu0 0
        %1831 = vmatpush2.bf16.msra.mxu0 %v1593
        %1832 = vmatprep.subr.bf16.mxu0 0
        %1833 = vmatpush2.bf16.msra.mxu0 %v1592
        %1834 = vmatprep.subr.bf16.mxu0 0
        %1835 = vmatpush2.bf16.msra.mxu0 %v1591
        %1836 = vmatprep.subr.bf16.mxu0 0
        %1837 = vmatpush2.bf16.msra.mxu0 %v1590
        %1838 = vmatprep.mubr.bf16.mxu0 %v1743
        %1839 = vmatmul.mubr.bf16.gmra.mxu0 %v1742
        %v1840 = vpop.f32.mrf.mxu0
        %v1841 = vadd.f32 0.0, %v1840
        %v1842 = vpop.f32.mrf.mxu0
        %v1843 = vpop.f32.mrf.mxu0
        %v1844 = vadd.f32 0.0, %v1843
        %v1845 = vpop.f32.mrf.mxu0
        %1846 = vmatprep.mubr.bf16.mxu0 %v1745
        %1847 = vmatmul.mubr.bf16.gmra.mxu0 %v1744
        %v1848 = vpop.f32.mrf.mxu0
        %v1849 = vadd.f32 0.0, %v1848
        %v1850 = vpop.f32.mrf.mxu0
        %v1851 = vpop.f32.mrf.mxu0
        %v1852 = vadd.f32 0.0, %v1851
        %v1853 = vpop.f32.mrf.mxu0
        %1854 = vmatprep.mubr.bf16.mxu0 %v1747
        %1855 = vmatmul.mubr.bf16.gmra.mxu0 %v1746
        %v1856 = vpop.f32.mrf.mxu0
        %v1857 = vadd.f32 0.0, %v1856
        %v1858 = vpop.f32.mrf.mxu0
        %v1859 = vpop.f32.mrf.mxu0
        %v1860 = vadd.f32 0.0, %v1859
        %v1861 = vpop.f32.mrf.mxu0
        %1862 = vmatprep.mubr.bf16.mxu0 %v1749
        %1863 = vmatmul.mubr.bf16.gmra.mxu0 %v1748
        %v1864 = vpop.f32.mrf.mxu0
        %v1865 = vadd.f32 0.0, %v1864
        %v1866 = vpop.f32.mrf.mxu0
        %v1867 = vpop.f32.mrf.mxu0
        %v1868 = vadd.f32 0.0, %v1867
        %v1869 = vpop.f32.mrf.mxu0
        %1870 = vmatprep.mubr.bf16.mxu0 %v1751
        %1871 = vmatmul.mubr.bf16.gmra.mxu0 %v1750
        %v1872 = vpop.f32.mrf.mxu0
        %v1873 = vadd.f32 0.0, %v1872
        %v1874 = vpop.f32.mrf.mxu0
        %v1875 = vpop.f32.mrf.mxu0
        %v1876 = vadd.f32 0.0, %v1875
        %v1877 = vpop.f32.mrf.mxu0
        %1878 = vmatprep.mubr.bf16.mxu0 %v1753
        %1879 = vmatmul.mubr.bf16.gmra.mxu0 %v1752
        %v1880 = vpop.f32.mrf.mxu0
        %v1881 = vadd.f32 0.0, %v1880
        %v1882 = vpop.f32.mrf.mxu0
        %v1883 = vpop.f32.mrf.mxu0
        %v1884 = vadd.f32 0.0, %v1883
        %v1885 = vpop.f32.mrf.mxu0
        %1886 = vmatprep.mubr.bf16.mxu0 %v1755
        %1887 = vmatmul.mubr.bf16.gmra.mxu0 %v1754
        %v1888 = vpop.f32.mrf.mxu0
        %v1889 = vadd.f32 0.0, %v1888
        %v1890 = vpop.f32.mrf.mxu0
        %v1891 = vpop.f32.mrf.mxu0
        %v1892 = vadd.f32 0.0, %v1891
        %v1893 = vpop.f32.mrf.mxu0
        %1894 = vmatprep.mubr.bf16.mxu0 %v1757
        %1895 = vmatmul.mubr.bf16.gmra.mxu0 %v1756
        %v1896 = vpop.f32.mrf.mxu0
        %v1897 = vadd.f32 0.0, %v1896
        %v1898 = vpop.f32.mrf.mxu0
        %v1899 = vpop.f32.mrf.mxu0
        %v1900 = vadd.f32 0.0, %v1899
        %v1901 = vpop.f32.mrf.mxu0
        %1902 = vmatprep.mubr.bf16.mxu0 %v1759
        %1903 = vmatmul.mubr.bf16.gmra.mxu0 %v1758
        %v1904 = vpop.f32.mrf.mxu0
        %v1905 = vadd.f32 0.0, %v1904
        %v1906 = vpop.f32.mrf.mxu0
        %v1907 = vpop.f32.mrf.mxu0
        %v1908 = vadd.f32 0.0, %v1907
        %v1909 = vpop.f32.mrf.mxu0
        %1910 = vmatprep.mubr.bf16.mxu0 %v1761
        %1911 = vmatmul.mubr.bf16.gmra.mxu0 %v1760
        %v1912 = vpop.f32.mrf.mxu0
        %v1913 = vadd.f32 0.0, %v1912
        %v1914 = vpop.f32.mrf.mxu0
        %v1915 = vpop.f32.mrf.mxu0
        %v1916 = vadd.f32 0.0, %v1915
        %v1917 = vpop.f32.mrf.mxu0
        %1918 = vmatprep.mubr.bf16.mxu0 %v1763
        %1919 = vmatmul.mubr.bf16.gmra.mxu0 %v1762
        %v1920 = vpop.f32.mrf.mxu0
        %v1921 = vadd.f32 0.0, %v1920
        %v1922 = vpop.f32.mrf.mxu0
        %v1923 = vpop.f32.mrf.mxu0
        %v1924 = vadd.f32 0.0, %v1923
        %v1925 = vpop.f32.mrf.mxu0
        %1926 = vmatprep.mubr.bf16.mxu0 %v1765
        %1927 = vmatmul.mubr.bf16.gmra.mxu0 %v1764
        %v1928 = vpop.f32.mrf.mxu0
        %v1929 = vadd.f32 0.0, %v1928
        %v1930 = vpop.f32.mrf.mxu0
        %v1931 = vpop.f32.mrf.mxu0
        %v1932 = vadd.f32 0.0, %v1931
        %v1933 = vpop.f32.mrf.mxu0
        %1934 = vmatprep.mubr.bf16.mxu0 %v1767
        %1935 = vmatmul.mubr.bf16.gmra.mxu0 %v1766
        %v1936 = vpop.f32.mrf.mxu0
        %v1937 = vadd.f32 0.0, %v1936
        %v1938 = vpop.f32.mrf.mxu0
        %v1939 = vpop.f32.mrf.mxu0
        %v1940 = vadd.f32 0.0, %v1939
        %v1941 = vpop.f32.mrf.mxu0
        %1942 = vmatprep.mubr.bf16.mxu0 %v1769
        %1943 = vmatmul.mubr.bf16.gmra.mxu0 %v1768
        %v1944 = vpop.f32.mrf.mxu0
        %v1945 = vadd.f32 0.0, %v1944
        %v1946 = vpop.f32.mrf.mxu0
        %v1947 = vpop.f32.mrf.mxu0
        %v1948 = vadd.f32 0.0, %v1947
        %v1949 = vpop.f32.mrf.mxu0
        %1950 = vmatprep.mubr.bf16.mxu0 %v1771
        %1951 = vmatmul.mubr.bf16.gmra.mxu0 %v1770
        %v1952 = vpop.f32.mrf.mxu0
        %v1953 = vadd.f32 0.0, %v1952
        %v1954 = vpop.f32.mrf.mxu0
        %v1955 = vpop.f32.mrf.mxu0
        %v1956 = vadd.f32 0.0, %v1955
        %v1957 = vpop.f32.mrf.mxu0
        %1958 = vmatprep.mubr.bf16.mxu0 %v1773
        %1959 = vmatmul.mubr.bf16.gmra.mxu0 %v1772
        %v1960 = vpop.f32.mrf.mxu0
        %v1961 = vadd.f32 0.0, %v1960
        %v1962 = vpop.f32.mrf.mxu0
        %v1963 = vpop.f32.mrf.mxu0
        %v1964 = vadd.f32 0.0, %v1963
        %v1965 = vpop.f32.mrf.mxu0
        %1966 = vdwg.mxu0
        %v1999 = vunpack.c.l.b16 %v364
        %v2000 = vunpack.c.h.b16 %v364
        %v2001 = vunpack.c.l.b16 %v365
        %v2002 = vunpack.c.h.b16 %v365
        %v2003 = vunpack.c.l.b16 %v366
        %v2004 = vunpack.c.h.b16 %v366
        %v2005 = vunpack.c.l.b16 %v367
        %v2006 = vunpack.c.h.b16 %v367
        %v2007 = vunpack.c.l.b16 %v368
        %v2008 = vunpack.c.h.b16 %v368
        %v2009 = vunpack.c.l.b16 %v369
        %v2010 = vunpack.c.h.b16 %v369
        %v2011 = vunpack.c.l.b16 %v370
        %v2012 = vunpack.c.h.b16 %v370
        %v2013 = vunpack.c.l.b16 %v371
        %v2014 = vunpack.c.h.b16 %v371
        %v2015 = vunpack.c.l.b16 %v372
        %v2016 = vunpack.c.h.b16 %v372
        %v2017 = vunpack.c.l.b16 %v373
        %v2018 = vunpack.c.h.b16 %v373
        %v2019 = vunpack.c.l.b16 %v374
        %v2020 = vunpack.c.h.b16 %v374
        %v2021 = vunpack.c.l.b16 %v375
        %v2022 = vunpack.c.h.b16 %v375
        %v2023 = vunpack.c.l.b16 %v376
        %v2024 = vunpack.c.h.b16 %v376
        %v2025 = vunpack.c.l.b16 %v377
        %v2026 = vunpack.c.h.b16 %v377
        %v2027 = vunpack.c.l.b16 %v378
        %v2028 = vunpack.c.h.b16 %v378
        %v2029 = vunpack.c.l.b16 %v379
        %v2030 = vunpack.c.h.b16 %v379
        %v2031 = vunpack.c.l.b16 %v380
        %v2032 = vunpack.c.h.b16 %v380
        %v2033 = vunpack.c.l.b16 %v381
        %v2034 = vunpack.c.h.b16 %v381
        %v2035 = vunpack.c.l.b16 %v382
        %v2036 = vunpack.c.h.b16 %v382
        %v2037 = vunpack.c.l.b16 %v383
        %v2038 = vunpack.c.h.b16 %v383
        %v2039 = vunpack.c.l.b16 %v384
        %v2040 = vunpack.c.h.b16 %v384
        %v2041 = vunpack.c.l.b16 %v385
        %v2042 = vunpack.c.h.b16 %v385
        %v2043 = vunpack.c.l.b16 %v386
        %v2044 = vunpack.c.h.b16 %v386
        %v2045 = vunpack.c.l.b16 %v387
        %v2046 = vunpack.c.h.b16 %v387
        %v2047 = vunpack.c.l.b16 %v388
        %v2048 = vunpack.c.h.b16 %v388
        %v2049 = vunpack.c.l.b16 %v389
        %v2050 = vunpack.c.h.b16 %v389
        %v2051 = vunpack.c.l.b16 %v390
        %v2052 = vunpack.c.h.b16 %v390
        %v2053 = vunpack.c.l.b16 %v391
        %v2054 = vunpack.c.h.b16 %v391
        %v2055 = vunpack.c.l.b16 %v392
        %v2056 = vunpack.c.h.b16 %v392
        %v2057 = vunpack.c.l.b16 %v393
        %v2058 = vunpack.c.h.b16 %v393
        %v2059 = vunpack.c.l.b16 %v394
        %v2060 = vunpack.c.h.b16 %v394
        %v2061 = vunpack.c.l.b16 %v395
        %v2062 = vunpack.c.h.b16 %v395
        %v2063 = vpack.c.b16 %v2001, %v1999
        %v2064 = vpack.c.b16 %v2002, %v2000
        %v2065 = vpack.c.b16 %v2005, %v2003
        %v2066 = vpack.c.b16 %v2006, %v2004
        %v2067 = vpack.c.b16 %v2009, %v2007
        %v2068 = vpack.c.b16 %v2010, %v2008
        %v2069 = vpack.c.b16 %v2013, %v2011
        %v2070 = vpack.c.b16 %v2014, %v2012
        %v2071 = vpack.c.b16 %v2017, %v2015
        %v2072 = vpack.c.b16 %v2018, %v2016
        %v2073 = vpack.c.b16 %v2021, %v2019
        %v2074 = vpack.c.b16 %v2022, %v2020
        %v2075 = vpack.c.b16 %v2025, %v2023
        %v2076 = vpack.c.b16 %v2026, %v2024
        %v2077 = vpack.c.b16 %v2029, %v2027
        %v2078 = vpack.c.b16 %v2030, %v2028
        %v2079 = vpack.c.b16 %v2033, %v2031
        %v2080 = vpack.c.b16 %v2034, %v2032
        %v2081 = vpack.c.b16 %v2037, %v2035
        %v2082 = vpack.c.b16 %v2038, %v2036
        %v2083 = vpack.c.b16 %v2041, %v2039
        %v2084 = vpack.c.b16 %v2042, %v2040
        %v2085 = vpack.c.b16 %v2045, %v2043
        %v2086 = vpack.c.b16 %v2046, %v2044
        %v2087 = vpack.c.b16 %v2049, %v2047
        %v2088 = vpack.c.b16 %v2050, %v2048
        %v2089 = vpack.c.b16 %v2053, %v2051
        %v2090 = vpack.c.b16 %v2054, %v2052
        %v2091 = vpack.c.b16 %v2057, %v2055
        %v2092 = vpack.c.b16 %v2058, %v2056
        %v2093 = vpack.c.b16 %v2061, %v2059
        %v2094 = vpack.c.b16 %v2062, %v2060
        %2127 = vmatprep.subr.bf16.mxu0 0
        %2128 = vmatpush1.bf16.msra.mxu0 %v1605
        %2129 = vmatprep.subr.bf16.mxu0 0
        %2130 = vmatpush1.bf16.msra.mxu0 %v1604
        %2131 = vmatprep.subr.bf16.mxu0 0
        %2132 = vmatpush1.bf16.msra.mxu0 %v1603
        %2133 = vmatprep.subr.bf16.mxu0 0
        %2134 = vmatpush1.bf16.msra.mxu0 %v1602
        %2135 = vmatprep.subr.bf16.mxu0 0
        %2136 = vmatpush1.bf16.msra.mxu0 %v1601
        %2137 = vmatprep.subr.bf16.mxu0 0
        %2138 = vmatpush1.bf16.msra.mxu0 %v1600
        %2139 = vmatprep.subr.bf16.mxu0 0
        %2140 = vmatpush1.bf16.msra.mxu0 %v1599
        %2141 = vmatprep.subr.bf16.mxu0 0
        %2142 = vmatpush1.bf16.msra.mxu0 %v1598
        %2143 = vmatprep.subr.bf16.mxu0 0
        %2144 = vmatpush2.bf16.msra.mxu0 %v1613
        %2145 = vmatprep.subr.bf16.mxu0 0
        %2146 = vmatpush2.bf16.msra.mxu0 %v1612
        %2147 = vmatprep.subr.bf16.mxu0 0
        %2148 = vmatpush2.bf16.msra.mxu0 %v1611
        %2149 = vmatprep.subr.bf16.mxu0 0
        %2150 = vmatpush2.bf16.msra.mxu0 %v1610
        %2151 = vmatprep.subr.bf16.mxu0 0
        %2152 = vmatpush2.bf16.msra.mxu0 %v1609
        %2153 = vmatprep.subr.bf16.mxu0 0
        %2154 = vmatpush2.bf16.msra.mxu0 %v1608
        %2155 = vmatprep.subr.bf16.mxu0 0
        %2156 = vmatpush2.bf16.msra.mxu0 %v1607
        %2157 = vmatprep.subr.bf16.mxu0 0
        %2158 = vmatpush2.bf16.msra.mxu0 %v1606
        %2159 = vmatprep.mubr.bf16.mxu0 %v2064
        %2160 = vmatmul.mubr.bf16.gmra.mxu0 %v2063
        %v2161 = vpop.f32.mrf.mxu0
        %v2162 = vadd.f32 0.0, %v2161
        %v2163 = vpop.f32.mrf.mxu0
        %v2164 = vpop.f32.mrf.mxu0
        %v2165 = vadd.f32 0.0, %v2164
        %v2166 = vpop.f32.mrf.mxu0
        %2167 = vmatprep.mubr.bf16.mxu0 %v2066
        %2168 = vmatmul.mubr.bf16.gmra.mxu0 %v2065
        %v2169 = vpop.f32.mrf.mxu0
        %v2170 = vadd.f32 0.0, %v2169
        %v2171 = vpop.f32.mrf.mxu0
        %v2172 = vpop.f32.mrf.mxu0
        %v2173 = vadd.f32 0.0, %v2172
        %v2174 = vpop.f32.mrf.mxu0
        %2175 = vmatprep.mubr.bf16.mxu0 %v2068
        %2176 = vmatmul.mubr.bf16.gmra.mxu0 %v2067
        %v2177 = vpop.f32.mrf.mxu0
        %v2178 = vadd.f32 0.0, %v2177
        %v2179 = vpop.f32.mrf.mxu0
        %v2180 = vpop.f32.mrf.mxu0
        %v2181 = vadd.f32 0.0, %v2180
        %v2182 = vpop.f32.mrf.mxu0
        %2183 = vmatprep.mubr.bf16.mxu0 %v2070
        %2184 = vmatmul.mubr.bf16.gmra.mxu0 %v2069
        %v2185 = vpop.f32.mrf.mxu0
        %v2186 = vadd.f32 0.0, %v2185
        %v2187 = vpop.f32.mrf.mxu0
        %v2188 = vpop.f32.mrf.mxu0
        %v2189 = vadd.f32 0.0, %v2188
        %v2190 = vpop.f32.mrf.mxu0
        %2191 = vmatprep.mubr.bf16.mxu0 %v2072
        %2192 = vmatmul.mubr.bf16.gmra.mxu0 %v2071
        %v2193 = vpop.f32.mrf.mxu0
        %v2194 = vadd.f32 0.0, %v2193
        %v2195 = vpop.f32.mrf.mxu0
        %v2196 = vpop.f32.mrf.mxu0
        %v2197 = vadd.f32 0.0, %v2196
        %v2198 = vpop.f32.mrf.mxu0
        %2199 = vmatprep.mubr.bf16.mxu0 %v2074
        %2200 = vmatmul.mubr.bf16.gmra.mxu0 %v2073
        %v2201 = vpop.f32.mrf.mxu0
        %v2202 = vadd.f32 0.0, %v2201
        %v2203 = vpop.f32.mrf.mxu0
        %v2204 = vpop.f32.mrf.mxu0
        %v2205 = vadd.f32 0.0, %v2204
        %v2206 = vpop.f32.mrf.mxu0
        %2207 = vmatprep.mubr.bf16.mxu0 %v2076
        %2208 = vmatmul.mubr.bf16.gmra.mxu0 %v2075
        %v2209 = vpop.f32.mrf.mxu0
        %v2210 = vadd.f32 0.0, %v2209
        %v2211 = vpop.f32.mrf.mxu0
        %v2212 = vpop.f32.mrf.mxu0
        %v2213 = vadd.f32 0.0, %v2212
        %v2214 = vpop.f32.mrf.mxu0
        %2215 = vmatprep.mubr.bf16.mxu0 %v2078
        %2216 = vmatmul.mubr.bf16.gmra.mxu0 %v2077
        %v2217 = vpop.f32.mrf.mxu0
        %v2218 = vadd.f32 0.0, %v2217
        %v2219 = vpop.f32.mrf.mxu0
        %v2220 = vpop.f32.mrf.mxu0
        %v2221 = vadd.f32 0.0, %v2220
        %v2222 = vpop.f32.mrf.mxu0
        %2223 = vmatprep.mubr.bf16.mxu0 %v2080
        %2224 = vmatmul.mubr.bf16.gmra.mxu0 %v2079
        %v2225 = vpop.f32.mrf.mxu0
        %v2226 = vadd.f32 0.0, %v2225
        %v2227 = vpop.f32.mrf.mxu0
        %v2228 = vpop.f32.mrf.mxu0
        %v2229 = vadd.f32 0.0, %v2228
        %v2230 = vpop.f32.mrf.mxu0
        %2231 = vmatprep.mubr.bf16.mxu0 %v2082
        %2232 = vmatmul.mubr.bf16.gmra.mxu0 %v2081
        %v2233 = vpop.f32.mrf.mxu0
        %v2234 = vadd.f32 0.0, %v2233
        %v2235 = vpop.f32.mrf.mxu0
        %v2236 = vpop.f32.mrf.mxu0
        %v2237 = vadd.f32 0.0, %v2236
        %v2238 = vpop.f32.mrf.mxu0
        %2239 = vmatprep.mubr.bf16.mxu0 %v2084
        %2240 = vmatmul.mubr.bf16.gmra.mxu0 %v2083
        %v2241 = vpop.f32.mrf.mxu0
        %v2242 = vadd.f32 0.0, %v2241
        %v2243 = vpop.f32.mrf.mxu0
        %v2244 = vpop.f32.mrf.mxu0
        %v2245 = vadd.f32 0.0, %v2244
        %v2246 = vpop.f32.mrf.mxu0
        %2247 = vmatprep.mubr.bf16.mxu0 %v2086
        %2248 = vmatmul.mubr.bf16.gmra.mxu0 %v2085
        %v2249 = vpop.f32.mrf.mxu0
        %v2250 = vadd.f32 0.0, %v2249
        %v2251 = vpop.f32.mrf.mxu0
        %v2252 = vpop.f32.mrf.mxu0
        %v2253 = vadd.f32 0.0, %v2252
        %v2254 = vpop.f32.mrf.mxu0
        %2255 = vmatprep.mubr.bf16.mxu0 %v2088
        %2256 = vmatmul.mubr.bf16.gmra.mxu0 %v2087
        %v2257 = vpop.f32.mrf.mxu0
        %v2258 = vadd.f32 0.0, %v2257
        %v2259 = vpop.f32.mrf.mxu0
        %v2260 = vpop.f32.mrf.mxu0
        %v2261 = vadd.f32 0.0, %v2260
        %v2262 = vpop.f32.mrf.mxu0
        %2263 = vmatprep.mubr.bf16.mxu0 %v2090
        %2264 = vmatmul.mubr.bf16.gmra.mxu0 %v2089
        %v2265 = vpop.f32.mrf.mxu0
        %v2266 = vadd.f32 0.0, %v2265
        %v2267 = vpop.f32.mrf.mxu0
        %v2268 = vpop.f32.mrf.mxu0
        %v2269 = vadd.f32 0.0, %v2268
        %v2270 = vpop.f32.mrf.mxu0
        %2271 = vmatprep.mubr.bf16.mxu0 %v2092
        %2272 = vmatmul.mubr.bf16.gmra.mxu0 %v2091
        %v2273 = vpop.f32.mrf.mxu0
        %v2274 = vadd.f32 0.0, %v2273
        %v2275 = vpop.f32.mrf.mxu0
        %v2276 = vpop.f32.mrf.mxu0
        %v2277 = vadd.f32 0.0, %v2276
        %v2278 = vpop.f32.mrf.mxu0
        %2279 = vmatprep.mubr.bf16.mxu0 %v2094
        %2280 = vmatmul.mubr.bf16.gmra.mxu0 %v2093
        %v2281 = vpop.f32.mrf.mxu0
        %v2282 = vadd.f32 0.0, %v2281
        %v2283 = vpop.f32.mrf.mxu0
        %v2284 = vpop.f32.mrf.mxu0
        %v2285 = vadd.f32 0.0, %v2284
        %v2286 = vpop.f32.mrf.mxu0
        %2287 = vdwg.mxu0
        %v2320 = vunpack.c.l.b16 %v396
        %v2321 = vunpack.c.h.b16 %v396
        %v2322 = vunpack.c.l.b16 %v397
        %v2323 = vunpack.c.h.b16 %v397
        %v2324 = vunpack.c.l.b16 %v398
        %v2325 = vunpack.c.h.b16 %v398
        %v2326 = vunpack.c.l.b16 %v399
        %v2327 = vunpack.c.h.b16 %v399
        %v2328 = vunpack.c.l.b16 %v400
        %v2329 = vunpack.c.h.b16 %v400
        %v2330 = vunpack.c.l.b16 %v401
        %v2331 = vunpack.c.h.b16 %v401
        %v2332 = vunpack.c.l.b16 %v402
        %v2333 = vunpack.c.h.b16 %v402
        %v2334 = vunpack.c.l.b16 %v403
        %v2335 = vunpack.c.h.b16 %v403
        %v2336 = vunpack.c.l.b16 %v404
        %v2337 = vunpack.c.h.b16 %v404
        %v2338 = vunpack.c.l.b16 %v405
        %v2339 = vunpack.c.h.b16 %v405
        %v2340 = vunpack.c.l.b16 %v406
        %v2341 = vunpack.c.h.b16 %v406
        %v2342 = vunpack.c.l.b16 %v407
        %v2343 = vunpack.c.h.b16 %v407
        %v2344 = vunpack.c.l.b16 %v408
        %v2345 = vunpack.c.h.b16 %v408
        %v2346 = vunpack.c.l.b16 %v409
        %v2347 = vunpack.c.h.b16 %v409
        %v2348 = vunpack.c.l.b16 %v410
        %v2349 = vunpack.c.h.b16 %v410
        %v2350 = vunpack.c.l.b16 %v411
        %v2351 = vunpack.c.h.b16 %v411
        %v2352 = vunpack.c.l.b16 %v412
        %v2353 = vunpack.c.h.b16 %v412
        %v2354 = vunpack.c.l.b16 %v413
        %v2355 = vunpack.c.h.b16 %v413
        %v2356 = vunpack.c.l.b16 %v414
        %v2357 = vunpack.c.h.b16 %v414
        %v2358 = vunpack.c.l.b16 %v415
        %v2359 = vunpack.c.h.b16 %v415
        %v2360 = vunpack.c.l.b16 %v416
        %v2361 = vunpack.c.h.b16 %v416
        %v2362 = vunpack.c.l.b16 %v417
        %v2363 = vunpack.c.h.b16 %v417
        %v2364 = vunpack.c.l.b16 %v418
        %v2365 = vunpack.c.h.b16 %v418
        %v2366 = vunpack.c.l.b16 %v419
        %v2367 = vunpack.c.h.b16 %v419
        %v2368 = vunpack.c.l.b16 %v420
        %v2369 = vunpack.c.h.b16 %v420
        %v2370 = vunpack.c.l.b16 %v421
        %v2371 = vunpack.c.h.b16 %v421
        %v2372 = vunpack.c.l.b16 %v422
        %v2373 = vunpack.c.h.b16 %v422
        %v2374 = vunpack.c.l.b16 %v423
        %v2375 = vunpack.c.h.b16 %v423
        %v2376 = vunpack.c.l.b16 %v424
        %v2377 = vunpack.c.h.b16 %v424
        %v2378 = vunpack.c.l.b16 %v425
        %v2379 = vunpack.c.h.b16 %v425
        %v2380 = vunpack.c.l.b16 %v426
        %v2381 = vunpack.c.h.b16 %v426
        %v2382 = vunpack.c.l.b16 %v427
        %v2383 = vunpack.c.h.b16 %v427
        %v2384 = vpack.c.b16 %v2322, %v2320
        %v2385 = vpack.c.b16 %v2323, %v2321
        %v2386 = vpack.c.b16 %v2326, %v2324
        %v2387 = vpack.c.b16 %v2327, %v2325
        %v2388 = vpack.c.b16 %v2330, %v2328
        %v2389 = vpack.c.b16 %v2331, %v2329
        %v2390 = vpack.c.b16 %v2334, %v2332
        %v2391 = vpack.c.b16 %v2335, %v2333
        %v2392 = vpack.c.b16 %v2338, %v2336
        %v2393 = vpack.c.b16 %v2339, %v2337
        %v2394 = vpack.c.b16 %v2342, %v2340
        %v2395 = vpack.c.b16 %v2343, %v2341
        %v2396 = vpack.c.b16 %v2346, %v2344
        %v2397 = vpack.c.b16 %v2347, %v2345
        %v2398 = vpack.c.b16 %v2350, %v2348
        %v2399 = vpack.c.b16 %v2351, %v2349
        %v2400 = vpack.c.b16 %v2354, %v2352
        %v2401 = vpack.c.b16 %v2355, %v2353
        %v2402 = vpack.c.b16 %v2358, %v2356
        %v2403 = vpack.c.b16 %v2359, %v2357
        %v2404 = vpack.c.b16 %v2362, %v2360
        %v2405 = vpack.c.b16 %v2363, %v2361
        %v2406 = vpack.c.b16 %v2366, %v2364
        %v2407 = vpack.c.b16 %v2367, %v2365
        %v2408 = vpack.c.b16 %v2370, %v2368
        %v2409 = vpack.c.b16 %v2371, %v2369
        %v2410 = vpack.c.b16 %v2374, %v2372
        %v2411 = vpack.c.b16 %v2375, %v2373
        %v2412 = vpack.c.b16 %v2378, %v2376
        %v2413 = vpack.c.b16 %v2379, %v2377
        %v2414 = vpack.c.b16 %v2382, %v2380
        %v2415 = vpack.c.b16 %v2383, %v2381
        %2448 = vmatprep.subr.bf16.mxu0 0
        %2449 = vmatpush1.bf16.msra.mxu0 %v1621
        %2450 = vmatprep.subr.bf16.mxu0 0
        %2451 = vmatpush1.bf16.msra.mxu0 %v1620
        %2452 = vmatprep.subr.bf16.mxu0 0
        %2453 = vmatpush1.bf16.msra.mxu0 %v1619
        %2454 = vmatprep.subr.bf16.mxu0 0
        %2455 = vmatpush1.bf16.msra.mxu0 %v1618
        %2456 = vmatprep.subr.bf16.mxu0 0
        %2457 = vmatpush1.bf16.msra.mxu0 %v1617
        %2458 = vmatprep.subr.bf16.mxu0 0
        %2459 = vmatpush1.bf16.msra.mxu0 %v1616
        %2460 = vmatprep.subr.bf16.mxu0 0
        %2461 = vmatpush1.bf16.msra.mxu0 %v1615
        %2462 = vmatprep.subr.bf16.mxu0 0
        %2463 = vmatpush1.bf16.msra.mxu0 %v1614
        %2464 = vmatprep.subr.bf16.mxu0 0
        %2465 = vmatpush2.bf16.msra.mxu0 %v1629
        %2466 = vmatprep.subr.bf16.mxu0 0
        %2467 = vmatpush2.bf16.msra.mxu0 %v1628
        %2468 = vmatprep.subr.bf16.mxu0 0
        %2469 = vmatpush2.bf16.msra.mxu0 %v1627
        %2470 = vmatprep.subr.bf16.mxu0 0
        %2471 = vmatpush2.bf16.msra.mxu0 %v1626
        %2472 = vmatprep.subr.bf16.mxu0 0
        %2473 = vmatpush2.bf16.msra.mxu0 %v1625
        %2474 = vmatprep.subr.bf16.mxu0 0
        %2475 = vmatpush2.bf16.msra.mxu0 %v1624
        %2476 = vmatprep.subr.bf16.mxu0 0
        %2477 = vmatpush2.bf16.msra.mxu0 %v1623
        %2478 = vmatprep.subr.bf16.mxu0 0
        %2479 = vmatpush2.bf16.msra.mxu0 %v1622
        %2480 = vmatprep.mubr.bf16.mxu0 %v2385
        %2481 = vmatmul.mubr.bf16.gmra.mxu0 %v2384
        %v2482 = vpop.f32.mrf.mxu0
        %v2483 = vadd.f32 0.0, %v2482
        %v2484 = vpop.f32.mrf.mxu0
        %v2485 = vpop.f32.mrf.mxu0
        %v2486 = vadd.f32 0.0, %v2485
        %v2487 = vpop.f32.mrf.mxu0
        %2488 = vmatprep.mubr.bf16.mxu0 %v2387
        %2489 = vmatmul.mubr.bf16.gmra.mxu0 %v2386
        %v2490 = vpop.f32.mrf.mxu0
        %v2491 = vadd.f32 0.0, %v2490
        %v2492 = vpop.f32.mrf.mxu0
        %v2493 = vpop.f32.mrf.mxu0
        %v2494 = vadd.f32 0.0, %v2493
        %v2495 = vpop.f32.mrf.mxu0
        %2496 = vmatprep.mubr.bf16.mxu0 %v2389
        %2497 = vmatmul.mubr.bf16.gmra.mxu0 %v2388
        %v2498 = vpop.f32.mrf.mxu0
        %v2499 = vadd.f32 0.0, %v2498
        %v2500 = vpop.f32.mrf.mxu0
        %v2501 = vpop.f32.mrf.mxu0
        %v2502 = vadd.f32 0.0, %v2501
        %v2503 = vpop.f32.mrf.mxu0
        %2504 = vmatprep.mubr.bf16.mxu0 %v2391
        %2505 = vmatmul.mubr.bf16.gmra.mxu0 %v2390
        %v2506 = vpop.f32.mrf.mxu0
        %v2507 = vadd.f32 0.0, %v2506
        %v2508 = vpop.f32.mrf.mxu0
        %v2509 = vpop.f32.mrf.mxu0
        %v2510 = vadd.f32 0.0, %v2509
        %v2511 = vpop.f32.mrf.mxu0
        %2512 = vmatprep.mubr.bf16.mxu0 %v2393
        %2513 = vmatmul.mubr.bf16.gmra.mxu0 %v2392
        %v2514 = vpop.f32.mrf.mxu0
        %v2515 = vadd.f32 0.0, %v2514
        %v2516 = vpop.f32.mrf.mxu0
        %v2517 = vpop.f32.mrf.mxu0
        %v2518 = vadd.f32 0.0, %v2517
        %v2519 = vpop.f32.mrf.mxu0
        %2520 = vmatprep.mubr.bf16.mxu0 %v2395
        %2521 = vmatmul.mubr.bf16.gmra.mxu0 %v2394
        %v2522 = vpop.f32.mrf.mxu0
        %v2523 = vadd.f32 0.0, %v2522
        %v2524 = vpop.f32.mrf.mxu0
        %v2525 = vpop.f32.mrf.mxu0
        %v2526 = vadd.f32 0.0, %v2525
        %v2527 = vpop.f32.mrf.mxu0
        %2528 = vmatprep.mubr.bf16.mxu0 %v2397
        %2529 = vmatmul.mubr.bf16.gmra.mxu0 %v2396
        %v2530 = vpop.f32.mrf.mxu0
        %v2531 = vadd.f32 0.0, %v2530
        %v2532 = vpop.f32.mrf.mxu0
        %v2533 = vpop.f32.mrf.mxu0
        %v2534 = vadd.f32 0.0, %v2533
        %v2535 = vpop.f32.mrf.mxu0
        %2536 = vmatprep.mubr.bf16.mxu0 %v2399
        %2537 = vmatmul.mubr.bf16.gmra.mxu0 %v2398
        %v2538 = vpop.f32.mrf.mxu0
        %v2539 = vadd.f32 0.0, %v2538
        %v2540 = vpop.f32.mrf.mxu0
        %v2541 = vpop.f32.mrf.mxu0
        %v2542 = vadd.f32 0.0, %v2541
        %v2543 = vpop.f32.mrf.mxu0
        %2544 = vmatprep.mubr.bf16.mxu0 %v2401
        %2545 = vmatmul.mubr.bf16.gmra.mxu0 %v2400
        %v2546 = vpop.f32.mrf.mxu0
        %v2547 = vadd.f32 0.0, %v2546
        %v2548 = vpop.f32.mrf.mxu0
        %v2549 = vpop.f32.mrf.mxu0
        %v2550 = vadd.f32 0.0, %v2549
        %v2551 = vpop.f32.mrf.mxu0
        %2552 = vmatprep.mubr.bf16.mxu0 %v2403
        %2553 = vmatmul.mubr.bf16.gmra.mxu0 %v2402
        %v2554 = vpop.f32.mrf.mxu0
        %v2555 = vadd.f32 0.0, %v2554
        %v2556 = vpop.f32.mrf.mxu0
        %v2557 = vpop.f32.mrf.mxu0
        %v2558 = vadd.f32 0.0, %v2557
        %v2559 = vpop.f32.mrf.mxu0
        %2560 = vmatprep.mubr.bf16.mxu0 %v2405
        %2561 = vmatmul.mubr.bf16.gmra.mxu0 %v2404
        %v2562 = vpop.f32.mrf.mxu0
        %v2563 = vadd.f32 0.0, %v2562
        %v2564 = vpop.f32.mrf.mxu0
        %v2565 = vpop.f32.mrf.mxu0
        %v2566 = vadd.f32 0.0, %v2565
        %v2567 = vpop.f32.mrf.mxu0
        %2568 = vmatprep.mubr.bf16.mxu0 %v2407
        %2569 = vmatmul.mubr.bf16.gmra.mxu0 %v2406
        %v2570 = vpop.f32.mrf.mxu0
        %v2571 = vadd.f32 0.0, %v2570
        %v2572 = vpop.f32.mrf.mxu0
        %v2573 = vpop.f32.mrf.mxu0
        %v2574 = vadd.f32 0.0, %v2573
        %v2575 = vpop.f32.mrf.mxu0
        %2576 = vmatprep.mubr.bf16.mxu0 %v2409
        %2577 = vmatmul.mubr.bf16.gmra.mxu0 %v2408
        %v2578 = vpop.f32.mrf.mxu0
        %v2579 = vadd.f32 0.0, %v2578
        %v2580 = vpop.f32.mrf.mxu0
        %v2581 = vpop.f32.mrf.mxu0
        %v2582 = vadd.f32 0.0, %v2581
        %v2583 = vpop.f32.mrf.mxu0
        %2584 = vmatprep.mubr.bf16.mxu0 %v2411
        %2585 = vmatmul.mubr.bf16.gmra.mxu0 %v2410
        %v2586 = vpop.f32.mrf.mxu0
        %v2587 = vadd.f32 0.0, %v2586
        %v2588 = vpop.f32.mrf.mxu0
        %v2589 = vpop.f32.mrf.mxu0
        %v2590 = vadd.f32 0.0, %v2589
        %v2591 = vpop.f32.mrf.mxu0
        %2592 = vmatprep.mubr.bf16.mxu0 %v2413
        %2593 = vmatmul.mubr.bf16.gmra.mxu0 %v2412
        %v2594 = vpop.f32.mrf.mxu0
        %v2595 = vadd.f32 0.0, %v2594
        %v2596 = vpop.f32.mrf.mxu0
        %v2597 = vpop.f32.mrf.mxu0
        %v2598 = vadd.f32 0.0, %v2597
        %v2599 = vpop.f32.mrf.mxu0
        %2600 = vmatprep.mubr.bf16.mxu0 %v2415
        %2601 = vmatmul.mubr.bf16.gmra.mxu0 %v2414
        %v2602 = vpop.f32.mrf.mxu0
        %v2603 = vadd.f32 0.0, %v2602
        %v2604 = vpop.f32.mrf.mxu0
        %v2605 = vpop.f32.mrf.mxu0
        %v2606 = vadd.f32 0.0, %v2605
        %v2607 = vpop.f32.mrf.mxu0
        %2608 = vdwg.mxu0
        %v2641 = vunpack.c.l.b16 %v428
        %v2642 = vunpack.c.h.b16 %v428
        %v2643 = vunpack.c.l.b16 %v429
        %v2644 = vunpack.c.h.b16 %v429
        %v2645 = vunpack.c.l.b16 %v430
        %v2646 = vunpack.c.h.b16 %v430
        %v2647 = vunpack.c.l.b16 %v431
        %v2648 = vunpack.c.h.b16 %v431
        %v2649 = vunpack.c.l.b16 %v432
        %v2650 = vunpack.c.h.b16 %v432
        %v2651 = vunpack.c.l.b16 %v433
        %v2652 = vunpack.c.h.b16 %v433
        %v2653 = vunpack.c.l.b16 %v434
        %v2654 = vunpack.c.h.b16 %v434
        %v2655 = vunpack.c.l.b16 %v435
        %v2656 = vunpack.c.h.b16 %v435
        %v2657 = vunpack.c.l.b16 %v436
        %v2658 = vunpack.c.h.b16 %v436
        %v2659 = vunpack.c.l.b16 %v437
        %v2660 = vunpack.c.h.b16 %v437
        %v2661 = vunpack.c.l.b16 %v438
        %v2662 = vunpack.c.h.b16 %v438
        %v2663 = vunpack.c.l.b16 %v439
        %v2664 = vunpack.c.h.b16 %v439
        %v2665 = vunpack.c.l.b16 %v440
        %v2666 = vunpack.c.h.b16 %v440
        %v2667 = vunpack.c.l.b16 %v441
        %v2668 = vunpack.c.h.b16 %v441
        %v2669 = vunpack.c.l.b16 %v442
        %v2670 = vunpack.c.h.b16 %v442
        %v2671 = vunpack.c.l.b16 %v443
        %v2672 = vunpack.c.h.b16 %v443
        %v2673 = vunpack.c.l.b16 %v444
        %v2674 = vunpack.c.h.b16 %v444
        %v2675 = vunpack.c.l.b16 %v445
        %v2676 = vunpack.c.h.b16 %v445
        %v2677 = vunpack.c.l.b16 %v446
        %v2678 = vunpack.c.h.b16 %v446
        %v2679 = vunpack.c.l.b16 %v447
        %v2680 = vunpack.c.h.b16 %v447
        %v2681 = vunpack.c.l.b16 %v448
        %v2682 = vunpack.c.h.b16 %v448
        %v2683 = vunpack.c.l.b16 %v449
        %v2684 = vunpack.c.h.b16 %v449
        %v2685 = vunpack.c.l.b16 %v450
        %v2686 = vunpack.c.h.b16 %v450
        %v2687 = vunpack.c.l.b16 %v451
        %v2688 = vunpack.c.h.b16 %v451
        %v2689 = vunpack.c.l.b16 %v452
        %v2690 = vunpack.c.h.b16 %v452
        %v2691 = vunpack.c.l.b16 %v453
        %v2692 = vunpack.c.h.b16 %v453
        %v2693 = vunpack.c.l.b16 %v454
        %v2694 = vunpack.c.h.b16 %v454
        %v2695 = vunpack.c.l.b16 %v455
        %v2696 = vunpack.c.h.b16 %v455
        %v2697 = vunpack.c.l.b16 %v456
        %v2698 = vunpack.c.h.b16 %v456
        %v2699 = vunpack.c.l.b16 %v457
        %v2700 = vunpack.c.h.b16 %v457
        %v2701 = vunpack.c.l.b16 %v458
        %v2702 = vunpack.c.h.b16 %v458
        %v2703 = vunpack.c.l.b16 %v459
        %v2704 = vunpack.c.h.b16 %v459
        %v2705 = vpack.c.b16 %v2643, %v2641
        %v2706 = vpack.c.b16 %v2644, %v2642
        %v2707 = vpack.c.b16 %v2647, %v2645
        %v2708 = vpack.c.b16 %v2648, %v2646
        %v2709 = vpack.c.b16 %v2651, %v2649
        %v2710 = vpack.c.b16 %v2652, %v2650
        %v2711 = vpack.c.b16 %v2655, %v2653
        %v2712 = vpack.c.b16 %v2656, %v2654
        %v2713 = vpack.c.b16 %v2659, %v2657
        %v2714 = vpack.c.b16 %v2660, %v2658
        %v2715 = vpack.c.b16 %v2663, %v2661
        %v2716 = vpack.c.b16 %v2664, %v2662
        %v2717 = vpack.c.b16 %v2667, %v2665
        %v2718 = vpack.c.b16 %v2668, %v2666
        %v2719 = vpack.c.b16 %v2671, %v2669
        %v2720 = vpack.c.b16 %v2672, %v2670
        %v2721 = vpack.c.b16 %v2675, %v2673
        %v2722 = vpack.c.b16 %v2676, %v2674
        %v2723 = vpack.c.b16 %v2679, %v2677
        %v2724 = vpack.c.b16 %v2680, %v2678
        %v2725 = vpack.c.b16 %v2683, %v2681
        %v2726 = vpack.c.b16 %v2684, %v2682
        %v2727 = vpack.c.b16 %v2687, %v2685
        %v2728 = vpack.c.b16 %v2688, %v2686
        %v2729 = vpack.c.b16 %v2691, %v2689
        %v2730 = vpack.c.b16 %v2692, %v2690
        %v2731 = vpack.c.b16 %v2695, %v2693
        %v2732 = vpack.c.b16 %v2696, %v2694
        %v2733 = vpack.c.b16 %v2699, %v2697
        %v2734 = vpack.c.b16 %v2700, %v2698
        %v2735 = vpack.c.b16 %v2703, %v2701
        %v2736 = vpack.c.b16 %v2704, %v2702
        %2769 = vmatprep.subr.bf16.mxu0 0
        %2770 = vmatpush1.bf16.msra.mxu0 %v1637
        %2771 = vmatprep.subr.bf16.mxu0 0
        %2772 = vmatpush1.bf16.msra.mxu0 %v1636
        %2773 = vmatprep.subr.bf16.mxu0 0
        %2774 = vmatpush1.bf16.msra.mxu0 %v1635
        %2775 = vmatprep.subr.bf16.mxu0 0
        %2776 = vmatpush1.bf16.msra.mxu0 %v1634
        %2777 = vmatprep.subr.bf16.mxu0 0
        %2778 = vmatpush1.bf16.msra.mxu0 %v1633
        %2779 = vmatprep.subr.bf16.mxu0 0
        %2780 = vmatpush1.bf16.msra.mxu0 %v1632
        %2781 = vmatprep.subr.bf16.mxu0 0
        %2782 = vmatpush1.bf16.msra.mxu0 %v1631
        %2783 = vmatprep.subr.bf16.mxu0 0
        %2784 = vmatpush1.bf16.msra.mxu0 %v1630
        %2785 = vmatprep.subr.bf16.mxu0 0
        %2786 = vmatpush2.bf16.msra.mxu0 %v1645
        %2787 = vmatprep.subr.bf16.mxu0 0
        %2788 = vmatpush2.bf16.msra.mxu0 %v1644
        %2789 = vmatprep.subr.bf16.mxu0 0
        %2790 = vmatpush2.bf16.msra.mxu0 %v1643
        %2791 = vmatprep.subr.bf16.mxu0 0
        %2792 = vmatpush2.bf16.msra.mxu0 %v1642
        %2793 = vmatprep.subr.bf16.mxu0 0
        %2794 = vmatpush2.bf16.msra.mxu0 %v1641
        %2795 = vmatprep.subr.bf16.mxu0 0
        %2796 = vmatpush2.bf16.msra.mxu0 %v1640
        %2797 = vmatprep.subr.bf16.mxu0 0
        %2798 = vmatpush2.bf16.msra.mxu0 %v1639
        %2799 = vmatprep.subr.bf16.mxu0 0
        %2800 = vmatpush2.bf16.msra.mxu0 %v1638
        %2801 = vmatprep.mubr.bf16.mxu0 %v2706
        %2802 = vmatmul.mubr.bf16.gmra.mxu0 %v2705
        %v2803 = vpop.f32.mrf.mxu0
        %v2804 = vadd.f32 0.0, %v2803
        %v2805 = vpop.f32.mrf.mxu0
        %v2806 = vpop.f32.mrf.mxu0
        %v2807 = vadd.f32 0.0, %v2806
        %v2808 = vpop.f32.mrf.mxu0
        %2809 = vmatprep.mubr.bf16.mxu0 %v2708
        %2810 = vmatmul.mubr.bf16.gmra.mxu0 %v2707
        %v2811 = vpop.f32.mrf.mxu0
        %v2812 = vadd.f32 0.0, %v2811
        %v2813 = vpop.f32.mrf.mxu0
        %v2814 = vpop.f32.mrf.mxu0
        %v2815 = vadd.f32 0.0, %v2814
        %v2816 = vpop.f32.mrf.mxu0
        %2817 = vmatprep.mubr.bf16.mxu0 %v2710
        %2818 = vmatmul.mubr.bf16.gmra.mxu0 %v2709
        %v2819 = vpop.f32.mrf.mxu0
        %v2820 = vadd.f32 0.0, %v2819
        %v2821 = vpop.f32.mrf.mxu0
        %v2822 = vpop.f32.mrf.mxu0
        %v2823 = vadd.f32 0.0, %v2822
        %v2824 = vpop.f32.mrf.mxu0
        %2825 = vmatprep.mubr.bf16.mxu0 %v2712
        %2826 = vmatmul.mubr.bf16.gmra.mxu0 %v2711
        %v2827 = vpop.f32.mrf.mxu0
        %v2828 = vadd.f32 0.0, %v2827
        %v2829 = vpop.f32.mrf.mxu0
        %v2830 = vpop.f32.mrf.mxu0
        %v2831 = vadd.f32 0.0, %v2830
        %v2832 = vpop.f32.mrf.mxu0
        %2833 = vmatprep.mubr.bf16.mxu0 %v2714
        %2834 = vmatmul.mubr.bf16.gmra.mxu0 %v2713
        %v2835 = vpop.f32.mrf.mxu0
        %v2836 = vadd.f32 0.0, %v2835
        %v2837 = vpop.f32.mrf.mxu0
        %v2838 = vpop.f32.mrf.mxu0
        %v2839 = vadd.f32 0.0, %v2838
        %v2840 = vpop.f32.mrf.mxu0
        %2841 = vmatprep.mubr.bf16.mxu0 %v2716
        %2842 = vmatmul.mubr.bf16.gmra.mxu0 %v2715
        %v2843 = vpop.f32.mrf.mxu0
        %v2844 = vadd.f32 0.0, %v2843
        %v2845 = vpop.f32.mrf.mxu0
        %v2846 = vpop.f32.mrf.mxu0
        %v2847 = vadd.f32 0.0, %v2846
        %v2848 = vpop.f32.mrf.mxu0
        %2849 = vmatprep.mubr.bf16.mxu0 %v2718
        %2850 = vmatmul.mubr.bf16.gmra.mxu0 %v2717
        %v2851 = vpop.f32.mrf.mxu0
        %v2852 = vadd.f32 0.0, %v2851
        %v2853 = vpop.f32.mrf.mxu0
        %v2854 = vpop.f32.mrf.mxu0
        %v2855 = vadd.f32 0.0, %v2854
        %v2856 = vpop.f32.mrf.mxu0
        %2857 = vmatprep.mubr.bf16.mxu0 %v2720
        %2858 = vmatmul.mubr.bf16.gmra.mxu0 %v2719
        %v2859 = vpop.f32.mrf.mxu0
        %v2860 = vadd.f32 0.0, %v2859
        %v2861 = vpop.f32.mrf.mxu0
        %v2862 = vpop.f32.mrf.mxu0
        %v2863 = vadd.f32 0.0, %v2862
        %v2864 = vpop.f32.mrf.mxu0
        %2865 = vmatprep.mubr.bf16.mxu0 %v2722
        %2866 = vmatmul.mubr.bf16.gmra.mxu0 %v2721
        %v2867 = vpop.f32.mrf.mxu0
        %v2868 = vadd.f32 0.0, %v2867
        %v2869 = vpop.f32.mrf.mxu0
        %v2870 = vpop.f32.mrf.mxu0
        %v2871 = vadd.f32 0.0, %v2870
        %v2872 = vpop.f32.mrf.mxu0
        %2873 = vmatprep.mubr.bf16.mxu0 %v2724
        %2874 = vmatmul.mubr.bf16.gmra.mxu0 %v2723
        %v2875 = vpop.f32.mrf.mxu0
        %v2876 = vadd.f32 0.0, %v2875
        %v2877 = vpop.f32.mrf.mxu0
        %v2878 = vpop.f32.mrf.mxu0
        %v2879 = vadd.f32 0.0, %v2878
        %v2880 = vpop.f32.mrf.mxu0
        %2881 = vmatprep.mubr.bf16.mxu0 %v2726
        %2882 = vmatmul.mubr.bf16.gmra.mxu0 %v2725
        %v2883 = vpop.f32.mrf.mxu0
        %v2884 = vadd.f32 0.0, %v2883
        %v2885 = vpop.f32.mrf.mxu0
        %v2886 = vpop.f32.mrf.mxu0
        %v2887 = vadd.f32 0.0, %v2886
        %v2888 = vpop.f32.mrf.mxu0
        %2889 = vmatprep.mubr.bf16.mxu0 %v2728
        %2890 = vmatmul.mubr.bf16.gmra.mxu0 %v2727
        %v2891 = vpop.f32.mrf.mxu0
        %v2892 = vadd.f32 0.0, %v2891
        %v2893 = vpop.f32.mrf.mxu0
        %v2894 = vpop.f32.mrf.mxu0
        %v2895 = vadd.f32 0.0, %v2894
        %v2896 = vpop.f32.mrf.mxu0
        %2897 = vmatprep.mubr.bf16.mxu0 %v2730
        %2898 = vmatmul.mubr.bf16.gmra.mxu0 %v2729
        %v2899 = vpop.f32.mrf.mxu0
        %v2900 = vadd.f32 0.0, %v2899
        %v2901 = vpop.f32.mrf.mxu0
        %v2902 = vpop.f32.mrf.mxu0
        %v2903 = vadd.f32 0.0, %v2902
        %v2904 = vpop.f32.mrf.mxu0
        %2905 = vmatprep.mubr.bf16.mxu0 %v2732
        %2906 = vmatmul.mubr.bf16.gmra.mxu0 %v2731
        %v2907 = vpop.f32.mrf.mxu0
        %v2908 = vadd.f32 0.0, %v2907
        %v2909 = vpop.f32.mrf.mxu0
        %v2910 = vpop.f32.mrf.mxu0
        %v2911 = vadd.f32 0.0, %v2910
        %v2912 = vpop.f32.mrf.mxu0
        %2913 = vmatprep.mubr.bf16.mxu0 %v2734
        %2914 = vmatmul.mubr.bf16.gmra.mxu0 %v2733
        %v2915 = vpop.f32.mrf.mxu0
        %v2916 = vadd.f32 0.0, %v2915
        %v2917 = vpop.f32.mrf.mxu0
        %v2918 = vpop.f32.mrf.mxu0
        %v2919 = vadd.f32 0.0, %v2918
        %v2920 = vpop.f32.mrf.mxu0
        %2921 = vmatprep.mubr.bf16.mxu0 %v2736
        %2922 = vmatmul.mubr.bf16.gmra.mxu0 %v2735
        %v2923 = vpop.f32.mrf.mxu0
        %v2924 = vadd.f32 0.0, %v2923
        %v2925 = vpop.f32.mrf.mxu0
        %v2926 = vpop.f32.mrf.mxu0
        %v2927 = vadd.f32 0.0, %v2926
        %v2928 = vpop.f32.mrf.mxu0
        %2929 = vdwg.mxu0
        %v2930 = vlaneseq
        %v2931 = vshrl.u32 %v2930, 7
        %v2932 = vsub.s32 0, %v2931
        %v2933 = vrot.slane %v604, %v2932
        %v2934 = vadd.f32 %v1841, %v2933
        %v2935 = vadd.f32 %v1844, %v2933
        %v2936 = vadd.f32 %v1849, %v2933
        %v2937 = vadd.f32 %v1852, %v2933
        %v2938 = vadd.f32 %v1857, %v2933
        %v2939 = vadd.f32 %v1860, %v2933
        %v2940 = vadd.f32 %v1865, %v2933
        %v2941 = vadd.f32 %v1868, %v2933
        %v2942 = vadd.f32 %v1873, %v2933
        %v2943 = vadd.f32 %v1876, %v2933
        %v2944 = vadd.f32 %v1881, %v2933
        %v2945 = vadd.f32 %v1884, %v2933
        %v2946 = vadd.f32 %v1889, %v2933
        %v2947 = vadd.f32 %v1892, %v2933
        %v2948 = vadd.f32 %v1897, %v2933
        %v2949 = vadd.f32 %v1900, %v2933
        %v2950 = vadd.f32 %v1905, %v2933
        %v2951 = vadd.f32 %v1908, %v2933
        %v2952 = vadd.f32 %v1913, %v2933
        %v2953 = vadd.f32 %v1916, %v2933
        %v2954 = vadd.f32 %v1921, %v2933
        %v2955 = vadd.f32 %v1924, %v2933
        %v2956 = vadd.f32 %v1929, %v2933
        %v2957 = vadd.f32 %v1932, %v2933
        %v2958 = vadd.f32 %v1937, %v2933
        %v2959 = vadd.f32 %v1940, %v2933
        %v2960 = vadd.f32 %v1945, %v2933
        %v2961 = vadd.f32 %v1948, %v2933
        %v2962 = vadd.f32 %v1953, %v2933
        %v2963 = vadd.f32 %v1956, %v2933
        %v2964 = vadd.f32 %v1961, %v2933
        %v2965 = vadd.f32 %v1964, %v2933
        %v2966 = vadd.f32 %v2162, %v2933
        %v2967 = vadd.f32 %v2165, %v2933
        %v2968 = vadd.f32 %v2170, %v2933
        %v2969 = vadd.f32 %v2173, %v2933
        %v2970 = vadd.f32 %v2178, %v2933
        %v2971 = vadd.f32 %v2181, %v2933
        %v2972 = vadd.f32 %v2186, %v2933
        %v2973 = vadd.f32 %v2189, %v2933
        %v2974 = vadd.f32 %v2194, %v2933
        %v2975 = vadd.f32 %v2197, %v2933
        %v2976 = vadd.f32 %v2202, %v2933
        %v2977 = vadd.f32 %v2205, %v2933
        %v2978 = vadd.f32 %v2210, %v2933
        %v2979 = vadd.f32 %v2213, %v2933
        %v2980 = vadd.f32 %v2218, %v2933
        %v2981 = vadd.f32 %v2221, %v2933
        %v2982 = vadd.f32 %v2226, %v2933
        %v2983 = vadd.f32 %v2229, %v2933
        %v2984 = vadd.f32 %v2234, %v2933
        %v2985 = vadd.f32 %v2237, %v2933
        %v2986 = vadd.f32 %v2242, %v2933
        %v2987 = vadd.f32 %v2245, %v2933
        %v2988 = vadd.f32 %v2250, %v2933
        %v2989 = vadd.f32 %v2253, %v2933
        %v2990 = vadd.f32 %v2258, %v2933
        %v2991 = vadd.f32 %v2261, %v2933
        %v2992 = vadd.f32 %v2266, %v2933
        %v2993 = vadd.f32 %v2269, %v2933
        %v2994 = vadd.f32 %v2274, %v2933
        %v2995 = vadd.f32 %v2277, %v2933
        %v2996 = vadd.f32 %v2282, %v2933
        %v2997 = vadd.f32 %v2285, %v2933
        %v2998 = vadd.f32 %v2483, %v2933
        %v2999 = vadd.f32 %v2486, %v2933
        %v3000 = vadd.f32 %v2491, %v2933
        %v3001 = vadd.f32 %v2494, %v2933
        %v3002 = vadd.f32 %v2499, %v2933
        %v3003 = vadd.f32 %v2502, %v2933
        %v3004 = vadd.f32 %v2507, %v2933
        %v3005 = vadd.f32 %v2510, %v2933
        %v3006 = vadd.f32 %v2515, %v2933
        %v3007 = vadd.f32 %v2518, %v2933
        %v3008 = vadd.f32 %v2523, %v2933
        %v3009 = vadd.f32 %v2526, %v2933
        %v3010 = vadd.f32 %v2531, %v2933
        %v3011 = vadd.f32 %v2534, %v2933
        %v3012 = vadd.f32 %v2539, %v2933
        %v3013 = vadd.f32 %v2542, %v2933
        %v3014 = vadd.f32 %v2547, %v2933
        %v3015 = vadd.f32 %v2550, %v2933
        %v3016 = vadd.f32 %v2555, %v2933
        %v3017 = vadd.f32 %v2558, %v2933
        %v3018 = vadd.f32 %v2563, %v2933
        %v3019 = vadd.f32 %v2566, %v2933
        %v3020 = vadd.f32 %v2571, %v2933
        %v3021 = vadd.f32 %v2574, %v2933
        %v3022 = vadd.f32 %v2579, %v2933
        %v3023 = vadd.f32 %v2582, %v2933
        %v3024 = vadd.f32 %v2587, %v2933
        %v3025 = vadd.f32 %v2590, %v2933
        %v3026 = vadd.f32 %v2595, %v2933
        %v3027 = vadd.f32 %v2598, %v2933
        %v3028 = vadd.f32 %v2603, %v2933
        %v3029 = vadd.f32 %v2606, %v2933
        %v3030 = vadd.f32 %v2804, %v2933
        %v3031 = vadd.f32 %v2807, %v2933
        %v3032 = vadd.f32 %v2812, %v2933
        %v3033 = vadd.f32 %v2815, %v2933
        %v3034 = vadd.f32 %v2820, %v2933
        %v3035 = vadd.f32 %v2823, %v2933
        %v3036 = vadd.f32 %v2828, %v2933
        %v3037 = vadd.f32 %v2831, %v2933
        %v3038 = vadd.f32 %v2836, %v2933
        %v3039 = vadd.f32 %v2839, %v2933
        %v3040 = vadd.f32 %v2844, %v2933
        %v3041 = vadd.f32 %v2847, %v2933
        %v3042 = vadd.f32 %v2852, %v2933
        %v3043 = vadd.f32 %v2855, %v2933
        %v3044 = vadd.f32 %v2860, %v2933
        %v3045 = vadd.f32 %v2863, %v2933
        %v3046 = vadd.f32 %v2868, %v2933
        %v3047 = vadd.f32 %v2871, %v2933
        %v3048 = vadd.f32 %v2876, %v2933
        %v3049 = vadd.f32 %v2879, %v2933
        %v3050 = vadd.f32 %v2884, %v2933
        %v3051 = vadd.f32 %v2887, %v2933
        %v3052 = vadd.f32 %v2892, %v2933
        %v3053 = vadd.f32 %v2895, %v2933
        %v3054 = vadd.f32 %v2900, %v2933
        %v3055 = vadd.f32 %v2903, %v2933
        %v3056 = vadd.f32 %v2908, %v2933
        %v3057 = vadd.f32 %v2911, %v2933
        %v3058 = vadd.f32 %v2916, %v2933
        %v3059 = vadd.f32 %v2919, %v2933
        %v3060 = vadd.f32 %v2924, %v2933
        %v3061 = vadd.f32 %v2927, %v2933
        %v3062 = vmax.f32 %v2934, 0.0
        %v3063 = vmax.f32 %v2935, 0.0
        %v3064 = vmax.f32 %v2936, 0.0
        %v3065 = vmax.f32 %v2937, 0.0
        %v3066 = vmax.f32 %v2938, 0.0
        %v3067 = vmax.f32 %v2939, 0.0
        %v3068 = vmax.f32 %v2940, 0.0
        %v3069 = vmax.f32 %v2941, 0.0
        %v3070 = vmax.f32 %v2942, 0.0
        %v3071 = vmax.f32 %v2943, 0.0
        %v3072 = vmax.f32 %v2944, 0.0
        %v3073 = vmax.f32 %v2945, 0.0
        %v3074 = vmax.f32 %v2946, 0.0
        %v3075 = vmax.f32 %v2947, 0.0
        %v3076 = vmax.f32 %v2948, 0.0
        %v3077 = vmax.f32 %v2949, 0.0
        %v3078 = vmax.f32 %v2950, 0.0
        %v3079 = vmax.f32 %v2951, 0.0
        %v3080 = vmax.f32 %v2952, 0.0
        %v3081 = vmax.f32 %v2953, 0.0
        %v3082 = vmax.f32 %v2954, 0.0
        %v3083 = vmax.f32 %v2955, 0.0
        %v3084 = vmax.f32 %v2956, 0.0
        %v3085 = vmax.f32 %v2957, 0.0
        %v3086 = vmax.f32 %v2958, 0.0
        %v3087 = vmax.f32 %v2959, 0.0
        %v3088 = vmax.f32 %v2960, 0.0
        %v3089 = vmax.f32 %v2961, 0.0
        %v3090 = vmax.f32 %v2962, 0.0
        %v3091 = vmax.f32 %v2963, 0.0
        %v3092 = vmax.f32 %v2964, 0.0
        %v3093 = vmax.f32 %v2965, 0.0
        %v3094 = vmax.f32 %v2966, 0.0
        %v3095 = vmax.f32 %v2967, 0.0
        %v3096 = vmax.f32 %v2968, 0.0
        %v3097 = vmax.f32 %v2969, 0.0
        %v3098 = vmax.f32 %v2970, 0.0
        %v3099 = vmax.f32 %v2971, 0.0
        %v3100 = vmax.f32 %v2972, 0.0
        %v3101 = vmax.f32 %v2973, 0.0
        %v3102 = vmax.f32 %v2974, 0.0
        %v3103 = vmax.f32 %v2975, 0.0
        %v3104 = vmax.f32 %v2976, 0.0
        %v3105 = vmax.f32 %v2977, 0.0
        %v3106 = vmax.f32 %v2978, 0.0
        %v3107 = vmax.f32 %v2979, 0.0
        %v3108 = vmax.f32 %v2980, 0.0
        %v3109 = vmax.f32 %v2981, 0.0
        %v3110 = vmax.f32 %v2982, 0.0
        %v3111 = vmax.f32 %v2983, 0.0
        %v3112 = vmax.f32 %v2984, 0.0
        %v3113 = vmax.f32 %v2985, 0.0
        %v3114 = vmax.f32 %v2986, 0.0
        %v3115 = vmax.f32 %v2987, 0.0
        %v3116 = vmax.f32 %v2988, 0.0
        %v3117 = vmax.f32 %v2989, 0.0
        %v3118 = vmax.f32 %v2990, 0.0
        %v3119 = vmax.f32 %v2991, 0.0
        %v3120 = vmax.f32 %v2992, 0.0
        %v3121 = vmax.f32 %v2993, 0.0
        %v3122 = vmax.f32 %v2994, 0.0
        %v3123 = vmax.f32 %v2995, 0.0
        %v3124 = vmax.f32 %v2996, 0.0
        %v3125 = vmax.f32 %v2997, 0.0
        %v3126 = vmax.f32 %v2998, 0.0
        %v3127 = vmax.f32 %v2999, 0.0
        %v3128 = vmax.f32 %v3000, 0.0
        %v3129 = vmax.f32 %v3001, 0.0
        %v3130 = vmax.f32 %v3002, 0.0
        %v3131 = vmax.f32 %v3003, 0.0
        %v3132 = vmax.f32 %v3004, 0.0
        %v3133 = vmax.f32 %v3005, 0.0
        %v3134 = vmax.f32 %v3006, 0.0
        %v3135 = vmax.f32 %v3007, 0.0
        %v3136 = vmax.f32 %v3008, 0.0
        %v3137 = vmax.f32 %v3009, 0.0
        %v3138 = vmax.f32 %v3010, 0.0
        %v3139 = vmax.f32 %v3011, 0.0
        %v3140 = vmax.f32 %v3012, 0.0
        %v3141 = vmax.f32 %v3013, 0.0
        %v3142 = vmax.f32 %v3014, 0.0
        %v3143 = vmax.f32 %v3015, 0.0
        %v3144 = vmax.f32 %v3016, 0.0
        %v3145 = vmax.f32 %v3017, 0.0
        %v3146 = vmax.f32 %v3018, 0.0
        %v3147 = vmax.f32 %v3019, 0.0
        %v3148 = vmax.f32 %v3020, 0.0
        %v3149 = vmax.f32 %v3021, 0.0
        %v3150 = vmax.f32 %v3022, 0.0
        %v3151 = vmax.f32 %v3023, 0.0
        %v3152 = vmax.f32 %v3024, 0.0
        %v3153 = vmax.f32 %v3025, 0.0
        %v3154 = vmax.f32 %v3026, 0.0
        %v3155 = vmax.f32 %v3027, 0.0
        %v3156 = vmax.f32 %v3028, 0.0
        %v3157 = vmax.f32 %v3029, 0.0
        %v3158 = vmax.f32 %v3030, 0.0
        %v3159 = vmax.f32 %v3031, 0.0
        %v3160 = vmax.f32 %v3032, 0.0
        %v3161 = vmax.f32 %v3033, 0.0
        %v3162 = vmax.f32 %v3034, 0.0
        %v3163 = vmax.f32 %v3035, 0.0
        %v3164 = vmax.f32 %v3036, 0.0
        %v3165 = vmax.f32 %v3037, 0.0
        %v3166 = vmax.f32 %v3038, 0.0
        %v3167 = vmax.f32 %v3039, 0.0
        %v3168 = vmax.f32 %v3040, 0.0
        %v3169 = vmax.f32 %v3041, 0.0
        %v3170 = vmax.f32 %v3042, 0.0
        %v3171 = vmax.f32 %v3043, 0.0
        %v3172 = vmax.f32 %v3044, 0.0
        %v3173 = vmax.f32 %v3045, 0.0
        %v3174 = vmax.f32 %v3046, 0.0
        %v3175 = vmax.f32 %v3047, 0.0
        %v3176 = vmax.f32 %v3048, 0.0
        %v3177 = vmax.f32 %v3049, 0.0
        %v3178 = vmax.f32 %v3050, 0.0
        %v3179 = vmax.f32 %v3051, 0.0
        %v3180 = vmax.f32 %v3052, 0.0
        %v3181 = vmax.f32 %v3053, 0.0
        %v3182 = vmax.f32 %v3054, 0.0
        %v3183 = vmax.f32 %v3055, 0.0
        %v3184 = vmax.f32 %v3056, 0.0
        %v3185 = vmax.f32 %v3057, 0.0
        %v3186 = vmax.f32 %v3058, 0.0
        %v3187 = vmax.f32 %v3059, 0.0
        %v3188 = vmax.f32 %v3060, 0.0
        %v3189 = vmax.f32 %v3061, 0.0
        %s3190 = scalar_lea.vmem [#allocation7], 64
        %v3191 = vld [vmem:[%s3190] sm:$0xf]
        %v3192 = vld [vmem:[%s3190 + $0x4] sm:$0xf]
        %v3193 = vld [vmem:[%s3190 + $0x8] sm:$0xf]
        %v3194 = vld [vmem:[%s3190 + $0xc] sm:$0xf]
        %v3195 = vld [vmem:[%s3190 + $0x10] sm:$0xf]
        %v3196 = vld [vmem:[%s3190 + $0x14] sm:$0xf]
        %v3197 = vld [vmem:[%s3190 + $0x18] sm:$0xf]
        %v3198 = vld [vmem:[%s3190 + $0x1c] sm:$0xf]
        %v3199 = vld [vmem:[%s3190 + $0x20] sm:$0xf]
        %v3200 = vld [vmem:[%s3190 + $0x24] sm:$0xf]
        %v3201 = vld [vmem:[%s3190 + $0x28] sm:$0xf]
        %v3202 = vld [vmem:[%s3190 + $0x2c] sm:$0xf]
        %v3203 = vld [vmem:[%s3190 + $0x30] sm:$0xf]
        %v3204 = vld [vmem:[%s3190 + $0x34] sm:$0xf]
        %v3205 = vld [vmem:[%s3190 + $0x38] sm:$0xf]
        %v3206 = vld [vmem:[%s3190 + $0x3c] sm:$0xf]
        %v3207 = vld [vmem:[#allocation9 + $0x1] sm:$0x1]
        %v3208 = vpack.c.bf16 %v3063, %v3062
        %v3209 = vpack.c.bf16 %v3065, %v3064
        %v3210 = vpack.c.bf16 %v3067, %v3066
        %v3211 = vpack.c.bf16 %v3069, %v3068
        %v3212 = vpack.c.bf16 %v3071, %v3070
        %v3213 = vpack.c.bf16 %v3073, %v3072
        %v3214 = vpack.c.bf16 %v3075, %v3074
        %v3215 = vpack.c.bf16 %v3077, %v3076
        %v3216 = vpack.c.bf16 %v3079, %v3078
        %v3217 = vpack.c.bf16 %v3081, %v3080
        %v3218 = vpack.c.bf16 %v3083, %v3082
        %v3219 = vpack.c.bf16 %v3085, %v3084
        %v3220 = vpack.c.bf16 %v3087, %v3086
        %v3221 = vpack.c.bf16 %v3089, %v3088
        %v3222 = vpack.c.bf16 %v3091, %v3090
        %v3223 = vpack.c.bf16 %v3093, %v3092
        %v3224 = vpack.c.bf16 %v3095, %v3094
        %v3225 = vpack.c.bf16 %v3097, %v3096
        %v3226 = vpack.c.bf16 %v3099, %v3098
        %v3227 = vpack.c.bf16 %v3101, %v3100
        %v3228 = vpack.c.bf16 %v3103, %v3102
        %v3229 = vpack.c.bf16 %v3105, %v3104
        %v3230 = vpack.c.bf16 %v3107, %v3106
        %v3231 = vpack.c.bf16 %v3109, %v3108
        %v3232 = vpack.c.bf16 %v3111, %v3110
        %v3233 = vpack.c.bf16 %v3113, %v3112
        %v3234 = vpack.c.bf16 %v3115, %v3114
        %v3235 = vpack.c.bf16 %v3117, %v3116
        %v3236 = vpack.c.bf16 %v3119, %v3118
        %v3237 = vpack.c.bf16 %v3121, %v3120
        %v3238 = vpack.c.bf16 %v3123, %v3122
        %v3239 = vpack.c.bf16 %v3125, %v3124
        %v3240 = vpack.c.bf16 %v3127, %v3126
        %v3241 = vpack.c.bf16 %v3129, %v3128
        %v3242 = vpack.c.bf16 %v3131, %v3130
        %v3243 = vpack.c.bf16 %v3133, %v3132
        %v3244 = vpack.c.bf16 %v3135, %v3134
        %v3245 = vpack.c.bf16 %v3137, %v3136
        %v3246 = vpack.c.bf16 %v3139, %v3138
        %v3247 = vpack.c.bf16 %v3141, %v3140
        %v3248 = vpack.c.bf16 %v3143, %v3142
        %v3249 = vpack.c.bf16 %v3145, %v3144
        %v3250 = vpack.c.bf16 %v3147, %v3146
        %v3251 = vpack.c.bf16 %v3149, %v3148
        %v3252 = vpack.c.bf16 %v3151, %v3150
        %v3253 = vpack.c.bf16 %v3153, %v3152
        %v3254 = vpack.c.bf16 %v3155, %v3154
        %v3255 = vpack.c.bf16 %v3157, %v3156
        %v3256 = vpack.c.bf16 %v3159, %v3158
        %v3257 = vpack.c.bf16 %v3161, %v3160
        %v3258 = vpack.c.bf16 %v3163, %v3162
        %v3259 = vpack.c.bf16 %v3165, %v3164
        %v3260 = vpack.c.bf16 %v3167, %v3166
        %v3261 = vpack.c.bf16 %v3169, %v3168
        %v3262 = vpack.c.bf16 %v3171, %v3170
        %v3263 = vpack.c.bf16 %v3173, %v3172
        %v3264 = vpack.c.bf16 %v3175, %v3174
        %v3265 = vpack.c.bf16 %v3177, %v3176
        %v3266 = vpack.c.bf16 %v3179, %v3178
        %v3267 = vpack.c.bf16 %v3181, %v3180
        %v3268 = vpack.c.bf16 %v3183, %v3182
        %v3269 = vpack.c.bf16 %v3185, %v3184
        %v3270 = vpack.c.bf16 %v3187, %v3186
        %v3271 = vpack.c.bf16 %v3189, %v3188
        %v3288 = vunpack.c.l.b16 %v3191
        %v3289 = vunpack.c.l.b16 %v3192
        %v3290 = vunpack.c.l.b16 %v3193
        %v3291 = vunpack.c.l.b16 %v3194
        %v3292 = vunpack.c.l.b16 %v3195
        %v3293 = vunpack.c.l.b16 %v3196
        %v3294 = vunpack.c.l.b16 %v3197
        %v3295 = vunpack.c.l.b16 %v3198
        %v3296 = vunpack.c.l.b16 %v3199
        %v3297 = vunpack.c.l.b16 %v3200
        %v3298 = vunpack.c.l.b16 %v3201
        %v3299 = vunpack.c.l.b16 %v3202
        %v3300 = vunpack.c.l.b16 %v3203
        %v3301 = vunpack.c.l.b16 %v3204
        %v3302 = vunpack.c.l.b16 %v3205
        %v3303 = vunpack.c.l.b16 %v3206
        %v3304 = vpack.c.b16 %v3289, %v3288
        %v3305 = vpack.c.b16 %v3291, %v3290
        %v3306 = vpack.c.b16 %v3293, %v3292
        %v3307 = vpack.c.b16 %v3295, %v3294
        %v3308 = vpack.c.b16 %v3297, %v3296
        %v3309 = vpack.c.b16 %v3299, %v3298
        %v3310 = vpack.c.b16 %v3301, %v3300
        %v3311 = vpack.c.b16 %v3303, %v3302
        %3320 = vmatprep.subr.bf16.mxu0 0
        %3321 = vmatpush1.bf16.msra.mxu0 %v3311
        %3322 = vmatprep.subr.bf16.mxu0 0
        %3323 = vmatpush1.bf16.msra.mxu0 %v3310
        %3324 = vmatprep.subr.bf16.mxu0 0
        %3325 = vmatpush1.bf16.msra.mxu0 %v3309
        %3326 = vmatprep.subr.bf16.mxu0 0
        %3327 = vmatpush1.bf16.msra.mxu0 %v3308
        %3328 = vmatprep.subr.bf16.mxu0 0
        %3329 = vmatpush1.bf16.msra.mxu0 %v3307
        %3330 = vmatprep.subr.bf16.mxu0 0
        %3331 = vmatpush1.bf16.msra.mxu0 %v3306
        %3332 = vmatprep.subr.bf16.mxu0 0
        %3333 = vmatpush1.bf16.msra.mxu0 %v3305
        %3334 = vmatprep.subr.bf16.mxu0 0
        %3335 = vmatpush1.bf16.msra.mxu0 %v3304
        %3336 = vmatprep.subr.bf16.mxu0 0
        %3337 = vmatpush2.bf16.msra.mxu0 0
        %3338 = vmatprep.subr.bf16.mxu0 0
        %3339 = vmatpush2.bf16.msra.mxu0 0
        %3340 = vmatprep.subr.bf16.mxu0 0
        %3341 = vmatpush2.bf16.msra.mxu0 0
        %3342 = vmatprep.subr.bf16.mxu0 0
        %3343 = vmatpush2.bf16.msra.mxu0 0
        %3344 = vmatprep.subr.bf16.mxu0 0
        %3345 = vmatpush2.bf16.msra.mxu0 0
        %3346 = vmatprep.subr.bf16.mxu0 0
        %3347 = vmatpush2.bf16.msra.mxu0 0
        %3348 = vmatprep.subr.bf16.mxu0 0
        %3349 = vmatpush2.bf16.msra.mxu0 0
        %3350 = vmatprep.subr.bf16.mxu0 0
        %3351 = vmatpush2.bf16.msra.mxu0 0
        %3352 = vmatprep.mubr.bf16.mxu0 0
        %3353 = vmatmul.mubr.bf16.gmra.mxu0 %v3208
        %v3354 = vpop.f32.mrf.mxu0
        %v3355 = vadd.f32 0.0, %v3354
        %v3356 = vpop.f32.mrf.mxu0
        %v3357 = vpop.f32.mrf.mxu0
        %v3358 = vadd.f32 0.0, %v3357
        %v3359 = vpop.f32.mrf.mxu0
        %3360 = vmatprep.mubr.bf16.mxu0 0
        %3361 = vmatmul.mubr.bf16.gmra.mxu0 %v3209
        %v3362 = vpop.f32.mrf.mxu0
        %v3363 = vadd.f32 0.0, %v3362
        %v3364 = vpop.f32.mrf.mxu0
        %v3365 = vpop.f32.mrf.mxu0
        %v3366 = vadd.f32 0.0, %v3365
        %v3367 = vpop.f32.mrf.mxu0
        %3368 = vmatprep.mubr.bf16.mxu0 0
        %3369 = vmatmul.mubr.bf16.gmra.mxu0 %v3210
        %v3370 = vpop.f32.mrf.mxu0
        %v3371 = vadd.f32 0.0, %v3370
        %v3372 = vpop.f32.mrf.mxu0
        %v3373 = vpop.f32.mrf.mxu0
        %v3374 = vadd.f32 0.0, %v3373
        %v3375 = vpop.f32.mrf.mxu0
        %3376 = vmatprep.mubr.bf16.mxu0 0
        %3377 = vmatmul.mubr.bf16.gmra.mxu0 %v3211
        %v3378 = vpop.f32.mrf.mxu0
        %v3379 = vadd.f32 0.0, %v3378
        %v3380 = vpop.f32.mrf.mxu0
        %v3381 = vpop.f32.mrf.mxu0
        %v3382 = vadd.f32 0.0, %v3381
        %v3383 = vpop.f32.mrf.mxu0
        %3384 = vmatprep.mubr.bf16.mxu0 0
        %3385 = vmatmul.mubr.bf16.gmra.mxu0 %v3212
        %v3386 = vpop.f32.mrf.mxu0
        %v3387 = vadd.f32 0.0, %v3386
        %v3388 = vpop.f32.mrf.mxu0
        %v3389 = vpop.f32.mrf.mxu0
        %v3390 = vadd.f32 0.0, %v3389
        %v3391 = vpop.f32.mrf.mxu0
        %3392 = vmatprep.mubr.bf16.mxu0 0
        %3393 = vmatmul.mubr.bf16.gmra.mxu0 %v3213
        %v3394 = vpop.f32.mrf.mxu0
        %v3395 = vadd.f32 0.0, %v3394
        %v3396 = vpop.f32.mrf.mxu0
        %v3397 = vpop.f32.mrf.mxu0
        %v3398 = vadd.f32 0.0, %v3397
        %v3399 = vpop.f32.mrf.mxu0
        %3400 = vmatprep.mubr.bf16.mxu0 0
        %3401 = vmatmul.mubr.bf16.gmra.mxu0 %v3214
        %v3402 = vpop.f32.mrf.mxu0
        %v3403 = vadd.f32 0.0, %v3402
        %v3404 = vpop.f32.mrf.mxu0
        %v3405 = vpop.f32.mrf.mxu0
        %v3406 = vadd.f32 0.0, %v3405
        %v3407 = vpop.f32.mrf.mxu0
        %3408 = vmatprep.mubr.bf16.mxu0 0
        %3409 = vmatmul.mubr.bf16.gmra.mxu0 %v3215
        %v3410 = vpop.f32.mrf.mxu0
        %v3411 = vadd.f32 0.0, %v3410
        %v3412 = vpop.f32.mrf.mxu0
        %v3413 = vpop.f32.mrf.mxu0
        %v3414 = vadd.f32 0.0, %v3413
        %v3415 = vpop.f32.mrf.mxu0
        %3416 = vmatprep.mubr.bf16.mxu0 0
        %3417 = vmatmul.mubr.bf16.gmra.mxu0 %v3216
        %v3418 = vpop.f32.mrf.mxu0
        %v3419 = vadd.f32 0.0, %v3418
        %v3420 = vpop.f32.mrf.mxu0
        %v3421 = vpop.f32.mrf.mxu0
        %v3422 = vadd.f32 0.0, %v3421
        %v3423 = vpop.f32.mrf.mxu0
        %3424 = vmatprep.mubr.bf16.mxu0 0
        %3425 = vmatmul.mubr.bf16.gmra.mxu0 %v3217
        %v3426 = vpop.f32.mrf.mxu0
        %v3427 = vadd.f32 0.0, %v3426
        %v3428 = vpop.f32.mrf.mxu0
        %v3429 = vpop.f32.mrf.mxu0
        %v3430 = vadd.f32 0.0, %v3429
        %v3431 = vpop.f32.mrf.mxu0
        %3432 = vmatprep.mubr.bf16.mxu0 0
        %3433 = vmatmul.mubr.bf16.gmra.mxu0 %v3218
        %v3434 = vpop.f32.mrf.mxu0
        %v3435 = vadd.f32 0.0, %v3434
        %v3436 = vpop.f32.mrf.mxu0
        %v3437 = vpop.f32.mrf.mxu0
        %v3438 = vadd.f32 0.0, %v3437
        %v3439 = vpop.f32.mrf.mxu0
        %3440 = vmatprep.mubr.bf16.mxu0 0
        %3441 = vmatmul.mubr.bf16.gmra.mxu0 %v3219
        %v3442 = vpop.f32.mrf.mxu0
        %v3443 = vadd.f32 0.0, %v3442
        %v3444 = vpop.f32.mrf.mxu0
        %v3445 = vpop.f32.mrf.mxu0
        %v3446 = vadd.f32 0.0, %v3445
        %v3447 = vpop.f32.mrf.mxu0
        %3448 = vmatprep.mubr.bf16.mxu0 0
        %3449 = vmatmul.mubr.bf16.gmra.mxu0 %v3220
        %v3450 = vpop.f32.mrf.mxu0
        %v3451 = vadd.f32 0.0, %v3450
        %v3452 = vpop.f32.mrf.mxu0
        %v3453 = vpop.f32.mrf.mxu0
        %v3454 = vadd.f32 0.0, %v3453
        %v3455 = vpop.f32.mrf.mxu0
        %3456 = vmatprep.mubr.bf16.mxu0 0
        %3457 = vmatmul.mubr.bf16.gmra.mxu0 %v3221
        %v3458 = vpop.f32.mrf.mxu0
        %v3459 = vadd.f32 0.0, %v3458
        %v3460 = vpop.f32.mrf.mxu0
        %v3461 = vpop.f32.mrf.mxu0
        %v3462 = vadd.f32 0.0, %v3461
        %v3463 = vpop.f32.mrf.mxu0
        %3464 = vmatprep.mubr.bf16.mxu0 0
        %3465 = vmatmul.mubr.bf16.gmra.mxu0 %v3222
        %v3466 = vpop.f32.mrf.mxu0
        %v3467 = vadd.f32 0.0, %v3466
        %v3468 = vpop.f32.mrf.mxu0
        %v3469 = vpop.f32.mrf.mxu0
        %v3470 = vadd.f32 0.0, %v3469
        %v3471 = vpop.f32.mrf.mxu0
        %3472 = vmatprep.mubr.bf16.mxu0 0
        %3473 = vmatmul.mubr.bf16.gmra.mxu0 %v3223
        %v3474 = vpop.f32.mrf.mxu0
        %v3475 = vadd.f32 0.0, %v3474
        %v3476 = vpop.f32.mrf.mxu0
        %v3477 = vpop.f32.mrf.mxu0
        %v3478 = vadd.f32 0.0, %v3477
        %v3479 = vpop.f32.mrf.mxu0
        %3480 = vmatprep.mubr.bf16.mxu0 0
        %3481 = vmatmul.mubr.bf16.gmra.mxu0 %v3224
        %v3482 = vpop.f32.mrf.mxu0
        %v3483 = vadd.f32 0.0, %v3482
        %v3484 = vpop.f32.mrf.mxu0
        %v3485 = vpop.f32.mrf.mxu0
        %v3486 = vadd.f32 0.0, %v3485
        %v3487 = vpop.f32.mrf.mxu0
        %3488 = vmatprep.mubr.bf16.mxu0 0
        %3489 = vmatmul.mubr.bf16.gmra.mxu0 %v3225
        %v3490 = vpop.f32.mrf.mxu0
        %v3491 = vadd.f32 0.0, %v3490
        %v3492 = vpop.f32.mrf.mxu0
        %v3493 = vpop.f32.mrf.mxu0
        %v3494 = vadd.f32 0.0, %v3493
        %v3495 = vpop.f32.mrf.mxu0
        %3496 = vmatprep.mubr.bf16.mxu0 0
        %3497 = vmatmul.mubr.bf16.gmra.mxu0 %v3226
        %v3498 = vpop.f32.mrf.mxu0
        %v3499 = vadd.f32 0.0, %v3498
        %v3500 = vpop.f32.mrf.mxu0
        %v3501 = vpop.f32.mrf.mxu0
        %v3502 = vadd.f32 0.0, %v3501
        %v3503 = vpop.f32.mrf.mxu0
        %3504 = vmatprep.mubr.bf16.mxu0 0
        %3505 = vmatmul.mubr.bf16.gmra.mxu0 %v3227
        %v3506 = vpop.f32.mrf.mxu0
        %v3507 = vadd.f32 0.0, %v3506
        %v3508 = vpop.f32.mrf.mxu0
        %v3509 = vpop.f32.mrf.mxu0
        %v3510 = vadd.f32 0.0, %v3509
        %v3511 = vpop.f32.mrf.mxu0
        %3512 = vmatprep.mubr.bf16.mxu0 0
        %3513 = vmatmul.mubr.bf16.gmra.mxu0 %v3228
        %v3514 = vpop.f32.mrf.mxu0
        %v3515 = vadd.f32 0.0, %v3514
        %v3516 = vpop.f32.mrf.mxu0
        %v3517 = vpop.f32.mrf.mxu0
        %v3518 = vadd.f32 0.0, %v3517
        %v3519 = vpop.f32.mrf.mxu0
        %3520 = vmatprep.mubr.bf16.mxu0 0
        %3521 = vmatmul.mubr.bf16.gmra.mxu0 %v3229
        %v3522 = vpop.f32.mrf.mxu0
        %v3523 = vadd.f32 0.0, %v3522
        %v3524 = vpop.f32.mrf.mxu0
        %v3525 = vpop.f32.mrf.mxu0
        %v3526 = vadd.f32 0.0, %v3525
        %v3527 = vpop.f32.mrf.mxu0
        %3528 = vmatprep.mubr.bf16.mxu0 0
        %3529 = vmatmul.mubr.bf16.gmra.mxu0 %v3230
        %v3530 = vpop.f32.mrf.mxu0
        %v3531 = vadd.f32 0.0, %v3530
        %v3532 = vpop.f32.mrf.mxu0
        %v3533 = vpop.f32.mrf.mxu0
        %v3534 = vadd.f32 0.0, %v3533
        %v3535 = vpop.f32.mrf.mxu0
        %3536 = vmatprep.mubr.bf16.mxu0 0
        %3537 = vmatmul.mubr.bf16.gmra.mxu0 %v3231
        %v3538 = vpop.f32.mrf.mxu0
        %v3539 = vadd.f32 0.0, %v3538
        %v3540 = vpop.f32.mrf.mxu0
        %v3541 = vpop.f32.mrf.mxu0
        %v3542 = vadd.f32 0.0, %v3541
        %v3543 = vpop.f32.mrf.mxu0
        %3544 = vmatprep.mubr.bf16.mxu0 0
        %3545 = vmatmul.mubr.bf16.gmra.mxu0 %v3232
        %v3546 = vpop.f32.mrf.mxu0
        %v3547 = vadd.f32 0.0, %v3546
        %v3548 = vpop.f32.mrf.mxu0
        %v3549 = vpop.f32.mrf.mxu0
        %v3550 = vadd.f32 0.0, %v3549
        %v3551 = vpop.f32.mrf.mxu0
        %3552 = vmatprep.mubr.bf16.mxu0 0
        %3553 = vmatmul.mubr.bf16.gmra.mxu0 %v3233
        %v3554 = vpop.f32.mrf.mxu0
        %v3555 = vadd.f32 0.0, %v3554
        %v3556 = vpop.f32.mrf.mxu0
        %v3557 = vpop.f32.mrf.mxu0
        %v3558 = vadd.f32 0.0, %v3557
        %v3559 = vpop.f32.mrf.mxu0
        %3560 = vmatprep.mubr.bf16.mxu0 0
        %3561 = vmatmul.mubr.bf16.gmra.mxu0 %v3234
        %v3562 = vpop.f32.mrf.mxu0
        %v3563 = vadd.f32 0.0, %v3562
        %v3564 = vpop.f32.mrf.mxu0
        %v3565 = vpop.f32.mrf.mxu0
        %v3566 = vadd.f32 0.0, %v3565
        %v3567 = vpop.f32.mrf.mxu0
        %3568 = vmatprep.mubr.bf16.mxu0 0
        %3569 = vmatmul.mubr.bf16.gmra.mxu0 %v3235
        %v3570 = vpop.f32.mrf.mxu0
        %v3571 = vadd.f32 0.0, %v3570
        %v3572 = vpop.f32.mrf.mxu0
        %v3573 = vpop.f32.mrf.mxu0
        %v3574 = vadd.f32 0.0, %v3573
        %v3575 = vpop.f32.mrf.mxu0
        %3576 = vmatprep.mubr.bf16.mxu0 0
        %3577 = vmatmul.mubr.bf16.gmra.mxu0 %v3236
        %v3578 = vpop.f32.mrf.mxu0
        %v3579 = vadd.f32 0.0, %v3578
        %v3580 = vpop.f32.mrf.mxu0
        %v3581 = vpop.f32.mrf.mxu0
        %v3582 = vadd.f32 0.0, %v3581
        %v3583 = vpop.f32.mrf.mxu0
        %3584 = vmatprep.mubr.bf16.mxu0 0
        %3585 = vmatmul.mubr.bf16.gmra.mxu0 %v3237
        %v3586 = vpop.f32.mrf.mxu0
        %v3587 = vadd.f32 0.0, %v3586
        %v3588 = vpop.f32.mrf.mxu0
        %v3589 = vpop.f32.mrf.mxu0
        %v3590 = vadd.f32 0.0, %v3589
        %v3591 = vpop.f32.mrf.mxu0
        %3592 = vmatprep.mubr.bf16.mxu0 0
        %3593 = vmatmul.mubr.bf16.gmra.mxu0 %v3238
        %v3594 = vpop.f32.mrf.mxu0
        %v3595 = vadd.f32 0.0, %v3594
        %v3596 = vpop.f32.mrf.mxu0
        %v3597 = vpop.f32.mrf.mxu0
        %v3598 = vadd.f32 0.0, %v3597
        %v3599 = vpop.f32.mrf.mxu0
        %3600 = vmatprep.mubr.bf16.mxu0 0
        %3601 = vmatmul.mubr.bf16.gmra.mxu0 %v3239
        %v3602 = vpop.f32.mrf.mxu0
        %v3603 = vadd.f32 0.0, %v3602
        %v3604 = vpop.f32.mrf.mxu0
        %v3605 = vpop.f32.mrf.mxu0
        %v3606 = vadd.f32 0.0, %v3605
        %v3607 = vpop.f32.mrf.mxu0
        %3608 = vmatprep.mubr.bf16.mxu0 0
        %3609 = vmatmul.mubr.bf16.gmra.mxu0 %v3240
        %v3610 = vpop.f32.mrf.mxu0
        %v3611 = vadd.f32 0.0, %v3610
        %v3612 = vpop.f32.mrf.mxu0
        %v3613 = vpop.f32.mrf.mxu0
        %v3614 = vadd.f32 0.0, %v3613
        %v3615 = vpop.f32.mrf.mxu0
        %3616 = vmatprep.mubr.bf16.mxu0 0
        %3617 = vmatmul.mubr.bf16.gmra.mxu0 %v3241
        %v3618 = vpop.f32.mrf.mxu0
        %v3619 = vadd.f32 0.0, %v3618
        %v3620 = vpop.f32.mrf.mxu0
        %v3621 = vpop.f32.mrf.mxu0
        %v3622 = vadd.f32 0.0, %v3621
        %v3623 = vpop.f32.mrf.mxu0
        %3624 = vmatprep.mubr.bf16.mxu0 0
        %3625 = vmatmul.mubr.bf16.gmra.mxu0 %v3242
        %v3626 = vpop.f32.mrf.mxu0
        %v3627 = vadd.f32 0.0, %v3626
        %v3628 = vpop.f32.mrf.mxu0
        %v3629 = vpop.f32.mrf.mxu0
        %v3630 = vadd.f32 0.0, %v3629
        %v3631 = vpop.f32.mrf.mxu0
        %3632 = vmatprep.mubr.bf16.mxu0 0
        %3633 = vmatmul.mubr.bf16.gmra.mxu0 %v3243
        %v3634 = vpop.f32.mrf.mxu0
        %v3635 = vadd.f32 0.0, %v3634
        %v3636 = vpop.f32.mrf.mxu0
        %v3637 = vpop.f32.mrf.mxu0
        %v3638 = vadd.f32 0.0, %v3637
        %v3639 = vpop.f32.mrf.mxu0
        %3640 = vmatprep.mubr.bf16.mxu0 0
        %3641 = vmatmul.mubr.bf16.gmra.mxu0 %v3244
        %v3642 = vpop.f32.mrf.mxu0
        %v3643 = vadd.f32 0.0, %v3642
        %v3644 = vpop.f32.mrf.mxu0
        %v3645 = vpop.f32.mrf.mxu0
        %v3646 = vadd.f32 0.0, %v3645
        %v3647 = vpop.f32.mrf.mxu0
        %3648 = vmatprep.mubr.bf16.mxu0 0
        %3649 = vmatmul.mubr.bf16.gmra.mxu0 %v3245
        %v3650 = vpop.f32.mrf.mxu0
        %v3651 = vadd.f32 0.0, %v3650
        %v3652 = vpop.f32.mrf.mxu0
        %v3653 = vpop.f32.mrf.mxu0
        %v3654 = vadd.f32 0.0, %v3653
        %v3655 = vpop.f32.mrf.mxu0
        %3656 = vmatprep.mubr.bf16.mxu0 0
        %3657 = vmatmul.mubr.bf16.gmra.mxu0 %v3246
        %v3658 = vpop.f32.mrf.mxu0
        %v3659 = vadd.f32 0.0, %v3658
        %v3660 = vpop.f32.mrf.mxu0
        %v3661 = vpop.f32.mrf.mxu0
        %v3662 = vadd.f32 0.0, %v3661
        %v3663 = vpop.f32.mrf.mxu0
        %3664 = vmatprep.mubr.bf16.mxu0 0
        %3665 = vmatmul.mubr.bf16.gmra.mxu0 %v3247
        %v3666 = vpop.f32.mrf.mxu0
        %v3667 = vadd.f32 0.0, %v3666
        %v3668 = vpop.f32.mrf.mxu0
        %v3669 = vpop.f32.mrf.mxu0
        %v3670 = vadd.f32 0.0, %v3669
        %v3671 = vpop.f32.mrf.mxu0
        %3672 = vmatprep.mubr.bf16.mxu0 0
        %3673 = vmatmul.mubr.bf16.gmra.mxu0 %v3248
        %v3674 = vpop.f32.mrf.mxu0
        %v3675 = vadd.f32 0.0, %v3674
        %v3676 = vpop.f32.mrf.mxu0
        %v3677 = vpop.f32.mrf.mxu0
        %v3678 = vadd.f32 0.0, %v3677
        %v3679 = vpop.f32.mrf.mxu0
        %3680 = vmatprep.mubr.bf16.mxu0 0
        %3681 = vmatmul.mubr.bf16.gmra.mxu0 %v3249
        %v3682 = vpop.f32.mrf.mxu0
        %v3683 = vadd.f32 0.0, %v3682
        %v3684 = vpop.f32.mrf.mxu0
        %v3685 = vpop.f32.mrf.mxu0
        %v3686 = vadd.f32 0.0, %v3685
        %v3687 = vpop.f32.mrf.mxu0
        %3688 = vmatprep.mubr.bf16.mxu0 0
        %3689 = vmatmul.mubr.bf16.gmra.mxu0 %v3250
        %v3690 = vpop.f32.mrf.mxu0
        %v3691 = vadd.f32 0.0, %v3690
        %v3692 = vpop.f32.mrf.mxu0
        %v3693 = vpop.f32.mrf.mxu0
        %v3694 = vadd.f32 0.0, %v3693
        %v3695 = vpop.f32.mrf.mxu0
        %3696 = vmatprep.mubr.bf16.mxu0 0
        %3697 = vmatmul.mubr.bf16.gmra.mxu0 %v3251
        %v3698 = vpop.f32.mrf.mxu0
        %v3699 = vadd.f32 0.0, %v3698
        %v3700 = vpop.f32.mrf.mxu0
        %v3701 = vpop.f32.mrf.mxu0
        %v3702 = vadd.f32 0.0, %v3701
        %v3703 = vpop.f32.mrf.mxu0
        %3704 = vmatprep.mubr.bf16.mxu0 0
        %3705 = vmatmul.mubr.bf16.gmra.mxu0 %v3252
        %v3706 = vpop.f32.mrf.mxu0
        %v3707 = vadd.f32 0.0, %v3706
        %v3708 = vpop.f32.mrf.mxu0
        %v3709 = vpop.f32.mrf.mxu0
        %v3710 = vadd.f32 0.0, %v3709
        %v3711 = vpop.f32.mrf.mxu0
        %3712 = vmatprep.mubr.bf16.mxu0 0
        %3713 = vmatmul.mubr.bf16.gmra.mxu0 %v3253
        %v3714 = vpop.f32.mrf.mxu0
        %v3715 = vadd.f32 0.0, %v3714
        %v3716 = vpop.f32.mrf.mxu0
        %v3717 = vpop.f32.mrf.mxu0
        %v3718 = vadd.f32 0.0, %v3717
        %v3719 = vpop.f32.mrf.mxu0
        %3720 = vmatprep.mubr.bf16.mxu0 0
        %3721 = vmatmul.mubr.bf16.gmra.mxu0 %v3254
        %v3722 = vpop.f32.mrf.mxu0
        %v3723 = vadd.f32 0.0, %v3722
        %v3724 = vpop.f32.mrf.mxu0
        %v3725 = vpop.f32.mrf.mxu0
        %v3726 = vadd.f32 0.0, %v3725
        %v3727 = vpop.f32.mrf.mxu0
        %3728 = vmatprep.mubr.bf16.mxu0 0
        %3729 = vmatmul.mubr.bf16.gmra.mxu0 %v3255
        %v3730 = vpop.f32.mrf.mxu0
        %v3731 = vadd.f32 0.0, %v3730
        %v3732 = vpop.f32.mrf.mxu0
        %v3733 = vpop.f32.mrf.mxu0
        %v3734 = vadd.f32 0.0, %v3733
        %v3735 = vpop.f32.mrf.mxu0
        %3736 = vmatprep.mubr.bf16.mxu0 0
        %3737 = vmatmul.mubr.bf16.gmra.mxu0 %v3256
        %v3738 = vpop.f32.mrf.mxu0
        %v3739 = vadd.f32 0.0, %v3738
        %v3740 = vpop.f32.mrf.mxu0
        %v3741 = vpop.f32.mrf.mxu0
        %v3742 = vadd.f32 0.0, %v3741
        %v3743 = vpop.f32.mrf.mxu0
        %3744 = vmatprep.mubr.bf16.mxu0 0
        %3745 = vmatmul.mubr.bf16.gmra.mxu0 %v3257
        %v3746 = vpop.f32.mrf.mxu0
        %v3747 = vadd.f32 0.0, %v3746
        %v3748 = vpop.f32.mrf.mxu0
        %v3749 = vpop.f32.mrf.mxu0
        %v3750 = vadd.f32 0.0, %v3749
        %v3751 = vpop.f32.mrf.mxu0
        %3752 = vmatprep.mubr.bf16.mxu0 0
        %3753 = vmatmul.mubr.bf16.gmra.mxu0 %v3258
        %v3754 = vpop.f32.mrf.mxu0
        %v3755 = vadd.f32 0.0, %v3754
        %v3756 = vpop.f32.mrf.mxu0
        %v3757 = vpop.f32.mrf.mxu0
        %v3758 = vadd.f32 0.0, %v3757
        %v3759 = vpop.f32.mrf.mxu0
        %3760 = vmatprep.mubr.bf16.mxu0 0
        %3761 = vmatmul.mubr.bf16.gmra.mxu0 %v3259
        %v3762 = vpop.f32.mrf.mxu0
        %v3763 = vadd.f32 0.0, %v3762
        %v3764 = vpop.f32.mrf.mxu0
        %v3765 = vpop.f32.mrf.mxu0
        %v3766 = vadd.f32 0.0, %v3765
        %v3767 = vpop.f32.mrf.mxu0
        %3768 = vmatprep.mubr.bf16.mxu0 0
        %3769 = vmatmul.mubr.bf16.gmra.mxu0 %v3260
        %v3770 = vpop.f32.mrf.mxu0
        %v3771 = vadd.f32 0.0, %v3770
        %v3772 = vpop.f32.mrf.mxu0
        %v3773 = vpop.f32.mrf.mxu0
        %v3774 = vadd.f32 0.0, %v3773
        %v3775 = vpop.f32.mrf.mxu0
        %3776 = vmatprep.mubr.bf16.mxu0 0
        %3777 = vmatmul.mubr.bf16.gmra.mxu0 %v3261
        %v3778 = vpop.f32.mrf.mxu0
        %v3779 = vadd.f32 0.0, %v3778
        %v3780 = vpop.f32.mrf.mxu0
        %v3781 = vpop.f32.mrf.mxu0
        %v3782 = vadd.f32 0.0, %v3781
        %v3783 = vpop.f32.mrf.mxu0
        %3784 = vmatprep.mubr.bf16.mxu0 0
        %3785 = vmatmul.mubr.bf16.gmra.mxu0 %v3262
        %v3786 = vpop.f32.mrf.mxu0
        %v3787 = vadd.f32 0.0, %v3786
        %v3788 = vpop.f32.mrf.mxu0
        %v3789 = vpop.f32.mrf.mxu0
        %v3790 = vadd.f32 0.0, %v3789
        %v3791 = vpop.f32.mrf.mxu0
        %3792 = vmatprep.mubr.bf16.mxu0 0
        %3793 = vmatmul.mubr.bf16.gmra.mxu0 %v3263
        %v3794 = vpop.f32.mrf.mxu0
        %v3795 = vadd.f32 0.0, %v3794
        %v3796 = vpop.f32.mrf.mxu0
        %v3797 = vpop.f32.mrf.mxu0
        %v3798 = vadd.f32 0.0, %v3797
        %v3799 = vpop.f32.mrf.mxu0
        %3800 = vmatprep.mubr.bf16.mxu0 0
        %3801 = vmatmul.mubr.bf16.gmra.mxu0 %v3264
        %v3802 = vpop.f32.mrf.mxu0
        %v3803 = vadd.f32 0.0, %v3802
        %v3804 = vpop.f32.mrf.mxu0
        %v3805 = vpop.f32.mrf.mxu0
        %v3806 = vadd.f32 0.0, %v3805
        %v3807 = vpop.f32.mrf.mxu0
        %3808 = vmatprep.mubr.bf16.mxu0 0
        %3809 = vmatmul.mubr.bf16.gmra.mxu0 %v3265
        %v3810 = vpop.f32.mrf.mxu0
        %v3811 = vadd.f32 0.0, %v3810
        %v3812 = vpop.f32.mrf.mxu0
        %v3813 = vpop.f32.mrf.mxu0
        %v3814 = vadd.f32 0.0, %v3813
        %v3815 = vpop.f32.mrf.mxu0
        %3816 = vmatprep.mubr.bf16.mxu0 0
        %3817 = vmatmul.mubr.bf16.gmra.mxu0 %v3266
        %v3818 = vpop.f32.mrf.mxu0
        %v3819 = vadd.f32 0.0, %v3818
        %v3820 = vpop.f32.mrf.mxu0
        %v3821 = vpop.f32.mrf.mxu0
        %v3822 = vadd.f32 0.0, %v3821
        %v3823 = vpop.f32.mrf.mxu0
        %3824 = vmatprep.mubr.bf16.mxu0 0
        %3825 = vmatmul.mubr.bf16.gmra.mxu0 %v3267
        %v3826 = vpop.f32.mrf.mxu0
        %v3827 = vadd.f32 0.0, %v3826
        %v3828 = vpop.f32.mrf.mxu0
        %v3829 = vpop.f32.mrf.mxu0
        %v3830 = vadd.f32 0.0, %v3829
        %v3831 = vpop.f32.mrf.mxu0
        %3832 = vmatprep.mubr.bf16.mxu0 0
        %3833 = vmatmul.mubr.bf16.gmra.mxu0 %v3268
        %v3834 = vpop.f32.mrf.mxu0
        %v3835 = vadd.f32 0.0, %v3834
        %v3836 = vpop.f32.mrf.mxu0
        %v3837 = vpop.f32.mrf.mxu0
        %v3838 = vadd.f32 0.0, %v3837
        %v3839 = vpop.f32.mrf.mxu0
        %3840 = vmatprep.mubr.bf16.mxu0 0
        %3841 = vmatmul.mubr.bf16.gmra.mxu0 %v3269
        %v3842 = vpop.f32.mrf.mxu0
        %v3843 = vadd.f32 0.0, %v3842
        %v3844 = vpop.f32.mrf.mxu0
        %v3845 = vpop.f32.mrf.mxu0
        %v3846 = vadd.f32 0.0, %v3845
        %v3847 = vpop.f32.mrf.mxu0
        %3848 = vmatprep.mubr.bf16.mxu0 0
        %3849 = vmatmul.mubr.bf16.gmra.mxu0 %v3270
        %v3850 = vpop.f32.mrf.mxu0
        %v3851 = vadd.f32 0.0, %v3850
        %v3852 = vpop.f32.mrf.mxu0
        %v3853 = vpop.f32.mrf.mxu0
        %v3854 = vadd.f32 0.0, %v3853
        %v3855 = vpop.f32.mrf.mxu0
        %3856 = vmatprep.mubr.bf16.mxu0 0
        %3857 = vmatmul.mubr.bf16.gmra.mxu0 %v3271
        %v3858 = vpop.f32.mrf.mxu0
        %v3859 = vadd.f32 0.0, %v3858
        %v3860 = vpop.f32.mrf.mxu0
        %v3861 = vpop.f32.mrf.mxu0
        %v3862 = vadd.f32 0.0, %v3861
        %v3863 = vpop.f32.mrf.mxu0
        %3864 = vdwg.mxu0
        %v3865 = vpack.c.bf16 %v3358, %v3355
        %v3866 = vpack.c.bf16 %v3366, %v3363
        %v3867 = vpack.c.bf16 %v3374, %v3371
        %v3868 = vpack.c.bf16 %v3382, %v3379
        %v3869 = vpack.c.bf16 %v3390, %v3387
        %v3870 = vpack.c.bf16 %v3398, %v3395
        %v3871 = vpack.c.bf16 %v3406, %v3403
        %v3872 = vpack.c.bf16 %v3414, %v3411
        %v3873 = vpack.c.bf16 %v3422, %v3419
        %v3874 = vpack.c.bf16 %v3430, %v3427
        %v3875 = vpack.c.bf16 %v3438, %v3435
        %v3876 = vpack.c.bf16 %v3446, %v3443
        %v3877 = vpack.c.bf16 %v3454, %v3451
        %v3878 = vpack.c.bf16 %v3462, %v3459
        %v3879 = vpack.c.bf16 %v3470, %v3467
        %v3880 = vpack.c.bf16 %v3478, %v3475
        %v3881 = vpack.c.bf16 %v3486, %v3483
        %v3882 = vpack.c.bf16 %v3494, %v3491
        %v3883 = vpack.c.bf16 %v3502, %v3499
        %v3884 = vpack.c.bf16 %v3510, %v3507
        %v3885 = vpack.c.bf16 %v3518, %v3515
        %v3886 = vpack.c.bf16 %v3526, %v3523
        %v3887 = vpack.c.bf16 %v3534, %v3531
        %v3888 = vpack.c.bf16 %v3542, %v3539
        %v3889 = vpack.c.bf16 %v3550, %v3547
        %v3890 = vpack.c.bf16 %v3558, %v3555
        %v3891 = vpack.c.bf16 %v3566, %v3563
        %v3892 = vpack.c.bf16 %v3574, %v3571
        %v3893 = vpack.c.bf16 %v3582, %v3579
        %v3894 = vpack.c.bf16 %v3590, %v3587
        %v3895 = vpack.c.bf16 %v3598, %v3595
        %v3896 = vpack.c.bf16 %v3606, %v3603
        %v3897 = vpack.c.bf16 %v3614, %v3611
        %v3898 = vpack.c.bf16 %v3622, %v3619
        %v3899 = vpack.c.bf16 %v3630, %v3627
        %v3900 = vpack.c.bf16 %v3638, %v3635
        %v3901 = vpack.c.bf16 %v3646, %v3643
        %v3902 = vpack.c.bf16 %v3654, %v3651
        %v3903 = vpack.c.bf16 %v3662, %v3659
        %v3904 = vpack.c.bf16 %v3670, %v3667
        %v3905 = vpack.c.bf16 %v3678, %v3675
        %v3906 = vpack.c.bf16 %v3686, %v3683
        %v3907 = vpack.c.bf16 %v3694, %v3691
        %v3908 = vpack.c.bf16 %v3702, %v3699
        %v3909 = vpack.c.bf16 %v3710, %v3707
        %v3910 = vpack.c.bf16 %v3718, %v3715
        %v3911 = vpack.c.bf16 %v3726, %v3723
        %v3912 = vpack.c.bf16 %v3734, %v3731
        %v3913 = vpack.c.bf16 %v3742, %v3739
        %v3914 = vpack.c.bf16 %v3750, %v3747
        %v3915 = vpack.c.bf16 %v3758, %v3755
        %v3916 = vpack.c.bf16 %v3766, %v3763
        %v3917 = vpack.c.bf16 %v3774, %v3771
        %v3918 = vpack.c.bf16 %v3782, %v3779
        %v3919 = vpack.c.bf16 %v3790, %v3787
        %v3920 = vpack.c.bf16 %v3798, %v3795
        %v3921 = vpack.c.bf16 %v3806, %v3803
        %v3922 = vpack.c.bf16 %v3814, %v3811
        %v3923 = vpack.c.bf16 %v3822, %v3819
        %v3924 = vpack.c.bf16 %v3830, %v3827
        %v3925 = vpack.c.bf16 %v3838, %v3835
        %v3926 = vpack.c.bf16 %v3846, %v3843
        %v3927 = vpack.c.bf16 %v3854, %v3851
        %v3928 = vpack.c.bf16 %v3862, %v3859
        %3929 = vmatprep.subr.bf16.mxu0 0
        %3930 = vmatpush1.bf16.msra.mxu0 %v3872
        %3931 = vmatprep.subr.bf16.mxu0 0
        %3932 = vmatpush1.bf16.msra.mxu0 %v3871
        %3933 = vmatprep.subr.bf16.mxu0 0
        %3934 = vmatpush1.bf16.msra.mxu0 %v3870
        %3935 = vmatprep.subr.bf16.mxu0 0
        %3936 = vmatpush1.bf16.msra.mxu0 %v3869
        %3937 = vmatprep.subr.bf16.mxu0 0
        %3938 = vmatpush1.bf16.msra.mxu0 %v3868
        %3939 = vmatprep.subr.bf16.mxu0 0
        %3940 = vmatpush1.bf16.msra.mxu0 %v3867
        %3941 = vmatprep.subr.bf16.mxu0 0
        %3942 = vmatpush1.bf16.msra.mxu0 %v3866
        %3943 = vmatprep.subr.bf16.mxu0 0
        %3944 = vmatpush1.bf16.msra.mxu0 %v3865
        %3945 = vmatprep.subr.bf16.mxu0 0
        %3946 = vmatpush2.bf16.msra.mxu0 %v3880
        %3947 = vmatprep.subr.bf16.mxu0 0
        %3948 = vmatpush2.bf16.msra.mxu0 %v3879
        %3949 = vmatprep.subr.bf16.mxu0 0
        %3950 = vmatpush2.bf16.msra.mxu0 %v3878
        %3951 = vmatprep.subr.bf16.mxu0 0
        %3952 = vmatpush2.bf16.msra.mxu0 %v3877
        %3953 = vmatprep.subr.bf16.mxu0 0
        %3954 = vmatpush2.bf16.msra.mxu0 %v3876
        %3955 = vmatprep.subr.bf16.mxu0 0
        %3956 = vmatpush2.bf16.msra.mxu0 %v3875
        %3957 = vmatprep.subr.bf16.mxu0 0
        %3958 = vmatpush2.bf16.msra.mxu0 %v3874
        %3959 = vmatprep.subr.bf16.mxu0 0
        %3960 = vmatpush2.bf16.msra.mxu0 %v3873
        %3961 = vmatprep.mubr.bf16.mxu0 %v1743
        %3962 = vmatmul.mubr.bf16.gmra.mxu0 %v1742
        %v3963 = vpop.f32.mrf.mxu0
        %v3964 = vadd.f32 0.0, %v3963
        %v3965 = vpop.f32.mrf.mxu0
        %v3966 = vpop.f32.mrf.mxu0
        %v3967 = vadd.f32 0.0, %v3966
        %v3968 = vpop.f32.mrf.mxu0
        %3969 = vmatprep.mubr.bf16.mxu0 %v1745
        %3970 = vmatmul.mubr.bf16.gmra.mxu0 %v1744
        %v3971 = vpop.f32.mrf.mxu0
        %v3972 = vadd.f32 0.0, %v3971
        %v3973 = vpop.f32.mrf.mxu0
        %v3974 = vpop.f32.mrf.mxu0
        %v3975 = vadd.f32 0.0, %v3974
        %v3976 = vpop.f32.mrf.mxu0
        %3977 = vmatprep.mubr.bf16.mxu0 %v1747
        %3978 = vmatmul.mubr.bf16.gmra.mxu0 %v1746
        %v3979 = vpop.f32.mrf.mxu0
        %v3980 = vadd.f32 0.0, %v3979
        %v3981 = vpop.f32.mrf.mxu0
        %v3982 = vpop.f32.mrf.mxu0
        %v3983 = vadd.f32 0.0, %v3982
        %v3984 = vpop.f32.mrf.mxu0
        %3985 = vmatprep.mubr.bf16.mxu0 %v1749
        %3986 = vmatmul.mubr.bf16.gmra.mxu0 %v1748
        %v3987 = vpop.f32.mrf.mxu0
        %v3988 = vadd.f32 0.0, %v3987
        %v3989 = vpop.f32.mrf.mxu0
        %v3990 = vpop.f32.mrf.mxu0
        %v3991 = vadd.f32 0.0, %v3990
        %v3992 = vpop.f32.mrf.mxu0
        %3993 = vmatprep.mubr.bf16.mxu0 %v1751
        %3994 = vmatmul.mubr.bf16.gmra.mxu0 %v1750
        %v3995 = vpop.f32.mrf.mxu0
        %v3996 = vadd.f32 0.0, %v3995
        %v3997 = vpop.f32.mrf.mxu0
        %v3998 = vpop.f32.mrf.mxu0
        %v3999 = vadd.f32 0.0, %v3998
        %v4000 = vpop.f32.mrf.mxu0
        %4001 = vmatprep.mubr.bf16.mxu0 %v1753
        %4002 = vmatmul.mubr.bf16.gmra.mxu0 %v1752
        %v4003 = vpop.f32.mrf.mxu0
        %v4004 = vadd.f32 0.0, %v4003
        %v4005 = vpop.f32.mrf.mxu0
        %v4006 = vpop.f32.mrf.mxu0
        %v4007 = vadd.f32 0.0, %v4006
        %v4008 = vpop.f32.mrf.mxu0
        %4009 = vmatprep.mubr.bf16.mxu0 %v1755
        %4010 = vmatmul.mubr.bf16.gmra.mxu0 %v1754
        %v4011 = vpop.f32.mrf.mxu0
        %v4012 = vadd.f32 0.0, %v4011
        %v4013 = vpop.f32.mrf.mxu0
        %v4014 = vpop.f32.mrf.mxu0
        %v4015 = vadd.f32 0.0, %v4014
        %v4016 = vpop.f32.mrf.mxu0
        %4017 = vmatprep.mubr.bf16.mxu0 %v1757
        %4018 = vmatmul.mubr.bf16.gmra.mxu0 %v1756
        %v4019 = vpop.f32.mrf.mxu0
        %v4020 = vadd.f32 0.0, %v4019
        %v4021 = vpop.f32.mrf.mxu0
        %v4022 = vpop.f32.mrf.mxu0
        %v4023 = vadd.f32 0.0, %v4022
        %v4024 = vpop.f32.mrf.mxu0
        %4025 = vmatprep.mubr.bf16.mxu0 %v1759
        %4026 = vmatmul.mubr.bf16.gmra.mxu0 %v1758
        %v4027 = vpop.f32.mrf.mxu0
        %v4028 = vadd.f32 0.0, %v4027
        %v4029 = vpop.f32.mrf.mxu0
        %v4030 = vpop.f32.mrf.mxu0
        %v4031 = vadd.f32 0.0, %v4030
        %v4032 = vpop.f32.mrf.mxu0
        %4033 = vmatprep.mubr.bf16.mxu0 %v1761
        %4034 = vmatmul.mubr.bf16.gmra.mxu0 %v1760
        %v4035 = vpop.f32.mrf.mxu0
        %v4036 = vadd.f32 0.0, %v4035
        %v4037 = vpop.f32.mrf.mxu0
        %v4038 = vpop.f32.mrf.mxu0
        %v4039 = vadd.f32 0.0, %v4038
        %v4040 = vpop.f32.mrf.mxu0
        %4041 = vmatprep.mubr.bf16.mxu0 %v1763
        %4042 = vmatmul.mubr.bf16.gmra.mxu0 %v1762
        %v4043 = vpop.f32.mrf.mxu0
        %v4044 = vadd.f32 0.0, %v4043
        %v4045 = vpop.f32.mrf.mxu0
        %v4046 = vpop.f32.mrf.mxu0
        %v4047 = vadd.f32 0.0, %v4046
        %v4048 = vpop.f32.mrf.mxu0
        %4049 = vmatprep.mubr.bf16.mxu0 %v1765
        %4050 = vmatmul.mubr.bf16.gmra.mxu0 %v1764
        %v4051 = vpop.f32.mrf.mxu0
        %v4052 = vadd.f32 0.0, %v4051
        %v4053 = vpop.f32.mrf.mxu0
        %v4054 = vpop.f32.mrf.mxu0
        %v4055 = vadd.f32 0.0, %v4054
        %v4056 = vpop.f32.mrf.mxu0
        %4057 = vmatprep.mubr.bf16.mxu0 %v1767
        %4058 = vmatmul.mubr.bf16.gmra.mxu0 %v1766
        %v4059 = vpop.f32.mrf.mxu0
        %v4060 = vadd.f32 0.0, %v4059
        %v4061 = vpop.f32.mrf.mxu0
        %v4062 = vpop.f32.mrf.mxu0
        %v4063 = vadd.f32 0.0, %v4062
        %v4064 = vpop.f32.mrf.mxu0
        %4065 = vmatprep.mubr.bf16.mxu0 %v1769
        %4066 = vmatmul.mubr.bf16.gmra.mxu0 %v1768
        %v4067 = vpop.f32.mrf.mxu0
        %v4068 = vadd.f32 0.0, %v4067
        %v4069 = vpop.f32.mrf.mxu0
        %v4070 = vpop.f32.mrf.mxu0
        %v4071 = vadd.f32 0.0, %v4070
        %v4072 = vpop.f32.mrf.mxu0
        %4073 = vmatprep.mubr.bf16.mxu0 %v1771
        %4074 = vmatmul.mubr.bf16.gmra.mxu0 %v1770
        %v4075 = vpop.f32.mrf.mxu0
        %v4076 = vadd.f32 0.0, %v4075
        %v4077 = vpop.f32.mrf.mxu0
        %v4078 = vpop.f32.mrf.mxu0
        %v4079 = vadd.f32 0.0, %v4078
        %v4080 = vpop.f32.mrf.mxu0
        %4081 = vmatprep.mubr.bf16.mxu0 %v1773
        %4082 = vmatmul.mubr.bf16.gmra.mxu0 %v1772
        %v4083 = vpop.f32.mrf.mxu0
        %v4084 = vadd.f32 0.0, %v4083
        %v4085 = vpop.f32.mrf.mxu0
        %v4086 = vpop.f32.mrf.mxu0
        %v4087 = vadd.f32 0.0, %v4086
        %v4088 = vpop.f32.mrf.mxu0
        %4089 = vdwg.mxu0
        %4090 = vmatprep.subr.bf16.mxu0 0
        %4091 = vmatpush1.bf16.msra.mxu0 %v3888
        %4092 = vmatprep.subr.bf16.mxu0 0
        %4093 = vmatpush1.bf16.msra.mxu0 %v3887
        %4094 = vmatprep.subr.bf16.mxu0 0
        %4095 = vmatpush1.bf16.msra.mxu0 %v3886
        %4096 = vmatprep.subr.bf16.mxu0 0
        %4097 = vmatpush1.bf16.msra.mxu0 %v3885
        %4098 = vmatprep.subr.bf16.mxu0 0
        %4099 = vmatpush1.bf16.msra.mxu0 %v3884
        %4100 = vmatprep.subr.bf16.mxu0 0
        %4101 = vmatpush1.bf16.msra.mxu0 %v3883
        %4102 = vmatprep.subr.bf16.mxu0 0
        %4103 = vmatpush1.bf16.msra.mxu0 %v3882
        %4104 = vmatprep.subr.bf16.mxu0 0
        %4105 = vmatpush1.bf16.msra.mxu0 %v3881
        %4106 = vmatprep.subr.bf16.mxu0 0
        %4107 = vmatpush2.bf16.msra.mxu0 %v3896
        %4108 = vmatprep.subr.bf16.mxu0 0
        %4109 = vmatpush2.bf16.msra.mxu0 %v3895
        %4110 = vmatprep.subr.bf16.mxu0 0
        %4111 = vmatpush2.bf16.msra.mxu0 %v3894
        %4112 = vmatprep.subr.bf16.mxu0 0
        %4113 = vmatpush2.bf16.msra.mxu0 %v3893
        %4114 = vmatprep.subr.bf16.mxu0 0
        %4115 = vmatpush2.bf16.msra.mxu0 %v3892
        %4116 = vmatprep.subr.bf16.mxu0 0
        %4117 = vmatpush2.bf16.msra.mxu0 %v3891
        %4118 = vmatprep.subr.bf16.mxu0 0
        %4119 = vmatpush2.bf16.msra.mxu0 %v3890
        %4120 = vmatprep.subr.bf16.mxu0 0
        %4121 = vmatpush2.bf16.msra.mxu0 %v3889
        %4122 = vmatprep.mubr.bf16.mxu0 %v2064
        %4123 = vmatmul.mubr.bf16.gmra.mxu0 %v2063
        %v4124 = vpop.f32.mrf.mxu0
        %v4125 = vadd.f32 0.0, %v4124
        %v4126 = vpop.f32.mrf.mxu0
        %v4127 = vpop.f32.mrf.mxu0
        %v4128 = vadd.f32 0.0, %v4127
        %v4129 = vpop.f32.mrf.mxu0
        %4130 = vmatprep.mubr.bf16.mxu0 %v2066
        %4131 = vmatmul.mubr.bf16.gmra.mxu0 %v2065
        %v4132 = vpop.f32.mrf.mxu0
        %v4133 = vadd.f32 0.0, %v4132
        %v4134 = vpop.f32.mrf.mxu0
        %v4135 = vpop.f32.mrf.mxu0
        %v4136 = vadd.f32 0.0, %v4135
        %v4137 = vpop.f32.mrf.mxu0
        %4138 = vmatprep.mubr.bf16.mxu0 %v2068
        %4139 = vmatmul.mubr.bf16.gmra.mxu0 %v2067
        %v4140 = vpop.f32.mrf.mxu0
        %v4141 = vadd.f32 0.0, %v4140
        %v4142 = vpop.f32.mrf.mxu0
        %v4143 = vpop.f32.mrf.mxu0
        %v4144 = vadd.f32 0.0, %v4143
        %v4145 = vpop.f32.mrf.mxu0
        %4146 = vmatprep.mubr.bf16.mxu0 %v2070
        %4147 = vmatmul.mubr.bf16.gmra.mxu0 %v2069
        %v4148 = vpop.f32.mrf.mxu0
        %v4149 = vadd.f32 0.0, %v4148
        %v4150 = vpop.f32.mrf.mxu0
        %v4151 = vpop.f32.mrf.mxu0
        %v4152 = vadd.f32 0.0, %v4151
        %v4153 = vpop.f32.mrf.mxu0
        %4154 = vmatprep.mubr.bf16.mxu0 %v2072
        %4155 = vmatmul.mubr.bf16.gmra.mxu0 %v2071
        %v4156 = vpop.f32.mrf.mxu0
        %v4157 = vadd.f32 0.0, %v4156
        %v4158 = vpop.f32.mrf.mxu0
        %v4159 = vpop.f32.mrf.mxu0
        %v4160 = vadd.f32 0.0, %v4159
        %v4161 = vpop.f32.mrf.mxu0
        %4162 = vmatprep.mubr.bf16.mxu0 %v2074
        %4163 = vmatmul.mubr.bf16.gmra.mxu0 %v2073
        %v4164 = vpop.f32.mrf.mxu0
        %v4165 = vadd.f32 0.0, %v4164
        %v4166 = vpop.f32.mrf.mxu0
        %v4167 = vpop.f32.mrf.mxu0
        %v4168 = vadd.f32 0.0, %v4167
        %v4169 = vpop.f32.mrf.mxu0
        %4170 = vmatprep.mubr.bf16.mxu0 %v2076
        %4171 = vmatmul.mubr.bf16.gmra.mxu0 %v2075
        %v4172 = vpop.f32.mrf.mxu0
        %v4173 = vadd.f32 0.0, %v4172
        %v4174 = vpop.f32.mrf.mxu0
        %v4175 = vpop.f32.mrf.mxu0
        %v4176 = vadd.f32 0.0, %v4175
        %v4177 = vpop.f32.mrf.mxu0
        %4178 = vmatprep.mubr.bf16.mxu0 %v2078
        %4179 = vmatmul.mubr.bf16.gmra.mxu0 %v2077
        %v4180 = vpop.f32.mrf.mxu0
        %v4181 = vadd.f32 0.0, %v4180
        %v4182 = vpop.f32.mrf.mxu0
        %v4183 = vpop.f32.mrf.mxu0
        %v4184 = vadd.f32 0.0, %v4183
        %v4185 = vpop.f32.mrf.mxu0
        %4186 = vmatprep.mubr.bf16.mxu0 %v2080
        %4187 = vmatmul.mubr.bf16.gmra.mxu0 %v2079
        %v4188 = vpop.f32.mrf.mxu0
        %v4189 = vadd.f32 0.0, %v4188
        %v4190 = vpop.f32.mrf.mxu0
        %v4191 = vpop.f32.mrf.mxu0
        %v4192 = vadd.f32 0.0, %v4191
        %v4193 = vpop.f32.mrf.mxu0
        %4194 = vmatprep.mubr.bf16.mxu0 %v2082
        %4195 = vmatmul.mubr.bf16.gmra.mxu0 %v2081
        %v4196 = vpop.f32.mrf.mxu0
        %v4197 = vadd.f32 0.0, %v4196
        %v4198 = vpop.f32.mrf.mxu0
        %v4199 = vpop.f32.mrf.mxu0
        %v4200 = vadd.f32 0.0, %v4199
        %v4201 = vpop.f32.mrf.mxu0
        %4202 = vmatprep.mubr.bf16.mxu0 %v2084
        %4203 = vmatmul.mubr.bf16.gmra.mxu0 %v2083
        %v4204 = vpop.f32.mrf.mxu0
        %v4205 = vadd.f32 0.0, %v4204
        %v4206 = vpop.f32.mrf.mxu0
        %v4207 = vpop.f32.mrf.mxu0
        %v4208 = vadd.f32 0.0, %v4207
        %v4209 = vpop.f32.mrf.mxu0
        %4210 = vmatprep.mubr.bf16.mxu0 %v2086
        %4211 = vmatmul.mubr.bf16.gmra.mxu0 %v2085
        %v4212 = vpop.f32.mrf.mxu0
        %v4213 = vadd.f32 0.0, %v4212
        %v4214 = vpop.f32.mrf.mxu0
        %v4215 = vpop.f32.mrf.mxu0
        %v4216 = vadd.f32 0.0, %v4215
        %v4217 = vpop.f32.mrf.mxu0
        %4218 = vmatprep.mubr.bf16.mxu0 %v2088
        %4219 = vmatmul.mubr.bf16.gmra.mxu0 %v2087
        %v4220 = vpop.f32.mrf.mxu0
        %v4221 = vadd.f32 0.0, %v4220
        %v4222 = vpop.f32.mrf.mxu0
        %v4223 = vpop.f32.mrf.mxu0
        %v4224 = vadd.f32 0.0, %v4223
        %v4225 = vpop.f32.mrf.mxu0
        %4226 = vmatprep.mubr.bf16.mxu0 %v2090
        %4227 = vmatmul.mubr.bf16.gmra.mxu0 %v2089
        %v4228 = vpop.f32.mrf.mxu0
        %v4229 = vadd.f32 0.0, %v4228
        %v4230 = vpop.f32.mrf.mxu0
        %v4231 = vpop.f32.mrf.mxu0
        %v4232 = vadd.f32 0.0, %v4231
        %v4233 = vpop.f32.mrf.mxu0
        %4234 = vmatprep.mubr.bf16.mxu0 %v2092
        %4235 = vmatmul.mubr.bf16.gmra.mxu0 %v2091
        %v4236 = vpop.f32.mrf.mxu0
        %v4237 = vadd.f32 0.0, %v4236
        %v4238 = vpop.f32.mrf.mxu0
        %v4239 = vpop.f32.mrf.mxu0
        %v4240 = vadd.f32 0.0, %v4239
        %v4241 = vpop.f32.mrf.mxu0
        %4242 = vmatprep.mubr.bf16.mxu0 %v2094
        %4243 = vmatmul.mubr.bf16.gmra.mxu0 %v2093
        %v4244 = vpop.f32.mrf.mxu0
        %v4245 = vadd.f32 0.0, %v4244
        %v4246 = vpop.f32.mrf.mxu0
        %v4247 = vpop.f32.mrf.mxu0
        %v4248 = vadd.f32 0.0, %v4247
        %v4249 = vpop.f32.mrf.mxu0
        %4250 = vdwg.mxu0
        %4251 = vmatprep.subr.bf16.mxu0 0
        %4252 = vmatpush1.bf16.msra.mxu0 %v3904
        %4253 = vmatprep.subr.bf16.mxu0 0
        %4254 = vmatpush1.bf16.msra.mxu0 %v3903
        %4255 = vmatprep.subr.bf16.mxu0 0
        %4256 = vmatpush1.bf16.msra.mxu0 %v3902
        %4257 = vmatprep.subr.bf16.mxu0 0
        %4258 = vmatpush1.bf16.msra.mxu0 %v3901
        %4259 = vmatprep.subr.bf16.mxu0 0
        %4260 = vmatpush1.bf16.msra.mxu0 %v3900
        %4261 = vmatprep.subr.bf16.mxu0 0
        %4262 = vmatpush1.bf16.msra.mxu0 %v3899
        %4263 = vmatprep.subr.bf16.mxu0 0
        %4264 = vmatpush1.bf16.msra.mxu0 %v3898
        %4265 = vmatprep.subr.bf16.mxu0 0
        %4266 = vmatpush1.bf16.msra.mxu0 %v3897
        %4267 = vmatprep.subr.bf16.mxu0 0
        %4268 = vmatpush2.bf16.msra.mxu0 %v3912
        %4269 = vmatprep.subr.bf16.mxu0 0
        %4270 = vmatpush2.bf16.msra.mxu0 %v3911
        %4271 = vmatprep.subr.bf16.mxu0 0
        %4272 = vmatpush2.bf16.msra.mxu0 %v3910
        %4273 = vmatprep.subr.bf16.mxu0 0
        %4274 = vmatpush2.bf16.msra.mxu0 %v3909
        %4275 = vmatprep.subr.bf16.mxu0 0
        %4276 = vmatpush2.bf16.msra.mxu0 %v3908
        %4277 = vmatprep.subr.bf16.mxu0 0
        %4278 = vmatpush2.bf16.msra.mxu0 %v3907
        %4279 = vmatprep.subr.bf16.mxu0 0
        %4280 = vmatpush2.bf16.msra.mxu0 %v3906
        %4281 = vmatprep.subr.bf16.mxu0 0
        %4282 = vmatpush2.bf16.msra.mxu0 %v3905
        %4283 = vmatprep.mubr.bf16.mxu0 %v2385
        %4284 = vmatmul.mubr.bf16.gmra.mxu0 %v2384
        %v4285 = vpop.f32.mrf.mxu0
        %v4286 = vadd.f32 0.0, %v4285
        %v4287 = vpop.f32.mrf.mxu0
        %v4288 = vpop.f32.mrf.mxu0
        %v4289 = vadd.f32 0.0, %v4288
        %v4290 = vpop.f32.mrf.mxu0
        %4291 = vmatprep.mubr.bf16.mxu0 %v2387
        %4292 = vmatmul.mubr.bf16.gmra.mxu0 %v2386
        %v4293 = vpop.f32.mrf.mxu0
        %v4294 = vadd.f32 0.0, %v4293
        %v4295 = vpop.f32.mrf.mxu0
        %v4296 = vpop.f32.mrf.mxu0
        %v4297 = vadd.f32 0.0, %v4296
        %v4298 = vpop.f32.mrf.mxu0
        %4299 = vmatprep.mubr.bf16.mxu0 %v2389
        %4300 = vmatmul.mubr.bf16.gmra.mxu0 %v2388
        %v4301 = vpop.f32.mrf.mxu0
        %v4302 = vadd.f32 0.0, %v4301
        %v4303 = vpop.f32.mrf.mxu0
        %v4304 = vpop.f32.mrf.mxu0
        %v4305 = vadd.f32 0.0, %v4304
        %v4306 = vpop.f32.mrf.mxu0
        %4307 = vmatprep.mubr.bf16.mxu0 %v2391
        %4308 = vmatmul.mubr.bf16.gmra.mxu0 %v2390
        %v4309 = vpop.f32.mrf.mxu0
        %v4310 = vadd.f32 0.0, %v4309
        %v4311 = vpop.f32.mrf.mxu0
        %v4312 = vpop.f32.mrf.mxu0
        %v4313 = vadd.f32 0.0, %v4312
        %v4314 = vpop.f32.mrf.mxu0
        %4315 = vmatprep.mubr.bf16.mxu0 %v2393
        %4316 = vmatmul.mubr.bf16.gmra.mxu0 %v2392
        %v4317 = vpop.f32.mrf.mxu0
        %v4318 = vadd.f32 0.0, %v4317
        %v4319 = vpop.f32.mrf.mxu0
        %v4320 = vpop.f32.mrf.mxu0
        %v4321 = vadd.f32 0.0, %v4320
        %v4322 = vpop.f32.mrf.mxu0
        %4323 = vmatprep.mubr.bf16.mxu0 %v2395
        %4324 = vmatmul.mubr.bf16.gmra.mxu0 %v2394
        %v4325 = vpop.f32.mrf.mxu0
        %v4326 = vadd.f32 0.0, %v4325
        %v4327 = vpop.f32.mrf.mxu0
        %v4328 = vpop.f32.mrf.mxu0
        %v4329 = vadd.f32 0.0, %v4328
        %v4330 = vpop.f32.mrf.mxu0
        %4331 = vmatprep.mubr.bf16.mxu0 %v2397
        %4332 = vmatmul.mubr.bf16.gmra.mxu0 %v2396
        %v4333 = vpop.f32.mrf.mxu0
        %v4334 = vadd.f32 0.0, %v4333
        %v4335 = vpop.f32.mrf.mxu0
        %v4336 = vpop.f32.mrf.mxu0
        %v4337 = vadd.f32 0.0, %v4336
        %v4338 = vpop.f32.mrf.mxu0
        %4339 = vmatprep.mubr.bf16.mxu0 %v2399
        %4340 = vmatmul.mubr.bf16.gmra.mxu0 %v2398
        %v4341 = vpop.f32.mrf.mxu0
        %v4342 = vadd.f32 0.0, %v4341
        %v4343 = vpop.f32.mrf.mxu0
        %v4344 = vpop.f32.mrf.mxu0
        %v4345 = vadd.f32 0.0, %v4344
        %v4346 = vpop.f32.mrf.mxu0
        %4347 = vmatprep.mubr.bf16.mxu0 %v2401
        %4348 = vmatmul.mubr.bf16.gmra.mxu0 %v2400
        %v4349 = vpop.f32.mrf.mxu0
        %v4350 = vadd.f32 0.0, %v4349
        %v4351 = vpop.f32.mrf.mxu0
        %v4352 = vpop.f32.mrf.mxu0
        %v4353 = vadd.f32 0.0, %v4352
        %v4354 = vpop.f32.mrf.mxu0
        %4355 = vmatprep.mubr.bf16.mxu0 %v2403
        %4356 = vmatmul.mubr.bf16.gmra.mxu0 %v2402
        %v4357 = vpop.f32.mrf.mxu0
        %v4358 = vadd.f32 0.0, %v4357
        %v4359 = vpop.f32.mrf.mxu0
        %v4360 = vpop.f32.mrf.mxu0
        %v4361 = vadd.f32 0.0, %v4360
        %v4362 = vpop.f32.mrf.mxu0
        %4363 = vmatprep.mubr.bf16.mxu0 %v2405
        %4364 = vmatmul.mubr.bf16.gmra.mxu0 %v2404
        %v4365 = vpop.f32.mrf.mxu0
        %v4366 = vadd.f32 0.0, %v4365
        %v4367 = vpop.f32.mrf.mxu0
        %v4368 = vpop.f32.mrf.mxu0
        %v4369 = vadd.f32 0.0, %v4368
        %v4370 = vpop.f32.mrf.mxu0
        %4371 = vmatprep.mubr.bf16.mxu0 %v2407
        %4372 = vmatmul.mubr.bf16.gmra.mxu0 %v2406
        %v4373 = vpop.f32.mrf.mxu0
        %v4374 = vadd.f32 0.0, %v4373
        %v4375 = vpop.f32.mrf.mxu0
        %v4376 = vpop.f32.mrf.mxu0
        %v4377 = vadd.f32 0.0, %v4376
        %v4378 = vpop.f32.mrf.mxu0
        %4379 = vmatprep.mubr.bf16.mxu0 %v2409
        %4380 = vmatmul.mubr.bf16.gmra.mxu0 %v2408
        %v4381 = vpop.f32.mrf.mxu0
        %v4382 = vadd.f32 0.0, %v4381
        %v4383 = vpop.f32.mrf.mxu0
        %v4384 = vpop.f32.mrf.mxu0
        %v4385 = vadd.f32 0.0, %v4384
        %v4386 = vpop.f32.mrf.mxu0
        %4387 = vmatprep.mubr.bf16.mxu0 %v2411
        %4388 = vmatmul.mubr.bf16.gmra.mxu0 %v2410
        %v4389 = vpop.f32.mrf.mxu0
        %v4390 = vadd.f32 0.0, %v4389
        %v4391 = vpop.f32.mrf.mxu0
        %v4392 = vpop.f32.mrf.mxu0
        %v4393 = vadd.f32 0.0, %v4392
        %v4394 = vpop.f32.mrf.mxu0
        %4395 = vmatprep.mubr.bf16.mxu0 %v2413
        %4396 = vmatmul.mubr.bf16.gmra.mxu0 %v2412
        %v4397 = vpop.f32.mrf.mxu0
        %v4398 = vadd.f32 0.0, %v4397
        %v4399 = vpop.f32.mrf.mxu0
        %v4400 = vpop.f32.mrf.mxu0
        %v4401 = vadd.f32 0.0, %v4400
        %v4402 = vpop.f32.mrf.mxu0
        %4403 = vmatprep.mubr.bf16.mxu0 %v2415
        %4404 = vmatmul.mubr.bf16.gmra.mxu0 %v2414
        %v4405 = vpop.f32.mrf.mxu0
        %v4406 = vadd.f32 0.0, %v4405
        %v4407 = vpop.f32.mrf.mxu0
        %v4408 = vpop.f32.mrf.mxu0
        %v4409 = vadd.f32 0.0, %v4408
        %v4410 = vpop.f32.mrf.mxu0
        %4411 = vdwg.mxu0
        %4412 = vmatprep.subr.bf16.mxu0 0
        %4413 = vmatpush1.bf16.msra.mxu0 %v3920
        %4414 = vmatprep.subr.bf16.mxu0 0
        %4415 = vmatpush1.bf16.msra.mxu0 %v3919
        %4416 = vmatprep.subr.bf16.mxu0 0
        %4417 = vmatpush1.bf16.msra.mxu0 %v3918
        %4418 = vmatprep.subr.bf16.mxu0 0
        %4419 = vmatpush1.bf16.msra.mxu0 %v3917
        %4420 = vmatprep.subr.bf16.mxu0 0
        %4421 = vmatpush1.bf16.msra.mxu0 %v3916
        %4422 = vmatprep.subr.bf16.mxu0 0
        %4423 = vmatpush1.bf16.msra.mxu0 %v3915
        %4424 = vmatprep.subr.bf16.mxu0 0
        %4425 = vmatpush1.bf16.msra.mxu0 %v3914
        %4426 = vmatprep.subr.bf16.mxu0 0
        %4427 = vmatpush1.bf16.msra.mxu0 %v3913
        %4428 = vmatprep.subr.bf16.mxu0 0
        %4429 = vmatpush2.bf16.msra.mxu0 %v3928
        %4430 = vmatprep.subr.bf16.mxu0 0
        %4431 = vmatpush2.bf16.msra.mxu0 %v3927
        %4432 = vmatprep.subr.bf16.mxu0 0
        %4433 = vmatpush2.bf16.msra.mxu0 %v3926
        %4434 = vmatprep.subr.bf16.mxu0 0
        %4435 = vmatpush2.bf16.msra.mxu0 %v3925
        %4436 = vmatprep.subr.bf16.mxu0 0
        %4437 = vmatpush2.bf16.msra.mxu0 %v3924
        %4438 = vmatprep.subr.bf16.mxu0 0
        %4439 = vmatpush2.bf16.msra.mxu0 %v3923
        %4440 = vmatprep.subr.bf16.mxu0 0
        %4441 = vmatpush2.bf16.msra.mxu0 %v3922
        %4442 = vmatprep.subr.bf16.mxu0 0
        %4443 = vmatpush2.bf16.msra.mxu0 %v3921
        %4444 = vmatprep.mubr.bf16.mxu0 %v2706
        %4445 = vmatmul.mubr.bf16.gmra.mxu0 %v2705
        %v4446 = vpop.f32.mrf.mxu0
        %v4447 = vadd.f32 0.0, %v4446
        %v4448 = vpop.f32.mrf.mxu0
        %v4449 = vpop.f32.mrf.mxu0
        %v4450 = vadd.f32 0.0, %v4449
        %v4451 = vpop.f32.mrf.mxu0
        %4452 = vmatprep.mubr.bf16.mxu0 %v2708
        %4453 = vmatmul.mubr.bf16.gmra.mxu0 %v2707
        %v4454 = vpop.f32.mrf.mxu0
        %v4455 = vadd.f32 0.0, %v4454
        %v4456 = vpop.f32.mrf.mxu0
        %v4457 = vpop.f32.mrf.mxu0
        %v4458 = vadd.f32 0.0, %v4457
        %v4459 = vpop.f32.mrf.mxu0
        %4460 = vmatprep.mubr.bf16.mxu0 %v2710
        %4461 = vmatmul.mubr.bf16.gmra.mxu0 %v2709
        %v4462 = vpop.f32.mrf.mxu0
        %v4463 = vadd.f32 0.0, %v4462
        %v4464 = vpop.f32.mrf.mxu0
        %v4465 = vpop.f32.mrf.mxu0
        %v4466 = vadd.f32 0.0, %v4465
        %v4467 = vpop.f32.mrf.mxu0
        %4468 = vmatprep.mubr.bf16.mxu0 %v2712
        %4469 = vmatmul.mubr.bf16.gmra.mxu0 %v2711
        %v4470 = vpop.f32.mrf.mxu0
        %v4471 = vadd.f32 0.0, %v4470
        %v4472 = vpop.f32.mrf.mxu0
        %v4473 = vpop.f32.mrf.mxu0
        %v4474 = vadd.f32 0.0, %v4473
        %v4475 = vpop.f32.mrf.mxu0
        %4476 = vmatprep.mubr.bf16.mxu0 %v2714
        %4477 = vmatmul.mubr.bf16.gmra.mxu0 %v2713
        %v4478 = vpop.f32.mrf.mxu0
        %v4479 = vadd.f32 0.0, %v4478
        %v4480 = vpop.f32.mrf.mxu0
        %v4481 = vpop.f32.mrf.mxu0
        %v4482 = vadd.f32 0.0, %v4481
        %v4483 = vpop.f32.mrf.mxu0
        %4484 = vmatprep.mubr.bf16.mxu0 %v2716
        %4485 = vmatmul.mubr.bf16.gmra.mxu0 %v2715
        %v4486 = vpop.f32.mrf.mxu0
        %v4487 = vadd.f32 0.0, %v4486
        %v4488 = vpop.f32.mrf.mxu0
        %v4489 = vpop.f32.mrf.mxu0
        %v4490 = vadd.f32 0.0, %v4489
        %v4491 = vpop.f32.mrf.mxu0
        %4492 = vmatprep.mubr.bf16.mxu0 %v2718
        %4493 = vmatmul.mubr.bf16.gmra.mxu0 %v2717
        %v4494 = vpop.f32.mrf.mxu0
        %v4495 = vadd.f32 0.0, %v4494
        %v4496 = vpop.f32.mrf.mxu0
        %v4497 = vpop.f32.mrf.mxu0
        %v4498 = vadd.f32 0.0, %v4497
        %v4499 = vpop.f32.mrf.mxu0
        %4500 = vmatprep.mubr.bf16.mxu0 %v2720
        %4501 = vmatmul.mubr.bf16.gmra.mxu0 %v2719
        %v4502 = vpop.f32.mrf.mxu0
        %v4503 = vadd.f32 0.0, %v4502
        %v4504 = vpop.f32.mrf.mxu0
        %v4505 = vpop.f32.mrf.mxu0
        %v4506 = vadd.f32 0.0, %v4505
        %v4507 = vpop.f32.mrf.mxu0
        %4508 = vmatprep.mubr.bf16.mxu0 %v2722
        %4509 = vmatmul.mubr.bf16.gmra.mxu0 %v2721
        %v4510 = vpop.f32.mrf.mxu0
        %v4511 = vadd.f32 0.0, %v4510
        %v4512 = vpop.f32.mrf.mxu0
        %v4513 = vpop.f32.mrf.mxu0
        %v4514 = vadd.f32 0.0, %v4513
        %v4515 = vpop.f32.mrf.mxu0
        %4516 = vmatprep.mubr.bf16.mxu0 %v2724
        %4517 = vmatmul.mubr.bf16.gmra.mxu0 %v2723
        %v4518 = vpop.f32.mrf.mxu0
        %v4519 = vadd.f32 0.0, %v4518
        %v4520 = vpop.f32.mrf.mxu0
        %v4521 = vpop.f32.mrf.mxu0
        %v4522 = vadd.f32 0.0, %v4521
        %v4523 = vpop.f32.mrf.mxu0
        %4524 = vmatprep.mubr.bf16.mxu0 %v2726
        %4525 = vmatmul.mubr.bf16.gmra.mxu0 %v2725
        %v4526 = vpop.f32.mrf.mxu0
        %v4527 = vadd.f32 0.0, %v4526
        %v4528 = vpop.f32.mrf.mxu0
        %v4529 = vpop.f32.mrf.mxu0
        %v4530 = vadd.f32 0.0, %v4529
        %v4531 = vpop.f32.mrf.mxu0
        %4532 = vmatprep.mubr.bf16.mxu0 %v2728
        %4533 = vmatmul.mubr.bf16.gmra.mxu0 %v2727
        %v4534 = vpop.f32.mrf.mxu0
        %v4535 = vadd.f32 0.0, %v4534
        %v4536 = vpop.f32.mrf.mxu0
        %v4537 = vpop.f32.mrf.mxu0
        %v4538 = vadd.f32 0.0, %v4537
        %v4539 = vpop.f32.mrf.mxu0
        %4540 = vmatprep.mubr.bf16.mxu0 %v2730
        %4541 = vmatmul.mubr.bf16.gmra.mxu0 %v2729
        %v4542 = vpop.f32.mrf.mxu0
        %v4543 = vadd.f32 0.0, %v4542
        %v4544 = vpop.f32.mrf.mxu0
        %v4545 = vpop.f32.mrf.mxu0
        %v4546 = vadd.f32 0.0, %v4545
        %v4547 = vpop.f32.mrf.mxu0
        %4548 = vmatprep.mubr.bf16.mxu0 %v2732
        %4549 = vmatmul.mubr.bf16.gmra.mxu0 %v2731
        %v4550 = vpop.f32.mrf.mxu0
        %v4551 = vadd.f32 0.0, %v4550
        %v4552 = vpop.f32.mrf.mxu0
        %v4553 = vpop.f32.mrf.mxu0
        %v4554 = vadd.f32 0.0, %v4553
        %v4555 = vpop.f32.mrf.mxu0
        %4556 = vmatprep.mubr.bf16.mxu0 %v2734
        %4557 = vmatmul.mubr.bf16.gmra.mxu0 %v2733
        %v4558 = vpop.f32.mrf.mxu0
        %v4559 = vadd.f32 0.0, %v4558
        %v4560 = vpop.f32.mrf.mxu0
        %v4561 = vpop.f32.mrf.mxu0
        %v4562 = vadd.f32 0.0, %v4561
        %v4563 = vpop.f32.mrf.mxu0
        %4564 = vmatprep.mubr.bf16.mxu0 %v2736
        %4565 = vmatmul.mubr.bf16.gmra.mxu0 %v2735
        %v4566 = vpop.f32.mrf.mxu0
        %v4567 = vadd.f32 0.0, %v4566
        %v4568 = vpop.f32.mrf.mxu0
        %v4569 = vpop.f32.mrf.mxu0
        %v4570 = vadd.f32 0.0, %v4569
        %v4571 = vpop.f32.mrf.mxu0
        %4572 = vdwg.mxu0
        %v4573 = vlaneseq
        %v4574 = vshrl.u32 %v4573, 7
        %v4575 = vsub.s32 0, %v4574
        %v4576 = vrot.slane %v3207, %v4575
        %v4577 = vadd.f32 %v3964, %v4576
        %v4578 = vadd.f32 %v3967, %v4576
        %v4579 = vadd.f32 %v3972, %v4576
        %v4580 = vadd.f32 %v3975, %v4576
        %v4581 = vadd.f32 %v3980, %v4576
        %v4582 = vadd.f32 %v3983, %v4576
        %v4583 = vadd.f32 %v3988, %v4576
        %v4584 = vadd.f32 %v3991, %v4576
        %v4585 = vadd.f32 %v3996, %v4576
        %v4586 = vadd.f32 %v3999, %v4576
        %v4587 = vadd.f32 %v4004, %v4576
        %v4588 = vadd.f32 %v4007, %v4576
        %v4589 = vadd.f32 %v4012, %v4576
        %v4590 = vadd.f32 %v4015, %v4576
        %v4591 = vadd.f32 %v4020, %v4576
        %v4592 = vadd.f32 %v4023, %v4576
        %v4593 = vadd.f32 %v4028, %v4576
        %v4594 = vadd.f32 %v4031, %v4576
        %v4595 = vadd.f32 %v4036, %v4576
        %v4596 = vadd.f32 %v4039, %v4576
        %v4597 = vadd.f32 %v4044, %v4576
        %v4598 = vadd.f32 %v4047, %v4576
        %v4599 = vadd.f32 %v4052, %v4576
        %v4600 = vadd.f32 %v4055, %v4576
        %v4601 = vadd.f32 %v4060, %v4576
        %v4602 = vadd.f32 %v4063, %v4576
        %v4603 = vadd.f32 %v4068, %v4576
        %v4604 = vadd.f32 %v4071, %v4576
        %v4605 = vadd.f32 %v4076, %v4576
        %v4606 = vadd.f32 %v4079, %v4576
        %v4607 = vadd.f32 %v4084, %v4576
        %v4608 = vadd.f32 %v4087, %v4576
        %v4609 = vadd.f32 %v4125, %v4576
        %v4610 = vadd.f32 %v4128, %v4576
        %v4611 = vadd.f32 %v4133, %v4576
        %v4612 = vadd.f32 %v4136, %v4576
        %v4613 = vadd.f32 %v4141, %v4576
        %v4614 = vadd.f32 %v4144, %v4576
        %v4615 = vadd.f32 %v4149, %v4576
        %v4616 = vadd.f32 %v4152, %v4576
        %v4617 = vadd.f32 %v4157, %v4576
        %v4618 = vadd.f32 %v4160, %v4576
        %v4619 = vadd.f32 %v4165, %v4576
        %v4620 = vadd.f32 %v4168, %v4576
        %v4621 = vadd.f32 %v4173, %v4576
        %v4622 = vadd.f32 %v4176, %v4576
        %v4623 = vadd.f32 %v4181, %v4576
        %v4624 = vadd.f32 %v4184, %v4576
        %v4625 = vadd.f32 %v4189, %v4576
        %v4626 = vadd.f32 %v4192, %v4576
        %v4627 = vadd.f32 %v4197, %v4576
        %v4628 = vadd.f32 %v4200, %v4576
        %v4629 = vadd.f32 %v4205, %v4576
        %v4630 = vadd.f32 %v4208, %v4576
        %v4631 = vadd.f32 %v4213, %v4576
        %v4632 = vadd.f32 %v4216, %v4576
        %v4633 = vadd.f32 %v4221, %v4576
        %v4634 = vadd.f32 %v4224, %v4576
        %v4635 = vadd.f32 %v4229, %v4576
        %v4636 = vadd.f32 %v4232, %v4576
        %v4637 = vadd.f32 %v4237, %v4576
        %v4638 = vadd.f32 %v4240, %v4576
        %v4639 = vadd.f32 %v4245, %v4576
        %v4640 = vadd.f32 %v4248, %v4576
        %v4641 = vadd.f32 %v4286, %v4576
        %v4642 = vadd.f32 %v4289, %v4576
        %v4643 = vadd.f32 %v4294, %v4576
        %v4644 = vadd.f32 %v4297, %v4576
        %v4645 = vadd.f32 %v4302, %v4576
        %v4646 = vadd.f32 %v4305, %v4576
        %v4647 = vadd.f32 %v4310, %v4576
        %v4648 = vadd.f32 %v4313, %v4576
        %v4649 = vadd.f32 %v4318, %v4576
        %v4650 = vadd.f32 %v4321, %v4576
        %v4651 = vadd.f32 %v4326, %v4576
        %v4652 = vadd.f32 %v4329, %v4576
        %v4653 = vadd.f32 %v4334, %v4576
        %v4654 = vadd.f32 %v4337, %v4576
        %v4655 = vadd.f32 %v4342, %v4576
        %v4656 = vadd.f32 %v4345, %v4576
        %v4657 = vadd.f32 %v4350, %v4576
        %v4658 = vadd.f32 %v4353, %v4576
        %v4659 = vadd.f32 %v4358, %v4576
        %v4660 = vadd.f32 %v4361, %v4576
        %v4661 = vadd.f32 %v4366, %v4576
        %v4662 = vadd.f32 %v4369, %v4576
        %v4663 = vadd.f32 %v4374, %v4576
        %v4664 = vadd.f32 %v4377, %v4576
        %v4665 = vadd.f32 %v4382, %v4576
        %v4666 = vadd.f32 %v4385, %v4576
        %v4667 = vadd.f32 %v4390, %v4576
        %v4668 = vadd.f32 %v4393, %v4576
        %v4669 = vadd.f32 %v4398, %v4576
        %v4670 = vadd.f32 %v4401, %v4576
        %v4671 = vadd.f32 %v4406, %v4576
        %v4672 = vadd.f32 %v4409, %v4576
        %v4673 = vadd.f32 %v4447, %v4576
        %v4674 = vadd.f32 %v4450, %v4576
        %v4675 = vadd.f32 %v4455, %v4576
        %v4676 = vadd.f32 %v4458, %v4576
        %v4677 = vadd.f32 %v4463, %v4576
        %v4678 = vadd.f32 %v4466, %v4576
        %v4679 = vadd.f32 %v4471, %v4576
        %v4680 = vadd.f32 %v4474, %v4576
        %v4681 = vadd.f32 %v4479, %v4576
        %v4682 = vadd.f32 %v4482, %v4576
        %v4683 = vadd.f32 %v4487, %v4576
        %v4684 = vadd.f32 %v4490, %v4576
        %v4685 = vadd.f32 %v4495, %v4576
        %v4686 = vadd.f32 %v4498, %v4576
        %v4687 = vadd.f32 %v4503, %v4576
        %v4688 = vadd.f32 %v4506, %v4576
        %v4689 = vadd.f32 %v4511, %v4576
        %v4690 = vadd.f32 %v4514, %v4576
        %v4691 = vadd.f32 %v4519, %v4576
        %v4692 = vadd.f32 %v4522, %v4576
        %v4693 = vadd.f32 %v4527, %v4576
        %v4694 = vadd.f32 %v4530, %v4576
        %v4695 = vadd.f32 %v4535, %v4576
        %v4696 = vadd.f32 %v4538, %v4576
        %v4697 = vadd.f32 %v4543, %v4576
        %v4698 = vadd.f32 %v4546, %v4576
        %v4699 = vadd.f32 %v4551, %v4576
        %v4700 = vadd.f32 %v4554, %v4576
        %v4701 = vadd.f32 %v4559, %v4576
        %v4702 = vadd.f32 %v4562, %v4576
        %v4703 = vadd.f32 %v4567, %v4576
        %v4704 = vadd.f32 %v4570, %v4576
        %v4705 = vmax.f32 %v4577, 0.0
        %v4706 = vmax.f32 %v4578, 0.0
        %v4707 = vmax.f32 %v4579, 0.0
        %v4708 = vmax.f32 %v4580, 0.0
        %v4709 = vmax.f32 %v4581, 0.0
        %v4710 = vmax.f32 %v4582, 0.0
        %v4711 = vmax.f32 %v4583, 0.0
        %v4712 = vmax.f32 %v4584, 0.0
        %v4713 = vmax.f32 %v4585, 0.0
        %v4714 = vmax.f32 %v4586, 0.0
        %v4715 = vmax.f32 %v4587, 0.0
        %v4716 = vmax.f32 %v4588, 0.0
        %v4717 = vmax.f32 %v4589, 0.0
        %v4718 = vmax.f32 %v4590, 0.0
        %v4719 = vmax.f32 %v4591, 0.0
        %v4720 = vmax.f32 %v4592, 0.0
        %v4721 = vmax.f32 %v4593, 0.0
        %v4722 = vmax.f32 %v4594, 0.0
        %v4723 = vmax.f32 %v4595, 0.0
        %v4724 = vmax.f32 %v4596, 0.0
        %v4725 = vmax.f32 %v4597, 0.0
        %v4726 = vmax.f32 %v4598, 0.0
        %v4727 = vmax.f32 %v4599, 0.0
        %v4728 = vmax.f32 %v4600, 0.0
        %v4729 = vmax.f32 %v4601, 0.0
        %v4730 = vmax.f32 %v4602, 0.0
        %v4731 = vmax.f32 %v4603, 0.0
        %v4732 = vmax.f32 %v4604, 0.0
        %v4733 = vmax.f32 %v4605, 0.0
        %v4734 = vmax.f32 %v4606, 0.0
        %v4735 = vmax.f32 %v4607, 0.0
        %v4736 = vmax.f32 %v4608, 0.0
        %v4737 = vmax.f32 %v4609, 0.0
        %v4738 = vmax.f32 %v4610, 0.0
        %v4739 = vmax.f32 %v4611, 0.0
        %v4740 = vmax.f32 %v4612, 0.0
        %v4741 = vmax.f32 %v4613, 0.0
        %v4742 = vmax.f32 %v4614, 0.0
        %v4743 = vmax.f32 %v4615, 0.0
        %v4744 = vmax.f32 %v4616, 0.0
        %v4745 = vmax.f32 %v4617, 0.0
        %v4746 = vmax.f32 %v4618, 0.0
        %v4747 = vmax.f32 %v4619, 0.0
        %v4748 = vmax.f32 %v4620, 0.0
        %v4749 = vmax.f32 %v4621, 0.0
        %v4750 = vmax.f32 %v4622, 0.0
        %v4751 = vmax.f32 %v4623, 0.0
        %v4752 = vmax.f32 %v4624, 0.0
        %v4753 = vmax.f32 %v4625, 0.0
        %v4754 = vmax.f32 %v4626, 0.0
        %v4755 = vmax.f32 %v4627, 0.0
        %v4756 = vmax.f32 %v4628, 0.0
        %v4757 = vmax.f32 %v4629, 0.0
        %v4758 = vmax.f32 %v4630, 0.0
        %v4759 = vmax.f32 %v4631, 0.0
        %v4760 = vmax.f32 %v4632, 0.0
        %v4761 = vmax.f32 %v4633, 0.0
        %v4762 = vmax.f32 %v4634, 0.0
        %v4763 = vmax.f32 %v4635, 0.0
        %v4764 = vmax.f32 %v4636, 0.0
        %v4765 = vmax.f32 %v4637, 0.0
        %v4766 = vmax.f32 %v4638, 0.0
        %v4767 = vmax.f32 %v4639, 0.0
        %v4768 = vmax.f32 %v4640, 0.0
        %v4769 = vmax.f32 %v4641, 0.0
        %v4770 = vmax.f32 %v4642, 0.0
        %v4771 = vmax.f32 %v4643, 0.0
        %v4772 = vmax.f32 %v4644, 0.0
        %v4773 = vmax.f32 %v4645, 0.0
        %v4774 = vmax.f32 %v4646, 0.0
        %v4775 = vmax.f32 %v4647, 0.0
        %v4776 = vmax.f32 %v4648, 0.0
        %v4777 = vmax.f32 %v4649, 0.0
        %v4778 = vmax.f32 %v4650, 0.0
        %v4779 = vmax.f32 %v4651, 0.0
        %v4780 = vmax.f32 %v4652, 0.0
        %v4781 = vmax.f32 %v4653, 0.0
        %v4782 = vmax.f32 %v4654, 0.0
        %v4783 = vmax.f32 %v4655, 0.0
        %v4784 = vmax.f32 %v4656, 0.0
        %v4785 = vmax.f32 %v4657, 0.0
        %v4786 = vmax.f32 %v4658, 0.0
        %v4787 = vmax.f32 %v4659, 0.0
        %v4788 = vmax.f32 %v4660, 0.0
        %v4789 = vmax.f32 %v4661, 0.0
        %v4790 = vmax.f32 %v4662, 0.0
        %v4791 = vmax.f32 %v4663, 0.0
        %v4792 = vmax.f32 %v4664, 0.0
        %v4793 = vmax.f32 %v4665, 0.0
        %v4794 = vmax.f32 %v4666, 0.0
        %v4795 = vmax.f32 %v4667, 0.0
        %v4796 = vmax.f32 %v4668, 0.0
        %v4797 = vmax.f32 %v4669, 0.0
        %v4798 = vmax.f32 %v4670, 0.0
        %v4799 = vmax.f32 %v4671, 0.0
        %v4800 = vmax.f32 %v4672, 0.0
        %v4801 = vmax.f32 %v4673, 0.0
        %v4802 = vmax.f32 %v4674, 0.0
        %v4803 = vmax.f32 %v4675, 0.0
        %v4804 = vmax.f32 %v4676, 0.0
        %v4805 = vmax.f32 %v4677, 0.0
        %v4806 = vmax.f32 %v4678, 0.0
        %v4807 = vmax.f32 %v4679, 0.0
        %v4808 = vmax.f32 %v4680, 0.0
        %v4809 = vmax.f32 %v4681, 0.0
        %v4810 = vmax.f32 %v4682, 0.0
        %v4811 = vmax.f32 %v4683, 0.0
        %v4812 = vmax.f32 %v4684, 0.0
        %v4813 = vmax.f32 %v4685, 0.0
        %v4814 = vmax.f32 %v4686, 0.0
        %v4815 = vmax.f32 %v4687, 0.0
        %v4816 = vmax.f32 %v4688, 0.0
        %v4817 = vmax.f32 %v4689, 0.0
        %v4818 = vmax.f32 %v4690, 0.0
        %v4819 = vmax.f32 %v4691, 0.0
        %v4820 = vmax.f32 %v4692, 0.0
        %v4821 = vmax.f32 %v4693, 0.0
        %v4822 = vmax.f32 %v4694, 0.0
        %v4823 = vmax.f32 %v4695, 0.0
        %v4824 = vmax.f32 %v4696, 0.0
        %v4825 = vmax.f32 %v4697, 0.0
        %v4826 = vmax.f32 %v4698, 0.0
        %v4827 = vmax.f32 %v4699, 0.0
        %v4828 = vmax.f32 %v4700, 0.0
        %v4829 = vmax.f32 %v4701, 0.0
        %v4830 = vmax.f32 %v4702, 0.0
        %v4831 = vmax.f32 %v4703, 0.0
        %v4832 = vmax.f32 %v4704, 0.0
        %s4833 = scalar_lea.vmem [#allocation7], 128
        %v4834 = vld [vmem:[%s4833] sm:$0xf]
        %v4835 = vld [vmem:[%s4833 + $0x4] sm:$0xf]
        %v4836 = vld [vmem:[%s4833 + $0x8] sm:$0xf]
        %v4837 = vld [vmem:[%s4833 + $0xc] sm:$0xf]
        %v4838 = vld [vmem:[%s4833 + $0x10] sm:$0xf]
        %v4839 = vld [vmem:[%s4833 + $0x14] sm:$0xf]
        %v4840 = vld [vmem:[%s4833 + $0x18] sm:$0xf]
        %v4841 = vld [vmem:[%s4833 + $0x1c] sm:$0xf]
        %v4842 = vld [vmem:[%s4833 + $0x20] sm:$0xf]
        %v4843 = vld [vmem:[%s4833 + $0x24] sm:$0xf]
        %v4844 = vld [vmem:[%s4833 + $0x28] sm:$0xf]
        %v4845 = vld [vmem:[%s4833 + $0x2c] sm:$0xf]
        %v4846 = vld [vmem:[%s4833 + $0x30] sm:$0xf]
        %v4847 = vld [vmem:[%s4833 + $0x34] sm:$0xf]
        %v4848 = vld [vmem:[%s4833 + $0x38] sm:$0xf]
        %v4849 = vld [vmem:[%s4833 + $0x3c] sm:$0xf]
        %v4850 = vld [vmem:[#allocation9 + $0x2] sm:$0x1]
        %v4851 = vpack.c.bf16 %v4706, %v4705
        %v4852 = vpack.c.bf16 %v4708, %v4707
        %v4853 = vpack.c.bf16 %v4710, %v4709
        %v4854 = vpack.c.bf16 %v4712, %v4711
        %v4855 = vpack.c.bf16 %v4714, %v4713
        %v4856 = vpack.c.bf16 %v4716, %v4715
        %v4857 = vpack.c.bf16 %v4718, %v4717
        %v4858 = vpack.c.bf16 %v4720, %v4719
        %v4859 = vpack.c.bf16 %v4722, %v4721
        %v4860 = vpack.c.bf16 %v4724, %v4723
        %v4861 = vpack.c.bf16 %v4726, %v4725
        %v4862 = vpack.c.bf16 %v4728, %v4727
        %v4863 = vpack.c.bf16 %v4730, %v4729
        %v4864 = vpack.c.bf16 %v4732, %v4731
        %v4865 = vpack.c.bf16 %v4734, %v4733
        %v4866 = vpack.c.bf16 %v4736, %v4735
        %v4867 = vpack.c.bf16 %v4738, %v4737
        %v4868 = vpack.c.bf16 %v4740, %v4739
        %v4869 = vpack.c.bf16 %v4742, %v4741
        %v4870 = vpack.c.bf16 %v4744, %v4743
        %v4871 = vpack.c.bf16 %v4746, %v4745
        %v4872 = vpack.c.bf16 %v4748, %v4747
        %v4873 = vpack.c.bf16 %v4750, %v4749
        %v4874 = vpack.c.bf16 %v4752, %v4751
        %v4875 = vpack.c.bf16 %v4754, %v4753
        %v4876 = vpack.c.bf16 %v4756, %v4755
        %v4877 = vpack.c.bf16 %v4758, %v4757
        %v4878 = vpack.c.bf16 %v4760, %v4759
        %v4879 = vpack.c.bf16 %v4762, %v4761
        %v4880 = vpack.c.bf16 %v4764, %v4763
        %v4881 = vpack.c.bf16 %v4766, %v4765
        %v4882 = vpack.c.bf16 %v4768, %v4767
        %v4883 = vpack.c.bf16 %v4770, %v4769
        %v4884 = vpack.c.bf16 %v4772, %v4771
        %v4885 = vpack.c.bf16 %v4774, %v4773
        %v4886 = vpack.c.bf16 %v4776, %v4775
        %v4887 = vpack.c.bf16 %v4778, %v4777
        %v4888 = vpack.c.bf16 %v4780, %v4779
        %v4889 = vpack.c.bf16 %v4782, %v4781
        %v4890 = vpack.c.bf16 %v4784, %v4783
        %v4891 = vpack.c.bf16 %v4786, %v4785
        %v4892 = vpack.c.bf16 %v4788, %v4787
        %v4893 = vpack.c.bf16 %v4790, %v4789
        %v4894 = vpack.c.bf16 %v4792, %v4791
        %v4895 = vpack.c.bf16 %v4794, %v4793
        %v4896 = vpack.c.bf16 %v4796, %v4795
        %v4897 = vpack.c.bf16 %v4798, %v4797
        %v4898 = vpack.c.bf16 %v4800, %v4799
        %v4899 = vpack.c.bf16 %v4802, %v4801
        %v4900 = vpack.c.bf16 %v4804, %v4803
        %v4901 = vpack.c.bf16 %v4806, %v4805
        %v4902 = vpack.c.bf16 %v4808, %v4807
        %v4903 = vpack.c.bf16 %v4810, %v4809
        %v4904 = vpack.c.bf16 %v4812, %v4811
        %v4905 = vpack.c.bf16 %v4814, %v4813
        %v4906 = vpack.c.bf16 %v4816, %v4815
        %v4907 = vpack.c.bf16 %v4818, %v4817
        %v4908 = vpack.c.bf16 %v4820, %v4819
        %v4909 = vpack.c.bf16 %v4822, %v4821
        %v4910 = vpack.c.bf16 %v4824, %v4823
        %v4911 = vpack.c.bf16 %v4826, %v4825
        %v4912 = vpack.c.bf16 %v4828, %v4827
        %v4913 = vpack.c.bf16 %v4830, %v4829
        %v4914 = vpack.c.bf16 %v4832, %v4831
        %v4931 = vunpack.c.l.b16 %v4834
        %v4932 = vunpack.c.l.b16 %v4835
        %v4933 = vunpack.c.l.b16 %v4836
        %v4934 = vunpack.c.l.b16 %v4837
        %v4935 = vunpack.c.l.b16 %v4838
        %v4936 = vunpack.c.l.b16 %v4839
        %v4937 = vunpack.c.l.b16 %v4840
        %v4938 = vunpack.c.l.b16 %v4841
        %v4939 = vunpack.c.l.b16 %v4842
        %v4940 = vunpack.c.l.b16 %v4843
        %v4941 = vunpack.c.l.b16 %v4844
        %v4942 = vunpack.c.l.b16 %v4845
        %v4943 = vunpack.c.l.b16 %v4846
        %v4944 = vunpack.c.l.b16 %v4847
        %v4945 = vunpack.c.l.b16 %v4848
        %v4946 = vunpack.c.l.b16 %v4849
        %v4947 = vpack.c.b16 %v4932, %v4931
        %v4948 = vpack.c.b16 %v4934, %v4933
        %v4949 = vpack.c.b16 %v4936, %v4935
        %v4950 = vpack.c.b16 %v4938, %v4937
        %v4951 = vpack.c.b16 %v4940, %v4939
        %v4952 = vpack.c.b16 %v4942, %v4941
        %v4953 = vpack.c.b16 %v4944, %v4943
        %v4954 = vpack.c.b16 %v4946, %v4945
        %4963 = vmatprep.subr.bf16.mxu0 0
        %4964 = vmatpush1.bf16.msra.mxu0 %v4954
        %4965 = vmatprep.subr.bf16.mxu0 0
        %4966 = vmatpush1.bf16.msra.mxu0 %v4953
        %4967 = vmatprep.subr.bf16.mxu0 0
        %4968 = vmatpush1.bf16.msra.mxu0 %v4952
        %4969 = vmatprep.subr.bf16.mxu0 0
        %4970 = vmatpush1.bf16.msra.mxu0 %v4951
        %4971 = vmatprep.subr.bf16.mxu0 0
        %4972 = vmatpush1.bf16.msra.mxu0 %v4950
        %4973 = vmatprep.subr.bf16.mxu0 0
        %4974 = vmatpush1.bf16.msra.mxu0 %v4949
        %4975 = vmatprep.subr.bf16.mxu0 0
        %4976 = vmatpush1.bf16.msra.mxu0 %v4948
        %4977 = vmatprep.subr.bf16.mxu0 0
        %4978 = vmatpush1.bf16.msra.mxu0 %v4947
        %4979 = vmatprep.subr.bf16.mxu0 0
        %4980 = vmatpush2.bf16.msra.mxu0 0
        %4981 = vmatprep.subr.bf16.mxu0 0
        %4982 = vmatpush2.bf16.msra.mxu0 0
        %4983 = vmatprep.subr.bf16.mxu0 0
        %4984 = vmatpush2.bf16.msra.mxu0 0
        %4985 = vmatprep.subr.bf16.mxu0 0
        %4986 = vmatpush2.bf16.msra.mxu0 0
        %4987 = vmatprep.subr.bf16.mxu0 0
        %4988 = vmatpush2.bf16.msra.mxu0 0
        %4989 = vmatprep.subr.bf16.mxu0 0
        %4990 = vmatpush2.bf16.msra.mxu0 0
        %4991 = vmatprep.subr.bf16.mxu0 0
        %4992 = vmatpush2.bf16.msra.mxu0 0
        %4993 = vmatprep.subr.bf16.mxu0 0
        %4994 = vmatpush2.bf16.msra.mxu0 0
        %4995 = vmatprep.mubr.bf16.mxu0 0
        %4996 = vmatmul.mubr.bf16.gmra.mxu0 %v4851
        %v4997 = vpop.f32.mrf.mxu0
        %v4998 = vadd.f32 0.0, %v4997
        %v4999 = vpop.f32.mrf.mxu0
        %v5000 = vpop.f32.mrf.mxu0
        %v5001 = vadd.f32 0.0, %v5000
        %v5002 = vpop.f32.mrf.mxu0
        %5003 = vmatprep.mubr.bf16.mxu0 0
        %5004 = vmatmul.mubr.bf16.gmra.mxu0 %v4852
        %v5005 = vpop.f32.mrf.mxu0
        %v5006 = vadd.f32 0.0, %v5005
        %v5007 = vpop.f32.mrf.mxu0
        %v5008 = vpop.f32.mrf.mxu0
        %v5009 = vadd.f32 0.0, %v5008
        %v5010 = vpop.f32.mrf.mxu0
        %5011 = vmatprep.mubr.bf16.mxu0 0
        %5012 = vmatmul.mubr.bf16.gmra.mxu0 %v4853
        %v5013 = vpop.f32.mrf.mxu0
        %v5014 = vadd.f32 0.0, %v5013
        %v5015 = vpop.f32.mrf.mxu0
        %v5016 = vpop.f32.mrf.mxu0
        %v5017 = vadd.f32 0.0, %v5016
        %v5018 = vpop.f32.mrf.mxu0
        %5019 = vmatprep.mubr.bf16.mxu0 0
        %5020 = vmatmul.mubr.bf16.gmra.mxu0 %v4854
        %v5021 = vpop.f32.mrf.mxu0
        %v5022 = vadd.f32 0.0, %v5021
        %v5023 = vpop.f32.mrf.mxu0
        %v5024 = vpop.f32.mrf.mxu0
        %v5025 = vadd.f32 0.0, %v5024
        %v5026 = vpop.f32.mrf.mxu0
        %5027 = vmatprep.mubr.bf16.mxu0 0
        %5028 = vmatmul.mubr.bf16.gmra.mxu0 %v4855
        %v5029 = vpop.f32.mrf.mxu0
        %v5030 = vadd.f32 0.0, %v5029
        %v5031 = vpop.f32.mrf.mxu0
        %v5032 = vpop.f32.mrf.mxu0
        %v5033 = vadd.f32 0.0, %v5032
        %v5034 = vpop.f32.mrf.mxu0
        %5035 = vmatprep.mubr.bf16.mxu0 0
        %5036 = vmatmul.mubr.bf16.gmra.mxu0 %v4856
        %v5037 = vpop.f32.mrf.mxu0
        %v5038 = vadd.f32 0.0, %v5037
        %v5039 = vpop.f32.mrf.mxu0
        %v5040 = vpop.f32.mrf.mxu0
        %v5041 = vadd.f32 0.0, %v5040
        %v5042 = vpop.f32.mrf.mxu0
        %5043 = vmatprep.mubr.bf16.mxu0 0
        %5044 = vmatmul.mubr.bf16.gmra.mxu0 %v4857
        %v5045 = vpop.f32.mrf.mxu0
        %v5046 = vadd.f32 0.0, %v5045
        %v5047 = vpop.f32.mrf.mxu0
        %v5048 = vpop.f32.mrf.mxu0
        %v5049 = vadd.f32 0.0, %v5048
        %v5050 = vpop.f32.mrf.mxu0
        %5051 = vmatprep.mubr.bf16.mxu0 0
        %5052 = vmatmul.mubr.bf16.gmra.mxu0 %v4858
        %v5053 = vpop.f32.mrf.mxu0
        %v5054 = vadd.f32 0.0, %v5053
        %v5055 = vpop.f32.mrf.mxu0
        %v5056 = vpop.f32.mrf.mxu0
        %v5057 = vadd.f32 0.0, %v5056
        %v5058 = vpop.f32.mrf.mxu0
        %5059 = vmatprep.mubr.bf16.mxu0 0
        %5060 = vmatmul.mubr.bf16.gmra.mxu0 %v4859
        %v5061 = vpop.f32.mrf.mxu0
        %v5062 = vadd.f32 0.0, %v5061
        %v5063 = vpop.f32.mrf.mxu0
        %v5064 = vpop.f32.mrf.mxu0
        %v5065 = vadd.f32 0.0, %v5064
        %v5066 = vpop.f32.mrf.mxu0
        %5067 = vmatprep.mubr.bf16.mxu0 0
        %5068 = vmatmul.mubr.bf16.gmra.mxu0 %v4860
        %v5069 = vpop.f32.mrf.mxu0
        %v5070 = vadd.f32 0.0, %v5069
        %v5071 = vpop.f32.mrf.mxu0
        %v5072 = vpop.f32.mrf.mxu0
        %v5073 = vadd.f32 0.0, %v5072
        %v5074 = vpop.f32.mrf.mxu0
        %5075 = vmatprep.mubr.bf16.mxu0 0
        %5076 = vmatmul.mubr.bf16.gmra.mxu0 %v4861
        %v5077 = vpop.f32.mrf.mxu0
        %v5078 = vadd.f32 0.0, %v5077
        %v5079 = vpop.f32.mrf.mxu0
        %v5080 = vpop.f32.mrf.mxu0
        %v5081 = vadd.f32 0.0, %v5080
        %v5082 = vpop.f32.mrf.mxu0
        %5083 = vmatprep.mubr.bf16.mxu0 0
        %5084 = vmatmul.mubr.bf16.gmra.mxu0 %v4862
        %v5085 = vpop.f32.mrf.mxu0
        %v5086 = vadd.f32 0.0, %v5085
        %v5087 = vpop.f32.mrf.mxu0
        %v5088 = vpop.f32.mrf.mxu0
        %v5089 = vadd.f32 0.0, %v5088
        %v5090 = vpop.f32.mrf.mxu0
        %5091 = vmatprep.mubr.bf16.mxu0 0
        %5092 = vmatmul.mubr.bf16.gmra.mxu0 %v4863
        %v5093 = vpop.f32.mrf.mxu0
        %v5094 = vadd.f32 0.0, %v5093
        %v5095 = vpop.f32.mrf.mxu0
        %v5096 = vpop.f32.mrf.mxu0
        %v5097 = vadd.f32 0.0, %v5096
        %v5098 = vpop.f32.mrf.mxu0
        %5099 = vmatprep.mubr.bf16.mxu0 0
        %5100 = vmatmul.mubr.bf16.gmra.mxu0 %v4864
        %v5101 = vpop.f32.mrf.mxu0
        %v5102 = vadd.f32 0.0, %v5101
        %v5103 = vpop.f32.mrf.mxu0
        %v5104 = vpop.f32.mrf.mxu0
        %v5105 = vadd.f32 0.0, %v5104
        %v5106 = vpop.f32.mrf.mxu0
        %5107 = vmatprep.mubr.bf16.mxu0 0
        %5108 = vmatmul.mubr.bf16.gmra.mxu0 %v4865
        %v5109 = vpop.f32.mrf.mxu0
        %v5110 = vadd.f32 0.0, %v5109
        %v5111 = vpop.f32.mrf.mxu0
        %v5112 = vpop.f32.mrf.mxu0
        %v5113 = vadd.f32 0.0, %v5112
        %v5114 = vpop.f32.mrf.mxu0
        %5115 = vmatprep.mubr.bf16.mxu0 0
        %5116 = vmatmul.mubr.bf16.gmra.mxu0 %v4866
        %v5117 = vpop.f32.mrf.mxu0
        %v5118 = vadd.f32 0.0, %v5117
        %v5119 = vpop.f32.mrf.mxu0
        %v5120 = vpop.f32.mrf.mxu0
        %v5121 = vadd.f32 0.0, %v5120
        %v5122 = vpop.f32.mrf.mxu0
        %5123 = vmatprep.mubr.bf16.mxu0 0
        %5124 = vmatmul.mubr.bf16.gmra.mxu0 %v4867
        %v5125 = vpop.f32.mrf.mxu0
        %v5126 = vadd.f32 0.0, %v5125
        %v5127 = vpop.f32.mrf.mxu0
        %v5128 = vpop.f32.mrf.mxu0
        %v5129 = vadd.f32 0.0, %v5128
        %v5130 = vpop.f32.mrf.mxu0
        %5131 = vmatprep.mubr.bf16.mxu0 0
        %5132 = vmatmul.mubr.bf16.gmra.mxu0 %v4868
        %v5133 = vpop.f32.mrf.mxu0
        %v5134 = vadd.f32 0.0, %v5133
        %v5135 = vpop.f32.mrf.mxu0
        %v5136 = vpop.f32.mrf.mxu0
        %v5137 = vadd.f32 0.0, %v5136
        %v5138 = vpop.f32.mrf.mxu0
        %5139 = vmatprep.mubr.bf16.mxu0 0
        %5140 = vmatmul.mubr.bf16.gmra.mxu0 %v4869
        %v5141 = vpop.f32.mrf.mxu0
        %v5142 = vadd.f32 0.0, %v5141
        %v5143 = vpop.f32.mrf.mxu0
        %v5144 = vpop.f32.mrf.mxu0
        %v5145 = vadd.f32 0.0, %v5144
        %v5146 = vpop.f32.mrf.mxu0
        %5147 = vmatprep.mubr.bf16.mxu0 0
        %5148 = vmatmul.mubr.bf16.gmra.mxu0 %v4870
        %v5149 = vpop.f32.mrf.mxu0
        %v5150 = vadd.f32 0.0, %v5149
        %v5151 = vpop.f32.mrf.mxu0
        %v5152 = vpop.f32.mrf.mxu0
        %v5153 = vadd.f32 0.0, %v5152
        %v5154 = vpop.f32.mrf.mxu0
        %5155 = vmatprep.mubr.bf16.mxu0 0
        %5156 = vmatmul.mubr.bf16.gmra.mxu0 %v4871
        %v5157 = vpop.f32.mrf.mxu0
        %v5158 = vadd.f32 0.0, %v5157
        %v5159 = vpop.f32.mrf.mxu0
        %v5160 = vpop.f32.mrf.mxu0
        %v5161 = vadd.f32 0.0, %v5160
        %v5162 = vpop.f32.mrf.mxu0
        %5163 = vmatprep.mubr.bf16.mxu0 0
        %5164 = vmatmul.mubr.bf16.gmra.mxu0 %v4872
        %v5165 = vpop.f32.mrf.mxu0
        %v5166 = vadd.f32 0.0, %v5165
        %v5167 = vpop.f32.mrf.mxu0
        %v5168 = vpop.f32.mrf.mxu0
        %v5169 = vadd.f32 0.0, %v5168
        %v5170 = vpop.f32.mrf.mxu0
        %5171 = vmatprep.mubr.bf16.mxu0 0
        %5172 = vmatmul.mubr.bf16.gmra.mxu0 %v4873
        %v5173 = vpop.f32.mrf.mxu0
        %v5174 = vadd.f32 0.0, %v5173
        %v5175 = vpop.f32.mrf.mxu0
        %v5176 = vpop.f32.mrf.mxu0
        %v5177 = vadd.f32 0.0, %v5176
        %v5178 = vpop.f32.mrf.mxu0
        %5179 = vmatprep.mubr.bf16.mxu0 0
        %5180 = vmatmul.mubr.bf16.gmra.mxu0 %v4874
        %v5181 = vpop.f32.mrf.mxu0
        %v5182 = vadd.f32 0.0, %v5181
        %v5183 = vpop.f32.mrf.mxu0
        %v5184 = vpop.f32.mrf.mxu0
        %v5185 = vadd.f32 0.0, %v5184
        %v5186 = vpop.f32.mrf.mxu0
        %5187 = vmatprep.mubr.bf16.mxu0 0
        %5188 = vmatmul.mubr.bf16.gmra.mxu0 %v4875
        %v5189 = vpop.f32.mrf.mxu0
        %v5190 = vadd.f32 0.0, %v5189
        %v5191 = vpop.f32.mrf.mxu0
        %v5192 = vpop.f32.mrf.mxu0
        %v5193 = vadd.f32 0.0, %v5192
        %v5194 = vpop.f32.mrf.mxu0
        %5195 = vmatprep.mubr.bf16.mxu0 0
        %5196 = vmatmul.mubr.bf16.gmra.mxu0 %v4876
        %v5197 = vpop.f32.mrf.mxu0
        %v5198 = vadd.f32 0.0, %v5197
        %v5199 = vpop.f32.mrf.mxu0
        %v5200 = vpop.f32.mrf.mxu0
        %v5201 = vadd.f32 0.0, %v5200
        %v5202 = vpop.f32.mrf.mxu0
        %5203 = vmatprep.mubr.bf16.mxu0 0
        %5204 = vmatmul.mubr.bf16.gmra.mxu0 %v4877
        %v5205 = vpop.f32.mrf.mxu0
        %v5206 = vadd.f32 0.0, %v5205
        %v5207 = vpop.f32.mrf.mxu0
        %v5208 = vpop.f32.mrf.mxu0
        %v5209 = vadd.f32 0.0, %v5208
        %v5210 = vpop.f32.mrf.mxu0
        %5211 = vmatprep.mubr.bf16.mxu0 0
        %5212 = vmatmul.mubr.bf16.gmra.mxu0 %v4878
        %v5213 = vpop.f32.mrf.mxu0
        %v5214 = vadd.f32 0.0, %v5213
        %v5215 = vpop.f32.mrf.mxu0
        %v5216 = vpop.f32.mrf.mxu0
        %v5217 = vadd.f32 0.0, %v5216
        %v5218 = vpop.f32.mrf.mxu0
        %5219 = vmatprep.mubr.bf16.mxu0 0
        %5220 = vmatmul.mubr.bf16.gmra.mxu0 %v4879
        %v5221 = vpop.f32.mrf.mxu0
        %v5222 = vadd.f32 0.0, %v5221
        %v5223 = vpop.f32.mrf.mxu0
        %v5224 = vpop.f32.mrf.mxu0
        %v5225 = vadd.f32 0.0, %v5224
        %v5226 = vpop.f32.mrf.mxu0
        %5227 = vmatprep.mubr.bf16.mxu0 0
        %5228 = vmatmul.mubr.bf16.gmra.mxu0 %v4880
        %v5229 = vpop.f32.mrf.mxu0
        %v5230 = vadd.f32 0.0, %v5229
        %v5231 = vpop.f32.mrf.mxu0
        %v5232 = vpop.f32.mrf.mxu0
        %v5233 = vadd.f32 0.0, %v5232
        %v5234 = vpop.f32.mrf.mxu0
        %5235 = vmatprep.mubr.bf16.mxu0 0
        %5236 = vmatmul.mubr.bf16.gmra.mxu0 %v4881
        %v5237 = vpop.f32.mrf.mxu0
        %v5238 = vadd.f32 0.0, %v5237
        %v5239 = vpop.f32.mrf.mxu0
        %v5240 = vpop.f32.mrf.mxu0
        %v5241 = vadd.f32 0.0, %v5240
        %v5242 = vpop.f32.mrf.mxu0
        %5243 = vmatprep.mubr.bf16.mxu0 0
        %5244 = vmatmul.mubr.bf16.gmra.mxu0 %v4882
        %v5245 = vpop.f32.mrf.mxu0
        %v5246 = vadd.f32 0.0, %v5245
        %v5247 = vpop.f32.mrf.mxu0
        %v5248 = vpop.f32.mrf.mxu0
        %v5249 = vadd.f32 0.0, %v5248
        %v5250 = vpop.f32.mrf.mxu0
        %5251 = vmatprep.mubr.bf16.mxu0 0
        %5252 = vmatmul.mubr.bf16.gmra.mxu0 %v4883
        %v5253 = vpop.f32.mrf.mxu0
        %v5254 = vadd.f32 0.0, %v5253
        %v5255 = vpop.f32.mrf.mxu0
        %v5256 = vpop.f32.mrf.mxu0
        %v5257 = vadd.f32 0.0, %v5256
        %v5258 = vpop.f32.mrf.mxu0
        %5259 = vmatprep.mubr.bf16.mxu0 0
        %5260 = vmatmul.mubr.bf16.gmra.mxu0 %v4884
        %v5261 = vpop.f32.mrf.mxu0
        %v5262 = vadd.f32 0.0, %v5261
        %v5263 = vpop.f32.mrf.mxu0
        %v5264 = vpop.f32.mrf.mxu0
        %v5265 = vadd.f32 0.0, %v5264
        %v5266 = vpop.f32.mrf.mxu0
        %5267 = vmatprep.mubr.bf16.mxu0 0
        %5268 = vmatmul.mubr.bf16.gmra.mxu0 %v4885
        %v5269 = vpop.f32.mrf.mxu0
        %v5270 = vadd.f32 0.0, %v5269
        %v5271 = vpop.f32.mrf.mxu0
        %v5272 = vpop.f32.mrf.mxu0
        %v5273 = vadd.f32 0.0, %v5272
        %v5274 = vpop.f32.mrf.mxu0
        %5275 = vmatprep.mubr.bf16.mxu0 0
        %5276 = vmatmul.mubr.bf16.gmra.mxu0 %v4886
        %v5277 = vpop.f32.mrf.mxu0
        %v5278 = vadd.f32 0.0, %v5277
        %v5279 = vpop.f32.mrf.mxu0
        %v5280 = vpop.f32.mrf.mxu0
        %v5281 = vadd.f32 0.0, %v5280
        %v5282 = vpop.f32.mrf.mxu0
        %5283 = vmatprep.mubr.bf16.mxu0 0
        %5284 = vmatmul.mubr.bf16.gmra.mxu0 %v4887
        %v5285 = vpop.f32.mrf.mxu0
        %v5286 = vadd.f32 0.0, %v5285
        %v5287 = vpop.f32.mrf.mxu0
        %v5288 = vpop.f32.mrf.mxu0
        %v5289 = vadd.f32 0.0, %v5288
        %v5290 = vpop.f32.mrf.mxu0
        %5291 = vmatprep.mubr.bf16.mxu0 0
        %5292 = vmatmul.mubr.bf16.gmra.mxu0 %v4888
        %v5293 = vpop.f32.mrf.mxu0
        %v5294 = vadd.f32 0.0, %v5293
        %v5295 = vpop.f32.mrf.mxu0
        %v5296 = vpop.f32.mrf.mxu0
        %v5297 = vadd.f32 0.0, %v5296
        %v5298 = vpop.f32.mrf.mxu0
        %5299 = vmatprep.mubr.bf16.mxu0 0
        %5300 = vmatmul.mubr.bf16.gmra.mxu0 %v4889
        %v5301 = vpop.f32.mrf.mxu0
        %v5302 = vadd.f32 0.0, %v5301
        %v5303 = vpop.f32.mrf.mxu0
        %v5304 = vpop.f32.mrf.mxu0
        %v5305 = vadd.f32 0.0, %v5304
        %v5306 = vpop.f32.mrf.mxu0
        %5307 = vmatprep.mubr.bf16.mxu0 0
        %5308 = vmatmul.mubr.bf16.gmra.mxu0 %v4890
        %v5309 = vpop.f32.mrf.mxu0
        %v5310 = vadd.f32 0.0, %v5309
        %v5311 = vpop.f32.mrf.mxu0
        %v5312 = vpop.f32.mrf.mxu0
        %v5313 = vadd.f32 0.0, %v5312
        %v5314 = vpop.f32.mrf.mxu0
        %5315 = vmatprep.mubr.bf16.mxu0 0
        %5316 = vmatmul.mubr.bf16.gmra.mxu0 %v4891
        %v5317 = vpop.f32.mrf.mxu0
        %v5318 = vadd.f32 0.0, %v5317
        %v5319 = vpop.f32.mrf.mxu0
        %v5320 = vpop.f32.mrf.mxu0
        %v5321 = vadd.f32 0.0, %v5320
        %v5322 = vpop.f32.mrf.mxu0
        %5323 = vmatprep.mubr.bf16.mxu0 0
        %5324 = vmatmul.mubr.bf16.gmra.mxu0 %v4892
        %v5325 = vpop.f32.mrf.mxu0
        %v5326 = vadd.f32 0.0, %v5325
        %v5327 = vpop.f32.mrf.mxu0
        %v5328 = vpop.f32.mrf.mxu0
        %v5329 = vadd.f32 0.0, %v5328
        %v5330 = vpop.f32.mrf.mxu0
        %5331 = vmatprep.mubr.bf16.mxu0 0
        %5332 = vmatmul.mubr.bf16.gmra.mxu0 %v4893
        %v5333 = vpop.f32.mrf.mxu0
        %v5334 = vadd.f32 0.0, %v5333
        %v5335 = vpop.f32.mrf.mxu0
        %v5336 = vpop.f32.mrf.mxu0
        %v5337 = vadd.f32 0.0, %v5336
        %v5338 = vpop.f32.mrf.mxu0
        %5339 = vmatprep.mubr.bf16.mxu0 0
        %5340 = vmatmul.mubr.bf16.gmra.mxu0 %v4894
        %v5341 = vpop.f32.mrf.mxu0
        %v5342 = vadd.f32 0.0, %v5341
        %v5343 = vpop.f32.mrf.mxu0
        %v5344 = vpop.f32.mrf.mxu0
        %v5345 = vadd.f32 0.0, %v5344
        %v5346 = vpop.f32.mrf.mxu0
        %5347 = vmatprep.mubr.bf16.mxu0 0
        %5348 = vmatmul.mubr.bf16.gmra.mxu0 %v4895
        %v5349 = vpop.f32.mrf.mxu0
        %v5350 = vadd.f32 0.0, %v5349
        %v5351 = vpop.f32.mrf.mxu0
        %v5352 = vpop.f32.mrf.mxu0
        %v5353 = vadd.f32 0.0, %v5352
        %v5354 = vpop.f32.mrf.mxu0
        %5355 = vmatprep.mubr.bf16.mxu0 0
        %5356 = vmatmul.mubr.bf16.gmra.mxu0 %v4896
        %v5357 = vpop.f32.mrf.mxu0
        %v5358 = vadd.f32 0.0, %v5357
        %v5359 = vpop.f32.mrf.mxu0
        %v5360 = vpop.f32.mrf.mxu0
        %v5361 = vadd.f32 0.0, %v5360
        %v5362 = vpop.f32.mrf.mxu0
        %5363 = vmatprep.mubr.bf16.mxu0 0
        %5364 = vmatmul.mubr.bf16.gmra.mxu0 %v4897
        %v5365 = vpop.f32.mrf.mxu0
        %v5366 = vadd.f32 0.0, %v5365
        %v5367 = vpop.f32.mrf.mxu0
        %v5368 = vpop.f32.mrf.mxu0
        %v5369 = vadd.f32 0.0, %v5368
        %v5370 = vpop.f32.mrf.mxu0
        %5371 = vmatprep.mubr.bf16.mxu0 0
        %5372 = vmatmul.mubr.bf16.gmra.mxu0 %v4898
        %v5373 = vpop.f32.mrf.mxu0
        %v5374 = vadd.f32 0.0, %v5373
        %v5375 = vpop.f32.mrf.mxu0
        %v5376 = vpop.f32.mrf.mxu0
        %v5377 = vadd.f32 0.0, %v5376
        %v5378 = vpop.f32.mrf.mxu0
        %5379 = vmatprep.mubr.bf16.mxu0 0
        %5380 = vmatmul.mubr.bf16.gmra.mxu0 %v4899
        %v5381 = vpop.f32.mrf.mxu0
        %v5382 = vadd.f32 0.0, %v5381
        %v5383 = vpop.f32.mrf.mxu0
        %v5384 = vpop.f32.mrf.mxu0
        %v5385 = vadd.f32 0.0, %v5384
        %v5386 = vpop.f32.mrf.mxu0
        %5387 = vmatprep.mubr.bf16.mxu0 0
        %5388 = vmatmul.mubr.bf16.gmra.mxu0 %v4900
        %v5389 = vpop.f32.mrf.mxu0
        %v5390 = vadd.f32 0.0, %v5389
        %v5391 = vpop.f32.mrf.mxu0
        %v5392 = vpop.f32.mrf.mxu0
        %v5393 = vadd.f32 0.0, %v5392
        %v5394 = vpop.f32.mrf.mxu0
        %5395 = vmatprep.mubr.bf16.mxu0 0
        %5396 = vmatmul.mubr.bf16.gmra.mxu0 %v4901
        %v5397 = vpop.f32.mrf.mxu0
        %v5398 = vadd.f32 0.0, %v5397
        %v5399 = vpop.f32.mrf.mxu0
        %v5400 = vpop.f32.mrf.mxu0
        %v5401 = vadd.f32 0.0, %v5400
        %v5402 = vpop.f32.mrf.mxu0
        %5403 = vmatprep.mubr.bf16.mxu0 0
        %5404 = vmatmul.mubr.bf16.gmra.mxu0 %v4902
        %v5405 = vpop.f32.mrf.mxu0
        %v5406 = vadd.f32 0.0, %v5405
        %v5407 = vpop.f32.mrf.mxu0
        %v5408 = vpop.f32.mrf.mxu0
        %v5409 = vadd.f32 0.0, %v5408
        %v5410 = vpop.f32.mrf.mxu0
        %5411 = vmatprep.mubr.bf16.mxu0 0
        %5412 = vmatmul.mubr.bf16.gmra.mxu0 %v4903
        %v5413 = vpop.f32.mrf.mxu0
        %v5414 = vadd.f32 0.0, %v5413
        %v5415 = vpop.f32.mrf.mxu0
        %v5416 = vpop.f32.mrf.mxu0
        %v5417 = vadd.f32 0.0, %v5416
        %v5418 = vpop.f32.mrf.mxu0
        %5419 = vmatprep.mubr.bf16.mxu0 0
        %5420 = vmatmul.mubr.bf16.gmra.mxu0 %v4904
        %v5421 = vpop.f32.mrf.mxu0
        %v5422 = vadd.f32 0.0, %v5421
        %v5423 = vpop.f32.mrf.mxu0
        %v5424 = vpop.f32.mrf.mxu0
        %v5425 = vadd.f32 0.0, %v5424
        %v5426 = vpop.f32.mrf.mxu0
        %5427 = vmatprep.mubr.bf16.mxu0 0
        %5428 = vmatmul.mubr.bf16.gmra.mxu0 %v4905
        %v5429 = vpop.f32.mrf.mxu0
        %v5430 = vadd.f32 0.0, %v5429
        %v5431 = vpop.f32.mrf.mxu0
        %v5432 = vpop.f32.mrf.mxu0
        %v5433 = vadd.f32 0.0, %v5432
        %v5434 = vpop.f32.mrf.mxu0
        %5435 = vmatprep.mubr.bf16.mxu0 0
        %5436 = vmatmul.mubr.bf16.gmra.mxu0 %v4906
        %v5437 = vpop.f32.mrf.mxu0
        %v5438 = vadd.f32 0.0, %v5437
        %v5439 = vpop.f32.mrf.mxu0
        %v5440 = vpop.f32.mrf.mxu0
        %v5441 = vadd.f32 0.0, %v5440
        %v5442 = vpop.f32.mrf.mxu0
        %5443 = vmatprep.mubr.bf16.mxu0 0
        %5444 = vmatmul.mubr.bf16.gmra.mxu0 %v4907
        %v5445 = vpop.f32.mrf.mxu0
        %v5446 = vadd.f32 0.0, %v5445
        %v5447 = vpop.f32.mrf.mxu0
        %v5448 = vpop.f32.mrf.mxu0
        %v5449 = vadd.f32 0.0, %v5448
        %v5450 = vpop.f32.mrf.mxu0
        %5451 = vmatprep.mubr.bf16.mxu0 0
        %5452 = vmatmul.mubr.bf16.gmra.mxu0 %v4908
        %v5453 = vpop.f32.mrf.mxu0
        %v5454 = vadd.f32 0.0, %v5453
        %v5455 = vpop.f32.mrf.mxu0
        %v5456 = vpop.f32.mrf.mxu0
        %v5457 = vadd.f32 0.0, %v5456
        %v5458 = vpop.f32.mrf.mxu0
        %5459 = vmatprep.mubr.bf16.mxu0 0
        %5460 = vmatmul.mubr.bf16.gmra.mxu0 %v4909
        %v5461 = vpop.f32.mrf.mxu0
        %v5462 = vadd.f32 0.0, %v5461
        %v5463 = vpop.f32.mrf.mxu0
        %v5464 = vpop.f32.mrf.mxu0
        %v5465 = vadd.f32 0.0, %v5464
        %v5466 = vpop.f32.mrf.mxu0
        %5467 = vmatprep.mubr.bf16.mxu0 0
        %5468 = vmatmul.mubr.bf16.gmra.mxu0 %v4910
        %v5469 = vpop.f32.mrf.mxu0
        %v5470 = vadd.f32 0.0, %v5469
        %v5471 = vpop.f32.mrf.mxu0
        %v5472 = vpop.f32.mrf.mxu0
        %v5473 = vadd.f32 0.0, %v5472
        %v5474 = vpop.f32.mrf.mxu0
        %5475 = vmatprep.mubr.bf16.mxu0 0
        %5476 = vmatmul.mubr.bf16.gmra.mxu0 %v4911
        %v5477 = vpop.f32.mrf.mxu0
        %v5478 = vadd.f32 0.0, %v5477
        %v5479 = vpop.f32.mrf.mxu0
        %v5480 = vpop.f32.mrf.mxu0
        %v5481 = vadd.f32 0.0, %v5480
        %v5482 = vpop.f32.mrf.mxu0
        %5483 = vmatprep.mubr.bf16.mxu0 0
        %5484 = vmatmul.mubr.bf16.gmra.mxu0 %v4912
        %v5485 = vpop.f32.mrf.mxu0
        %v5486 = vadd.f32 0.0, %v5485
        %v5487 = vpop.f32.mrf.mxu0
        %v5488 = vpop.f32.mrf.mxu0
        %v5489 = vadd.f32 0.0, %v5488
        %v5490 = vpop.f32.mrf.mxu0
        %5491 = vmatprep.mubr.bf16.mxu0 0
        %5492 = vmatmul.mubr.bf16.gmra.mxu0 %v4913
        %v5493 = vpop.f32.mrf.mxu0
        %v5494 = vadd.f32 0.0, %v5493
        %v5495 = vpop.f32.mrf.mxu0
        %v5496 = vpop.f32.mrf.mxu0
        %v5497 = vadd.f32 0.0, %v5496
        %v5498 = vpop.f32.mrf.mxu0
        %5499 = vmatprep.mubr.bf16.mxu0 0
        %5500 = vmatmul.mubr.bf16.gmra.mxu0 %v4914
        %v5501 = vpop.f32.mrf.mxu0
        %v5502 = vadd.f32 0.0, %v5501
        %v5503 = vpop.f32.mrf.mxu0
        %v5504 = vpop.f32.mrf.mxu0
        %v5505 = vadd.f32 0.0, %v5504
        %v5506 = vpop.f32.mrf.mxu0
        %5507 = vdwg.mxu0
        %v5508 = vpack.c.bf16 %v5001, %v4998
        %v5509 = vpack.c.bf16 %v5009, %v5006
        %v5510 = vpack.c.bf16 %v5017, %v5014
        %v5511 = vpack.c.bf16 %v5025, %v5022
        %v5512 = vpack.c.bf16 %v5033, %v5030
        %v5513 = vpack.c.bf16 %v5041, %v5038
        %v5514 = vpack.c.bf16 %v5049, %v5046
        %v5515 = vpack.c.bf16 %v5057, %v5054
        %v5516 = vpack.c.bf16 %v5065, %v5062
        %v5517 = vpack.c.bf16 %v5073, %v5070
        %v5518 = vpack.c.bf16 %v5081, %v5078
        %v5519 = vpack.c.bf16 %v5089, %v5086
        %v5520 = vpack.c.bf16 %v5097, %v5094
        %v5521 = vpack.c.bf16 %v5105, %v5102
        %v5522 = vpack.c.bf16 %v5113, %v5110
        %v5523 = vpack.c.bf16 %v5121, %v5118
        %v5524 = vpack.c.bf16 %v5129, %v5126
        %v5525 = vpack.c.bf16 %v5137, %v5134
        %v5526 = vpack.c.bf16 %v5145, %v5142
        %v5527 = vpack.c.bf16 %v5153, %v5150
        %v5528 = vpack.c.bf16 %v5161, %v5158
        %v5529 = vpack.c.bf16 %v5169, %v5166
        %v5530 = vpack.c.bf16 %v5177, %v5174
        %v5531 = vpack.c.bf16 %v5185, %v5182
        %v5532 = vpack.c.bf16 %v5193, %v5190
        %v5533 = vpack.c.bf16 %v5201, %v5198
        %v5534 = vpack.c.bf16 %v5209, %v5206
        %v5535 = vpack.c.bf16 %v5217, %v5214
        %v5536 = vpack.c.bf16 %v5225, %v5222
        %v5537 = vpack.c.bf16 %v5233, %v5230
        %v5538 = vpack.c.bf16 %v5241, %v5238
        %v5539 = vpack.c.bf16 %v5249, %v5246
        %v5540 = vpack.c.bf16 %v5257, %v5254
        %v5541 = vpack.c.bf16 %v5265, %v5262
        %v5542 = vpack.c.bf16 %v5273, %v5270
        %v5543 = vpack.c.bf16 %v5281, %v5278
        %v5544 = vpack.c.bf16 %v5289, %v5286
        %v5545 = vpack.c.bf16 %v5297, %v5294
        %v5546 = vpack.c.bf16 %v5305, %v5302
        %v5547 = vpack.c.bf16 %v5313, %v5310
        %v5548 = vpack.c.bf16 %v5321, %v5318
        %v5549 = vpack.c.bf16 %v5329, %v5326
        %v5550 = vpack.c.bf16 %v5337, %v5334
        %v5551 = vpack.c.bf16 %v5345, %v5342
        %v5552 = vpack.c.bf16 %v5353, %v5350
        %v5553 = vpack.c.bf16 %v5361, %v5358
        %v5554 = vpack.c.bf16 %v5369, %v5366
        %v5555 = vpack.c.bf16 %v5377, %v5374
        %v5556 = vpack.c.bf16 %v5385, %v5382
        %v5557 = vpack.c.bf16 %v5393, %v5390
        %v5558 = vpack.c.bf16 %v5401, %v5398
        %v5559 = vpack.c.bf16 %v5409, %v5406
        %v5560 = vpack.c.bf16 %v5417, %v5414
        %v5561 = vpack.c.bf16 %v5425, %v5422
        %v5562 = vpack.c.bf16 %v5433, %v5430
        %v5563 = vpack.c.bf16 %v5441, %v5438
        %v5564 = vpack.c.bf16 %v5449, %v5446
        %v5565 = vpack.c.bf16 %v5457, %v5454
        %v5566 = vpack.c.bf16 %v5465, %v5462
        %v5567 = vpack.c.bf16 %v5473, %v5470
        %v5568 = vpack.c.bf16 %v5481, %v5478
        %v5569 = vpack.c.bf16 %v5489, %v5486
        %v5570 = vpack.c.bf16 %v5497, %v5494
        %v5571 = vpack.c.bf16 %v5505, %v5502
        %5572 = vmatprep.subr.bf16.mxu0 0
        %5573 = vmatpush1.bf16.msra.mxu0 %v5515
        %5574 = vmatprep.subr.bf16.mxu0 0
        %5575 = vmatpush1.bf16.msra.mxu0 %v5514
        %5576 = vmatprep.subr.bf16.mxu0 0
        %5577 = vmatpush1.bf16.msra.mxu0 %v5513
        %5578 = vmatprep.subr.bf16.mxu0 0
        %5579 = vmatpush1.bf16.msra.mxu0 %v5512
        %5580 = vmatprep.subr.bf16.mxu0 0
        %5581 = vmatpush1.bf16.msra.mxu0 %v5511
        %5582 = vmatprep.subr.bf16.mxu0 0
        %5583 = vmatpush1.bf16.msra.mxu0 %v5510
        %5584 = vmatprep.subr.bf16.mxu0 0
        %5585 = vmatpush1.bf16.msra.mxu0 %v5509
        %5586 = vmatprep.subr.bf16.mxu0 0
        %5587 = vmatpush1.bf16.msra.mxu0 %v5508
        %5588 = vmatprep.subr.bf16.mxu0 0
        %5589 = vmatpush2.bf16.msra.mxu0 %v5523
        %5590 = vmatprep.subr.bf16.mxu0 0
        %5591 = vmatpush2.bf16.msra.mxu0 %v5522
        %5592 = vmatprep.subr.bf16.mxu0 0
        %5593 = vmatpush2.bf16.msra.mxu0 %v5521
        %5594 = vmatprep.subr.bf16.mxu0 0
        %5595 = vmatpush2.bf16.msra.mxu0 %v5520
        %5596 = vmatprep.subr.bf16.mxu0 0
        %5597 = vmatpush2.bf16.msra.mxu0 %v5519
        %5598 = vmatprep.subr.bf16.mxu0 0
        %5599 = vmatpush2.bf16.msra.mxu0 %v5518
        %5600 = vmatprep.subr.bf16.mxu0 0
        %5601 = vmatpush2.bf16.msra.mxu0 %v5517
        %5602 = vmatprep.subr.bf16.mxu0 0
        %5603 = vmatpush2.bf16.msra.mxu0 %v5516
        %5604 = vmatprep.mubr.bf16.mxu0 %v1743
        %5605 = vmatmul.mubr.bf16.gmra.mxu0 %v1742
        %v5606 = vpop.f32.mrf.mxu0
        %v5607 = vadd.f32 0.0, %v5606
        %v5608 = vpop.f32.mrf.mxu0
        %v5609 = vpop.f32.mrf.mxu0
        %v5610 = vadd.f32 0.0, %v5609
        %v5611 = vpop.f32.mrf.mxu0
        %5612 = vmatprep.mubr.bf16.mxu0 %v1745
        %5613 = vmatmul.mubr.bf16.gmra.mxu0 %v1744
        %v5614 = vpop.f32.mrf.mxu0
        %v5615 = vadd.f32 0.0, %v5614
        %v5616 = vpop.f32.mrf.mxu0
        %v5617 = vpop.f32.mrf.mxu0
        %v5618 = vadd.f32 0.0, %v5617
        %v5619 = vpop.f32.mrf.mxu0
        %5620 = vmatprep.mubr.bf16.mxu0 %v1747
        %5621 = vmatmul.mubr.bf16.gmra.mxu0 %v1746
        %v5622 = vpop.f32.mrf.mxu0
        %v5623 = vadd.f32 0.0, %v5622
        %v5624 = vpop.f32.mrf.mxu0
        %v5625 = vpop.f32.mrf.mxu0
        %v5626 = vadd.f32 0.0, %v5625
        %v5627 = vpop.f32.mrf.mxu0
        %5628 = vmatprep.mubr.bf16.mxu0 %v1749
        %5629 = vmatmul.mubr.bf16.gmra.mxu0 %v1748
        %v5630 = vpop.f32.mrf.mxu0
        %v5631 = vadd.f32 0.0, %v5630
        %v5632 = vpop.f32.mrf.mxu0
        %v5633 = vpop.f32.mrf.mxu0
        %v5634 = vadd.f32 0.0, %v5633
        %v5635 = vpop.f32.mrf.mxu0
        %5636 = vmatprep.mubr.bf16.mxu0 %v1751
        %5637 = vmatmul.mubr.bf16.gmra.mxu0 %v1750
        %v5638 = vpop.f32.mrf.mxu0
        %v5639 = vadd.f32 0.0, %v5638
        %v5640 = vpop.f32.mrf.mxu0
        %v5641 = vpop.f32.mrf.mxu0
        %v5642 = vadd.f32 0.0, %v5641
        %v5643 = vpop.f32.mrf.mxu0
        %5644 = vmatprep.mubr.bf16.mxu0 %v1753
        %5645 = vmatmul.mubr.bf16.gmra.mxu0 %v1752
        %v5646 = vpop.f32.mrf.mxu0
        %v5647 = vadd.f32 0.0, %v5646
        %v5648 = vpop.f32.mrf.mxu0
        %v5649 = vpop.f32.mrf.mxu0
        %v5650 = vadd.f32 0.0, %v5649
        %v5651 = vpop.f32.mrf.mxu0
        %5652 = vmatprep.mubr.bf16.mxu0 %v1755
        %5653 = vmatmul.mubr.bf16.gmra.mxu0 %v1754
        %v5654 = vpop.f32.mrf.mxu0
        %v5655 = vadd.f32 0.0, %v5654
        %v5656 = vpop.f32.mrf.mxu0
        %v5657 = vpop.f32.mrf.mxu0
        %v5658 = vadd.f32 0.0, %v5657
        %v5659 = vpop.f32.mrf.mxu0
        %5660 = vmatprep.mubr.bf16.mxu0 %v1757
        %5661 = vmatmul.mubr.bf16.gmra.mxu0 %v1756
        %v5662 = vpop.f32.mrf.mxu0
        %v5663 = vadd.f32 0.0, %v5662
        %v5664 = vpop.f32.mrf.mxu0
        %v5665 = vpop.f32.mrf.mxu0
        %v5666 = vadd.f32 0.0, %v5665
        %v5667 = vpop.f32.mrf.mxu0
        %5668 = vmatprep.mubr.bf16.mxu0 %v1759
        %5669 = vmatmul.mubr.bf16.gmra.mxu0 %v1758
        %v5670 = vpop.f32.mrf.mxu0
        %v5671 = vadd.f32 0.0, %v5670
        %v5672 = vpop.f32.mrf.mxu0
        %v5673 = vpop.f32.mrf.mxu0
        %v5674 = vadd.f32 0.0, %v5673
        %v5675 = vpop.f32.mrf.mxu0
        %5676 = vmatprep.mubr.bf16.mxu0 %v1761
        %5677 = vmatmul.mubr.bf16.gmra.mxu0 %v1760
        %v5678 = vpop.f32.mrf.mxu0
        %v5679 = vadd.f32 0.0, %v5678
        %v5680 = vpop.f32.mrf.mxu0
        %v5681 = vpop.f32.mrf.mxu0
        %v5682 = vadd.f32 0.0, %v5681
        %v5683 = vpop.f32.mrf.mxu0
        %5684 = vmatprep.mubr.bf16.mxu0 %v1763
        %5685 = vmatmul.mubr.bf16.gmra.mxu0 %v1762
        %v5686 = vpop.f32.mrf.mxu0
        %v5687 = vadd.f32 0.0, %v5686
        %v5688 = vpop.f32.mrf.mxu0
        %v5689 = vpop.f32.mrf.mxu0
        %v5690 = vadd.f32 0.0, %v5689
        %v5691 = vpop.f32.mrf.mxu0
        %5692 = vmatprep.mubr.bf16.mxu0 %v1765
        %5693 = vmatmul.mubr.bf16.gmra.mxu0 %v1764
        %v5694 = vpop.f32.mrf.mxu0
        %v5695 = vadd.f32 0.0, %v5694
        %v5696 = vpop.f32.mrf.mxu0
        %v5697 = vpop.f32.mrf.mxu0
        %v5698 = vadd.f32 0.0, %v5697
        %v5699 = vpop.f32.mrf.mxu0
        %5700 = vmatprep.mubr.bf16.mxu0 %v1767
        %5701 = vmatmul.mubr.bf16.gmra.mxu0 %v1766
        %v5702 = vpop.f32.mrf.mxu0
        %v5703 = vadd.f32 0.0, %v5702
        %v5704 = vpop.f32.mrf.mxu0
        %v5705 = vpop.f32.mrf.mxu0
        %v5706 = vadd.f32 0.0, %v5705
        %v5707 = vpop.f32.mrf.mxu0
        %5708 = vmatprep.mubr.bf16.mxu0 %v1769
        %5709 = vmatmul.mubr.bf16.gmra.mxu0 %v1768
        %v5710 = vpop.f32.mrf.mxu0
        %v5711 = vadd.f32 0.0, %v5710
        %v5712 = vpop.f32.mrf.mxu0
        %v5713 = vpop.f32.mrf.mxu0
        %v5714 = vadd.f32 0.0, %v5713
        %v5715 = vpop.f32.mrf.mxu0
        %5716 = vmatprep.mubr.bf16.mxu0 %v1771
        %5717 = vmatmul.mubr.bf16.gmra.mxu0 %v1770
        %v5718 = vpop.f32.mrf.mxu0
        %v5719 = vadd.f32 0.0, %v5718
        %v5720 = vpop.f32.mrf.mxu0
        %v5721 = vpop.f32.mrf.mxu0
        %v5722 = vadd.f32 0.0, %v5721
        %v5723 = vpop.f32.mrf.mxu0
        %5724 = vmatprep.mubr.bf16.mxu0 %v1773
        %5725 = vmatmul.mubr.bf16.gmra.mxu0 %v1772
        %v5726 = vpop.f32.mrf.mxu0
        %v5727 = vadd.f32 0.0, %v5726
        %v5728 = vpop.f32.mrf.mxu0
        %v5729 = vpop.f32.mrf.mxu0
        %v5730 = vadd.f32 0.0, %v5729
        %v5731 = vpop.f32.mrf.mxu0
        %5732 = vdwg.mxu0
        %5733 = vmatprep.subr.bf16.mxu0 0
        %5734 = vmatpush1.bf16.msra.mxu0 %v5531
        %5735 = vmatprep.subr.bf16.mxu0 0
        %5736 = vmatpush1.bf16.msra.mxu0 %v5530
        %5737 = vmatprep.subr.bf16.mxu0 0
        %5738 = vmatpush1.bf16.msra.mxu0 %v5529
        %5739 = vmatprep.subr.bf16.mxu0 0
        %5740 = vmatpush1.bf16.msra.mxu0 %v5528
        %5741 = vmatprep.subr.bf16.mxu0 0
        %5742 = vmatpush1.bf16.msra.mxu0 %v5527
        %5743 = vmatprep.subr.bf16.mxu0 0
        %5744 = vmatpush1.bf16.msra.mxu0 %v5526
        %5745 = vmatprep.subr.bf16.mxu0 0
        %5746 = vmatpush1.bf16.msra.mxu0 %v5525
        %5747 = vmatprep.subr.bf16.mxu0 0
        %5748 = vmatpush1.bf16.msra.mxu0 %v5524
        %5749 = vmatprep.subr.bf16.mxu0 0
        %5750 = vmatpush2.bf16.msra.mxu0 %v5539
        %5751 = vmatprep.subr.bf16.mxu0 0
        %5752 = vmatpush2.bf16.msra.mxu0 %v5538
        %5753 = vmatprep.subr.bf16.mxu0 0
        %5754 = vmatpush2.bf16.msra.mxu0 %v5537
        %5755 = vmatprep.subr.bf16.mxu0 0
        %5756 = vmatpush2.bf16.msra.mxu0 %v5536
        %5757 = vmatprep.subr.bf16.mxu0 0
        %5758 = vmatpush2.bf16.msra.mxu0 %v5535
        %5759 = vmatprep.subr.bf16.mxu0 0
        %5760 = vmatpush2.bf16.msra.mxu0 %v5534
        %5761 = vmatprep.subr.bf16.mxu0 0
        %5762 = vmatpush2.bf16.msra.mxu0 %v5533
        %5763 = vmatprep.subr.bf16.mxu0 0
        %5764 = vmatpush2.bf16.msra.mxu0 %v5532
        %5765 = vmatprep.mubr.bf16.mxu0 %v2064
        %5766 = vmatmul.mubr.bf16.gmra.mxu0 %v2063
        %v5767 = vpop.f32.mrf.mxu0
        %v5768 = vadd.f32 0.0, %v5767
        %v5769 = vpop.f32.mrf.mxu0
        %v5770 = vpop.f32.mrf.mxu0
        %v5771 = vadd.f32 0.0, %v5770
        %v5772 = vpop.f32.mrf.mxu0
        %5773 = vmatprep.mubr.bf16.mxu0 %v2066
        %5774 = vmatmul.mubr.bf16.gmra.mxu0 %v2065
        %v5775 = vpop.f32.mrf.mxu0
        %v5776 = vadd.f32 0.0, %v5775
        %v5777 = vpop.f32.mrf.mxu0
        %v5778 = vpop.f32.mrf.mxu0
        %v5779 = vadd.f32 0.0, %v5778
        %v5780 = vpop.f32.mrf.mxu0
        %5781 = vmatprep.mubr.bf16.mxu0 %v2068
        %5782 = vmatmul.mubr.bf16.gmra.mxu0 %v2067
        %v5783 = vpop.f32.mrf.mxu0
        %v5784 = vadd.f32 0.0, %v5783
        %v5785 = vpop.f32.mrf.mxu0
        %v5786 = vpop.f32.mrf.mxu0
        %v5787 = vadd.f32 0.0, %v5786
        %v5788 = vpop.f32.mrf.mxu0
        %5789 = vmatprep.mubr.bf16.mxu0 %v2070
        %5790 = vmatmul.mubr.bf16.gmra.mxu0 %v2069
        %v5791 = vpop.f32.mrf.mxu0
        %v5792 = vadd.f32 0.0, %v5791
        %v5793 = vpop.f32.mrf.mxu0
        %v5794 = vpop.f32.mrf.mxu0
        %v5795 = vadd.f32 0.0, %v5794
        %v5796 = vpop.f32.mrf.mxu0
        %5797 = vmatprep.mubr.bf16.mxu0 %v2072
        %5798 = vmatmul.mubr.bf16.gmra.mxu0 %v2071
        %v5799 = vpop.f32.mrf.mxu0
        %v5800 = vadd.f32 0.0, %v5799
        %v5801 = vpop.f32.mrf.mxu0
        %v5802 = vpop.f32.mrf.mxu0
        %v5803 = vadd.f32 0.0, %v5802
        %v5804 = vpop.f32.mrf.mxu0
        %5805 = vmatprep.mubr.bf16.mxu0 %v2074
        %5806 = vmatmul.mubr.bf16.gmra.mxu0 %v2073
        %v5807 = vpop.f32.mrf.mxu0
        %v5808 = vadd.f32 0.0, %v5807
        %v5809 = vpop.f32.mrf.mxu0
        %v5810 = vpop.f32.mrf.mxu0
        %v5811 = vadd.f32 0.0, %v5810
        %v5812 = vpop.f32.mrf.mxu0
        %5813 = vmatprep.mubr.bf16.mxu0 %v2076
        %5814 = vmatmul.mubr.bf16.gmra.mxu0 %v2075
        %v5815 = vpop.f32.mrf.mxu0
        %v5816 = vadd.f32 0.0, %v5815
        %v5817 = vpop.f32.mrf.mxu0
        %v5818 = vpop.f32.mrf.mxu0
        %v5819 = vadd.f32 0.0, %v5818
        %v5820 = vpop.f32.mrf.mxu0
        %5821 = vmatprep.mubr.bf16.mxu0 %v2078
        %5822 = vmatmul.mubr.bf16.gmra.mxu0 %v2077
        %v5823 = vpop.f32.mrf.mxu0
        %v5824 = vadd.f32 0.0, %v5823
        %v5825 = vpop.f32.mrf.mxu0
        %v5826 = vpop.f32.mrf.mxu0
        %v5827 = vadd.f32 0.0, %v5826
        %v5828 = vpop.f32.mrf.mxu0
        %5829 = vmatprep.mubr.bf16.mxu0 %v2080
        %5830 = vmatmul.mubr.bf16.gmra.mxu0 %v2079
        %v5831 = vpop.f32.mrf.mxu0
        %v5832 = vadd.f32 0.0, %v5831
        %v5833 = vpop.f32.mrf.mxu0
        %v5834 = vpop.f32.mrf.mxu0
        %v5835 = vadd.f32 0.0, %v5834
        %v5836 = vpop.f32.mrf.mxu0
        %5837 = vmatprep.mubr.bf16.mxu0 %v2082
        %5838 = vmatmul.mubr.bf16.gmra.mxu0 %v2081
        %v5839 = vpop.f32.mrf.mxu0
        %v5840 = vadd.f32 0.0, %v5839
        %v5841 = vpop.f32.mrf.mxu0
        %v5842 = vpop.f32.mrf.mxu0
        %v5843 = vadd.f32 0.0, %v5842
        %v5844 = vpop.f32.mrf.mxu0
        %5845 = vmatprep.mubr.bf16.mxu0 %v2084
        %5846 = vmatmul.mubr.bf16.gmra.mxu0 %v2083
        %v5847 = vpop.f32.mrf.mxu0
        %v5848 = vadd.f32 0.0, %v5847
        %v5849 = vpop.f32.mrf.mxu0
        %v5850 = vpop.f32.mrf.mxu0
        %v5851 = vadd.f32 0.0, %v5850
        %v5852 = vpop.f32.mrf.mxu0
        %5853 = vmatprep.mubr.bf16.mxu0 %v2086
        %5854 = vmatmul.mubr.bf16.gmra.mxu0 %v2085
        %v5855 = vpop.f32.mrf.mxu0
        %v5856 = vadd.f32 0.0, %v5855
        %v5857 = vpop.f32.mrf.mxu0
        %v5858 = vpop.f32.mrf.mxu0
        %v5859 = vadd.f32 0.0, %v5858
        %v5860 = vpop.f32.mrf.mxu0
        %5861 = vmatprep.mubr.bf16.mxu0 %v2088
        %5862 = vmatmul.mubr.bf16.gmra.mxu0 %v2087
        %v5863 = vpop.f32.mrf.mxu0
        %v5864 = vadd.f32 0.0, %v5863
        %v5865 = vpop.f32.mrf.mxu0
        %v5866 = vpop.f32.mrf.mxu0
        %v5867 = vadd.f32 0.0, %v5866
        %v5868 = vpop.f32.mrf.mxu0
        %5869 = vmatprep.mubr.bf16.mxu0 %v2090
        %5870 = vmatmul.mubr.bf16.gmra.mxu0 %v2089
        %v5871 = vpop.f32.mrf.mxu0
        %v5872 = vadd.f32 0.0, %v5871
        %v5873 = vpop.f32.mrf.mxu0
        %v5874 = vpop.f32.mrf.mxu0
        %v5875 = vadd.f32 0.0, %v5874
        %v5876 = vpop.f32.mrf.mxu0
        %5877 = vmatprep.mubr.bf16.mxu0 %v2092
        %5878 = vmatmul.mubr.bf16.gmra.mxu0 %v2091
        %v5879 = vpop.f32.mrf.mxu0
        %v5880 = vadd.f32 0.0, %v5879
        %v5881 = vpop.f32.mrf.mxu0
        %v5882 = vpop.f32.mrf.mxu0
        %v5883 = vadd.f32 0.0, %v5882
        %v5884 = vpop.f32.mrf.mxu0
        %5885 = vmatprep.mubr.bf16.mxu0 %v2094
        %5886 = vmatmul.mubr.bf16.gmra.mxu0 %v2093
        %v5887 = vpop.f32.mrf.mxu0
        %v5888 = vadd.f32 0.0, %v5887
        %v5889 = vpop.f32.mrf.mxu0
        %v5890 = vpop.f32.mrf.mxu0
        %v5891 = vadd.f32 0.0, %v5890
        %v5892 = vpop.f32.mrf.mxu0
        %5893 = vdwg.mxu0
        %5894 = vmatprep.subr.bf16.mxu0 0
        %5895 = vmatpush1.bf16.msra.mxu0 %v5547
        %5896 = vmatprep.subr.bf16.mxu0 0
        %5897 = vmatpush1.bf16.msra.mxu0 %v5546
        %5898 = vmatprep.subr.bf16.mxu0 0
        %5899 = vmatpush1.bf16.msra.mxu0 %v5545
        %5900 = vmatprep.subr.bf16.mxu0 0
        %5901 = vmatpush1.bf16.msra.mxu0 %v5544
        %5902 = vmatprep.subr.bf16.mxu0 0
        %5903 = vmatpush1.bf16.msra.mxu0 %v5543
        %5904 = vmatprep.subr.bf16.mxu0 0
        %5905 = vmatpush1.bf16.msra.mxu0 %v5542
        %5906 = vmatprep.subr.bf16.mxu0 0
        %5907 = vmatpush1.bf16.msra.mxu0 %v5541
        %5908 = vmatprep.subr.bf16.mxu0 0
        %5909 = vmatpush1.bf16.msra.mxu0 %v5540
        %5910 = vmatprep.subr.bf16.mxu0 0
        %5911 = vmatpush2.bf16.msra.mxu0 %v5555
        %5912 = vmatprep.subr.bf16.mxu0 0
        %5913 = vmatpush2.bf16.msra.mxu0 %v5554
        %5914 = vmatprep.subr.bf16.mxu0 0
        %5915 = vmatpush2.bf16.msra.mxu0 %v5553
        %5916 = vmatprep.subr.bf16.mxu0 0
        %5917 = vmatpush2.bf16.msra.mxu0 %v5552
        %5918 = vmatprep.subr.bf16.mxu0 0
        %5919 = vmatpush2.bf16.msra.mxu0 %v5551
        %5920 = vmatprep.subr.bf16.mxu0 0
        %5921 = vmatpush2.bf16.msra.mxu0 %v5550
        %5922 = vmatprep.subr.bf16.mxu0 0
        %5923 = vmatpush2.bf16.msra.mxu0 %v5549
        %5924 = vmatprep.subr.bf16.mxu0 0
        %5925 = vmatpush2.bf16.msra.mxu0 %v5548
        %5926 = vmatprep.mubr.bf16.mxu0 %v2385
        %5927 = vmatmul.mubr.bf16.gmra.mxu0 %v2384
        %v5928 = vpop.f32.mrf.mxu0
        %v5929 = vadd.f32 0.0, %v5928
        %v5930 = vpop.f32.mrf.mxu0
        %v5931 = vpop.f32.mrf.mxu0
        %v5932 = vadd.f32 0.0, %v5931
        %v5933 = vpop.f32.mrf.mxu0
        %5934 = vmatprep.mubr.bf16.mxu0 %v2387
        %5935 = vmatmul.mubr.bf16.gmra.mxu0 %v2386
        %v5936 = vpop.f32.mrf.mxu0
        %v5937 = vadd.f32 0.0, %v5936
        %v5938 = vpop.f32.mrf.mxu0
        %v5939 = vpop.f32.mrf.mxu0
        %v5940 = vadd.f32 0.0, %v5939
        %v5941 = vpop.f32.mrf.mxu0
        %5942 = vmatprep.mubr.bf16.mxu0 %v2389
        %5943 = vmatmul.mubr.bf16.gmra.mxu0 %v2388
        %v5944 = vpop.f32.mrf.mxu0
        %v5945 = vadd.f32 0.0, %v5944
        %v5946 = vpop.f32.mrf.mxu0
        %v5947 = vpop.f32.mrf.mxu0
        %v5948 = vadd.f32 0.0, %v5947
        %v5949 = vpop.f32.mrf.mxu0
        %5950 = vmatprep.mubr.bf16.mxu0 %v2391
        %5951 = vmatmul.mubr.bf16.gmra.mxu0 %v2390
        %v5952 = vpop.f32.mrf.mxu0
        %v5953 = vadd.f32 0.0, %v5952
        %v5954 = vpop.f32.mrf.mxu0
        %v5955 = vpop.f32.mrf.mxu0
        %v5956 = vadd.f32 0.0, %v5955
        %v5957 = vpop.f32.mrf.mxu0
        %5958 = vmatprep.mubr.bf16.mxu0 %v2393
        %5959 = vmatmul.mubr.bf16.gmra.mxu0 %v2392
        %v5960 = vpop.f32.mrf.mxu0
        %v5961 = vadd.f32 0.0, %v5960
        %v5962 = vpop.f32.mrf.mxu0
        %v5963 = vpop.f32.mrf.mxu0
        %v5964 = vadd.f32 0.0, %v5963
        %v5965 = vpop.f32.mrf.mxu0
        %5966 = vmatprep.mubr.bf16.mxu0 %v2395
        %5967 = vmatmul.mubr.bf16.gmra.mxu0 %v2394
        %v5968 = vpop.f32.mrf.mxu0
        %v5969 = vadd.f32 0.0, %v5968
        %v5970 = vpop.f32.mrf.mxu0
        %v5971 = vpop.f32.mrf.mxu0
        %v5972 = vadd.f32 0.0, %v5971
        %v5973 = vpop.f32.mrf.mxu0
        %5974 = vmatprep.mubr.bf16.mxu0 %v2397
        %5975 = vmatmul.mubr.bf16.gmra.mxu0 %v2396
        %v5976 = vpop.f32.mrf.mxu0
        %v5977 = vadd.f32 0.0, %v5976
        %v5978 = vpop.f32.mrf.mxu0
        %v5979 = vpop.f32.mrf.mxu0
        %v5980 = vadd.f32 0.0, %v5979
        %v5981 = vpop.f32.mrf.mxu0
        %5982 = vmatprep.mubr.bf16.mxu0 %v2399
        %5983 = vmatmul.mubr.bf16.gmra.mxu0 %v2398
        %v5984 = vpop.f32.mrf.mxu0
        %v5985 = vadd.f32 0.0, %v5984
        %v5986 = vpop.f32.mrf.mxu0
        %v5987 = vpop.f32.mrf.mxu0
        %v5988 = vadd.f32 0.0, %v5987
        %v5989 = vpop.f32.mrf.mxu0
        %5990 = vmatprep.mubr.bf16.mxu0 %v2401
        %5991 = vmatmul.mubr.bf16.gmra.mxu0 %v2400
        %v5992 = vpop.f32.mrf.mxu0
        %v5993 = vadd.f32 0.0, %v5992
        %v5994 = vpop.f32.mrf.mxu0
        %v5995 = vpop.f32.mrf.mxu0
        %v5996 = vadd.f32 0.0, %v5995
        %v5997 = vpop.f32.mrf.mxu0
        %5998 = vmatprep.mubr.bf16.mxu0 %v2403
        %5999 = vmatmul.mubr.bf16.gmra.mxu0 %v2402
        %v6000 = vpop.f32.mrf.mxu0
        %v6001 = vadd.f32 0.0, %v6000
        %v6002 = vpop.f32.mrf.mxu0
        %v6003 = vpop.f32.mrf.mxu0
        %v6004 = vadd.f32 0.0, %v6003
        %v6005 = vpop.f32.mrf.mxu0
        %6006 = vmatprep.mubr.bf16.mxu0 %v2405
        %6007 = vmatmul.mubr.bf16.gmra.mxu0 %v2404
        %v6008 = vpop.f32.mrf.mxu0
        %v6009 = vadd.f32 0.0, %v6008
        %v6010 = vpop.f32.mrf.mxu0
        %v6011 = vpop.f32.mrf.mxu0
        %v6012 = vadd.f32 0.0, %v6011
        %v6013 = vpop.f32.mrf.mxu0
        %6014 = vmatprep.mubr.bf16.mxu0 %v2407
        %6015 = vmatmul.mubr.bf16.gmra.mxu0 %v2406
        %v6016 = vpop.f32.mrf.mxu0
        %v6017 = vadd.f32 0.0, %v6016
        %v6018 = vpop.f32.mrf.mxu0
        %v6019 = vpop.f32.mrf.mxu0
        %v6020 = vadd.f32 0.0, %v6019
        %v6021 = vpop.f32.mrf.mxu0
        %6022 = vmatprep.mubr.bf16.mxu0 %v2409
        %6023 = vmatmul.mubr.bf16.gmra.mxu0 %v2408
        %v6024 = vpop.f32.mrf.mxu0
        %v6025 = vadd.f32 0.0, %v6024
        %v6026 = vpop.f32.mrf.mxu0
        %v6027 = vpop.f32.mrf.mxu0
        %v6028 = vadd.f32 0.0, %v6027
        %v6029 = vpop.f32.mrf.mxu0
        %6030 = vmatprep.mubr.bf16.mxu0 %v2411
        %6031 = vmatmul.mubr.bf16.gmra.mxu0 %v2410
        %v6032 = vpop.f32.mrf.mxu0
        %v6033 = vadd.f32 0.0, %v6032
        %v6034 = vpop.f32.mrf.mxu0
        %v6035 = vpop.f32.mrf.mxu0
        %v6036 = vadd.f32 0.0, %v6035
        %v6037 = vpop.f32.mrf.mxu0
        %6038 = vmatprep.mubr.bf16.mxu0 %v2413
        %6039 = vmatmul.mubr.bf16.gmra.mxu0 %v2412
        %v6040 = vpop.f32.mrf.mxu0
        %v6041 = vadd.f32 0.0, %v6040
        %v6042 = vpop.f32.mrf.mxu0
        %v6043 = vpop.f32.mrf.mxu0
        %v6044 = vadd.f32 0.0, %v6043
        %v6045 = vpop.f32.mrf.mxu0
        %6046 = vmatprep.mubr.bf16.mxu0 %v2415
        %6047 = vmatmul.mubr.bf16.gmra.mxu0 %v2414
        %v6048 = vpop.f32.mrf.mxu0
        %v6049 = vadd.f32 0.0, %v6048
        %v6050 = vpop.f32.mrf.mxu0
        %v6051 = vpop.f32.mrf.mxu0
        %v6052 = vadd.f32 0.0, %v6051
        %v6053 = vpop.f32.mrf.mxu0
        %6054 = vdwg.mxu0
        %6055 = vmatprep.subr.bf16.mxu0 0
        %6056 = vmatpush1.bf16.msra.mxu0 %v5563
        %6057 = vmatprep.subr.bf16.mxu0 0
        %6058 = vmatpush1.bf16.msra.mxu0 %v5562
        %6059 = vmatprep.subr.bf16.mxu0 0
        %6060 = vmatpush1.bf16.msra.mxu0 %v5561
        %6061 = vmatprep.subr.bf16.mxu0 0
        %6062 = vmatpush1.bf16.msra.mxu0 %v5560
        %6063 = vmatprep.subr.bf16.mxu0 0
        %6064 = vmatpush1.bf16.msra.mxu0 %v5559
        %6065 = vmatprep.subr.bf16.mxu0 0
        %6066 = vmatpush1.bf16.msra.mxu0 %v5558
        %6067 = vmatprep.subr.bf16.mxu0 0
        %6068 = vmatpush1.bf16.msra.mxu0 %v5557
        %6069 = vmatprep.subr.bf16.mxu0 0
        %6070 = vmatpush1.bf16.msra.mxu0 %v5556
        %6071 = vmatprep.subr.bf16.mxu0 0
        %6072 = vmatpush2.bf16.msra.mxu0 %v5571
        %6073 = vmatprep.subr.bf16.mxu0 0
        %6074 = vmatpush2.bf16.msra.mxu0 %v5570
        %6075 = vmatprep.subr.bf16.mxu0 0
        %6076 = vmatpush2.bf16.msra.mxu0 %v5569
        %6077 = vmatprep.subr.bf16.mxu0 0
        %6078 = vmatpush2.bf16.msra.mxu0 %v5568
        %6079 = vmatprep.subr.bf16.mxu0 0
        %6080 = vmatpush2.bf16.msra.mxu0 %v5567
        %6081 = vmatprep.subr.bf16.mxu0 0
        %6082 = vmatpush2.bf16.msra.mxu0 %v5566
        %6083 = vmatprep.subr.bf16.mxu0 0
        %6084 = vmatpush2.bf16.msra.mxu0 %v5565
        %6085 = vmatprep.subr.bf16.mxu0 0
        %6086 = vmatpush2.bf16.msra.mxu0 %v5564
        %6087 = vmatprep.mubr.bf16.mxu0 %v2706
        %6088 = vmatmul.mubr.bf16.gmra.mxu0 %v2705
        %v6089 = vpop.f32.mrf.mxu0
        %v6090 = vadd.f32 0.0, %v6089
        %v6091 = vpop.f32.mrf.mxu0
        %v6092 = vpop.f32.mrf.mxu0
        %v6093 = vadd.f32 0.0, %v6092
        %v6094 = vpop.f32.mrf.mxu0
        %6095 = vmatprep.mubr.bf16.mxu0 %v2708
        %6096 = vmatmul.mubr.bf16.gmra.mxu0 %v2707
        %v6097 = vpop.f32.mrf.mxu0
        %v6098 = vadd.f32 0.0, %v6097
        %v6099 = vpop.f32.mrf.mxu0
        %v6100 = vpop.f32.mrf.mxu0
        %v6101 = vadd.f32 0.0, %v6100
        %v6102 = vpop.f32.mrf.mxu0
        %6103 = vmatprep.mubr.bf16.mxu0 %v2710
        %6104 = vmatmul.mubr.bf16.gmra.mxu0 %v2709
        %v6105 = vpop.f32.mrf.mxu0
        %v6106 = vadd.f32 0.0, %v6105
        %v6107 = vpop.f32.mrf.mxu0
        %v6108 = vpop.f32.mrf.mxu0
        %v6109 = vadd.f32 0.0, %v6108
        %v6110 = vpop.f32.mrf.mxu0
        %6111 = vmatprep.mubr.bf16.mxu0 %v2712
        %6112 = vmatmul.mubr.bf16.gmra.mxu0 %v2711
        %v6113 = vpop.f32.mrf.mxu0
        %v6114 = vadd.f32 0.0, %v6113
        %v6115 = vpop.f32.mrf.mxu0
        %v6116 = vpop.f32.mrf.mxu0
        %v6117 = vadd.f32 0.0, %v6116
        %v6118 = vpop.f32.mrf.mxu0
        %6119 = vmatprep.mubr.bf16.mxu0 %v2714
        %6120 = vmatmul.mubr.bf16.gmra.mxu0 %v2713
        %v6121 = vpop.f32.mrf.mxu0
        %v6122 = vadd.f32 0.0, %v6121
        %v6123 = vpop.f32.mrf.mxu0
        %v6124 = vpop.f32.mrf.mxu0
        %v6125 = vadd.f32 0.0, %v6124
        %v6126 = vpop.f32.mrf.mxu0
        %6127 = vmatprep.mubr.bf16.mxu0 %v2716
        %6128 = vmatmul.mubr.bf16.gmra.mxu0 %v2715
        %v6129 = vpop.f32.mrf.mxu0
        %v6130 = vadd.f32 0.0, %v6129
        %v6131 = vpop.f32.mrf.mxu0
        %v6132 = vpop.f32.mrf.mxu0
        %v6133 = vadd.f32 0.0, %v6132
        %v6134 = vpop.f32.mrf.mxu0
        %6135 = vmatprep.mubr.bf16.mxu0 %v2718
        %6136 = vmatmul.mubr.bf16.gmra.mxu0 %v2717
        %v6137 = vpop.f32.mrf.mxu0
        %v6138 = vadd.f32 0.0, %v6137
        %v6139 = vpop.f32.mrf.mxu0
        %v6140 = vpop.f32.mrf.mxu0
        %v6141 = vadd.f32 0.0, %v6140
        %v6142 = vpop.f32.mrf.mxu0
        %6143 = vmatprep.mubr.bf16.mxu0 %v2720
        %6144 = vmatmul.mubr.bf16.gmra.mxu0 %v2719
        %v6145 = vpop.f32.mrf.mxu0
        %v6146 = vadd.f32 0.0, %v6145
        %v6147 = vpop.f32.mrf.mxu0
        %v6148 = vpop.f32.mrf.mxu0
        %v6149 = vadd.f32 0.0, %v6148
        %v6150 = vpop.f32.mrf.mxu0
        %6151 = vmatprep.mubr.bf16.mxu0 %v2722
        %6152 = vmatmul.mubr.bf16.gmra.mxu0 %v2721
        %v6153 = vpop.f32.mrf.mxu0
        %v6154 = vadd.f32 0.0, %v6153
        %v6155 = vpop.f32.mrf.mxu0
        %v6156 = vpop.f32.mrf.mxu0
        %v6157 = vadd.f32 0.0, %v6156
        %v6158 = vpop.f32.mrf.mxu0
        %6159 = vmatprep.mubr.bf16.mxu0 %v2724
        %6160 = vmatmul.mubr.bf16.gmra.mxu0 %v2723
        %v6161 = vpop.f32.mrf.mxu0
        %v6162 = vadd.f32 0.0, %v6161
        %v6163 = vpop.f32.mrf.mxu0
        %v6164 = vpop.f32.mrf.mxu0
        %v6165 = vadd.f32 0.0, %v6164
        %v6166 = vpop.f32.mrf.mxu0
        %6167 = vmatprep.mubr.bf16.mxu0 %v2726
        %6168 = vmatmul.mubr.bf16.gmra.mxu0 %v2725
        %v6169 = vpop.f32.mrf.mxu0
        %v6170 = vadd.f32 0.0, %v6169
        %v6171 = vpop.f32.mrf.mxu0
        %v6172 = vpop.f32.mrf.mxu0
        %v6173 = vadd.f32 0.0, %v6172
        %v6174 = vpop.f32.mrf.mxu0
        %6175 = vmatprep.mubr.bf16.mxu0 %v2728
        %6176 = vmatmul.mubr.bf16.gmra.mxu0 %v2727
        %v6177 = vpop.f32.mrf.mxu0
        %v6178 = vadd.f32 0.0, %v6177
        %v6179 = vpop.f32.mrf.mxu0
        %v6180 = vpop.f32.mrf.mxu0
        %v6181 = vadd.f32 0.0, %v6180
        %v6182 = vpop.f32.mrf.mxu0
        %6183 = vmatprep.mubr.bf16.mxu0 %v2730
        %6184 = vmatmul.mubr.bf16.gmra.mxu0 %v2729
        %v6185 = vpop.f32.mrf.mxu0
        %v6186 = vadd.f32 0.0, %v6185
        %v6187 = vpop.f32.mrf.mxu0
        %v6188 = vpop.f32.mrf.mxu0
        %v6189 = vadd.f32 0.0, %v6188
        %v6190 = vpop.f32.mrf.mxu0
        %6191 = vmatprep.mubr.bf16.mxu0 %v2732
        %6192 = vmatmul.mubr.bf16.gmra.mxu0 %v2731
        %v6193 = vpop.f32.mrf.mxu0
        %v6194 = vadd.f32 0.0, %v6193
        %v6195 = vpop.f32.mrf.mxu0
        %v6196 = vpop.f32.mrf.mxu0
        %v6197 = vadd.f32 0.0, %v6196
        %v6198 = vpop.f32.mrf.mxu0
        %6199 = vmatprep.mubr.bf16.mxu0 %v2734
        %6200 = vmatmul.mubr.bf16.gmra.mxu0 %v2733
        %v6201 = vpop.f32.mrf.mxu0
        %v6202 = vadd.f32 0.0, %v6201
        %v6203 = vpop.f32.mrf.mxu0
        %v6204 = vpop.f32.mrf.mxu0
        %v6205 = vadd.f32 0.0, %v6204
        %v6206 = vpop.f32.mrf.mxu0
        %6207 = vmatprep.mubr.bf16.mxu0 %v2736
        %6208 = vmatmul.mubr.bf16.gmra.mxu0 %v2735
        %v6209 = vpop.f32.mrf.mxu0
        %v6210 = vadd.f32 0.0, %v6209
        %v6211 = vpop.f32.mrf.mxu0
        %v6212 = vpop.f32.mrf.mxu0
        %v6213 = vadd.f32 0.0, %v6212
        %v6214 = vpop.f32.mrf.mxu0
        %6215 = vdwg.mxu0
        %v6216 = vlaneseq
        %v6217 = vshrl.u32 %v6216, 7
        %v6218 = vsub.s32 0, %v6217
        %v6219 = vrot.slane %v4850, %v6218
        %v6220 = vadd.f32 %v5607, %v6219
        %v6221 = vadd.f32 %v5610, %v6219
        %v6222 = vadd.f32 %v5615, %v6219
        %v6223 = vadd.f32 %v5618, %v6219
        %v6224 = vadd.f32 %v5623, %v6219
        %v6225 = vadd.f32 %v5626, %v6219
        %v6226 = vadd.f32 %v5631, %v6219
        %v6227 = vadd.f32 %v5634, %v6219
        %v6228 = vadd.f32 %v5639, %v6219
        %v6229 = vadd.f32 %v5642, %v6219
        %v6230 = vadd.f32 %v5647, %v6219
        %v6231 = vadd.f32 %v5650, %v6219
        %v6232 = vadd.f32 %v5655, %v6219
        %v6233 = vadd.f32 %v5658, %v6219
        %v6234 = vadd.f32 %v5663, %v6219
        %v6235 = vadd.f32 %v5666, %v6219
        %v6236 = vadd.f32 %v5671, %v6219
        %v6237 = vadd.f32 %v5674, %v6219
        %v6238 = vadd.f32 %v5679, %v6219
        %v6239 = vadd.f32 %v5682, %v6219
        %v6240 = vadd.f32 %v5687, %v6219
        %v6241 = vadd.f32 %v5690, %v6219
        %v6242 = vadd.f32 %v5695, %v6219
        %v6243 = vadd.f32 %v5698, %v6219
        %v6244 = vadd.f32 %v5703, %v6219
        %v6245 = vadd.f32 %v5706, %v6219
        %v6246 = vadd.f32 %v5711, %v6219
        %v6247 = vadd.f32 %v5714, %v6219
        %v6248 = vadd.f32 %v5719, %v6219
        %v6249 = vadd.f32 %v5722, %v6219
        %v6250 = vadd.f32 %v5727, %v6219
        %v6251 = vadd.f32 %v5730, %v6219
        %v6252 = vadd.f32 %v5768, %v6219
        %v6253 = vadd.f32 %v5771, %v6219
        %v6254 = vadd.f32 %v5776, %v6219
        %v6255 = vadd.f32 %v5779, %v6219
        %v6256 = vadd.f32 %v5784, %v6219
        %v6257 = vadd.f32 %v5787, %v6219
        %v6258 = vadd.f32 %v5792, %v6219
        %v6259 = vadd.f32 %v5795, %v6219
        %v6260 = vadd.f32 %v5800, %v6219
        %v6261 = vadd.f32 %v5803, %v6219
        %v6262 = vadd.f32 %v5808, %v6219
        %v6263 = vadd.f32 %v5811, %v6219
        %v6264 = vadd.f32 %v5816, %v6219
        %v6265 = vadd.f32 %v5819, %v6219
        %v6266 = vadd.f32 %v5824, %v6219
        %v6267 = vadd.f32 %v5827, %v6219
        %v6268 = vadd.f32 %v5832, %v6219
        %v6269 = vadd.f32 %v5835, %v6219
        %v6270 = vadd.f32 %v5840, %v6219
        %v6271 = vadd.f32 %v5843, %v6219
        %v6272 = vadd.f32 %v5848, %v6219
        %v6273 = vadd.f32 %v5851, %v6219
        %v6274 = vadd.f32 %v5856, %v6219
        %v6275 = vadd.f32 %v5859, %v6219
        %v6276 = vadd.f32 %v5864, %v6219
        %v6277 = vadd.f32 %v5867, %v6219
        %v6278 = vadd.f32 %v5872, %v6219
        %v6279 = vadd.f32 %v5875, %v6219
        %v6280 = vadd.f32 %v5880, %v6219
        %v6281 = vadd.f32 %v5883, %v6219
        %v6282 = vadd.f32 %v5888, %v6219
        %v6283 = vadd.f32 %v5891, %v6219
        %v6284 = vadd.f32 %v5929, %v6219
        %v6285 = vadd.f32 %v5932, %v6219
        %v6286 = vadd.f32 %v5937, %v6219
        %v6287 = vadd.f32 %v5940, %v6219
        %v6288 = vadd.f32 %v5945, %v6219
        %v6289 = vadd.f32 %v5948, %v6219
        %v6290 = vadd.f32 %v5953, %v6219
        %v6291 = vadd.f32 %v5956, %v6219
        %v6292 = vadd.f32 %v5961, %v6219
        %v6293 = vadd.f32 %v5964, %v6219
        %v6294 = vadd.f32 %v5969, %v6219
        %v6295 = vadd.f32 %v5972, %v6219
        %v6296 = vadd.f32 %v5977, %v6219
        %v6297 = vadd.f32 %v5980, %v6219
        %v6298 = vadd.f32 %v5985, %v6219
        %v6299 = vadd.f32 %v5988, %v6219
        %v6300 = vadd.f32 %v5993, %v6219
        %v6301 = vadd.f32 %v5996, %v6219
        %v6302 = vadd.f32 %v6001, %v6219
        %v6303 = vadd.f32 %v6004, %v6219
        %v6304 = vadd.f32 %v6009, %v6219
        %v6305 = vadd.f32 %v6012, %v6219
        %v6306 = vadd.f32 %v6017, %v6219
        %v6307 = vadd.f32 %v6020, %v6219
        %v6308 = vadd.f32 %v6025, %v6219
        %v6309 = vadd.f32 %v6028, %v6219
        %v6310 = vadd.f32 %v6033, %v6219
        %v6311 = vadd.f32 %v6036, %v6219
        %v6312 = vadd.f32 %v6041, %v6219
        %v6313 = vadd.f32 %v6044, %v6219
        %v6314 = vadd.f32 %v6049, %v6219
        %v6315 = vadd.f32 %v6052, %v6219
        %v6316 = vadd.f32 %v6090, %v6219
        %v6317 = vadd.f32 %v6093, %v6219
        %v6318 = vadd.f32 %v6098, %v6219
        %v6319 = vadd.f32 %v6101, %v6219
        %v6320 = vadd.f32 %v6106, %v6219
        %v6321 = vadd.f32 %v6109, %v6219
        %v6322 = vadd.f32 %v6114, %v6219
        %v6323 = vadd.f32 %v6117, %v6219
        %v6324 = vadd.f32 %v6122, %v6219
        %v6325 = vadd.f32 %v6125, %v6219
        %v6326 = vadd.f32 %v6130, %v6219
        %v6327 = vadd.f32 %v6133, %v6219
        %v6328 = vadd.f32 %v6138, %v6219
        %v6329 = vadd.f32 %v6141, %v6219
        %v6330 = vadd.f32 %v6146, %v6219
        %v6331 = vadd.f32 %v6149, %v6219
        %v6332 = vadd.f32 %v6154, %v6219
        %v6333 = vadd.f32 %v6157, %v6219
        %v6334 = vadd.f32 %v6162, %v6219
        %v6335 = vadd.f32 %v6165, %v6219
        %v6336 = vadd.f32 %v6170, %v6219
        %v6337 = vadd.f32 %v6173, %v6219
        %v6338 = vadd.f32 %v6178, %v6219
        %v6339 = vadd.f32 %v6181, %v6219
        %v6340 = vadd.f32 %v6186, %v6219
        %v6341 = vadd.f32 %v6189, %v6219
        %v6342 = vadd.f32 %v6194, %v6219
        %v6343 = vadd.f32 %v6197, %v6219
        %v6344 = vadd.f32 %v6202, %v6219
        %v6345 = vadd.f32 %v6205, %v6219
        %v6346 = vadd.f32 %v6210, %v6219
        %v6347 = vadd.f32 %v6213, %v6219
        %v6348 = vmax.f32 %v6220, 0.0
        %v6349 = vmax.f32 %v6221, 0.0
        %v6350 = vmax.f32 %v6222, 0.0
        %v6351 = vmax.f32 %v6223, 0.0
        %v6352 = vmax.f32 %v6224, 0.0
        %v6353 = vmax.f32 %v6225, 0.0
        %v6354 = vmax.f32 %v6226, 0.0
        %v6355 = vmax.f32 %v6227, 0.0
        %v6356 = vmax.f32 %v6228, 0.0
        %v6357 = vmax.f32 %v6229, 0.0
        %v6358 = vmax.f32 %v6230, 0.0
        %v6359 = vmax.f32 %v6231, 0.0
        %v6360 = vmax.f32 %v6232, 0.0
        %v6361 = vmax.f32 %v6233, 0.0
        %v6362 = vmax.f32 %v6234, 0.0
        %v6363 = vmax.f32 %v6235, 0.0
        %v6364 = vmax.f32 %v6236, 0.0
        %v6365 = vmax.f32 %v6237, 0.0
        %v6366 = vmax.f32 %v6238, 0.0
        %v6367 = vmax.f32 %v6239, 0.0
        %v6368 = vmax.f32 %v6240, 0.0
        %v6369 = vmax.f32 %v6241, 0.0
        %v6370 = vmax.f32 %v6242, 0.0
        %v6371 = vmax.f32 %v6243, 0.0
        %v6372 = vmax.f32 %v6244, 0.0
        %v6373 = vmax.f32 %v6245, 0.0
        %v6374 = vmax.f32 %v6246, 0.0
        %v6375 = vmax.f32 %v6247, 0.0
        %v6376 = vmax.f32 %v6248, 0.0
        %v6377 = vmax.f32 %v6249, 0.0
        %v6378 = vmax.f32 %v6250, 0.0
        %v6379 = vmax.f32 %v6251, 0.0
        %v6380 = vmax.f32 %v6252, 0.0
        %v6381 = vmax.f32 %v6253, 0.0
        %v6382 = vmax.f32 %v6254, 0.0
        %v6383 = vmax.f32 %v6255, 0.0
        %v6384 = vmax.f32 %v6256, 0.0
        %v6385 = vmax.f32 %v6257, 0.0
        %v6386 = vmax.f32 %v6258, 0.0
        %v6387 = vmax.f32 %v6259, 0.0
        %v6388 = vmax.f32 %v6260, 0.0
        %v6389 = vmax.f32 %v6261, 0.0
        %v6390 = vmax.f32 %v6262, 0.0
        %v6391 = vmax.f32 %v6263, 0.0
        %v6392 = vmax.f32 %v6264, 0.0
        %v6393 = vmax.f32 %v6265, 0.0
        %v6394 = vmax.f32 %v6266, 0.0
        %v6395 = vmax.f32 %v6267, 0.0
        %v6396 = vmax.f32 %v6268, 0.0
        %v6397 = vmax.f32 %v6269, 0.0
        %v6398 = vmax.f32 %v6270, 0.0
        %v6399 = vmax.f32 %v6271, 0.0
        %v6400 = vmax.f32 %v6272, 0.0
        %v6401 = vmax.f32 %v6273, 0.0
        %v6402 = vmax.f32 %v6274, 0.0
        %v6403 = vmax.f32 %v6275, 0.0
        %v6404 = vmax.f32 %v6276, 0.0
        %v6405 = vmax.f32 %v6277, 0.0
        %v6406 = vmax.f32 %v6278, 0.0
        %v6407 = vmax.f32 %v6279, 0.0
        %v6408 = vmax.f32 %v6280, 0.0
        %v6409 = vmax.f32 %v6281, 0.0
        %v6410 = vmax.f32 %v6282, 0.0
        %v6411 = vmax.f32 %v6283, 0.0
        %v6412 = vmax.f32 %v6284, 0.0
        %v6413 = vmax.f32 %v6285, 0.0
        %v6414 = vmax.f32 %v6286, 0.0
        %v6415 = vmax.f32 %v6287, 0.0
        %v6416 = vmax.f32 %v6288, 0.0
        %v6417 = vmax.f32 %v6289, 0.0
        %v6418 = vmax.f32 %v6290, 0.0
        %v6419 = vmax.f32 %v6291, 0.0
        %v6420 = vmax.f32 %v6292, 0.0
        %v6421 = vmax.f32 %v6293, 0.0
        %v6422 = vmax.f32 %v6294, 0.0
        %v6423 = vmax.f32 %v6295, 0.0
        %v6424 = vmax.f32 %v6296, 0.0
        %v6425 = vmax.f32 %v6297, 0.0
        %v6426 = vmax.f32 %v6298, 0.0
        %v6427 = vmax.f32 %v6299, 0.0
        %v6428 = vmax.f32 %v6300, 0.0
        %v6429 = vmax.f32 %v6301, 0.0
        %v6430 = vmax.f32 %v6302, 0.0
        %v6431 = vmax.f32 %v6303, 0.0
        %v6432 = vmax.f32 %v6304, 0.0
        %v6433 = vmax.f32 %v6305, 0.0
        %v6434 = vmax.f32 %v6306, 0.0
        %v6435 = vmax.f32 %v6307, 0.0
        %v6436 = vmax.f32 %v6308, 0.0
        %v6437 = vmax.f32 %v6309, 0.0
        %v6438 = vmax.f32 %v6310, 0.0
        %v6439 = vmax.f32 %v6311, 0.0
        %v6440 = vmax.f32 %v6312, 0.0
        %v6441 = vmax.f32 %v6313, 0.0
        %v6442 = vmax.f32 %v6314, 0.0
        %v6443 = vmax.f32 %v6315, 0.0
        %v6444 = vmax.f32 %v6316, 0.0
        %v6445 = vmax.f32 %v6317, 0.0
        %v6446 = vmax.f32 %v6318, 0.0
        %v6447 = vmax.f32 %v6319, 0.0
        %v6448 = vmax.f32 %v6320, 0.0
        %v6449 = vmax.f32 %v6321, 0.0
        %v6450 = vmax.f32 %v6322, 0.0
        %v6451 = vmax.f32 %v6323, 0.0
        %v6452 = vmax.f32 %v6324, 0.0
        %v6453 = vmax.f32 %v6325, 0.0
        %v6454 = vmax.f32 %v6326, 0.0
        %v6455 = vmax.f32 %v6327, 0.0
        %v6456 = vmax.f32 %v6328, 0.0
        %v6457 = vmax.f32 %v6329, 0.0
        %v6458 = vmax.f32 %v6330, 0.0
        %v6459 = vmax.f32 %v6331, 0.0
        %v6460 = vmax.f32 %v6332, 0.0
        %v6461 = vmax.f32 %v6333, 0.0
        %v6462 = vmax.f32 %v6334, 0.0
        %v6463 = vmax.f32 %v6335, 0.0
        %v6464 = vmax.f32 %v6336, 0.0
        %v6465 = vmax.f32 %v6337, 0.0
        %v6466 = vmax.f32 %v6338, 0.0
        %v6467 = vmax.f32 %v6339, 0.0
        %v6468 = vmax.f32 %v6340, 0.0
        %v6469 = vmax.f32 %v6341, 0.0
        %v6470 = vmax.f32 %v6342, 0.0
        %v6471 = vmax.f32 %v6343, 0.0
        %v6472 = vmax.f32 %v6344, 0.0
        %v6473 = vmax.f32 %v6345, 0.0
        %v6474 = vmax.f32 %v6346, 0.0
        %v6475 = vmax.f32 %v6347, 0.0
        %s6476 = scalar_lea.vmem [#allocation7], 192
        %v6477 = vld [vmem:[%s6476] sm:$0xf]
        %v6478 = vld [vmem:[%s6476 + $0x4] sm:$0xf]
        %v6479 = vld [vmem:[%s6476 + $0x8] sm:$0xf]
        %v6480 = vld [vmem:[%s6476 + $0xc] sm:$0xf]
        %v6481 = vld [vmem:[%s6476 + $0x10] sm:$0xf]
        %v6482 = vld [vmem:[%s6476 + $0x14] sm:$0xf]
        %v6483 = vld [vmem:[%s6476 + $0x18] sm:$0xf]
        %v6484 = vld [vmem:[%s6476 + $0x1c] sm:$0xf]
        %v6485 = vld [vmem:[%s6476 + $0x20] sm:$0xf]
        %v6486 = vld [vmem:[%s6476 + $0x24] sm:$0xf]
        %v6487 = vld [vmem:[%s6476 + $0x28] sm:$0xf]
        %v6488 = vld [vmem:[%s6476 + $0x2c] sm:$0xf]
        %v6489 = vld [vmem:[%s6476 + $0x30] sm:$0xf]
        %v6490 = vld [vmem:[%s6476 + $0x34] sm:$0xf]
        %v6491 = vld [vmem:[%s6476 + $0x38] sm:$0xf]
        %v6492 = vld [vmem:[%s6476 + $0x3c] sm:$0xf]
        %v6493 = vld [vmem:[#allocation9 + $0x3] sm:$0x1]
        %v6494 = vpack.c.bf16 %v6349, %v6348
        %v6495 = vpack.c.bf16 %v6351, %v6350
        %v6496 = vpack.c.bf16 %v6353, %v6352
        %v6497 = vpack.c.bf16 %v6355, %v6354
        %v6498 = vpack.c.bf16 %v6357, %v6356
        %v6499 = vpack.c.bf16 %v6359, %v6358
        %v6500 = vpack.c.bf16 %v6361, %v6360
        %v6501 = vpack.c.bf16 %v6363, %v6362
        %v6502 = vpack.c.bf16 %v6365, %v6364
        %v6503 = vpack.c.bf16 %v6367, %v6366
        %v6504 = vpack.c.bf16 %v6369, %v6368
        %v6505 = vpack.c.bf16 %v6371, %v6370
        %v6506 = vpack.c.bf16 %v6373, %v6372
        %v6507 = vpack.c.bf16 %v6375, %v6374
        %v6508 = vpack.c.bf16 %v6377, %v6376
        %v6509 = vpack.c.bf16 %v6379, %v6378
        %v6510 = vpack.c.bf16 %v6381, %v6380
        %v6511 = vpack.c.bf16 %v6383, %v6382
        %v6512 = vpack.c.bf16 %v6385, %v6384
        %v6513 = vpack.c.bf16 %v6387, %v6386
        %v6514 = vpack.c.bf16 %v6389, %v6388
        %v6515 = vpack.c.bf16 %v6391, %v6390
        %v6516 = vpack.c.bf16 %v6393, %v6392
        %v6517 = vpack.c.bf16 %v6395, %v6394
        %v6518 = vpack.c.bf16 %v6397, %v6396
        %v6519 = vpack.c.bf16 %v6399, %v6398
        %v6520 = vpack.c.bf16 %v6401, %v6400
        %v6521 = vpack.c.bf16 %v6403, %v6402
        %v6522 = vpack.c.bf16 %v6405, %v6404
        %v6523 = vpack.c.bf16 %v6407, %v6406
        %v6524 = vpack.c.bf16 %v6409, %v6408
        %v6525 = vpack.c.bf16 %v6411, %v6410
        %v6526 = vpack.c.bf16 %v6413, %v6412
        %v6527 = vpack.c.bf16 %v6415, %v6414
        %v6528 = vpack.c.bf16 %v6417, %v6416
        %v6529 = vpack.c.bf16 %v6419, %v6418
        %v6530 = vpack.c.bf16 %v6421, %v6420
        %v6531 = vpack.c.bf16 %v6423, %v6422
        %v6532 = vpack.c.bf16 %v6425, %v6424
        %v6533 = vpack.c.bf16 %v6427, %v6426
        %v6534 = vpack.c.bf16 %v6429, %v6428
        %v6535 = vpack.c.bf16 %v6431, %v6430
        %v6536 = vpack.c.bf16 %v6433, %v6432
        %v6537 = vpack.c.bf16 %v6435, %v6434
        %v6538 = vpack.c.bf16 %v6437, %v6436
        %v6539 = vpack.c.bf16 %v6439, %v6438
        %v6540 = vpack.c.bf16 %v6441, %v6440
        %v6541 = vpack.c.bf16 %v6443, %v6442
        %v6542 = vpack.c.bf16 %v6445, %v6444
        %v6543 = vpack.c.bf16 %v6447, %v6446
        %v6544 = vpack.c.bf16 %v6449, %v6448
        %v6545 = vpack.c.bf16 %v6451, %v6450
        %v6546 = vpack.c.bf16 %v6453, %v6452
        %v6547 = vpack.c.bf16 %v6455, %v6454
        %v6548 = vpack.c.bf16 %v6457, %v6456
        %v6549 = vpack.c.bf16 %v6459, %v6458
        %v6550 = vpack.c.bf16 %v6461, %v6460
        %v6551 = vpack.c.bf16 %v6463, %v6462
        %v6552 = vpack.c.bf16 %v6465, %v6464
        %v6553 = vpack.c.bf16 %v6467, %v6466
        %v6554 = vpack.c.bf16 %v6469, %v6468
        %v6555 = vpack.c.bf16 %v6471, %v6470
        %v6556 = vpack.c.bf16 %v6473, %v6472
        %v6557 = vpack.c.bf16 %v6475, %v6474
        %v6574 = vunpack.c.l.b16 %v6477
        %v6575 = vunpack.c.l.b16 %v6478
        %v6576 = vunpack.c.l.b16 %v6479
        %v6577 = vunpack.c.l.b16 %v6480
        %v6578 = vunpack.c.l.b16 %v6481
        %v6579 = vunpack.c.l.b16 %v6482
        %v6580 = vunpack.c.l.b16 %v6483
        %v6581 = vunpack.c.l.b16 %v6484
        %v6582 = vunpack.c.l.b16 %v6485
        %v6583 = vunpack.c.l.b16 %v6486
        %v6584 = vunpack.c.l.b16 %v6487
        %v6585 = vunpack.c.l.b16 %v6488
        %v6586 = vunpack.c.l.b16 %v6489
        %v6587 = vunpack.c.l.b16 %v6490
        %v6588 = vunpack.c.l.b16 %v6491
        %v6589 = vunpack.c.l.b16 %v6492
        %v6590 = vpack.c.b16 %v6575, %v6574
        %v6591 = vpack.c.b16 %v6577, %v6576
        %v6592 = vpack.c.b16 %v6579, %v6578
        %v6593 = vpack.c.b16 %v6581, %v6580
        %v6594 = vpack.c.b16 %v6583, %v6582
        %v6595 = vpack.c.b16 %v6585, %v6584
        %v6596 = vpack.c.b16 %v6587, %v6586
        %v6597 = vpack.c.b16 %v6589, %v6588
        %6606 = vmatprep.subr.bf16.mxu0 0
        %6607 = vmatpush1.bf16.msra.mxu0 %v6597
        %6608 = vmatprep.subr.bf16.mxu0 0
        %6609 = vmatpush1.bf16.msra.mxu0 %v6596
        %6610 = vmatprep.subr.bf16.mxu0 0
        %6611 = vmatpush1.bf16.msra.mxu0 %v6595
        %6612 = vmatprep.subr.bf16.mxu0 0
        %6613 = vmatpush1.bf16.msra.mxu0 %v6594
        %6614 = vmatprep.subr.bf16.mxu0 0
        %6615 = vmatpush1.bf16.msra.mxu0 %v6593
        %6616 = vmatprep.subr.bf16.mxu0 0
        %6617 = vmatpush1.bf16.msra.mxu0 %v6592
        %6618 = vmatprep.subr.bf16.mxu0 0
        %6619 = vmatpush1.bf16.msra.mxu0 %v6591
        %6620 = vmatprep.subr.bf16.mxu0 0
        %6621 = vmatpush1.bf16.msra.mxu0 %v6590
        %6622 = vmatprep.subr.bf16.mxu0 0
        %6623 = vmatpush2.bf16.msra.mxu0 0
        %6624 = vmatprep.subr.bf16.mxu0 0
        %6625 = vmatpush2.bf16.msra.mxu0 0
        %6626 = vmatprep.subr.bf16.mxu0 0
        %6627 = vmatpush2.bf16.msra.mxu0 0
        %6628 = vmatprep.subr.bf16.mxu0 0
        %6629 = vmatpush2.bf16.msra.mxu0 0
        %6630 = vmatprep.subr.bf16.mxu0 0
        %6631 = vmatpush2.bf16.msra.mxu0 0
        %6632 = vmatprep.subr.bf16.mxu0 0
        %6633 = vmatpush2.bf16.msra.mxu0 0
        %6634 = vmatprep.subr.bf16.mxu0 0
        %6635 = vmatpush2.bf16.msra.mxu0 0
        %6636 = vmatprep.subr.bf16.mxu0 0
        %6637 = vmatpush2.bf16.msra.mxu0 0
        %6638 = vmatprep.mubr.bf16.mxu0 0
        %6639 = vmatmul.mubr.bf16.gmra.mxu0 %v6494
        %v6640 = vpop.f32.mrf.mxu0
        %v6641 = vadd.f32 0.0, %v6640
        %v6642 = vpop.f32.mrf.mxu0
        %v6643 = vpop.f32.mrf.mxu0
        %v6644 = vadd.f32 0.0, %v6643
        %v6645 = vpop.f32.mrf.mxu0
        %6646 = vmatprep.mubr.bf16.mxu0 0
        %6647 = vmatmul.mubr.bf16.gmra.mxu0 %v6495
        %v6648 = vpop.f32.mrf.mxu0
        %v6649 = vadd.f32 0.0, %v6648
        %v6650 = vpop.f32.mrf.mxu0
        %v6651 = vpop.f32.mrf.mxu0
        %v6652 = vadd.f32 0.0, %v6651
        %v6653 = vpop.f32.mrf.mxu0
        %6654 = vmatprep.mubr.bf16.mxu0 0
        %6655 = vmatmul.mubr.bf16.gmra.mxu0 %v6496
        %v6656 = vpop.f32.mrf.mxu0
        %v6657 = vadd.f32 0.0, %v6656
        %v6658 = vpop.f32.mrf.mxu0
        %v6659 = vpop.f32.mrf.mxu0
        %v6660 = vadd.f32 0.0, %v6659
        %v6661 = vpop.f32.mrf.mxu0
        %6662 = vmatprep.mubr.bf16.mxu0 0
        %6663 = vmatmul.mubr.bf16.gmra.mxu0 %v6497
        %v6664 = vpop.f32.mrf.mxu0
        %v6665 = vadd.f32 0.0, %v6664
        %v6666 = vpop.f32.mrf.mxu0
        %v6667 = vpop.f32.mrf.mxu0
        %v6668 = vadd.f32 0.0, %v6667
        %v6669 = vpop.f32.mrf.mxu0
        %6670 = vmatprep.mubr.bf16.mxu0 0
        %6671 = vmatmul.mubr.bf16.gmra.mxu0 %v6498
        %v6672 = vpop.f32.mrf.mxu0
        %v6673 = vadd.f32 0.0, %v6672
        %v6674 = vpop.f32.mrf.mxu0
        %v6675 = vpop.f32.mrf.mxu0
        %v6676 = vadd.f32 0.0, %v6675
        %v6677 = vpop.f32.mrf.mxu0
        %6678 = vmatprep.mubr.bf16.mxu0 0
        %6679 = vmatmul.mubr.bf16.gmra.mxu0 %v6499
        %v6680 = vpop.f32.mrf.mxu0
        %v6681 = vadd.f32 0.0, %v6680
        %v6682 = vpop.f32.mrf.mxu0
        %v6683 = vpop.f32.mrf.mxu0
        %v6684 = vadd.f32 0.0, %v6683
        %v6685 = vpop.f32.mrf.mxu0
        %6686 = vmatprep.mubr.bf16.mxu0 0
        %6687 = vmatmul.mubr.bf16.gmra.mxu0 %v6500
        %v6688 = vpop.f32.mrf.mxu0
        %v6689 = vadd.f32 0.0, %v6688
        %v6690 = vpop.f32.mrf.mxu0
        %v6691 = vpop.f32.mrf.mxu0
        %v6692 = vadd.f32 0.0, %v6691
        %v6693 = vpop.f32.mrf.mxu0
        %6694 = vmatprep.mubr.bf16.mxu0 0
        %6695 = vmatmul.mubr.bf16.gmra.mxu0 %v6501
        %v6696 = vpop.f32.mrf.mxu0
        %v6697 = vadd.f32 0.0, %v6696
        %v6698 = vpop.f32.mrf.mxu0
        %v6699 = vpop.f32.mrf.mxu0
        %v6700 = vadd.f32 0.0, %v6699
        %v6701 = vpop.f32.mrf.mxu0
        %6702 = vmatprep.mubr.bf16.mxu0 0
        %6703 = vmatmul.mubr.bf16.gmra.mxu0 %v6502
        %v6704 = vpop.f32.mrf.mxu0
        %v6705 = vadd.f32 0.0, %v6704
        %v6706 = vpop.f32.mrf.mxu0
        %v6707 = vpop.f32.mrf.mxu0
        %v6708 = vadd.f32 0.0, %v6707
        %v6709 = vpop.f32.mrf.mxu0
        %6710 = vmatprep.mubr.bf16.mxu0 0
        %6711 = vmatmul.mubr.bf16.gmra.mxu0 %v6503
        %v6712 = vpop.f32.mrf.mxu0
        %v6713 = vadd.f32 0.0, %v6712
        %v6714 = vpop.f32.mrf.mxu0
        %v6715 = vpop.f32.mrf.mxu0
        %v6716 = vadd.f32 0.0, %v6715
        %v6717 = vpop.f32.mrf.mxu0
        %6718 = vmatprep.mubr.bf16.mxu0 0
        %6719 = vmatmul.mubr.bf16.gmra.mxu0 %v6504
        %v6720 = vpop.f32.mrf.mxu0
        %v6721 = vadd.f32 0.0, %v6720
        %v6722 = vpop.f32.mrf.mxu0
        %v6723 = vpop.f32.mrf.mxu0
        %v6724 = vadd.f32 0.0, %v6723
        %v6725 = vpop.f32.mrf.mxu0
        %6726 = vmatprep.mubr.bf16.mxu0 0
        %6727 = vmatmul.mubr.bf16.gmra.mxu0 %v6505
        %v6728 = vpop.f32.mrf.mxu0
        %v6729 = vadd.f32 0.0, %v6728
        %v6730 = vpop.f32.mrf.mxu0
        %v6731 = vpop.f32.mrf.mxu0
        %v6732 = vadd.f32 0.0, %v6731
        %v6733 = vpop.f32.mrf.mxu0
        %6734 = vmatprep.mubr.bf16.mxu0 0
        %6735 = vmatmul.mubr.bf16.gmra.mxu0 %v6506
        %v6736 = vpop.f32.mrf.mxu0
        %v6737 = vadd.f32 0.0, %v6736
        %v6738 = vpop.f32.mrf.mxu0
        %v6739 = vpop.f32.mrf.mxu0
        %v6740 = vadd.f32 0.0, %v6739
        %v6741 = vpop.f32.mrf.mxu0
        %6742 = vmatprep.mubr.bf16.mxu0 0
        %6743 = vmatmul.mubr.bf16.gmra.mxu0 %v6507
        %v6744 = vpop.f32.mrf.mxu0
        %v6745 = vadd.f32 0.0, %v6744
        %v6746 = vpop.f32.mrf.mxu0
        %v6747 = vpop.f32.mrf.mxu0
        %v6748 = vadd.f32 0.0, %v6747
        %v6749 = vpop.f32.mrf.mxu0
        %6750 = vmatprep.mubr.bf16.mxu0 0
        %6751 = vmatmul.mubr.bf16.gmra.mxu0 %v6508
        %v6752 = vpop.f32.mrf.mxu0
        %v6753 = vadd.f32 0.0, %v6752
        %v6754 = vpop.f32.mrf.mxu0
        %v6755 = vpop.f32.mrf.mxu0
        %v6756 = vadd.f32 0.0, %v6755
        %v6757 = vpop.f32.mrf.mxu0
        %6758 = vmatprep.mubr.bf16.mxu0 0
        %6759 = vmatmul.mubr.bf16.gmra.mxu0 %v6509
        %v6760 = vpop.f32.mrf.mxu0
        %v6761 = vadd.f32 0.0, %v6760
        %v6762 = vpop.f32.mrf.mxu0
        %v6763 = vpop.f32.mrf.mxu0
        %v6764 = vadd.f32 0.0, %v6763
        %v6765 = vpop.f32.mrf.mxu0
        %6766 = vmatprep.mubr.bf16.mxu0 0
        %6767 = vmatmul.mubr.bf16.gmra.mxu0 %v6510
        %v6768 = vpop.f32.mrf.mxu0
        %v6769 = vadd.f32 0.0, %v6768
        %v6770 = vpop.f32.mrf.mxu0
        %v6771 = vpop.f32.mrf.mxu0
        %v6772 = vadd.f32 0.0, %v6771
        %v6773 = vpop.f32.mrf.mxu0
        %6774 = vmatprep.mubr.bf16.mxu0 0
        %6775 = vmatmul.mubr.bf16.gmra.mxu0 %v6511
        %v6776 = vpop.f32.mrf.mxu0
        %v6777 = vadd.f32 0.0, %v6776
        %v6778 = vpop.f32.mrf.mxu0
        %v6779 = vpop.f32.mrf.mxu0
        %v6780 = vadd.f32 0.0, %v6779
        %v6781 = vpop.f32.mrf.mxu0
        %6782 = vmatprep.mubr.bf16.mxu0 0
        %6783 = vmatmul.mubr.bf16.gmra.mxu0 %v6512
        %v6784 = vpop.f32.mrf.mxu0
        %v6785 = vadd.f32 0.0, %v6784
        %v6786 = vpop.f32.mrf.mxu0
        %v6787 = vpop.f32.mrf.mxu0
        %v6788 = vadd.f32 0.0, %v6787
        %v6789 = vpop.f32.mrf.mxu0
        %6790 = vmatprep.mubr.bf16.mxu0 0
        %6791 = vmatmul.mubr.bf16.gmra.mxu0 %v6513
        %v6792 = vpop.f32.mrf.mxu0
        %v6793 = vadd.f32 0.0, %v6792
        %v6794 = vpop.f32.mrf.mxu0
        %v6795 = vpop.f32.mrf.mxu0
        %v6796 = vadd.f32 0.0, %v6795
        %v6797 = vpop.f32.mrf.mxu0
        %6798 = vmatprep.mubr.bf16.mxu0 0
        %6799 = vmatmul.mubr.bf16.gmra.mxu0 %v6514
        %v6800 = vpop.f32.mrf.mxu0
        %v6801 = vadd.f32 0.0, %v6800
        %v6802 = vpop.f32.mrf.mxu0
        %v6803 = vpop.f32.mrf.mxu0
        %v6804 = vadd.f32 0.0, %v6803
        %v6805 = vpop.f32.mrf.mxu0
        %6806 = vmatprep.mubr.bf16.mxu0 0
        %6807 = vmatmul.mubr.bf16.gmra.mxu0 %v6515
        %v6808 = vpop.f32.mrf.mxu0
        %v6809 = vadd.f32 0.0, %v6808
        %v6810 = vpop.f32.mrf.mxu0
        %v6811 = vpop.f32.mrf.mxu0
        %v6812 = vadd.f32 0.0, %v6811
        %v6813 = vpop.f32.mrf.mxu0
        %6814 = vmatprep.mubr.bf16.mxu0 0
        %6815 = vmatmul.mubr.bf16.gmra.mxu0 %v6516
        %v6816 = vpop.f32.mrf.mxu0
        %v6817 = vadd.f32 0.0, %v6816
        %v6818 = vpop.f32.mrf.mxu0
        %v6819 = vpop.f32.mrf.mxu0
        %v6820 = vadd.f32 0.0, %v6819
        %v6821 = vpop.f32.mrf.mxu0
        %6822 = vmatprep.mubr.bf16.mxu0 0
        %6823 = vmatmul.mubr.bf16.gmra.mxu0 %v6517
        %v6824 = vpop.f32.mrf.mxu0
        %v6825 = vadd.f32 0.0, %v6824
        %v6826 = vpop.f32.mrf.mxu0
        %v6827 = vpop.f32.mrf.mxu0
        %v6828 = vadd.f32 0.0, %v6827
        %v6829 = vpop.f32.mrf.mxu0
        %6830 = vmatprep.mubr.bf16.mxu0 0
        %6831 = vmatmul.mubr.bf16.gmra.mxu0 %v6518
        %v6832 = vpop.f32.mrf.mxu0
        %v6833 = vadd.f32 0.0, %v6832
        %v6834 = vpop.f32.mrf.mxu0
        %v6835 = vpop.f32.mrf.mxu0
        %v6836 = vadd.f32 0.0, %v6835
        %v6837 = vpop.f32.mrf.mxu0
        %6838 = vmatprep.mubr.bf16.mxu0 0
        %6839 = vmatmul.mubr.bf16.gmra.mxu0 %v6519
        %v6840 = vpop.f32.mrf.mxu0
        %v6841 = vadd.f32 0.0, %v6840
        %v6842 = vpop.f32.mrf.mxu0
        %v6843 = vpop.f32.mrf.mxu0
        %v6844 = vadd.f32 0.0, %v6843
        %v6845 = vpop.f32.mrf.mxu0
        %6846 = vmatprep.mubr.bf16.mxu0 0
        %6847 = vmatmul.mubr.bf16.gmra.mxu0 %v6520
        %v6848 = vpop.f32.mrf.mxu0
        %v6849 = vadd.f32 0.0, %v6848
        %v6850 = vpop.f32.mrf.mxu0
        %v6851 = vpop.f32.mrf.mxu0
        %v6852 = vadd.f32 0.0, %v6851
        %v6853 = vpop.f32.mrf.mxu0
        %6854 = vmatprep.mubr.bf16.mxu0 0
        %6855 = vmatmul.mubr.bf16.gmra.mxu0 %v6521
        %v6856 = vpop.f32.mrf.mxu0
        %v6857 = vadd.f32 0.0, %v6856
        %v6858 = vpop.f32.mrf.mxu0
        %v6859 = vpop.f32.mrf.mxu0
        %v6860 = vadd.f32 0.0, %v6859
        %v6861 = vpop.f32.mrf.mxu0
        %6862 = vmatprep.mubr.bf16.mxu0 0
        %6863 = vmatmul.mubr.bf16.gmra.mxu0 %v6522
        %v6864 = vpop.f32.mrf.mxu0
        %v6865 = vadd.f32 0.0, %v6864
        %v6866 = vpop.f32.mrf.mxu0
        %v6867 = vpop.f32.mrf.mxu0
        %v6868 = vadd.f32 0.0, %v6867
        %v6869 = vpop.f32.mrf.mxu0
        %6870 = vmatprep.mubr.bf16.mxu0 0
        %6871 = vmatmul.mubr.bf16.gmra.mxu0 %v6523
        %v6872 = vpop.f32.mrf.mxu0
        %v6873 = vadd.f32 0.0, %v6872
        %v6874 = vpop.f32.mrf.mxu0
        %v6875 = vpop.f32.mrf.mxu0
        %v6876 = vadd.f32 0.0, %v6875
        %v6877 = vpop.f32.mrf.mxu0
        %6878 = vmatprep.mubr.bf16.mxu0 0
        %6879 = vmatmul.mubr.bf16.gmra.mxu0 %v6524
        %v6880 = vpop.f32.mrf.mxu0
        %v6881 = vadd.f32 0.0, %v6880
        %v6882 = vpop.f32.mrf.mxu0
        %v6883 = vpop.f32.mrf.mxu0
        %v6884 = vadd.f32 0.0, %v6883
        %v6885 = vpop.f32.mrf.mxu0
        %6886 = vmatprep.mubr.bf16.mxu0 0
        %6887 = vmatmul.mubr.bf16.gmra.mxu0 %v6525
        %v6888 = vpop.f32.mrf.mxu0
        %v6889 = vadd.f32 0.0, %v6888
        %v6890 = vpop.f32.mrf.mxu0
        %v6891 = vpop.f32.mrf.mxu0
        %v6892 = vadd.f32 0.0, %v6891
        %v6893 = vpop.f32.mrf.mxu0
        %6894 = vmatprep.mubr.bf16.mxu0 0
        %6895 = vmatmul.mubr.bf16.gmra.mxu0 %v6526
        %v6896 = vpop.f32.mrf.mxu0
        %v6897 = vadd.f32 0.0, %v6896
        %v6898 = vpop.f32.mrf.mxu0
        %v6899 = vpop.f32.mrf.mxu0
        %v6900 = vadd.f32 0.0, %v6899
        %v6901 = vpop.f32.mrf.mxu0
        %6902 = vmatprep.mubr.bf16.mxu0 0
        %6903 = vmatmul.mubr.bf16.gmra.mxu0 %v6527
        %v6904 = vpop.f32.mrf.mxu0
        %v6905 = vadd.f32 0.0, %v6904
        %v6906 = vpop.f32.mrf.mxu0
        %v6907 = vpop.f32.mrf.mxu0
        %v6908 = vadd.f32 0.0, %v6907
        %v6909 = vpop.f32.mrf.mxu0
        %6910 = vmatprep.mubr.bf16.mxu0 0
        %6911 = vmatmul.mubr.bf16.gmra.mxu0 %v6528
        %v6912 = vpop.f32.mrf.mxu0
        %v6913 = vadd.f32 0.0, %v6912
        %v6914 = vpop.f32.mrf.mxu0
        %v6915 = vpop.f32.mrf.mxu0
        %v6916 = vadd.f32 0.0, %v6915
        %v6917 = vpop.f32.mrf.mxu0
        %6918 = vmatprep.mubr.bf16.mxu0 0
        %6919 = vmatmul.mubr.bf16.gmra.mxu0 %v6529
        %v6920 = vpop.f32.mrf.mxu0
        %v6921 = vadd.f32 0.0, %v6920
        %v6922 = vpop.f32.mrf.mxu0
        %v6923 = vpop.f32.mrf.mxu0
        %v6924 = vadd.f32 0.0, %v6923
        %v6925 = vpop.f32.mrf.mxu0
        %6926 = vmatprep.mubr.bf16.mxu0 0
        %6927 = vmatmul.mubr.bf16.gmra.mxu0 %v6530
        %v6928 = vpop.f32.mrf.mxu0
        %v6929 = vadd.f32 0.0, %v6928
        %v6930 = vpop.f32.mrf.mxu0
        %v6931 = vpop.f32.mrf.mxu0
        %v6932 = vadd.f32 0.0, %v6931
        %v6933 = vpop.f32.mrf.mxu0
        %6934 = vmatprep.mubr.bf16.mxu0 0
        %6935 = vmatmul.mubr.bf16.gmra.mxu0 %v6531
        %v6936 = vpop.f32.mrf.mxu0
        %v6937 = vadd.f32 0.0, %v6936
        %v6938 = vpop.f32.mrf.mxu0
        %v6939 = vpop.f32.mrf.mxu0
        %v6940 = vadd.f32 0.0, %v6939
        %v6941 = vpop.f32.mrf.mxu0
        %6942 = vmatprep.mubr.bf16.mxu0 0
        %6943 = vmatmul.mubr.bf16.gmra.mxu0 %v6532
        %v6944 = vpop.f32.mrf.mxu0
        %v6945 = vadd.f32 0.0, %v6944
        %v6946 = vpop.f32.mrf.mxu0
        %v6947 = vpop.f32.mrf.mxu0
        %v6948 = vadd.f32 0.0, %v6947
        %v6949 = vpop.f32.mrf.mxu0
        %6950 = vmatprep.mubr.bf16.mxu0 0
        %6951 = vmatmul.mubr.bf16.gmra.mxu0 %v6533
        %v6952 = vpop.f32.mrf.mxu0
        %v6953 = vadd.f32 0.0, %v6952
        %v6954 = vpop.f32.mrf.mxu0
        %v6955 = vpop.f32.mrf.mxu0
        %v6956 = vadd.f32 0.0, %v6955
        %v6957 = vpop.f32.mrf.mxu0
        %6958 = vmatprep.mubr.bf16.mxu0 0
        %6959 = vmatmul.mubr.bf16.gmra.mxu0 %v6534
        %v6960 = vpop.f32.mrf.mxu0
        %v6961 = vadd.f32 0.0, %v6960
        %v6962 = vpop.f32.mrf.mxu0
        %v6963 = vpop.f32.mrf.mxu0
        %v6964 = vadd.f32 0.0, %v6963
        %v6965 = vpop.f32.mrf.mxu0
        %6966 = vmatprep.mubr.bf16.mxu0 0
        %6967 = vmatmul.mubr.bf16.gmra.mxu0 %v6535
        %v6968 = vpop.f32.mrf.mxu0
        %v6969 = vadd.f32 0.0, %v6968
        %v6970 = vpop.f32.mrf.mxu0
        %v6971 = vpop.f32.mrf.mxu0
        %v6972 = vadd.f32 0.0, %v6971
        %v6973 = vpop.f32.mrf.mxu0
        %6974 = vmatprep.mubr.bf16.mxu0 0
        %6975 = vmatmul.mubr.bf16.gmra.mxu0 %v6536
        %v6976 = vpop.f32.mrf.mxu0
        %v6977 = vadd.f32 0.0, %v6976
        %v6978 = vpop.f32.mrf.mxu0
        %v6979 = vpop.f32.mrf.mxu0
        %v6980 = vadd.f32 0.0, %v6979
        %v6981 = vpop.f32.mrf.mxu0
        %6982 = vmatprep.mubr.bf16.mxu0 0
        %6983 = vmatmul.mubr.bf16.gmra.mxu0 %v6537
        %v6984 = vpop.f32.mrf.mxu0
        %v6985 = vadd.f32 0.0, %v6984
        %v6986 = vpop.f32.mrf.mxu0
        %v6987 = vpop.f32.mrf.mxu0
        %v6988 = vadd.f32 0.0, %v6987
        %v6989 = vpop.f32.mrf.mxu0
        %6990 = vmatprep.mubr.bf16.mxu0 0
        %6991 = vmatmul.mubr.bf16.gmra.mxu0 %v6538
        %v6992 = vpop.f32.mrf.mxu0
        %v6993 = vadd.f32 0.0, %v6992
        %v6994 = vpop.f32.mrf.mxu0
        %v6995 = vpop.f32.mrf.mxu0
        %v6996 = vadd.f32 0.0, %v6995
        %v6997 = vpop.f32.mrf.mxu0
        %6998 = vmatprep.mubr.bf16.mxu0 0
        %6999 = vmatmul.mubr.bf16.gmra.mxu0 %v6539
        %v7000 = vpop.f32.mrf.mxu0
        %v7001 = vadd.f32 0.0, %v7000
        %v7002 = vpop.f32.mrf.mxu0
        %v7003 = vpop.f32.mrf.mxu0
        %v7004 = vadd.f32 0.0, %v7003
        %v7005 = vpop.f32.mrf.mxu0
        %7006 = vmatprep.mubr.bf16.mxu0 0
        %7007 = vmatmul.mubr.bf16.gmra.mxu0 %v6540
        %v7008 = vpop.f32.mrf.mxu0
        %v7009 = vadd.f32 0.0, %v7008
        %v7010 = vpop.f32.mrf.mxu0
        %v7011 = vpop.f32.mrf.mxu0
        %v7012 = vadd.f32 0.0, %v7011
        %v7013 = vpop.f32.mrf.mxu0
        %7014 = vmatprep.mubr.bf16.mxu0 0
        %7015 = vmatmul.mubr.bf16.gmra.mxu0 %v6541
        %v7016 = vpop.f32.mrf.mxu0
        %v7017 = vadd.f32 0.0, %v7016
        %v7018 = vpop.f32.mrf.mxu0
        %v7019 = vpop.f32.mrf.mxu0
        %v7020 = vadd.f32 0.0, %v7019
        %v7021 = vpop.f32.mrf.mxu0
        %7022 = vmatprep.mubr.bf16.mxu0 0
        %7023 = vmatmul.mubr.bf16.gmra.mxu0 %v6542
        %v7024 = vpop.f32.mrf.mxu0
        %v7025 = vadd.f32 0.0, %v7024
        %v7026 = vpop.f32.mrf.mxu0
        %v7027 = vpop.f32.mrf.mxu0
        %v7028 = vadd.f32 0.0, %v7027
        %v7029 = vpop.f32.mrf.mxu0
        %7030 = vmatprep.mubr.bf16.mxu0 0
        %7031 = vmatmul.mubr.bf16.gmra.mxu0 %v6543
        %v7032 = vpop.f32.mrf.mxu0
        %v7033 = vadd.f32 0.0, %v7032
        %v7034 = vpop.f32.mrf.mxu0
        %v7035 = vpop.f32.mrf.mxu0
        %v7036 = vadd.f32 0.0, %v7035
        %v7037 = vpop.f32.mrf.mxu0
        %7038 = vmatprep.mubr.bf16.mxu0 0
        %7039 = vmatmul.mubr.bf16.gmra.mxu0 %v6544
        %v7040 = vpop.f32.mrf.mxu0
        %v7041 = vadd.f32 0.0, %v7040
        %v7042 = vpop.f32.mrf.mxu0
        %v7043 = vpop.f32.mrf.mxu0
        %v7044 = vadd.f32 0.0, %v7043
        %v7045 = vpop.f32.mrf.mxu0
        %7046 = vmatprep.mubr.bf16.mxu0 0
        %7047 = vmatmul.mubr.bf16.gmra.mxu0 %v6545
        %v7048 = vpop.f32.mrf.mxu0
        %v7049 = vadd.f32 0.0, %v7048
        %v7050 = vpop.f32.mrf.mxu0
        %v7051 = vpop.f32.mrf.mxu0
        %v7052 = vadd.f32 0.0, %v7051
        %v7053 = vpop.f32.mrf.mxu0
        %7054 = vmatprep.mubr.bf16.mxu0 0
        %7055 = vmatmul.mubr.bf16.gmra.mxu0 %v6546
        %v7056 = vpop.f32.mrf.mxu0
        %v7057 = vadd.f32 0.0, %v7056
        %v7058 = vpop.f32.mrf.mxu0
        %v7059 = vpop.f32.mrf.mxu0
        %v7060 = vadd.f32 0.0, %v7059
        %v7061 = vpop.f32.mrf.mxu0
        %7062 = vmatprep.mubr.bf16.mxu0 0
        %7063 = vmatmul.mubr.bf16.gmra.mxu0 %v6547
        %v7064 = vpop.f32.mrf.mxu0
        %v7065 = vadd.f32 0.0, %v7064
        %v7066 = vpop.f32.mrf.mxu0
        %v7067 = vpop.f32.mrf.mxu0
        %v7068 = vadd.f32 0.0, %v7067
        %v7069 = vpop.f32.mrf.mxu0
        %7070 = vmatprep.mubr.bf16.mxu0 0
        %7071 = vmatmul.mubr.bf16.gmra.mxu0 %v6548
        %v7072 = vpop.f32.mrf.mxu0
        %v7073 = vadd.f32 0.0, %v7072
        %v7074 = vpop.f32.mrf.mxu0
        %v7075 = vpop.f32.mrf.mxu0
        %v7076 = vadd.f32 0.0, %v7075
        %v7077 = vpop.f32.mrf.mxu0
        %7078 = vmatprep.mubr.bf16.mxu0 0
        %7079 = vmatmul.mubr.bf16.gmra.mxu0 %v6549
        %v7080 = vpop.f32.mrf.mxu0
        %v7081 = vadd.f32 0.0, %v7080
        %v7082 = vpop.f32.mrf.mxu0
        %v7083 = vpop.f32.mrf.mxu0
        %v7084 = vadd.f32 0.0, %v7083
        %v7085 = vpop.f32.mrf.mxu0
        %7086 = vmatprep.mubr.bf16.mxu0 0
        %7087 = vmatmul.mubr.bf16.gmra.mxu0 %v6550
        %v7088 = vpop.f32.mrf.mxu0
        %v7089 = vadd.f32 0.0, %v7088
        %v7090 = vpop.f32.mrf.mxu0
        %v7091 = vpop.f32.mrf.mxu0
        %v7092 = vadd.f32 0.0, %v7091
        %v7093 = vpop.f32.mrf.mxu0
        %7094 = vmatprep.mubr.bf16.mxu0 0
        %7095 = vmatmul.mubr.bf16.gmra.mxu0 %v6551
        %v7096 = vpop.f32.mrf.mxu0
        %v7097 = vadd.f32 0.0, %v7096
        %v7098 = vpop.f32.mrf.mxu0
        %v7099 = vpop.f32.mrf.mxu0
        %v7100 = vadd.f32 0.0, %v7099
        %v7101 = vpop.f32.mrf.mxu0
        %7102 = vmatprep.mubr.bf16.mxu0 0
        %7103 = vmatmul.mubr.bf16.gmra.mxu0 %v6552
        %v7104 = vpop.f32.mrf.mxu0
        %v7105 = vadd.f32 0.0, %v7104
        %v7106 = vpop.f32.mrf.mxu0
        %v7107 = vpop.f32.mrf.mxu0
        %v7108 = vadd.f32 0.0, %v7107
        %v7109 = vpop.f32.mrf.mxu0
        %7110 = vmatprep.mubr.bf16.mxu0 0
        %7111 = vmatmul.mubr.bf16.gmra.mxu0 %v6553
        %v7112 = vpop.f32.mrf.mxu0
        %v7113 = vadd.f32 0.0, %v7112
        %v7114 = vpop.f32.mrf.mxu0
        %v7115 = vpop.f32.mrf.mxu0
        %v7116 = vadd.f32 0.0, %v7115
        %v7117 = vpop.f32.mrf.mxu0
        %7118 = vmatprep.mubr.bf16.mxu0 0
        %7119 = vmatmul.mubr.bf16.gmra.mxu0 %v6554
        %v7120 = vpop.f32.mrf.mxu0
        %v7121 = vadd.f32 0.0, %v7120
        %v7122 = vpop.f32.mrf.mxu0
        %v7123 = vpop.f32.mrf.mxu0
        %v7124 = vadd.f32 0.0, %v7123
        %v7125 = vpop.f32.mrf.mxu0
        %7126 = vmatprep.mubr.bf16.mxu0 0
        %7127 = vmatmul.mubr.bf16.gmra.mxu0 %v6555
        %v7128 = vpop.f32.mrf.mxu0
        %v7129 = vadd.f32 0.0, %v7128
        %v7130 = vpop.f32.mrf.mxu0
        %v7131 = vpop.f32.mrf.mxu0
        %v7132 = vadd.f32 0.0, %v7131
        %v7133 = vpop.f32.mrf.mxu0
        %7134 = vmatprep.mubr.bf16.mxu0 0
        %7135 = vmatmul.mubr.bf16.gmra.mxu0 %v6556
        %v7136 = vpop.f32.mrf.mxu0
        %v7137 = vadd.f32 0.0, %v7136
        %v7138 = vpop.f32.mrf.mxu0
        %v7139 = vpop.f32.mrf.mxu0
        %v7140 = vadd.f32 0.0, %v7139
        %v7141 = vpop.f32.mrf.mxu0
        %7142 = vmatprep.mubr.bf16.mxu0 0
        %7143 = vmatmul.mubr.bf16.gmra.mxu0 %v6557
        %v7144 = vpop.f32.mrf.mxu0
        %v7145 = vadd.f32 0.0, %v7144
        %v7146 = vpop.f32.mrf.mxu0
        %v7147 = vpop.f32.mrf.mxu0
        %v7148 = vadd.f32 0.0, %v7147
        %v7149 = vpop.f32.mrf.mxu0
        %7150 = vdwg.mxu0
        %v7151 = vpack.c.bf16 %v6644, %v6641
        %v7152 = vpack.c.bf16 %v6652, %v6649
        %v7153 = vpack.c.bf16 %v6660, %v6657
        %v7154 = vpack.c.bf16 %v6668, %v6665
        %v7155 = vpack.c.bf16 %v6676, %v6673
        %v7156 = vpack.c.bf16 %v6684, %v6681
        %v7157 = vpack.c.bf16 %v6692, %v6689
        %v7158 = vpack.c.bf16 %v6700, %v6697
        %v7159 = vpack.c.bf16 %v6708, %v6705
        %v7160 = vpack.c.bf16 %v6716, %v6713
        %v7161 = vpack.c.bf16 %v6724, %v6721
        %v7162 = vpack.c.bf16 %v6732, %v6729
        %v7163 = vpack.c.bf16 %v6740, %v6737
        %v7164 = vpack.c.bf16 %v6748, %v6745
        %v7165 = vpack.c.bf16 %v6756, %v6753
        %v7166 = vpack.c.bf16 %v6764, %v6761
        %v7167 = vpack.c.bf16 %v6772, %v6769
        %v7168 = vpack.c.bf16 %v6780, %v6777
        %v7169 = vpack.c.bf16 %v6788, %v6785
        %v7170 = vpack.c.bf16 %v6796, %v6793
        %v7171 = vpack.c.bf16 %v6804, %v6801
        %v7172 = vpack.c.bf16 %v6812, %v6809
        %v7173 = vpack.c.bf16 %v6820, %v6817
        %v7174 = vpack.c.bf16 %v6828, %v6825
        %v7175 = vpack.c.bf16 %v6836, %v6833
        %v7176 = vpack.c.bf16 %v6844, %v6841
        %v7177 = vpack.c.bf16 %v6852, %v6849
        %v7178 = vpack.c.bf16 %v6860, %v6857
        %v7179 = vpack.c.bf16 %v6868, %v6865
        %v7180 = vpack.c.bf16 %v6876, %v6873
        %v7181 = vpack.c.bf16 %v6884, %v6881
        %v7182 = vpack.c.bf16 %v6892, %v6889
        %v7183 = vpack.c.bf16 %v6900, %v6897
        %v7184 = vpack.c.bf16 %v6908, %v6905
        %v7185 = vpack.c.bf16 %v6916, %v6913
        %v7186 = vpack.c.bf16 %v6924, %v6921
        %v7187 = vpack.c.bf16 %v6932, %v6929
        %v7188 = vpack.c.bf16 %v6940, %v6937
        %v7189 = vpack.c.bf16 %v6948, %v6945
        %v7190 = vpack.c.bf16 %v6956, %v6953
        %v7191 = vpack.c.bf16 %v6964, %v6961
        %v7192 = vpack.c.bf16 %v6972, %v6969
        %v7193 = vpack.c.bf16 %v6980, %v6977
        %v7194 = vpack.c.bf16 %v6988, %v6985
        %v7195 = vpack.c.bf16 %v6996, %v6993
        %v7196 = vpack.c.bf16 %v7004, %v7001
        %v7197 = vpack.c.bf16 %v7012, %v7009
        %v7198 = vpack.c.bf16 %v7020, %v7017
        %v7199 = vpack.c.bf16 %v7028, %v7025
        %v7200 = vpack.c.bf16 %v7036, %v7033
        %v7201 = vpack.c.bf16 %v7044, %v7041
        %v7202 = vpack.c.bf16 %v7052, %v7049
        %v7203 = vpack.c.bf16 %v7060, %v7057
        %v7204 = vpack.c.bf16 %v7068, %v7065
        %v7205 = vpack.c.bf16 %v7076, %v7073
        %v7206 = vpack.c.bf16 %v7084, %v7081
        %v7207 = vpack.c.bf16 %v7092, %v7089
        %v7208 = vpack.c.bf16 %v7100, %v7097
        %v7209 = vpack.c.bf16 %v7108, %v7105
        %v7210 = vpack.c.bf16 %v7116, %v7113
        %v7211 = vpack.c.bf16 %v7124, %v7121
        %v7212 = vpack.c.bf16 %v7132, %v7129
        %v7213 = vpack.c.bf16 %v7140, %v7137
        %v7214 = vpack.c.bf16 %v7148, %v7145
        %7215 = vmatprep.subr.bf16.mxu0 0
        %7216 = vmatpush1.bf16.msra.mxu0 %v7158
        %7217 = vmatprep.subr.bf16.mxu0 0
        %7218 = vmatpush1.bf16.msra.mxu0 %v7157
        %7219 = vmatprep.subr.bf16.mxu0 0
        %7220 = vmatpush1.bf16.msra.mxu0 %v7156
        %7221 = vmatprep.subr.bf16.mxu0 0
        %7222 = vmatpush1.bf16.msra.mxu0 %v7155
        %7223 = vmatprep.subr.bf16.mxu0 0
        %7224 = vmatpush1.bf16.msra.mxu0 %v7154
        %7225 = vmatprep.subr.bf16.mxu0 0
        %7226 = vmatpush1.bf16.msra.mxu0 %v7153
        %7227 = vmatprep.subr.bf16.mxu0 0
        %7228 = vmatpush1.bf16.msra.mxu0 %v7152
        %7229 = vmatprep.subr.bf16.mxu0 0
        %7230 = vmatpush1.bf16.msra.mxu0 %v7151
        %7231 = vmatprep.subr.bf16.mxu0 0
        %7232 = vmatpush2.bf16.msra.mxu0 %v7166
        %7233 = vmatprep.subr.bf16.mxu0 0
        %7234 = vmatpush2.bf16.msra.mxu0 %v7165
        %7235 = vmatprep.subr.bf16.mxu0 0
        %7236 = vmatpush2.bf16.msra.mxu0 %v7164
        %7237 = vmatprep.subr.bf16.mxu0 0
        %7238 = vmatpush2.bf16.msra.mxu0 %v7163
        %7239 = vmatprep.subr.bf16.mxu0 0
        %7240 = vmatpush2.bf16.msra.mxu0 %v7162
        %7241 = vmatprep.subr.bf16.mxu0 0
        %7242 = vmatpush2.bf16.msra.mxu0 %v7161
        %7243 = vmatprep.subr.bf16.mxu0 0
        %7244 = vmatpush2.bf16.msra.mxu0 %v7160
        %7245 = vmatprep.subr.bf16.mxu0 0
        %7246 = vmatpush2.bf16.msra.mxu0 %v7159
        %7247 = vmatprep.mubr.bf16.mxu0 %v1743
        %7248 = vmatmul.mubr.bf16.gmra.mxu0 %v1742
        %v7249 = vpop.f32.mrf.mxu0
        %v7250 = vadd.f32 0.0, %v7249
        %v7251 = vpop.f32.mrf.mxu0
        %v7252 = vpop.f32.mrf.mxu0
        %v7253 = vadd.f32 0.0, %v7252
        %v7254 = vpop.f32.mrf.mxu0
        %7255 = vmatprep.mubr.bf16.mxu0 %v1745
        %7256 = vmatmul.mubr.bf16.gmra.mxu0 %v1744
        %v7257 = vpop.f32.mrf.mxu0
        %v7258 = vadd.f32 0.0, %v7257
        %v7259 = vpop.f32.mrf.mxu0
        %v7260 = vpop.f32.mrf.mxu0
        %v7261 = vadd.f32 0.0, %v7260
        %v7262 = vpop.f32.mrf.mxu0
        %7263 = vmatprep.mubr.bf16.mxu0 %v1747
        %7264 = vmatmul.mubr.bf16.gmra.mxu0 %v1746
        %v7265 = vpop.f32.mrf.mxu0
        %v7266 = vadd.f32 0.0, %v7265
        %v7267 = vpop.f32.mrf.mxu0
        %v7268 = vpop.f32.mrf.mxu0
        %v7269 = vadd.f32 0.0, %v7268
        %v7270 = vpop.f32.mrf.mxu0
        %7271 = vmatprep.mubr.bf16.mxu0 %v1749
        %7272 = vmatmul.mubr.bf16.gmra.mxu0 %v1748
        %v7273 = vpop.f32.mrf.mxu0
        %v7274 = vadd.f32 0.0, %v7273
        %v7275 = vpop.f32.mrf.mxu0
        %v7276 = vpop.f32.mrf.mxu0
        %v7277 = vadd.f32 0.0, %v7276
        %v7278 = vpop.f32.mrf.mxu0
        %7279 = vmatprep.mubr.bf16.mxu0 %v1751
        %7280 = vmatmul.mubr.bf16.gmra.mxu0 %v1750
        %v7281 = vpop.f32.mrf.mxu0
        %v7282 = vadd.f32 0.0, %v7281
        %v7283 = vpop.f32.mrf.mxu0
        %v7284 = vpop.f32.mrf.mxu0
        %v7285 = vadd.f32 0.0, %v7284
        %v7286 = vpop.f32.mrf.mxu0
        %7287 = vmatprep.mubr.bf16.mxu0 %v1753
        %7288 = vmatmul.mubr.bf16.gmra.mxu0 %v1752
        %v7289 = vpop.f32.mrf.mxu0
        %v7290 = vadd.f32 0.0, %v7289
        %v7291 = vpop.f32.mrf.mxu0
        %v7292 = vpop.f32.mrf.mxu0
        %v7293 = vadd.f32 0.0, %v7292
        %v7294 = vpop.f32.mrf.mxu0
        %7295 = vmatprep.mubr.bf16.mxu0 %v1755
        %7296 = vmatmul.mubr.bf16.gmra.mxu0 %v1754
        %v7297 = vpop.f32.mrf.mxu0
        %v7298 = vadd.f32 0.0, %v7297
        %v7299 = vpop.f32.mrf.mxu0
        %v7300 = vpop.f32.mrf.mxu0
        %v7301 = vadd.f32 0.0, %v7300
        %v7302 = vpop.f32.mrf.mxu0
        %7303 = vmatprep.mubr.bf16.mxu0 %v1757
        %7304 = vmatmul.mubr.bf16.gmra.mxu0 %v1756
        %v7305 = vpop.f32.mrf.mxu0
        %v7306 = vadd.f32 0.0, %v7305
        %v7307 = vpop.f32.mrf.mxu0
        %v7308 = vpop.f32.mrf.mxu0
        %v7309 = vadd.f32 0.0, %v7308
        %v7310 = vpop.f32.mrf.mxu0
        %7311 = vmatprep.mubr.bf16.mxu0 %v1759
        %7312 = vmatmul.mubr.bf16.gmra.mxu0 %v1758
        %v7313 = vpop.f32.mrf.mxu0
        %v7314 = vadd.f32 0.0, %v7313
        %v7315 = vpop.f32.mrf.mxu0
        %v7316 = vpop.f32.mrf.mxu0
        %v7317 = vadd.f32 0.0, %v7316
        %v7318 = vpop.f32.mrf.mxu0
        %7319 = vmatprep.mubr.bf16.mxu0 %v1761
        %7320 = vmatmul.mubr.bf16.gmra.mxu0 %v1760
        %v7321 = vpop.f32.mrf.mxu0
        %v7322 = vadd.f32 0.0, %v7321
        %v7323 = vpop.f32.mrf.mxu0
        %v7324 = vpop.f32.mrf.mxu0
        %v7325 = vadd.f32 0.0, %v7324
        %v7326 = vpop.f32.mrf.mxu0
        %7327 = vmatprep.mubr.bf16.mxu0 %v1763
        %7328 = vmatmul.mubr.bf16.gmra.mxu0 %v1762
        %v7329 = vpop.f32.mrf.mxu0
        %v7330 = vadd.f32 0.0, %v7329
        %v7331 = vpop.f32.mrf.mxu0
        %v7332 = vpop.f32.mrf.mxu0
        %v7333 = vadd.f32 0.0, %v7332
        %v7334 = vpop.f32.mrf.mxu0
        %7335 = vmatprep.mubr.bf16.mxu0 %v1765
        %7336 = vmatmul.mubr.bf16.gmra.mxu0 %v1764
        %v7337 = vpop.f32.mrf.mxu0
        %v7338 = vadd.f32 0.0, %v7337
        %v7339 = vpop.f32.mrf.mxu0
        %v7340 = vpop.f32.mrf.mxu0
        %v7341 = vadd.f32 0.0, %v7340
        %v7342 = vpop.f32.mrf.mxu0
        %7343 = vmatprep.mubr.bf16.mxu0 %v1767
        %7344 = vmatmul.mubr.bf16.gmra.mxu0 %v1766
        %v7345 = vpop.f32.mrf.mxu0
        %v7346 = vadd.f32 0.0, %v7345
        %v7347 = vpop.f32.mrf.mxu0
        %v7348 = vpop.f32.mrf.mxu0
        %v7349 = vadd.f32 0.0, %v7348
        %v7350 = vpop.f32.mrf.mxu0
        %7351 = vmatprep.mubr.bf16.mxu0 %v1769
        %7352 = vmatmul.mubr.bf16.gmra.mxu0 %v1768
        %v7353 = vpop.f32.mrf.mxu0
        %v7354 = vadd.f32 0.0, %v7353
        %v7355 = vpop.f32.mrf.mxu0
        %v7356 = vpop.f32.mrf.mxu0
        %v7357 = vadd.f32 0.0, %v7356
        %v7358 = vpop.f32.mrf.mxu0
        %7359 = vmatprep.mubr.bf16.mxu0 %v1771
        %7360 = vmatmul.mubr.bf16.gmra.mxu0 %v1770
        %v7361 = vpop.f32.mrf.mxu0
        %v7362 = vadd.f32 0.0, %v7361
        %v7363 = vpop.f32.mrf.mxu0
        %v7364 = vpop.f32.mrf.mxu0
        %v7365 = vadd.f32 0.0, %v7364
        %v7366 = vpop.f32.mrf.mxu0
        %7367 = vmatprep.mubr.bf16.mxu0 %v1773
        %7368 = vmatmul.mubr.bf16.gmra.mxu0 %v1772
        %v7369 = vpop.f32.mrf.mxu0
        %v7370 = vadd.f32 0.0, %v7369
        %v7371 = vpop.f32.mrf.mxu0
        %v7372 = vpop.f32.mrf.mxu0
        %v7373 = vadd.f32 0.0, %v7372
        %v7374 = vpop.f32.mrf.mxu0
        %7375 = vdwg.mxu0
        %7376 = vmatprep.subr.bf16.mxu0 0
        %7377 = vmatpush1.bf16.msra.mxu0 %v7174
        %7378 = vmatprep.subr.bf16.mxu0 0
        %7379 = vmatpush1.bf16.msra.mxu0 %v7173
        %7380 = vmatprep.subr.bf16.mxu0 0
        %7381 = vmatpush1.bf16.msra.mxu0 %v7172
        %7382 = vmatprep.subr.bf16.mxu0 0
        %7383 = vmatpush1.bf16.msra.mxu0 %v7171
        %7384 = vmatprep.subr.bf16.mxu0 0
        %7385 = vmatpush1.bf16.msra.mxu0 %v7170
        %7386 = vmatprep.subr.bf16.mxu0 0
        %7387 = vmatpush1.bf16.msra.mxu0 %v7169
        %7388 = vmatprep.subr.bf16.mxu0 0
        %7389 = vmatpush1.bf16.msra.mxu0 %v7168
        %7390 = vmatprep.subr.bf16.mxu0 0
        %7391 = vmatpush1.bf16.msra.mxu0 %v7167
        %7392 = vmatprep.subr.bf16.mxu0 0
        %7393 = vmatpush2.bf16.msra.mxu0 %v7182
        %7394 = vmatprep.subr.bf16.mxu0 0
        %7395 = vmatpush2.bf16.msra.mxu0 %v7181
        %7396 = vmatprep.subr.bf16.mxu0 0
        %7397 = vmatpush2.bf16.msra.mxu0 %v7180
        %7398 = vmatprep.subr.bf16.mxu0 0
        %7399 = vmatpush2.bf16.msra.mxu0 %v7179
        %7400 = vmatprep.subr.bf16.mxu0 0
        %7401 = vmatpush2.bf16.msra.mxu0 %v7178
        %7402 = vmatprep.subr.bf16.mxu0 0
        %7403 = vmatpush2.bf16.msra.mxu0 %v7177
        %7404 = vmatprep.subr.bf16.mxu0 0
        %7405 = vmatpush2.bf16.msra.mxu0 %v7176
        %7406 = vmatprep.subr.bf16.mxu0 0
        %7407 = vmatpush2.bf16.msra.mxu0 %v7175
        %7408 = vmatprep.mubr.bf16.mxu0 %v2064
        %7409 = vmatmul.mubr.bf16.gmra.mxu0 %v2063
        %v7410 = vpop.f32.mrf.mxu0
        %v7411 = vadd.f32 0.0, %v7410
        %v7412 = vpop.f32.mrf.mxu0
        %v7413 = vpop.f32.mrf.mxu0
        %v7414 = vadd.f32 0.0, %v7413
        %v7415 = vpop.f32.mrf.mxu0
        %7416 = vmatprep.mubr.bf16.mxu0 %v2066
        %7417 = vmatmul.mubr.bf16.gmra.mxu0 %v2065
        %v7418 = vpop.f32.mrf.mxu0
        %v7419 = vadd.f32 0.0, %v7418
        %v7420 = vpop.f32.mrf.mxu0
        %v7421 = vpop.f32.mrf.mxu0
        %v7422 = vadd.f32 0.0, %v7421
        %v7423 = vpop.f32.mrf.mxu0
        %7424 = vmatprep.mubr.bf16.mxu0 %v2068
        %7425 = vmatmul.mubr.bf16.gmra.mxu0 %v2067
        %v7426 = vpop.f32.mrf.mxu0
        %v7427 = vadd.f32 0.0, %v7426
        %v7428 = vpop.f32.mrf.mxu0
        %v7429 = vpop.f32.mrf.mxu0
        %v7430 = vadd.f32 0.0, %v7429
        %v7431 = vpop.f32.mrf.mxu0
        %7432 = vmatprep.mubr.bf16.mxu0 %v2070
        %7433 = vmatmul.mubr.bf16.gmra.mxu0 %v2069
        %v7434 = vpop.f32.mrf.mxu0
        %v7435 = vadd.f32 0.0, %v7434
        %v7436 = vpop.f32.mrf.mxu0
        %v7437 = vpop.f32.mrf.mxu0
        %v7438 = vadd.f32 0.0, %v7437
        %v7439 = vpop.f32.mrf.mxu0
        %7440 = vmatprep.mubr.bf16.mxu0 %v2072
        %7441 = vmatmul.mubr.bf16.gmra.mxu0 %v2071
        %v7442 = vpop.f32.mrf.mxu0
        %v7443 = vadd.f32 0.0, %v7442
        %v7444 = vpop.f32.mrf.mxu0
        %v7445 = vpop.f32.mrf.mxu0
        %v7446 = vadd.f32 0.0, %v7445
        %v7447 = vpop.f32.mrf.mxu0
        %7448 = vmatprep.mubr.bf16.mxu0 %v2074
        %7449 = vmatmul.mubr.bf16.gmra.mxu0 %v2073
        %v7450 = vpop.f32.mrf.mxu0
        %v7451 = vadd.f32 0.0, %v7450
        %v7452 = vpop.f32.mrf.mxu0
        %v7453 = vpop.f32.mrf.mxu0
        %v7454 = vadd.f32 0.0, %v7453
        %v7455 = vpop.f32.mrf.mxu0
        %7456 = vmatprep.mubr.bf16.mxu0 %v2076
        %7457 = vmatmul.mubr.bf16.gmra.mxu0 %v2075
        %v7458 = vpop.f32.mrf.mxu0
        %v7459 = vadd.f32 0.0, %v7458
        %v7460 = vpop.f32.mrf.mxu0
        %v7461 = vpop.f32.mrf.mxu0
        %v7462 = vadd.f32 0.0, %v7461
        %v7463 = vpop.f32.mrf.mxu0
        %7464 = vmatprep.mubr.bf16.mxu0 %v2078
        %7465 = vmatmul.mubr.bf16.gmra.mxu0 %v2077
        %v7466 = vpop.f32.mrf.mxu0
        %v7467 = vadd.f32 0.0, %v7466
        %v7468 = vpop.f32.mrf.mxu0
        %v7469 = vpop.f32.mrf.mxu0
        %v7470 = vadd.f32 0.0, %v7469
        %v7471 = vpop.f32.mrf.mxu0
        %7472 = vmatprep.mubr.bf16.mxu0 %v2080
        %7473 = vmatmul.mubr.bf16.gmra.mxu0 %v2079
        %v7474 = vpop.f32.mrf.mxu0
        %v7475 = vadd.f32 0.0, %v7474
        %v7476 = vpop.f32.mrf.mxu0
        %v7477 = vpop.f32.mrf.mxu0
        %v7478 = vadd.f32 0.0, %v7477
        %v7479 = vpop.f32.mrf.mxu0
        %7480 = vmatprep.mubr.bf16.mxu0 %v2082
        %7481 = vmatmul.mubr.bf16.gmra.mxu0 %v2081
        %v7482 = vpop.f32.mrf.mxu0
        %v7483 = vadd.f32 0.0, %v7482
        %v7484 = vpop.f32.mrf.mxu0
        %v7485 = vpop.f32.mrf.mxu0
        %v7486 = vadd.f32 0.0, %v7485
        %v7487 = vpop.f32.mrf.mxu0
        %7488 = vmatprep.mubr.bf16.mxu0 %v2084
        %7489 = vmatmul.mubr.bf16.gmra.mxu0 %v2083
        %v7490 = vpop.f32.mrf.mxu0
        %v7491 = vadd.f32 0.0, %v7490
        %v7492 = vpop.f32.mrf.mxu0
        %v7493 = vpop.f32.mrf.mxu0
        %v7494 = vadd.f32 0.0, %v7493
        %v7495 = vpop.f32.mrf.mxu0
        %7496 = vmatprep.mubr.bf16.mxu0 %v2086
        %7497 = vmatmul.mubr.bf16.gmra.mxu0 %v2085
        %v7498 = vpop.f32.mrf.mxu0
        %v7499 = vadd.f32 0.0, %v7498
        %v7500 = vpop.f32.mrf.mxu0
        %v7501 = vpop.f32.mrf.mxu0
        %v7502 = vadd.f32 0.0, %v7501
        %v7503 = vpop.f32.mrf.mxu0
        %7504 = vmatprep.mubr.bf16.mxu0 %v2088
        %7505 = vmatmul.mubr.bf16.gmra.mxu0 %v2087
        %v7506 = vpop.f32.mrf.mxu0
        %v7507 = vadd.f32 0.0, %v7506
        %v7508 = vpop.f32.mrf.mxu0
        %v7509 = vpop.f32.mrf.mxu0
        %v7510 = vadd.f32 0.0, %v7509
        %v7511 = vpop.f32.mrf.mxu0
        %7512 = vmatprep.mubr.bf16.mxu0 %v2090
        %7513 = vmatmul.mubr.bf16.gmra.mxu0 %v2089
        %v7514 = vpop.f32.mrf.mxu0
        %v7515 = vadd.f32 0.0, %v7514
        %v7516 = vpop.f32.mrf.mxu0
        %v7517 = vpop.f32.mrf.mxu0
        %v7518 = vadd.f32 0.0, %v7517
        %v7519 = vpop.f32.mrf.mxu0
        %7520 = vmatprep.mubr.bf16.mxu0 %v2092
        %7521 = vmatmul.mubr.bf16.gmra.mxu0 %v2091
        %v7522 = vpop.f32.mrf.mxu0
        %v7523 = vadd.f32 0.0, %v7522
        %v7524 = vpop.f32.mrf.mxu0
        %v7525 = vpop.f32.mrf.mxu0
        %v7526 = vadd.f32 0.0, %v7525
        %v7527 = vpop.f32.mrf.mxu0
        %7528 = vmatprep.mubr.bf16.mxu0 %v2094
        %7529 = vmatmul.mubr.bf16.gmra.mxu0 %v2093
        %v7530 = vpop.f32.mrf.mxu0
        %v7531 = vadd.f32 0.0, %v7530
        %v7532 = vpop.f32.mrf.mxu0
        %v7533 = vpop.f32.mrf.mxu0
        %v7534 = vadd.f32 0.0, %v7533
        %v7535 = vpop.f32.mrf.mxu0
        %7536 = vdwg.mxu0
        %7537 = vmatprep.subr.bf16.mxu0 0
        %7538 = vmatpush1.bf16.msra.mxu0 %v7190
        %7539 = vmatprep.subr.bf16.mxu0 0
        %7540 = vmatpush1.bf16.msra.mxu0 %v7189
        %7541 = vmatprep.subr.bf16.mxu0 0
        %7542 = vmatpush1.bf16.msra.mxu0 %v7188
        %7543 = vmatprep.subr.bf16.mxu0 0
        %7544 = vmatpush1.bf16.msra.mxu0 %v7187
        %7545 = vmatprep.subr.bf16.mxu0 0
        %7546 = vmatpush1.bf16.msra.mxu0 %v7186
        %7547 = vmatprep.subr.bf16.mxu0 0
        %7548 = vmatpush1.bf16.msra.mxu0 %v7185
        %7549 = vmatprep.subr.bf16.mxu0 0
        %7550 = vmatpush1.bf16.msra.mxu0 %v7184
        %7551 = vmatprep.subr.bf16.mxu0 0
        %7552 = vmatpush1.bf16.msra.mxu0 %v7183
        %7553 = vmatprep.subr.bf16.mxu0 0
        %7554 = vmatpush2.bf16.msra.mxu0 %v7198
        %7555 = vmatprep.subr.bf16.mxu0 0
        %7556 = vmatpush2.bf16.msra.mxu0 %v7197
        %7557 = vmatprep.subr.bf16.mxu0 0
        %7558 = vmatpush2.bf16.msra.mxu0 %v7196
        %7559 = vmatprep.subr.bf16.mxu0 0
        %7560 = vmatpush2.bf16.msra.mxu0 %v7195
        %7561 = vmatprep.subr.bf16.mxu0 0
        %7562 = vmatpush2.bf16.msra.mxu0 %v7194
        %7563 = vmatprep.subr.bf16.mxu0 0
        %7564 = vmatpush2.bf16.msra.mxu0 %v7193
        %7565 = vmatprep.subr.bf16.mxu0 0
        %7566 = vmatpush2.bf16.msra.mxu0 %v7192
        %7567 = vmatprep.subr.bf16.mxu0 0
        %7568 = vmatpush2.bf16.msra.mxu0 %v7191
        %7569 = vmatprep.mubr.bf16.mxu0 %v2385
        %7570 = vmatmul.mubr.bf16.gmra.mxu0 %v2384
        %v7571 = vpop.f32.mrf.mxu0
        %v7572 = vadd.f32 0.0, %v7571
        %v7573 = vpop.f32.mrf.mxu0
        %v7574 = vpop.f32.mrf.mxu0
        %v7575 = vadd.f32 0.0, %v7574
        %v7576 = vpop.f32.mrf.mxu0
        %7577 = vmatprep.mubr.bf16.mxu0 %v2387
        %7578 = vmatmul.mubr.bf16.gmra.mxu0 %v2386
        %v7579 = vpop.f32.mrf.mxu0
        %v7580 = vadd.f32 0.0, %v7579
        %v7581 = vpop.f32.mrf.mxu0
        %v7582 = vpop.f32.mrf.mxu0
        %v7583 = vadd.f32 0.0, %v7582
        %v7584 = vpop.f32.mrf.mxu0
        %7585 = vmatprep.mubr.bf16.mxu0 %v2389
        %7586 = vmatmul.mubr.bf16.gmra.mxu0 %v2388
        %v7587 = vpop.f32.mrf.mxu0
        %v7588 = vadd.f32 0.0, %v7587
        %v7589 = vpop.f32.mrf.mxu0
        %v7590 = vpop.f32.mrf.mxu0
        %v7591 = vadd.f32 0.0, %v7590
        %v7592 = vpop.f32.mrf.mxu0
        %7593 = vmatprep.mubr.bf16.mxu0 %v2391
        %7594 = vmatmul.mubr.bf16.gmra.mxu0 %v2390
        %v7595 = vpop.f32.mrf.mxu0
        %v7596 = vadd.f32 0.0, %v7595
        %v7597 = vpop.f32.mrf.mxu0
        %v7598 = vpop.f32.mrf.mxu0
        %v7599 = vadd.f32 0.0, %v7598
        %v7600 = vpop.f32.mrf.mxu0
        %7601 = vmatprep.mubr.bf16.mxu0 %v2393
        %7602 = vmatmul.mubr.bf16.gmra.mxu0 %v2392
        %v7603 = vpop.f32.mrf.mxu0
        %v7604 = vadd.f32 0.0, %v7603
        %v7605 = vpop.f32.mrf.mxu0
        %v7606 = vpop.f32.mrf.mxu0
        %v7607 = vadd.f32 0.0, %v7606
        %v7608 = vpop.f32.mrf.mxu0
        %7609 = vmatprep.mubr.bf16.mxu0 %v2395
        %7610 = vmatmul.mubr.bf16.gmra.mxu0 %v2394
        %v7611 = vpop.f32.mrf.mxu0
        %v7612 = vadd.f32 0.0, %v7611
        %v7613 = vpop.f32.mrf.mxu0
        %v7614 = vpop.f32.mrf.mxu0
        %v7615 = vadd.f32 0.0, %v7614
        %v7616 = vpop.f32.mrf.mxu0
        %7617 = vmatprep.mubr.bf16.mxu0 %v2397
        %7618 = vmatmul.mubr.bf16.gmra.mxu0 %v2396
        %v7619 = vpop.f32.mrf.mxu0
        %v7620 = vadd.f32 0.0, %v7619
        %v7621 = vpop.f32.mrf.mxu0
        %v7622 = vpop.f32.mrf.mxu0
        %v7623 = vadd.f32 0.0, %v7622
        %v7624 = vpop.f32.mrf.mxu0
        %7625 = vmatprep.mubr.bf16.mxu0 %v2399
        %7626 = vmatmul.mubr.bf16.gmra.mxu0 %v2398
        %v7627 = vpop.f32.mrf.mxu0
        %v7628 = vadd.f32 0.0, %v7627
        %v7629 = vpop.f32.mrf.mxu0
        %v7630 = vpop.f32.mrf.mxu0
        %v7631 = vadd.f32 0.0, %v7630
        %v7632 = vpop.f32.mrf.mxu0
        %7633 = vmatprep.mubr.bf16.mxu0 %v2401
        %7634 = vmatmul.mubr.bf16.gmra.mxu0 %v2400
        %v7635 = vpop.f32.mrf.mxu0
        %v7636 = vadd.f32 0.0, %v7635
        %v7637 = vpop.f32.mrf.mxu0
        %v7638 = vpop.f32.mrf.mxu0
        %v7639 = vadd.f32 0.0, %v7638
        %v7640 = vpop.f32.mrf.mxu0
        %7641 = vmatprep.mubr.bf16.mxu0 %v2403
        %7642 = vmatmul.mubr.bf16.gmra.mxu0 %v2402
        %v7643 = vpop.f32.mrf.mxu0
        %v7644 = vadd.f32 0.0, %v7643
        %v7645 = vpop.f32.mrf.mxu0
        %v7646 = vpop.f32.mrf.mxu0
        %v7647 = vadd.f32 0.0, %v7646
        %v7648 = vpop.f32.mrf.mxu0
        %7649 = vmatprep.mubr.bf16.mxu0 %v2405
        %7650 = vmatmul.mubr.bf16.gmra.mxu0 %v2404
        %v7651 = vpop.f32.mrf.mxu0
        %v7652 = vadd.f32 0.0, %v7651
        %v7653 = vpop.f32.mrf.mxu0
        %v7654 = vpop.f32.mrf.mxu0
        %v7655 = vadd.f32 0.0, %v7654
        %v7656 = vpop.f32.mrf.mxu0
        %7657 = vmatprep.mubr.bf16.mxu0 %v2407
        %7658 = vmatmul.mubr.bf16.gmra.mxu0 %v2406
        %v7659 = vpop.f32.mrf.mxu0
        %v7660 = vadd.f32 0.0, %v7659
        %v7661 = vpop.f32.mrf.mxu0
        %v7662 = vpop.f32.mrf.mxu0
        %v7663 = vadd.f32 0.0, %v7662
        %v7664 = vpop.f32.mrf.mxu0
        %7665 = vmatprep.mubr.bf16.mxu0 %v2409
        %7666 = vmatmul.mubr.bf16.gmra.mxu0 %v2408
        %v7667 = vpop.f32.mrf.mxu0
        %v7668 = vadd.f32 0.0, %v7667
        %v7669 = vpop.f32.mrf.mxu0
        %v7670 = vpop.f32.mrf.mxu0
        %v7671 = vadd.f32 0.0, %v7670
        %v7672 = vpop.f32.mrf.mxu0
        %7673 = vmatprep.mubr.bf16.mxu0 %v2411
        %7674 = vmatmul.mubr.bf16.gmra.mxu0 %v2410
        %v7675 = vpop.f32.mrf.mxu0
        %v7676 = vadd.f32 0.0, %v7675
        %v7677 = vpop.f32.mrf.mxu0
        %v7678 = vpop.f32.mrf.mxu0
        %v7679 = vadd.f32 0.0, %v7678
        %v7680 = vpop.f32.mrf.mxu0
        %7681 = vmatprep.mubr.bf16.mxu0 %v2413
        %7682 = vmatmul.mubr.bf16.gmra.mxu0 %v2412
        %v7683 = vpop.f32.mrf.mxu0
        %v7684 = vadd.f32 0.0, %v7683
        %v7685 = vpop.f32.mrf.mxu0
        %v7686 = vpop.f32.mrf.mxu0
        %v7687 = vadd.f32 0.0, %v7686
        %v7688 = vpop.f32.mrf.mxu0
        %7689 = vmatprep.mubr.bf16.mxu0 %v2415
        %7690 = vmatmul.mubr.bf16.gmra.mxu0 %v2414
        %v7691 = vpop.f32.mrf.mxu0
        %v7692 = vadd.f32 0.0, %v7691
        %v7693 = vpop.f32.mrf.mxu0
        %v7694 = vpop.f32.mrf.mxu0
        %v7695 = vadd.f32 0.0, %v7694
        %v7696 = vpop.f32.mrf.mxu0
        %7697 = vdwg.mxu0
        %7698 = vmatprep.subr.bf16.mxu0 0
        %7699 = vmatpush1.bf16.msra.mxu0 %v7206
        %7700 = vmatprep.subr.bf16.mxu0 0
        %7701 = vmatpush1.bf16.msra.mxu0 %v7205
        %7702 = vmatprep.subr.bf16.mxu0 0
        %7703 = vmatpush1.bf16.msra.mxu0 %v7204
        %7704 = vmatprep.subr.bf16.mxu0 0
        %7705 = vmatpush1.bf16.msra.mxu0 %v7203
        %7706 = vmatprep.subr.bf16.mxu0 0
        %7707 = vmatpush1.bf16.msra.mxu0 %v7202
        %7708 = vmatprep.subr.bf16.mxu0 0
        %7709 = vmatpush1.bf16.msra.mxu0 %v7201
        %7710 = vmatprep.subr.bf16.mxu0 0
        %7711 = vmatpush1.bf16.msra.mxu0 %v7200
        %7712 = vmatprep.subr.bf16.mxu0 0
        %7713 = vmatpush1.bf16.msra.mxu0 %v7199
        %7714 = vmatprep.subr.bf16.mxu0 0
        %7715 = vmatpush2.bf16.msra.mxu0 %v7214
        %7716 = vmatprep.subr.bf16.mxu0 0
        %7717 = vmatpush2.bf16.msra.mxu0 %v7213
        %7718 = vmatprep.subr.bf16.mxu0 0
        %7719 = vmatpush2.bf16.msra.mxu0 %v7212
        %7720 = vmatprep.subr.bf16.mxu0 0
        %7721 = vmatpush2.bf16.msra.mxu0 %v7211
        %7722 = vmatprep.subr.bf16.mxu0 0
        %7723 = vmatpush2.bf16.msra.mxu0 %v7210
        %7724 = vmatprep.subr.bf16.mxu0 0
        %7725 = vmatpush2.bf16.msra.mxu0 %v7209
        %7726 = vmatprep.subr.bf16.mxu0 0
        %7727 = vmatpush2.bf16.msra.mxu0 %v7208
        %7728 = vmatprep.subr.bf16.mxu0 0
        %7729 = vmatpush2.bf16.msra.mxu0 %v7207
        %7730 = vmatprep.mubr.bf16.mxu0 %v2706
        %7731 = vmatmul.mubr.bf16.gmra.mxu0 %v2705
        %v7732 = vpop.f32.mrf.mxu0
        %v7733 = vadd.f32 0.0, %v7732
        %v7734 = vpop.f32.mrf.mxu0
        %v7735 = vpop.f32.mrf.mxu0
        %v7736 = vadd.f32 0.0, %v7735
        %v7737 = vpop.f32.mrf.mxu0
        %7738 = vmatprep.mubr.bf16.mxu0 %v2708
        %7739 = vmatmul.mubr.bf16.gmra.mxu0 %v2707
        %v7740 = vpop.f32.mrf.mxu0
        %v7741 = vadd.f32 0.0, %v7740
        %v7742 = vpop.f32.mrf.mxu0
        %v7743 = vpop.f32.mrf.mxu0
        %v7744 = vadd.f32 0.0, %v7743
        %v7745 = vpop.f32.mrf.mxu0
        %7746 = vmatprep.mubr.bf16.mxu0 %v2710
        %7747 = vmatmul.mubr.bf16.gmra.mxu0 %v2709
        %v7748 = vpop.f32.mrf.mxu0
        %v7749 = vadd.f32 0.0, %v7748
        %v7750 = vpop.f32.mrf.mxu0
        %v7751 = vpop.f32.mrf.mxu0
        %v7752 = vadd.f32 0.0, %v7751
        %v7753 = vpop.f32.mrf.mxu0
        %7754 = vmatprep.mubr.bf16.mxu0 %v2712
        %7755 = vmatmul.mubr.bf16.gmra.mxu0 %v2711
        %v7756 = vpop.f32.mrf.mxu0
        %v7757 = vadd.f32 0.0, %v7756
        %v7758 = vpop.f32.mrf.mxu0
        %v7759 = vpop.f32.mrf.mxu0
        %v7760 = vadd.f32 0.0, %v7759
        %v7761 = vpop.f32.mrf.mxu0
        %7762 = vmatprep.mubr.bf16.mxu0 %v2714
        %7763 = vmatmul.mubr.bf16.gmra.mxu0 %v2713
        %v7764 = vpop.f32.mrf.mxu0
        %v7765 = vadd.f32 0.0, %v7764
        %v7766 = vpop.f32.mrf.mxu0
        %v7767 = vpop.f32.mrf.mxu0
        %v7768 = vadd.f32 0.0, %v7767
        %v7769 = vpop.f32.mrf.mxu0
        %7770 = vmatprep.mubr.bf16.mxu0 %v2716
        %7771 = vmatmul.mubr.bf16.gmra.mxu0 %v2715
        %v7772 = vpop.f32.mrf.mxu0
        %v7773 = vadd.f32 0.0, %v7772
        %v7774 = vpop.f32.mrf.mxu0
        %v7775 = vpop.f32.mrf.mxu0
        %v7776 = vadd.f32 0.0, %v7775
        %v7777 = vpop.f32.mrf.mxu0
        %7778 = vmatprep.mubr.bf16.mxu0 %v2718
        %7779 = vmatmul.mubr.bf16.gmra.mxu0 %v2717
        %v7780 = vpop.f32.mrf.mxu0
        %v7781 = vadd.f32 0.0, %v7780
        %v7782 = vpop.f32.mrf.mxu0
        %v7783 = vpop.f32.mrf.mxu0
        %v7784 = vadd.f32 0.0, %v7783
        %v7785 = vpop.f32.mrf.mxu0
        %7786 = vmatprep.mubr.bf16.mxu0 %v2720
        %7787 = vmatmul.mubr.bf16.gmra.mxu0 %v2719
        %v7788 = vpop.f32.mrf.mxu0
        %v7789 = vadd.f32 0.0, %v7788
        %v7790 = vpop.f32.mrf.mxu0
        %v7791 = vpop.f32.mrf.mxu0
        %v7792 = vadd.f32 0.0, %v7791
        %v7793 = vpop.f32.mrf.mxu0
        %7794 = vmatprep.mubr.bf16.mxu0 %v2722
        %7795 = vmatmul.mubr.bf16.gmra.mxu0 %v2721
        %v7796 = vpop.f32.mrf.mxu0
        %v7797 = vadd.f32 0.0, %v7796
        %v7798 = vpop.f32.mrf.mxu0
        %v7799 = vpop.f32.mrf.mxu0
        %v7800 = vadd.f32 0.0, %v7799
        %v7801 = vpop.f32.mrf.mxu0
        %7802 = vmatprep.mubr.bf16.mxu0 %v2724
        %7803 = vmatmul.mubr.bf16.gmra.mxu0 %v2723
        %v7804 = vpop.f32.mrf.mxu0
        %v7805 = vadd.f32 0.0, %v7804
        %v7806 = vpop.f32.mrf.mxu0
        %v7807 = vpop.f32.mrf.mxu0
        %v7808 = vadd.f32 0.0, %v7807
        %v7809 = vpop.f32.mrf.mxu0
        %7810 = vmatprep.mubr.bf16.mxu0 %v2726
        %7811 = vmatmul.mubr.bf16.gmra.mxu0 %v2725
        %v7812 = vpop.f32.mrf.mxu0
        %v7813 = vadd.f32 0.0, %v7812
        %v7814 = vpop.f32.mrf.mxu0
        %v7815 = vpop.f32.mrf.mxu0
        %v7816 = vadd.f32 0.0, %v7815
        %v7817 = vpop.f32.mrf.mxu0
        %7818 = vmatprep.mubr.bf16.mxu0 %v2728
        %7819 = vmatmul.mubr.bf16.gmra.mxu0 %v2727
        %v7820 = vpop.f32.mrf.mxu0
        %v7821 = vadd.f32 0.0, %v7820
        %v7822 = vpop.f32.mrf.mxu0
        %v7823 = vpop.f32.mrf.mxu0
        %v7824 = vadd.f32 0.0, %v7823
        %v7825 = vpop.f32.mrf.mxu0
        %7826 = vmatprep.mubr.bf16.mxu0 %v2730
        %7827 = vmatmul.mubr.bf16.gmra.mxu0 %v2729
        %v7828 = vpop.f32.mrf.mxu0
        %v7829 = vadd.f32 0.0, %v7828
        %v7830 = vpop.f32.mrf.mxu0
        %v7831 = vpop.f32.mrf.mxu0
        %v7832 = vadd.f32 0.0, %v7831
        %v7833 = vpop.f32.mrf.mxu0
        %7834 = vmatprep.mubr.bf16.mxu0 %v2732
        %7835 = vmatmul.mubr.bf16.gmra.mxu0 %v2731
        %v7836 = vpop.f32.mrf.mxu0
        %v7837 = vadd.f32 0.0, %v7836
        %v7838 = vpop.f32.mrf.mxu0
        %v7839 = vpop.f32.mrf.mxu0
        %v7840 = vadd.f32 0.0, %v7839
        %v7841 = vpop.f32.mrf.mxu0
        %7842 = vmatprep.mubr.bf16.mxu0 %v2734
        %7843 = vmatmul.mubr.bf16.gmra.mxu0 %v2733
        %v7844 = vpop.f32.mrf.mxu0
        %v7845 = vadd.f32 0.0, %v7844
        %v7846 = vpop.f32.mrf.mxu0
        %v7847 = vpop.f32.mrf.mxu0
        %v7848 = vadd.f32 0.0, %v7847
        %v7849 = vpop.f32.mrf.mxu0
        %7850 = vmatprep.mubr.bf16.mxu0 %v2736
        %7851 = vmatmul.mubr.bf16.gmra.mxu0 %v2735
        %v7852 = vpop.f32.mrf.mxu0
        %v7853 = vadd.f32 0.0, %v7852
        %v7854 = vpop.f32.mrf.mxu0
        %v7855 = vpop.f32.mrf.mxu0
        %v7856 = vadd.f32 0.0, %v7855
        %v7857 = vpop.f32.mrf.mxu0
        %7858 = vdwg.mxu0
        %v7859 = vlaneseq
        %v7860 = vshrl.u32 %v7859, 7
        %v7861 = vsub.s32 0, %v7860
        %v7862 = vrot.slane %v6493, %v7861
        %v7863 = vadd.f32 %v7250, %v7862
        %v7864 = vadd.f32 %v7253, %v7862
        %v7865 = vadd.f32 %v7258, %v7862
        %v7866 = vadd.f32 %v7261, %v7862
        %v7867 = vadd.f32 %v7266, %v7862
        %v7868 = vadd.f32 %v7269, %v7862
        %v7869 = vadd.f32 %v7274, %v7862
        %v7870 = vadd.f32 %v7277, %v7862
        %v7871 = vadd.f32 %v7282, %v7862
        %v7872 = vadd.f32 %v7285, %v7862
        %v7873 = vadd.f32 %v7290, %v7862
        %v7874 = vadd.f32 %v7293, %v7862
        %v7875 = vadd.f32 %v7298, %v7862
        %v7876 = vadd.f32 %v7301, %v7862
        %v7877 = vadd.f32 %v7306, %v7862
        %v7878 = vadd.f32 %v7309, %v7862
        %v7879 = vadd.f32 %v7314, %v7862
        %v7880 = vadd.f32 %v7317, %v7862
        %v7881 = vadd.f32 %v7322, %v7862
        %v7882 = vadd.f32 %v7325, %v7862
        %v7883 = vadd.f32 %v7330, %v7862
        %v7884 = vadd.f32 %v7333, %v7862
        %v7885 = vadd.f32 %v7338, %v7862
        %v7886 = vadd.f32 %v7341, %v7862
        %v7887 = vadd.f32 %v7346, %v7862
        %v7888 = vadd.f32 %v7349, %v7862
        %v7889 = vadd.f32 %v7354, %v7862
        %v7890 = vadd.f32 %v7357, %v7862
        %v7891 = vadd.f32 %v7362, %v7862
        %v7892 = vadd.f32 %v7365, %v7862
        %v7893 = vadd.f32 %v7370, %v7862
        %v7894 = vadd.f32 %v7373, %v7862
        %v7895 = vadd.f32 %v7411, %v7862
        %v7896 = vadd.f32 %v7414, %v7862
        %v7897 = vadd.f32 %v7419, %v7862
        %v7898 = vadd.f32 %v7422, %v7862
        %v7899 = vadd.f32 %v7427, %v7862
        %v7900 = vadd.f32 %v7430, %v7862
        %v7901 = vadd.f32 %v7435, %v7862
        %v7902 = vadd.f32 %v7438, %v7862
        %v7903 = vadd.f32 %v7443, %v7862
        %v7904 = vadd.f32 %v7446, %v7862
        %v7905 = vadd.f32 %v7451, %v7862
        %v7906 = vadd.f32 %v7454, %v7862
        %v7907 = vadd.f32 %v7459, %v7862
        %v7908 = vadd.f32 %v7462, %v7862
        %v7909 = vadd.f32 %v7467, %v7862
        %v7910 = vadd.f32 %v7470, %v7862
        %v7911 = vadd.f32 %v7475, %v7862
        %v7912 = vadd.f32 %v7478, %v7862
        %v7913 = vadd.f32 %v7483, %v7862
        %v7914 = vadd.f32 %v7486, %v7862
        %v7915 = vadd.f32 %v7491, %v7862
        %v7916 = vadd.f32 %v7494, %v7862
        %v7917 = vadd.f32 %v7499, %v7862
        %v7918 = vadd.f32 %v7502, %v7862
        %v7919 = vadd.f32 %v7507, %v7862
        %v7920 = vadd.f32 %v7510, %v7862
        %v7921 = vadd.f32 %v7515, %v7862
        %v7922 = vadd.f32 %v7518, %v7862
        %v7923 = vadd.f32 %v7523, %v7862
        %v7924 = vadd.f32 %v7526, %v7862
        %v7925 = vadd.f32 %v7531, %v7862
        %v7926 = vadd.f32 %v7534, %v7862
        %v7927 = vadd.f32 %v7572, %v7862
        %v7928 = vadd.f32 %v7575, %v7862
        %v7929 = vadd.f32 %v7580, %v7862
        %v7930 = vadd.f32 %v7583, %v7862
        %v7931 = vadd.f32 %v7588, %v7862
        %v7932 = vadd.f32 %v7591, %v7862
        %v7933 = vadd.f32 %v7596, %v7862
        %v7934 = vadd.f32 %v7599, %v7862
        %v7935 = vadd.f32 %v7604, %v7862
        %v7936 = vadd.f32 %v7607, %v7862
        %v7937 = vadd.f32 %v7612, %v7862
        %v7938 = vadd.f32 %v7615, %v7862
        %v7939 = vadd.f32 %v7620, %v7862
        %v7940 = vadd.f32 %v7623, %v7862
        %v7941 = vadd.f32 %v7628, %v7862
        %v7942 = vadd.f32 %v7631, %v7862
        %v7943 = vadd.f32 %v7636, %v7862
        %v7944 = vadd.f32 %v7639, %v7862
        %v7945 = vadd.f32 %v7644, %v7862
        %v7946 = vadd.f32 %v7647, %v7862
        %v7947 = vadd.f32 %v7652, %v7862
        %v7948 = vadd.f32 %v7655, %v7862
        %v7949 = vadd.f32 %v7660, %v7862
        %v7950 = vadd.f32 %v7663, %v7862
        %v7951 = vadd.f32 %v7668, %v7862
        %v7952 = vadd.f32 %v7671, %v7862
        %v7953 = vadd.f32 %v7676, %v7862
        %v7954 = vadd.f32 %v7679, %v7862
        %v7955 = vadd.f32 %v7684, %v7862
        %v7956 = vadd.f32 %v7687, %v7862
        %v7957 = vadd.f32 %v7692, %v7862
        %v7958 = vadd.f32 %v7695, %v7862
        %v7959 = vadd.f32 %v7733, %v7862
        %v7960 = vadd.f32 %v7736, %v7862
        %v7961 = vadd.f32 %v7741, %v7862
        %v7962 = vadd.f32 %v7744, %v7862
        %v7963 = vadd.f32 %v7749, %v7862
        %v7964 = vadd.f32 %v7752, %v7862
        %v7965 = vadd.f32 %v7757, %v7862
        %v7966 = vadd.f32 %v7760, %v7862
        %v7967 = vadd.f32 %v7765, %v7862
        %v7968 = vadd.f32 %v7768, %v7862
        %v7969 = vadd.f32 %v7773, %v7862
        %v7970 = vadd.f32 %v7776, %v7862
        %v7971 = vadd.f32 %v7781, %v7862
        %v7972 = vadd.f32 %v7784, %v7862
        %v7973 = vadd.f32 %v7789, %v7862
        %v7974 = vadd.f32 %v7792, %v7862
        %v7975 = vadd.f32 %v7797, %v7862
        %v7976 = vadd.f32 %v7800, %v7862
        %v7977 = vadd.f32 %v7805, %v7862
        %v7978 = vadd.f32 %v7808, %v7862
        %v7979 = vadd.f32 %v7813, %v7862
        %v7980 = vadd.f32 %v7816, %v7862
        %v7981 = vadd.f32 %v7821, %v7862
        %v7982 = vadd.f32 %v7824, %v7862
        %v7983 = vadd.f32 %v7829, %v7862
        %v7984 = vadd.f32 %v7832, %v7862
        %v7985 = vadd.f32 %v7837, %v7862
        %v7986 = vadd.f32 %v7840, %v7862
        %v7987 = vadd.f32 %v7845, %v7862
        %v7988 = vadd.f32 %v7848, %v7862
        %v7989 = vadd.f32 %v7853, %v7862
        %v7990 = vadd.f32 %v7856, %v7862
        %v7991 = vmax.f32 %v7863, 0.0
        %v7992 = vmax.f32 %v7864, 0.0
        %v7993 = vmax.f32 %v7865, 0.0
        %v7994 = vmax.f32 %v7866, 0.0
        %v7995 = vmax.f32 %v7867, 0.0
        %v7996 = vmax.f32 %v7868, 0.0
        %v7997 = vmax.f32 %v7869, 0.0
        %v7998 = vmax.f32 %v7870, 0.0
        %v7999 = vmax.f32 %v7871, 0.0
        %v8000 = vmax.f32 %v7872, 0.0
        %v8001 = vmax.f32 %v7873, 0.0
        %v8002 = vmax.f32 %v7874, 0.0
        %v8003 = vmax.f32 %v7875, 0.0
        %v8004 = vmax.f32 %v7876, 0.0
        %v8005 = vmax.f32 %v7877, 0.0
        %v8006 = vmax.f32 %v7878, 0.0
        %v8007 = vmax.f32 %v7879, 0.0
        %v8008 = vmax.f32 %v7880, 0.0
        %v8009 = vmax.f32 %v7881, 0.0
        %v8010 = vmax.f32 %v7882, 0.0
        %v8011 = vmax.f32 %v7883, 0.0
        %v8012 = vmax.f32 %v7884, 0.0
        %v8013 = vmax.f32 %v7885, 0.0
        %v8014 = vmax.f32 %v7886, 0.0
        %v8015 = vmax.f32 %v7887, 0.0
        %v8016 = vmax.f32 %v7888, 0.0
        %v8017 = vmax.f32 %v7889, 0.0
        %v8018 = vmax.f32 %v7890, 0.0
        %v8019 = vmax.f32 %v7891, 0.0
        %v8020 = vmax.f32 %v7892, 0.0
        %v8021 = vmax.f32 %v7893, 0.0
        %v8022 = vmax.f32 %v7894, 0.0
        %v8023 = vmax.f32 %v7895, 0.0
        %v8024 = vmax.f32 %v7896, 0.0
        %v8025 = vmax.f32 %v7897, 0.0
        %v8026 = vmax.f32 %v7898, 0.0
        %v8027 = vmax.f32 %v7899, 0.0
        %v8028 = vmax.f32 %v7900, 0.0
        %v8029 = vmax.f32 %v7901, 0.0
        %v8030 = vmax.f32 %v7902, 0.0
        %v8031 = vmax.f32 %v7903, 0.0
        %v8032 = vmax.f32 %v7904, 0.0
        %v8033 = vmax.f32 %v7905, 0.0
        %v8034 = vmax.f32 %v7906, 0.0
        %v8035 = vmax.f32 %v7907, 0.0
        %v8036 = vmax.f32 %v7908, 0.0
        %v8037 = vmax.f32 %v7909, 0.0
        %v8038 = vmax.f32 %v7910, 0.0
        %v8039 = vmax.f32 %v7911, 0.0
        %v8040 = vmax.f32 %v7912, 0.0
        %v8041 = vmax.f32 %v7913, 0.0
        %v8042 = vmax.f32 %v7914, 0.0
        %v8043 = vmax.f32 %v7915, 0.0
        %v8044 = vmax.f32 %v7916, 0.0
        %v8045 = vmax.f32 %v7917, 0.0
        %v8046 = vmax.f32 %v7918, 0.0
        %v8047 = vmax.f32 %v7919, 0.0
        %v8048 = vmax.f32 %v7920, 0.0
        %v8049 = vmax.f32 %v7921, 0.0
        %v8050 = vmax.f32 %v7922, 0.0
        %v8051 = vmax.f32 %v7923, 0.0
        %v8052 = vmax.f32 %v7924, 0.0
        %v8053 = vmax.f32 %v7925, 0.0
        %v8054 = vmax.f32 %v7926, 0.0
        %v8055 = vmax.f32 %v7927, 0.0
        %v8056 = vmax.f32 %v7928, 0.0
        %v8057 = vmax.f32 %v7929, 0.0
        %v8058 = vmax.f32 %v7930, 0.0
        %v8059 = vmax.f32 %v7931, 0.0
        %v8060 = vmax.f32 %v7932, 0.0
        %v8061 = vmax.f32 %v7933, 0.0
        %v8062 = vmax.f32 %v7934, 0.0
        %v8063 = vmax.f32 %v7935, 0.0
        %v8064 = vmax.f32 %v7936, 0.0
        %v8065 = vmax.f32 %v7937, 0.0
        %v8066 = vmax.f32 %v7938, 0.0
        %v8067 = vmax.f32 %v7939, 0.0
        %v8068 = vmax.f32 %v7940, 0.0
        %v8069 = vmax.f32 %v7941, 0.0
        %v8070 = vmax.f32 %v7942, 0.0
        %v8071 = vmax.f32 %v7943, 0.0
        %v8072 = vmax.f32 %v7944, 0.0
        %v8073 = vmax.f32 %v7945, 0.0
        %v8074 = vmax.f32 %v7946, 0.0
        %v8075 = vmax.f32 %v7947, 0.0
        %v8076 = vmax.f32 %v7948, 0.0
        %v8077 = vmax.f32 %v7949, 0.0
        %v8078 = vmax.f32 %v7950, 0.0
        %v8079 = vmax.f32 %v7951, 0.0
        %v8080 = vmax.f32 %v7952, 0.0
        %v8081 = vmax.f32 %v7953, 0.0
        %v8082 = vmax.f32 %v7954, 0.0
        %v8083 = vmax.f32 %v7955, 0.0
        %v8084 = vmax.f32 %v7956, 0.0
        %v8085 = vmax.f32 %v7957, 0.0
        %v8086 = vmax.f32 %v7958, 0.0
        %v8087 = vmax.f32 %v7959, 0.0
        %v8088 = vmax.f32 %v7960, 0.0
        %v8089 = vmax.f32 %v7961, 0.0
        %v8090 = vmax.f32 %v7962, 0.0
        %v8091 = vmax.f32 %v7963, 0.0
        %v8092 = vmax.f32 %v7964, 0.0
        %v8093 = vmax.f32 %v7965, 0.0
        %v8094 = vmax.f32 %v7966, 0.0
        %v8095 = vmax.f32 %v7967, 0.0
        %v8096 = vmax.f32 %v7968, 0.0
        %v8097 = vmax.f32 %v7969, 0.0
        %v8098 = vmax.f32 %v7970, 0.0
        %v8099 = vmax.f32 %v7971, 0.0
        %v8100 = vmax.f32 %v7972, 0.0
        %v8101 = vmax.f32 %v7973, 0.0
        %v8102 = vmax.f32 %v7974, 0.0
        %v8103 = vmax.f32 %v7975, 0.0
        %v8104 = vmax.f32 %v7976, 0.0
        %v8105 = vmax.f32 %v7977, 0.0
        %v8106 = vmax.f32 %v7978, 0.0
        %v8107 = vmax.f32 %v7979, 0.0
        %v8108 = vmax.f32 %v7980, 0.0
        %v8109 = vmax.f32 %v7981, 0.0
        %v8110 = vmax.f32 %v7982, 0.0
        %v8111 = vmax.f32 %v7983, 0.0
        %v8112 = vmax.f32 %v7984, 0.0
        %v8113 = vmax.f32 %v7985, 0.0
        %v8114 = vmax.f32 %v7986, 0.0
        %v8115 = vmax.f32 %v7987, 0.0
        %v8116 = vmax.f32 %v7988, 0.0
        %v8117 = vmax.f32 %v7989, 0.0
        %v8118 = vmax.f32 %v7990, 0.0
        %v8119 = vld [vmem:[#allocation6] sm:$0xff]
        %v8120 = vld [vmem:[#allocation6 + $0x8] sm:$0xff]
        %v8121 = vld [vmem:[#allocation6 + $0x10] sm:$0xff]
        %v8122 = vld [vmem:[#allocation6 + $0x18] sm:$0xff]
        %v8123 = vld [vmem:[#allocation6 + $0x20] sm:$0xff]
        %v8124 = vld [vmem:[#allocation6 + $0x28] sm:$0xff]
        %v8125 = vld [vmem:[#allocation6 + $0x30] sm:$0xff]
        %v8126 = vld [vmem:[#allocation6 + $0x38] sm:$0xff]
        %v8127 = vld [vmem:[#allocation6 + $0x40] sm:$0xff]
        %v8128 = vld [vmem:[#allocation6 + $0x48] sm:$0xff]
        %v8129 = vld [vmem:[#allocation6 + $0x50] sm:$0xff]
        %v8130 = vld [vmem:[#allocation6 + $0x58] sm:$0xff]
        %v8131 = vld [vmem:[#allocation6 + $0x60] sm:$0xff]
        %v8132 = vld [vmem:[#allocation6 + $0x68] sm:$0xff]
        %v8133 = vld [vmem:[#allocation6 + $0x70] sm:$0xff]
        %v8134 = vld [vmem:[#allocation6 + $0x78] sm:$0xff]
        %v8135 = vpack.c.bf16 %v7992, %v7991
        %v8136 = vpack.c.bf16 %v7994, %v7993
        %v8137 = vpack.c.bf16 %v7996, %v7995
        %v8138 = vpack.c.bf16 %v7998, %v7997
        %v8139 = vpack.c.bf16 %v8000, %v7999
        %v8140 = vpack.c.bf16 %v8002, %v8001
        %v8141 = vpack.c.bf16 %v8004, %v8003
        %v8142 = vpack.c.bf16 %v8006, %v8005
        %v8143 = vpack.c.bf16 %v8008, %v8007
        %v8144 = vpack.c.bf16 %v8010, %v8009
        %v8145 = vpack.c.bf16 %v8012, %v8011
        %v8146 = vpack.c.bf16 %v8014, %v8013
        %v8147 = vpack.c.bf16 %v8016, %v8015
        %v8148 = vpack.c.bf16 %v8018, %v8017
        %v8149 = vpack.c.bf16 %v8020, %v8019
        %v8150 = vpack.c.bf16 %v8022, %v8021
        %v8151 = vpack.c.bf16 %v8024, %v8023
        %v8152 = vpack.c.bf16 %v8026, %v8025
        %v8153 = vpack.c.bf16 %v8028, %v8027
        %v8154 = vpack.c.bf16 %v8030, %v8029
        %v8155 = vpack.c.bf16 %v8032, %v8031
        %v8156 = vpack.c.bf16 %v8034, %v8033
        %v8157 = vpack.c.bf16 %v8036, %v8035
        %v8158 = vpack.c.bf16 %v8038, %v8037
        %v8159 = vpack.c.bf16 %v8040, %v8039
        %v8160 = vpack.c.bf16 %v8042, %v8041
        %v8161 = vpack.c.bf16 %v8044, %v8043
        %v8162 = vpack.c.bf16 %v8046, %v8045
        %v8163 = vpack.c.bf16 %v8048, %v8047
        %v8164 = vpack.c.bf16 %v8050, %v8049
        %v8165 = vpack.c.bf16 %v8052, %v8051
        %v8166 = vpack.c.bf16 %v8054, %v8053
        %v8167 = vpack.c.bf16 %v8056, %v8055
        %v8168 = vpack.c.bf16 %v8058, %v8057
        %v8169 = vpack.c.bf16 %v8060, %v8059
        %v8170 = vpack.c.bf16 %v8062, %v8061
        %v8171 = vpack.c.bf16 %v8064, %v8063
        %v8172 = vpack.c.bf16 %v8066, %v8065
        %v8173 = vpack.c.bf16 %v8068, %v8067
        %v8174 = vpack.c.bf16 %v8070, %v8069
        %v8175 = vpack.c.bf16 %v8072, %v8071
        %v8176 = vpack.c.bf16 %v8074, %v8073
        %v8177 = vpack.c.bf16 %v8076, %v8075
        %v8178 = vpack.c.bf16 %v8078, %v8077
        %v8179 = vpack.c.bf16 %v8080, %v8079
        %v8180 = vpack.c.bf16 %v8082, %v8081
        %v8181 = vpack.c.bf16 %v8084, %v8083
        %v8182 = vpack.c.bf16 %v8086, %v8085
        %v8183 = vpack.c.bf16 %v8088, %v8087
        %v8184 = vpack.c.bf16 %v8090, %v8089
        %v8185 = vpack.c.bf16 %v8092, %v8091
        %v8186 = vpack.c.bf16 %v8094, %v8093
        %v8187 = vpack.c.bf16 %v8096, %v8095
        %v8188 = vpack.c.bf16 %v8098, %v8097
        %v8189 = vpack.c.bf16 %v8100, %v8099
        %v8190 = vpack.c.bf16 %v8102, %v8101
        %v8191 = vpack.c.bf16 %v8104, %v8103
        %v8192 = vpack.c.bf16 %v8106, %v8105
        %v8193 = vpack.c.bf16 %v8108, %v8107
        %v8194 = vpack.c.bf16 %v8110, %v8109
        %v8195 = vpack.c.bf16 %v8112, %v8111
        %v8196 = vpack.c.bf16 %v8114, %v8113
        %v8197 = vpack.c.bf16 %v8116, %v8115
        %v8198 = vpack.c.bf16 %v8118, %v8117
        %v8215 = vunpack.c.l.b16 %v8119
        %v8216 = vunpack.c.h.b16 %v8119
        %v8217 = vunpack.c.l.b16 %v8120
        %v8218 = vunpack.c.h.b16 %v8120
        %v8219 = vunpack.c.l.b16 %v8121
        %v8220 = vunpack.c.h.b16 %v8121
        %v8221 = vunpack.c.l.b16 %v8122
        %v8222 = vunpack.c.h.b16 %v8122
        %v8223 = vunpack.c.l.b16 %v8123
        %v8224 = vunpack.c.h.b16 %v8123
        %v8225 = vunpack.c.l.b16 %v8124
        %v8226 = vunpack.c.h.b16 %v8124
        %v8227 = vunpack.c.l.b16 %v8125
        %v8228 = vunpack.c.h.b16 %v8125
        %v8229 = vunpack.c.l.b16 %v8126
        %v8230 = vunpack.c.h.b16 %v8126
        %v8231 = vunpack.c.l.b16 %v8127
        %v8232 = vunpack.c.h.b16 %v8127
        %v8233 = vunpack.c.l.b16 %v8128
        %v8234 = vunpack.c.h.b16 %v8128
        %v8235 = vunpack.c.l.b16 %v8129
        %v8236 = vunpack.c.h.b16 %v8129
        %v8237 = vunpack.c.l.b16 %v8130
        %v8238 = vunpack.c.h.b16 %v8130
        %v8239 = vunpack.c.l.b16 %v8131
        %v8240 = vunpack.c.h.b16 %v8131
        %v8241 = vunpack.c.l.b16 %v8132
        %v8242 = vunpack.c.h.b16 %v8132
        %v8243 = vunpack.c.l.b16 %v8133
        %v8244 = vunpack.c.h.b16 %v8133
        %v8245 = vunpack.c.l.b16 %v8134
        %v8246 = vunpack.c.h.b16 %v8134
        %v8247 = vpack.c.b16 %v8223, %v8215
        %v8248 = vpack.c.b16 %v8224, %v8216
        %v8249 = vpack.c.b16 %v8225, %v8217
        %v8250 = vpack.c.b16 %v8226, %v8218
        %v8251 = vpack.c.b16 %v8227, %v8219
        %v8252 = vpack.c.b16 %v8228, %v8220
        %v8253 = vpack.c.b16 %v8229, %v8221
        %v8254 = vpack.c.b16 %v8230, %v8222
        %v8255 = vpack.c.b16 %v8239, %v8231
        %v8256 = vpack.c.b16 %v8240, %v8232
        %v8257 = vpack.c.b16 %v8241, %v8233
        %v8258 = vpack.c.b16 %v8242, %v8234
        %v8259 = vpack.c.b16 %v8243, %v8235
        %v8260 = vpack.c.b16 %v8244, %v8236
        %v8261 = vpack.c.b16 %v8245, %v8237
        %v8262 = vpack.c.b16 %v8246, %v8238
        %8279 = vmatprep.subr.bf16.mxu0 0
        %8280 = vmatpush1.bf16.msra.mxu0 %v8142
        %8281 = vmatprep.subr.bf16.mxu0 0
        %8282 = vmatpush1.bf16.msra.mxu0 %v8141
        %8283 = vmatprep.subr.bf16.mxu0 0
        %8284 = vmatpush1.bf16.msra.mxu0 %v8140
        %8285 = vmatprep.subr.bf16.mxu0 0
        %8286 = vmatpush1.bf16.msra.mxu0 %v8139
        %8287 = vmatprep.subr.bf16.mxu0 0
        %8288 = vmatpush1.bf16.msra.mxu0 %v8138
        %8289 = vmatprep.subr.bf16.mxu0 0
        %8290 = vmatpush1.bf16.msra.mxu0 %v8137
        %8291 = vmatprep.subr.bf16.mxu0 0
        %8292 = vmatpush1.bf16.msra.mxu0 %v8136
        %8293 = vmatprep.subr.bf16.mxu0 0
        %8294 = vmatpush1.bf16.msra.mxu0 %v8135
        %8295 = vmatprep.subr.bf16.mxu0 0
        %8296 = vmatpush2.bf16.msra.mxu0 %v8150
        %8297 = vmatprep.subr.bf16.mxu0 0
        %8298 = vmatpush2.bf16.msra.mxu0 %v8149
        %8299 = vmatprep.subr.bf16.mxu0 0
        %8300 = vmatpush2.bf16.msra.mxu0 %v8148
        %8301 = vmatprep.subr.bf16.mxu0 0
        %8302 = vmatpush2.bf16.msra.mxu0 %v8147
        %8303 = vmatprep.subr.bf16.mxu0 0
        %8304 = vmatpush2.bf16.msra.mxu0 %v8146
        %8305 = vmatprep.subr.bf16.mxu0 0
        %8306 = vmatpush2.bf16.msra.mxu0 %v8145
        %8307 = vmatprep.subr.bf16.mxu0 0
        %8308 = vmatpush2.bf16.msra.mxu0 %v8144
        %8309 = vmatprep.subr.bf16.mxu0 0
        %8310 = vmatpush2.bf16.msra.mxu0 %v8143
        %8311 = vmatprep.mubr.bf16.mxu0 %v8248
        %8312 = vmatmul.mubr.bf16.gmra.mxu0 %v8247
        %v8313 = vpop.f32.mrf.mxu0
        %v8314 = vadd.f32 0.0, %v8313
        %v8315 = vpop.f32.mrf.mxu0
        %v8316 = vpop.f32.mrf.mxu0
        %v8317 = vadd.f32 0.0, %v8316
        %v8318 = vpop.f32.mrf.mxu0
        %8319 = vmatprep.mubr.bf16.mxu0 %v8256
        %8320 = vmatmul.mubr.bf16.gmra.mxu0 %v8255
        %v8321 = vpop.f32.mrf.mxu0
        %v8322 = vadd.f32 0.0, %v8321
        %v8323 = vpop.f32.mrf.mxu0
        %v8324 = vpop.f32.mrf.mxu0
        %v8325 = vadd.f32 0.0, %v8324
        %v8326 = vpop.f32.mrf.mxu0
        %8327 = vdwg.mxu0
        %8328 = vmatprep.subr.bf16.mxu0 0
        %8329 = vmatpush1.bf16.msra.mxu0 %v8158
        %8330 = vmatprep.subr.bf16.mxu0 0
        %8331 = vmatpush1.bf16.msra.mxu0 %v8157
        %8332 = vmatprep.subr.bf16.mxu0 0
        %8333 = vmatpush1.bf16.msra.mxu0 %v8156
        %8334 = vmatprep.subr.bf16.mxu0 0
        %8335 = vmatpush1.bf16.msra.mxu0 %v8155
        %8336 = vmatprep.subr.bf16.mxu0 0
        %8337 = vmatpush1.bf16.msra.mxu0 %v8154
        %8338 = vmatprep.subr.bf16.mxu0 0
        %8339 = vmatpush1.bf16.msra.mxu0 %v8153
        %8340 = vmatprep.subr.bf16.mxu0 0
        %8341 = vmatpush1.bf16.msra.mxu0 %v8152
        %8342 = vmatprep.subr.bf16.mxu0 0
        %8343 = vmatpush1.bf16.msra.mxu0 %v8151
        %8344 = vmatprep.subr.bf16.mxu0 0
        %8345 = vmatpush2.bf16.msra.mxu0 %v8166
        %8346 = vmatprep.subr.bf16.mxu0 0
        %8347 = vmatpush2.bf16.msra.mxu0 %v8165
        %8348 = vmatprep.subr.bf16.mxu0 0
        %8349 = vmatpush2.bf16.msra.mxu0 %v8164
        %8350 = vmatprep.subr.bf16.mxu0 0
        %8351 = vmatpush2.bf16.msra.mxu0 %v8163
        %8352 = vmatprep.subr.bf16.mxu0 0
        %8353 = vmatpush2.bf16.msra.mxu0 %v8162
        %8354 = vmatprep.subr.bf16.mxu0 0
        %8355 = vmatpush2.bf16.msra.mxu0 %v8161
        %8356 = vmatprep.subr.bf16.mxu0 0
        %8357 = vmatpush2.bf16.msra.mxu0 %v8160
        %8358 = vmatprep.subr.bf16.mxu0 0
        %8359 = vmatpush2.bf16.msra.mxu0 %v8159
        %8360 = vmatprep.mubr.bf16.mxu0 %v8250
        %8361 = vmatmul.mubr.bf16.gmra.mxu0 %v8249
        %v8362 = vpop.f32.mrf.mxu0
        %v8363 = vadd.f32 %v8314, %v8362
        %v8364 = vpop.f32.mrf.mxu0
        %v8365 = vpop.f32.mrf.mxu0
        %v8366 = vadd.f32 %v8317, %v8365
        %v8367 = vpop.f32.mrf.mxu0
        %8368 = vmatprep.mubr.bf16.mxu0 %v8258
        %8369 = vmatmul.mubr.bf16.gmra.mxu0 %v8257
        %v8370 = vpop.f32.mrf.mxu0
        %v8371 = vadd.f32 %v8322, %v8370
        %v8372 = vpop.f32.mrf.mxu0
        %v8373 = vpop.f32.mrf.mxu0
        %v8374 = vadd.f32 %v8325, %v8373
        %v8375 = vpop.f32.mrf.mxu0
        %8376 = vdwg.mxu0
        %8377 = vmatprep.subr.bf16.mxu0 0
        %8378 = vmatpush1.bf16.msra.mxu0 %v8174
        %8379 = vmatprep.subr.bf16.mxu0 0
        %8380 = vmatpush1.bf16.msra.mxu0 %v8173
        %8381 = vmatprep.subr.bf16.mxu0 0
        %8382 = vmatpush1.bf16.msra.mxu0 %v8172
        %8383 = vmatprep.subr.bf16.mxu0 0
        %8384 = vmatpush1.bf16.msra.mxu0 %v8171
        %8385 = vmatprep.subr.bf16.mxu0 0
        %8386 = vmatpush1.bf16.msra.mxu0 %v8170
        %8387 = vmatprep.subr.bf16.mxu0 0
        %8388 = vmatpush1.bf16.msra.mxu0 %v8169
        %8389 = vmatprep.subr.bf16.mxu0 0
        %8390 = vmatpush1.bf16.msra.mxu0 %v8168
        %8391 = vmatprep.subr.bf16.mxu0 0
        %8392 = vmatpush1.bf16.msra.mxu0 %v8167
        %8393 = vmatprep.subr.bf16.mxu0 0
        %8394 = vmatpush2.bf16.msra.mxu0 %v8182
        %8395 = vmatprep.subr.bf16.mxu0 0
        %8396 = vmatpush2.bf16.msra.mxu0 %v8181
        %8397 = vmatprep.subr.bf16.mxu0 0
        %8398 = vmatpush2.bf16.msra.mxu0 %v8180
        %8399 = vmatprep.subr.bf16.mxu0 0
        %8400 = vmatpush2.bf16.msra.mxu0 %v8179
        %8401 = vmatprep.subr.bf16.mxu0 0
        %8402 = vmatpush2.bf16.msra.mxu0 %v8178
        %8403 = vmatprep.subr.bf16.mxu0 0
        %8404 = vmatpush2.bf16.msra.mxu0 %v8177
        %8405 = vmatprep.subr.bf16.mxu0 0
        %8406 = vmatpush2.bf16.msra.mxu0 %v8176
        %8407 = vmatprep.subr.bf16.mxu0 0
        %8408 = vmatpush2.bf16.msra.mxu0 %v8175
        %8409 = vmatprep.mubr.bf16.mxu0 %v8252
        %8410 = vmatmul.mubr.bf16.gmra.mxu0 %v8251
        %v8411 = vpop.f32.mrf.mxu0
        %v8412 = vadd.f32 %v8363, %v8411
        %v8413 = vpop.f32.mrf.mxu0
        %v8414 = vpop.f32.mrf.mxu0
        %v8415 = vadd.f32 %v8366, %v8414
        %v8416 = vpop.f32.mrf.mxu0
        %8417 = vmatprep.mubr.bf16.mxu0 %v8260
        %8418 = vmatmul.mubr.bf16.gmra.mxu0 %v8259
        %v8419 = vpop.f32.mrf.mxu0
        %v8420 = vadd.f32 %v8371, %v8419
        %v8421 = vpop.f32.mrf.mxu0
        %v8422 = vpop.f32.mrf.mxu0
        %v8423 = vadd.f32 %v8374, %v8422
        %v8424 = vpop.f32.mrf.mxu0
        %8425 = vdwg.mxu0
        %8426 = vmatprep.subr.bf16.mxu0 0
        %8427 = vmatpush1.bf16.msra.mxu0 %v8190
        %8428 = vmatprep.subr.bf16.mxu0 0
        %8429 = vmatpush1.bf16.msra.mxu0 %v8189
        %8430 = vmatprep.subr.bf16.mxu0 0
        %8431 = vmatpush1.bf16.msra.mxu0 %v8188
        %8432 = vmatprep.subr.bf16.mxu0 0
        %8433 = vmatpush1.bf16.msra.mxu0 %v8187
        %8434 = vmatprep.subr.bf16.mxu0 0
        %8435 = vmatpush1.bf16.msra.mxu0 %v8186
        %8436 = vmatprep.subr.bf16.mxu0 0
        %8437 = vmatpush1.bf16.msra.mxu0 %v8185
        %8438 = vmatprep.subr.bf16.mxu0 0
        %8439 = vmatpush1.bf16.msra.mxu0 %v8184
        %8440 = vmatprep.subr.bf16.mxu0 0
        %8441 = vmatpush1.bf16.msra.mxu0 %v8183
        %8442 = vmatprep.subr.bf16.mxu0 0
        %8443 = vmatpush2.bf16.msra.mxu0 %v8198
        %8444 = vmatprep.subr.bf16.mxu0 0
        %8445 = vmatpush2.bf16.msra.mxu0 %v8197
        %8446 = vmatprep.subr.bf16.mxu0 0
        %8447 = vmatpush2.bf16.msra.mxu0 %v8196
        %8448 = vmatprep.subr.bf16.mxu0 0
        %8449 = vmatpush2.bf16.msra.mxu0 %v8195
        %8450 = vmatprep.subr.bf16.mxu0 0
        %8451 = vmatpush2.bf16.msra.mxu0 %v8194
        %8452 = vmatprep.subr.bf16.mxu0 0
        %8453 = vmatpush2.bf16.msra.mxu0 %v8193
        %8454 = vmatprep.subr.bf16.mxu0 0
        %8455 = vmatpush2.bf16.msra.mxu0 %v8192
        %8456 = vmatprep.subr.bf16.mxu0 0
        %8457 = vmatpush2.bf16.msra.mxu0 %v8191
        %8458 = vmatprep.mubr.bf16.mxu0 %v8254
        %8459 = vmatmul.mubr.bf16.gmra.mxu0 %v8253
        %v8460 = vpop.f32.mrf.mxu0
        %v8461 = vadd.f32 %v8412, %v8460
        %v8462 = vpop.f32.mrf.mxu0
        %v8463 = vpop.f32.mrf.mxu0
        %v8464 = vadd.f32 %v8415, %v8463
        %v8465 = vpop.f32.mrf.mxu0
        %8466 = vmatprep.mubr.bf16.mxu0 %v8262
        %8467 = vmatmul.mubr.bf16.gmra.mxu0 %v8261
        %v8468 = vpop.f32.mrf.mxu0
        %v8469 = vadd.f32 %v8420, %v8468
        %v8470 = vpop.f32.mrf.mxu0
        %v8471 = vpop.f32.mrf.mxu0
        %v8472 = vadd.f32 %v8423, %v8471
        %v8473 = vpop.f32.mrf.mxu0
        %8474 = vdwg.mxu0
        %s8475 = scalar_lea.vmem [#allocation7], 256
        %v8476 = vld [vmem:[%s8475] sm:$0xf]
        %v8477 = vld [vmem:[%s8475 + $0x4] sm:$0xf]
        %v8478 = vld [vmem:[%s8475 + $0x8] sm:$0xf]
        %v8479 = vld [vmem:[%s8475 + $0xc] sm:$0xf]
        %v8480 = vld [vmem:[%s8475 + $0x10] sm:$0xf]
        %v8481 = vld [vmem:[%s8475 + $0x14] sm:$0xf]
        %v8482 = vld [vmem:[%s8475 + $0x18] sm:$0xf]
        %v8483 = vld [vmem:[%s8475 + $0x1c] sm:$0xf]
        %v8484 = vld [vmem:[%s8475 + $0x20] sm:$0xf]
        %v8485 = vld [vmem:[%s8475 + $0x24] sm:$0xf]
        %v8486 = vld [vmem:[%s8475 + $0x28] sm:$0xf]
        %v8487 = vld [vmem:[%s8475 + $0x2c] sm:$0xf]
        %v8488 = vld [vmem:[%s8475 + $0x30] sm:$0xf]
        %v8489 = vld [vmem:[%s8475 + $0x34] sm:$0xf]
        %v8490 = vld [vmem:[%s8475 + $0x38] sm:$0xf]
        %v8491 = vld [vmem:[%s8475 + $0x3c] sm:$0xf]
        %v8492 = vld [vmem:[#allocation9 + $0x4] sm:$0x1]
        %v8493 = vpack.c.bf16 %v8464, %v8461
        %v8494 = vpack.c.bf16 %v8472, %v8469
        %v8495 = vlaneseq
        %v8496 = vshrl.u32 %v8495, 7
        %v8497 = vsub.s32 0, %v8496
        %v8498 = vrot.slane %v8492, %v8497
        %v8515 = vunpack.c.l.b16 %v8476
        %v8516 = vunpack.c.l.b16 %v8477
        %v8517 = vunpack.c.l.b16 %v8478
        %v8518 = vunpack.c.l.b16 %v8479
        %v8519 = vunpack.c.l.b16 %v8480
        %v8520 = vunpack.c.l.b16 %v8481
        %v8521 = vunpack.c.l.b16 %v8482
        %v8522 = vunpack.c.l.b16 %v8483
        %v8523 = vunpack.c.l.b16 %v8484
        %v8524 = vunpack.c.l.b16 %v8485
        %v8525 = vunpack.c.l.b16 %v8486
        %v8526 = vunpack.c.l.b16 %v8487
        %v8527 = vunpack.c.l.b16 %v8488
        %v8528 = vunpack.c.l.b16 %v8489
        %v8529 = vunpack.c.l.b16 %v8490
        %v8530 = vunpack.c.l.b16 %v8491
        %v8531 = vpack.c.b16 %v8516, %v8515
        %v8532 = vpack.c.b16 %v8518, %v8517
        %v8533 = vpack.c.b16 %v8520, %v8519
        %v8534 = vpack.c.b16 %v8522, %v8521
        %v8535 = vpack.c.b16 %v8524, %v8523
        %v8536 = vpack.c.b16 %v8526, %v8525
        %v8537 = vpack.c.b16 %v8528, %v8527
        %v8538 = vpack.c.b16 %v8530, %v8529
        %8547 = vmatprep.subr.bf16.mxu0 0
        %8548 = vmatpush1.bf16.msra.mxu0 %v8538
        %8549 = vmatprep.subr.bf16.mxu0 0
        %8550 = vmatpush1.bf16.msra.mxu0 %v8537
        %8551 = vmatprep.subr.bf16.mxu0 0
        %8552 = vmatpush1.bf16.msra.mxu0 %v8536
        %8553 = vmatprep.subr.bf16.mxu0 0
        %8554 = vmatpush1.bf16.msra.mxu0 %v8535
        %8555 = vmatprep.subr.bf16.mxu0 0
        %8556 = vmatpush1.bf16.msra.mxu0 %v8534
        %8557 = vmatprep.subr.bf16.mxu0 0
        %8558 = vmatpush1.bf16.msra.mxu0 %v8533
        %8559 = vmatprep.subr.bf16.mxu0 0
        %8560 = vmatpush1.bf16.msra.mxu0 %v8532
        %8561 = vmatprep.subr.bf16.mxu0 0
        %8562 = vmatpush1.bf16.msra.mxu0 %v8531
        %8563 = vmatprep.subr.bf16.mxu0 0
        %8564 = vmatpush2.bf16.msra.mxu0 0
        %8565 = vmatprep.subr.bf16.mxu0 0
        %8566 = vmatpush2.bf16.msra.mxu0 0
        %8567 = vmatprep.subr.bf16.mxu0 0
        %8568 = vmatpush2.bf16.msra.mxu0 0
        %8569 = vmatprep.subr.bf16.mxu0 0
        %8570 = vmatpush2.bf16.msra.mxu0 0
        %8571 = vmatprep.subr.bf16.mxu0 0
        %8572 = vmatpush2.bf16.msra.mxu0 0
        %8573 = vmatprep.subr.bf16.mxu0 0
        %8574 = vmatpush2.bf16.msra.mxu0 0
        %8575 = vmatprep.subr.bf16.mxu0 0
        %8576 = vmatpush2.bf16.msra.mxu0 0
        %8577 = vmatprep.subr.bf16.mxu0 0
        %8578 = vmatpush2.bf16.msra.mxu0 0
        %8579 = vmatprep.mubr.bf16.mxu0 0
        %8580 = vmatmul.mubr.bf16.gmra.mxu0 %v8493
        %v8581 = vpop.f32.mrf.mxu0
        %v8582 = vadd.f32 %v8498, %v8581
        %v8583 = vpop.f32.mrf.mxu0
        %v8584 = vpop.f32.mrf.mxu0
        %v8585 = vadd.f32 %v8498, %v8584
        %v8586 = vpop.f32.mrf.mxu0
        %8587 = vmatprep.mubr.bf16.mxu0 0
        %8588 = vmatmul.mubr.bf16.gmra.mxu0 %v8494
        %v8589 = vpop.f32.mrf.mxu0
        %v8590 = vadd.f32 %v8498, %v8589
        %v8591 = vpop.f32.mrf.mxu0
        %v8592 = vpop.f32.mrf.mxu0
        %v8593 = vadd.f32 %v8498, %v8592
        %v8594 = vpop.f32.mrf.mxu0
        %8595 = vdwg.mxu0
        %8596 = vmax.xlane.f32.xlu0 %v8582
        %v8597 = vpop.xlane.xlu0 %8596
        %8598 = vmax.xlane.f32.xlu0 %v8585
        %v8599 = vpop.xlane.xlu0 %8598
        %8600 = vmax.xlane.f32.xlu0 %v8590
        %v8601 = vpop.xlane.xlu0 %8600
        %8602 = vmax.xlane.f32.xlu0 %v8593
        %v8603 = vpop.xlane.xlu0 %8602
        %v8604 = vsub.f32 %v8582, %v8597
        %v8605 = vsub.f32 %v8585, %v8599
        %v8606 = vsub.f32 %v8590, %v8601
        %v8607 = vsub.f32 %v8593, %v8603
        %v8608 = vmul.f32 %v8604, 1.442695
        %v8609 = vpow.pop %v8608
        %v8610 = vmul.f32 %v8605, 1.442695
        %v8611 = vpow.pop %v8610
        %v8612 = vmul.f32 %v8606, 1.442695
        %v8613 = vpow.pop %v8612
        %v8614 = vmul.f32 %v8607, 1.442695
        %v8615 = vpow.pop %v8614
        %8616 = vadd.xlane.f32.xlu0 %v8609
        %v8617 = vpop.xlane.xlu0 %8616
        %8618 = vadd.xlane.f32.xlu0 %v8611
        %v8619 = vpop.xlane.xlu0 %8618
        %8620 = vadd.xlane.f32.xlu0 %v8613
        %v8621 = vpop.xlane.xlu0 %8620
        %8622 = vadd.xlane.f32.xlu0 %v8615
        %v8623 = vpop.xlane.xlu0 %8622
        %v8624 = vlog2.pop %v8617
        %v8625 = vmul.f32 %v8624, 0.6931472
        %v8626 = vlog2.pop %v8619
        %v8627 = vmul.f32 %v8626, 0.6931472
        %v8628 = vlog2.pop %v8621
        %v8629 = vmul.f32 %v8628, 0.6931472
        %v8630 = vlog2.pop %v8623
        %v8631 = vmul.f32 %v8630, 0.6931472
        %v8632 = vsub.f32 %v8604, %v8625
        %v8633 = vsub.f32 %v8605, %v8627
        %v8634 = vsub.f32 %v8606, %v8629
        %v8635 = vsub.f32 %v8607, %v8631
        %8636 = vst [vmem:[%s329] sm:$0xff] %v8632
        %8637 = vst [vmem:[%s329 + $0x8] sm:$0xff] %v8633
        %8638 = vst [vmem:[%s329 + $0x10] sm:$0xff] %v8634
        %8639 = vst [vmem:[%s329 + $0x18] sm:$0xff] %v8635
        %s8640 = smul.u32 4, %s23
        %p8641 = scmp.lt.s32.totalorder %s8640, 7
        %s8642 = scalar_select %p8641, %s8640, 7
        %s8643 = smul.addr %s8642, 8
        %s8644 = scalar_lea.vmem %s5, %s8643
        // Predicated region
        $region61: #{mygnn_forward.1} parent=39 // pred_check
          %p8645 = pneg %p156
        $region62: #{mygnn_forward.1} parent=39 // pred_check_branch
          %8647 = sbr.rel (%p8645) target = $region64
        $region63: #{mygnn_forward.1} parent=39 // pred_region
          %s8648 = smul.u32 4, %s23
        $region64: #{mygnn_forward.1} parent=39 // pred_fallthru
          _
      $region40: #{mygnn_forward.1} parent=5 // pred_fallthru
        _
      %p8649 = scmp.le.s32.totalorder 2, %s18
      // Predicated region
      $region65: #{mygnn_forward.1} parent=5 // pred_check
        %p8650 = pneg %p8649
      $region66: #{mygnn_forward.1} parent=5 // pred_check_branch
        %8652 = sbr.rel (%p8650) target = $region68
      $region67: #{mygnn_forward.1} parent=5 // pred_region
        %s8653 = ssub.s32 %s18, 2
        // Predicated region
        $region69: #{mygnn_forward.1} parent=67 // pred_check
          %p8654 = pneg %p162
        $region70: #{mygnn_forward.1} parent=67 // pred_check_branch
          %8656 = sbr.rel (%p8654) target = $region72
        $region71: #{mygnn_forward.1} parent=67 // pred_region
          %s8657 = smul.u32 4, %s24
          %p8658 = scmp.lt.s32.totalorder %s8657, 7
          %s8659 = scalar_select %p8658, %s8657, 7
          %s8660 = smul.addr %s8659, 8
          %s8661 = scalar_lea.vmem %s5, %s8660
        $region72: #{mygnn_forward.1} parent=67 // pred_fallthru
          _
      $region68: #{mygnn_forward.1} parent=5 // pred_fallthru
        _
    $region6: #{mygnn_forward.1} parent=1 // loop_footer
      %s22 = sadd.s32 1, %s18
    $region7: #{mygnn_forward.1} parent=1 // loop_footer_branch
      %17 = sbr.rel target = $region3
    $region8: #{mygnn_forward.1} parent=1 // loop_exit
      _
    %8662 = vsyncpa [#allocation3], 1
    %s8663 = scalar_lea.sflag [#allocation3], 1
    %8664 = vsyncpa %s8663, 1
    %8665 = vsyncpa [#allocation5], 1
    %s8666 = scalar_lea.sflag [#allocation5], 1
    %8667 = vsyncpa %s8666, 1
    %8668 = vsyncpa [#allocation8], 1

</llo_original>
